<compile_context>
chip_gen: v6e
topology: v6e:2x2x1
jax: 0.10.0
libtpu: 0.0.40
codegen_flags: <defaults>
</compile_context>

<pallas_src>
import functools

import jax
import jax.numpy as jnp
import numpy as np
from jax import lax
from jax.experimental import pallas as pl
from jax.experimental.pallas import tpu as pltpu


def _round_up(a, m):
    return -(-a // m) * m


def _sublane_mult(itemsize):
    # physical sublane packing: f32 -> 8, bf16/f16 -> 16, int8/fp8 -> 32
    return max(8, 32 // int(itemsize))


def _divisors(n):
    return [d for d in range(1, n + 1) if n % d == 0]


def _pixel_unshuffle_kernel(p_ref, x_ref, o_ref, *, r, precision):
    """One grid step.

    p_ref: (W, W)                 one-hot lane permutation,
                                  P[w, rw*W_o + wo] = 1  iff  w == wo*r + rw
    x_ref: (nb, dt, H_o, r*W)     input block (rd squeezed away by the BlockSpec;
                                  lane index l = rh*W + wo*r + rw)
    o_ref: (nb, r^2, dt, H_o, W_o)        output block (unmerged), or
           (nb, r^2, dt*H_o, W_o)         output block (merged, H_o < 8 case)
    """
    nb, dt, H_o, L = x_ref.shape
    W = L // r
    W_o = o_ref.shape[-1]
    merged = len(o_ref.shape) == 4
    rows = nb * dt * H_o

    for rh in range(r):                      # static unroll: r loads, r^2 dots/stores
        # Contiguous static lane slice of the ref (vreg-aligned when W % 128 == 0).
        lhs = x_ref[:, :, :, rh * W:(rh + 1) * W]          # (nb, dt, H_o, W)
        lhs = lhs.reshape(rows, W)                         # leading-dim merge
        if lhs.dtype != p_ref.dtype:
            lhs = lhs.astype(p_ref.dtype)
        for rw in range(r):
            k = rh * r + rw
            pw = p_ref[:, rw * W_o:(rw + 1) * W_o]         # (W, W_o) one-hot block
            slab = jnp.dot(lhs, pw,
                           preferred_element_type=jnp.float32,
                           precision=precision)            # (rows, W_o)
            slab = slab.astype(o_ref.dtype)                # fused cast -> store
            if merged:
                o_ref[:, k:k + 1, :, :] = slab.reshape(nb, 1, dt * H_o, W_o)
            else:
                o_ref[:, k:k + 1, :, :, :] = slab.reshape(nb, 1, dt, H_o, W_o)


def _pick_tiles(N, D_f, r, H_o, W, W_o, x_itemsize, p_itemsize, budget, merge_dh):
    """Pick (nb over N, dt over D_f) whose fully-accounted VMEM block fits `budget`.

    Accounts for: double-buffered input + output blocks, the (double-buffered,
    constant) permutation matrix, and f32 in-kernel temporaries, with
    dtype-correct (sublane, 128) tile padding.  Prefers an even, >= 2 program
    grid (megacore / 2-TC sharding) before maximizing block size.
    Returns None when merge_dh is requested but no aligned tile fits.
    """
    L = r * W
    sub_x = _sublane_mult(x_itemsize)
    sub_p = _sublane_mult(p_itemsize)
    perm_bytes = _round_up(W, sub_p) * _round_up(W, 128) * p_itemsize

    def block_bytes(nb, dt):
        rows = nb * dt * H_o
        in_b = nb * dt * _round_up(H_o, sub_x) * _round_up(L, 128) * x_itemsize
        if merge_dh:
            out_b = nb * r * r * _round_up(dt * H_o, sub_x) \
                * _round_up(W_o, 128) * x_itemsize
        else:
            out_b = nb * r * r * dt * _round_up(H_o, sub_x) \
                * _round_up(W_o, 128) * x_itemsize
        # lhs value + two f32 slabs worth of in-kernel temporaries (upper bound)
        tmp = _round_up(rows, 8) * (_round_up(W, 128) + 2 * _round_up(W_o, 128)) * 4
        return 2 * (in_b + out_b) + 2 * perm_bytes + tmp

    if merge_dh:
        # merged sublane dim must be 8-aligned or cover the full dim
        dts = [d for d in _divisors(D_f) if (d * H_o) % 8 == 0 or d == D_f]
    else:
        dts = _divisors(D_f)
    nbs = _divisors(N)

    cands = [(nb, dt) for dt in dts for nb in nbs if block_bytes(nb, dt) <= budget]
    if not cands:
        if merge_dh:
            return None
        return 1, 1

    def score(c):
        nb, dt = c
        progs = (N // nb) * (D_f // dt) * r
        # (at least 2 programs, even program count, then biggest block)
        return (progs >= 2, progs % 2 == 0, nb * dt)

    return max(cands, key=score)


def pixel_unshuffle_pallas(x, upscale_factor):
    r = int(upscale_factor)
    B, C, D, H, W = x.shape
    if r == 1:
        return x
    assert D % r == 0 and H % r == 0 and W % r == 0
    D_f, H_o, W_o = D // r, H // r, W // r
    N, L = B * C, r * W

    # Dtype / precision of the one-hot permutation matmul.
    if x.dtype == jnp.bfloat16:
        p_dtype, precision = jnp.bfloat16, lax.Precision.DEFAULT   # exact natively
    elif x.dtype == jnp.float32:
        p_dtype, precision = jnp.float32, lax.Precision.HIGHEST    # exact (3x bf16 split)
    else:
        # TODO(synk): non-f32/bf16 dtypes take an f32 MXU round trip; exact only
        # for values representable in f32 (e.g. |int| < 2**24).
        p_dtype, precision = jnp.float32, lax.Precision.HIGHEST

    # One-hot lane permutation: column q = rw*W_o + wo reads lane w = wo*r + rw.
    col = jnp.arange(W, dtype=jnp.int32)
    src = (col % W_o) * r + (col // W_o)
    perm = (jnp.arange(W, dtype=jnp.int32)[:, None] == src[None, :]).astype(p_dtype)

    # VMEM budget from the hardware (falls back to the smallest-VMEM chip, v7x).
    try:
        vmem_cap = int(pltpu.get_tpu_info().vmem_capacity_bytes)
    except Exception:
        vmem_cap = 64 * 1024 * 1024
    vmem_limit = max(32 * 1024 * 1024, min(vmem_cap // 2, 64 * 1024 * 1024))
    budget = (3 * vmem_limit) // 4

    p_itemsize = jnp.dtype(p_dtype).itemsize
    merge_dh = (H_o % 8 != 0)        # sublane-dense stores when H_o is small
    picked = _pick_tiles(N, D_f, r, H_o, W, W_o, x.dtype.itemsize, p_itemsize,
                         budget, merge_dh)
    if picked is None:               # no aligned merged tile fits -> plain layout
        merge_dh = False
        picked = _pick_tiles(N, D_f, r, H_o, W, W_o, x.dtype.itemsize, p_itemsize,
                             budget, merge_dh)
    nb, dt = picked

    # Free view: (B, C, D, H, W) -> (N, D_f, r, H_o, r*W); d = df*r + rd and the
    # (rh, w) pair is merged into the lane dimension (l = rh*W + w).
    x_in = x.reshape(N, D_f, r, H_o, L)

    grid = (N // nb, D_f // dt, r)
    kernel = functools.partial(_pixel_unshuffle_kernel, r=r, precision=precision)

    in_specs = [
        # Constant permutation matrix (fetched once; its VMEM double-buffer is
        # accounted for in _pick_tiles instead of using pl.Buffered(1)).
        pl.BlockSpec((W, W), lambda i, j, rd: (0, 0)),
        pl.BlockSpec((nb, dt, None, H_o, L), lambda i, j, rd: (i, j, rd, 0, 0)),
    ]
    if merge_dh:
        out_shape = jax.ShapeDtypeStruct((N, r ** 3, D_f * H_o, W_o), x.dtype)
        out_specs = pl.BlockSpec((nb, r * r, dt * H_o, W_o),
                                 lambda i, j, rd: (i, rd, j, 0))
    else:
        out_shape = jax.ShapeDtypeStruct((N, r ** 3, D_f, H_o, W_o), x.dtype)
        out_specs = pl.BlockSpec((nb, r * r, dt, H_o, W_o),
                                 lambda i, j, rd: (i, rd, j, 0, 0))

    out = pl.pallas_call(
        kernel,
        out_shape=out_shape,
        grid=grid,
        in_specs=in_specs,
        out_specs=out_specs,
        compiler_params=pltpu.CompilerParams(
            dimension_semantics=("parallel", "parallel", "parallel"),
            vmem_limit_bytes=vmem_limit,
        ),
    )(perm, x_in)

    # Free reshape to the PyTorch layout: channel = c*r^3 + rd*r^2 + rh*r + rw.
    return out.reshape(B, C * r ** 3, D_f, H_o, W_o)


def pixel_unshuffle_ref(x, r):
    """Pure-JAX reference mirroring the PyTorch view/permute/view."""
    B, C, D, H, W = x.shape
    xv = x.reshape(B, C, D // r, r, H // r, r, W // r, r)
    xv = jnp.transpose(xv, (0, 1, 3, 5, 7, 2, 4, 6))
    return xv.reshape(B, C * r ** 3, D // r, H // r, W // r)


if __name__ == "__main__":
    upscale_factor = 2
    B, C, D, H, W = 2, 4, 8, 16, 16   # small NCDHW input, divisible by r

    key = jax.random.PRNGKey(0)
    x = jax.random.normal(key, (B, C, D, H, W), dtype=jnp.float32)
    # Round to bf16-representable f32 values so the exact-equality check below
    # is independent of how many bf16 passes the f32 MXU matmul is lowered to.
    x = x.astype(jnp.bfloat16).astype(jnp.float32)

    out = pixel_unshuffle_pallas(x, upscale_factor)
    out = jax.block_until_ready(out)

    ref = pixel_unshuffle_ref(x, upscale_factor)
    assert out.shape == (B, C * upscale_factor ** 3, D // upscale_factor,
                         H // upscale_factor, W // upscale_factor), out.shape
    np.testing.assert_allclose(np.asarray(out), np.asarray(ref), rtol=0, atol=0)

    print("KERNEL_OK")
</pallas_src>

<mosaic_0001>
module attributes {stable_mosaic.version = 11 : i64} {
  func.func @_pixel_unshuffle_kernel(%arg0: i32, %arg1: i32, %arg2: i32, %arg3: memref<16x16xf32, #tpu.memory_space<vmem>>, %arg4: memref<8x4x1x8x32xf32, #tpu.memory_space<vmem>>, %arg5: memref<8x4x4x8x8xf32, #tpu.memory_space<vmem>>) attributes {dimension_semantics = [#tpu.dimension_semantics<parallel>, #tpu.dimension_semantics<parallel>, #tpu.dimension_semantics<parallel>], iteration_bounds = array<i64: 1, 1, 2>, scalar_prefetch = 0 : i64, scratch_operands = 0 : i64, tpu.core_type = #tpu.core_type<tc>, window_params = [{pipeline_mode = #tpu.pipeline_mode<synchronous>, transform_indices = @transform_0, window_bounds = array<i64: 16, 16>}, {transform_indices = @transform_1, window_bounds = array<i64: 8, 4, 1, 8, 32>}, {transform_indices = @transform_2, window_bounds = array<i64: 8, 4, 4, 8, 8>}]} {
    %c0 = arith.constant 0 : index
    %c0_0 = arith.constant 0 : index
    %c0_1 = arith.constant 0 : index
    %c0_2 = arith.constant 0 : index
    %c0_3 = arith.constant 0 : index
    %0 = vector.load %arg4[%c0, %c0_0, %c0_1, %c0_2, %c0_3] : memref<8x4x1x8x32xf32, #tpu.memory_space<vmem>>, vector<8x4x1x8x16xf32>
    %1 = vector.shape_cast %0 : vector<8x4x1x8x16xf32> to vector<8x4x8x16xf32>
    %2 = vector.shape_cast %1 : vector<8x4x8x16xf32> to vector<256x16xf32>
    %c0_4 = arith.constant 0 : index
    %c0_5 = arith.constant 0 : index
    %3 = vector.load %arg3[%c0_4, %c0_5] : memref<16x16xf32, #tpu.memory_space<vmem>>, vector<16x8xf32>
    %cst = arith.constant dense<0.000000e+00> : vector<256x8xf32>
    %4 = tpu.matmul %2, %3, %cst {dimension_numbers = #tpu.dot_dimension_numbers<[1], [0], [0], [1], [0, 0, 1, 1], [], []>, precision = #tpu.contract_precision<fp32>} : vector<256x16xf32>, vector<16x8xf32>, vector<256x8xf32> -> vector<256x8xf32>
    %5 = vector.shape_cast %4 : vector<256x8xf32> to vector<8x1x4x8x8xf32>
    %c0_6 = arith.constant 0 : index
    %c0_7 = arith.constant 0 : index
    %c0_8 = arith.constant 0 : index
    %c0_9 = arith.constant 0 : index
    %c0_10 = arith.constant 0 : index
    %6 = vector.load %arg5[%c0_6, %c0_7, %c0_8, %c0_9, %c0_10] : memref<8x4x4x8x8xf32, #tpu.memory_space<vmem>>, vector<8x1x4x8x8xf32>
    tpu.vector_store %arg5[%c0_6, %c0_7, %c0_8, %c0_9, %c0_10], %5 {strides = array<i32>} : memref<8x4x4x8x8xf32, #tpu.memory_space<vmem>>, vector<8x1x4x8x8xf32>,
    %c0_11 = arith.constant 0 : index
    %c8 = arith.constant 8 : index
    %7 = vector.load %arg3[%c0_11, %c8] : memref<16x16xf32, #tpu.memory_space<vmem>>, vector<16x8xf32>
    %cst_12 = arith.constant dense<0.000000e+00> : vector<256x8xf32>
    %8 = tpu.matmul %2, %7, %cst_12 {dimension_numbers = #tpu.dot_dimension_numbers<[1], [0], [0], [1], [0, 0, 1, 1], [], []>, precision = #tpu.contract_precision<fp32>} : vector<256x16xf32>, vector<16x8xf32>, vector<256x8xf32> -> vector<256x8xf32>
    %9 = vector.shape_cast %8 : vector<256x8xf32> to vector<8x1x4x8x8xf32>
    %c0_13 = arith.constant 0 : index
    %c1 = arith.constant 1 : index
    %c0_14 = arith.constant 0 : index
    %c0_15 = arith.constant 0 : index
    %c0_16 = arith.constant 0 : index
    %10 = vector.load %arg5[%c0_13, %c1, %c0_14, %c0_15, %c0_16] : memref<8x4x4x8x8xf32, #tpu.memory_space<vmem>>, vector<8x1x4x8x8xf32>
    tpu.vector_store %arg5[%c0_13, %c1, %c0_14, %c0_15, %c0_16], %9 {strides = array<i32>} : memref<8x4x4x8x8xf32, #tpu.memory_space<vmem>>, vector<8x1x4x8x8xf32>,
    %c0_17 = arith.constant 0 : index
    %c0_18 = arith.constant 0 : index
    %c0_19 = arith.constant 0 : index
    %c0_20 = arith.constant 0 : index
    %c16 = arith.constant 16 : index
    %11 = vector.load %arg4[%c0_17, %c0_18, %c0_19, %c0_20, %c16] : memref<8x4x1x8x32xf32, #tpu.memory_space<vmem>>, vector<8x4x1x8x16xf32>
    %12 = vector.shape_cast %11 : vector<8x4x1x8x16xf32> to vector<8x4x8x16xf32>
    %13 = vector.shape_cast %12 : vector<8x4x8x16xf32> to vector<256x16xf32>
    %c0_21 = arith.constant 0 : index
    %c0_22 = arith.constant 0 : index
    %14 = vector.load %arg3[%c0_21, %c0_22] : memref<16x16xf32, #tpu.memory_space<vmem>>, vector<16x8xf32>
    %cst_23 = arith.constant dense<0.000000e+00> : vector<256x8xf32>
    %15 = tpu.matmul %13, %14, %cst_23 {dimension_numbers = #tpu.dot_dimension_numbers<[1], [0], [0], [1], [0, 0, 1, 1], [], []>, precision = #tpu.contract_precision<fp32>} : vector<256x16xf32>, vector<16x8xf32>, vector<256x8xf32> -> vector<256x8xf32>
    %16 = vector.shape_cast %15 : vector<256x8xf32> to vector<8x1x4x8x8xf32>
    %c0_24 = arith.constant 0 : index
    %c2 = arith.constant 2 : index
    %c0_25 = arith.constant 0 : index
    %c0_26 = arith.constant 0 : index
    %c0_27 = arith.constant 0 : index
    %17 = vector.load %arg5[%c0_24, %c2, %c0_25, %c0_26, %c0_27] : memref<8x4x4x8x8xf32, #tpu.memory_space<vmem>>, vector<8x1x4x8x8xf32>
    tpu.vector_store %arg5[%c0_24, %c2, %c0_25, %c0_26, %c0_27], %16 {strides = array<i32>} : memref<8x4x4x8x8xf32, #tpu.memory_space<vmem>>, vector<8x1x4x8x8xf32>,
    %c0_28 = arith.constant 0 : index
    %c8_29 = arith.constant 8 : index
    %18 = vector.load %arg3[%c0_28, %c8_29] : memref<16x16xf32, #tpu.memory_space<vmem>>, vector<16x8xf32>
    %cst_30 = arith.constant dense<0.000000e+00> : vector<256x8xf32>
    %19 = tpu.matmul %13, %18, %cst_30 {dimension_numbers = #tpu.dot_dimension_numbers<[1], [0], [0], [1], [0, 0, 1, 1], [], []>, precision = #tpu.contract_precision<fp32>} : vector<256x16xf32>, vector<16x8xf32>, vector<256x8xf32> -> vector<256x8xf32>
    %20 = vector.shape_cast %19 : vector<256x8xf32> to vector<8x1x4x8x8xf32>
    %c0_31 = arith.constant 0 : index
    %c3 = arith.constant 3 : index
    %c0_32 = arith.constant 0 : index
    %c0_33 = arith.constant 0 : index
    %c0_34 = arith.constant 0 : index
    %21 = vector.load %arg5[%c0_31, %c3, %c0_32, %c0_33, %c0_34] : memref<8x4x4x8x8xf32, #tpu.memory_space<vmem>>, vector<8x1x4x8x8xf32>
    tpu.vector_store %arg5[%c0_31, %c3, %c0_32, %c0_33, %c0_34], %20 {strides = array<i32>} : memref<8x4x4x8x8xf32, #tpu.memory_space<vmem>>, vector<8x1x4x8x8xf32>,
    return
  }
  func.func @transform_0(%arg0: i32, %arg1: i32, %arg2: i32) -> (i32, i32) {
    %c0_i32 = arith.constant 0 : i32
    %c0_i32_0 = arith.constant 0 : i32
    %c0_i32_1 = arith.constant 0 : i32
    return %c0_i32, %c0_i32_0 : i32, i32
  }
  func.func @transform_1(%arg0: i32, %arg1: i32, %arg2: i32) -> (i32, i32, i32, i32, i32) {
    %c0_i32 = arith.constant 0 : i32
    %c0_i32_0 = arith.constant 0 : i32
    %c0_i32_1 = arith.constant 0 : i32
    return %arg0, %arg1, %arg2, %c0_i32, %c0_i32_0 : i32, i32, i32, i32, i32
  }
  func.func @transform_2(%arg0: i32, %arg1: i32, %arg2: i32) -> (i32, i32, i32, i32, i32) {
    %c0_i32 = arith.constant 0 : i32
    %c0_i32_0 = arith.constant 0 : i32
    %c0_i32_1 = arith.constant 0 : i32
    return %arg0, %arg2, %arg1, %c0_i32, %c0_i32_0 : i32, i32, i32, i32, i32
  }
}

</mosaic_0001>

<llo_original>
// kernel: tpu_custom_call.1
$region0: #{tpu_custom_call.1}
  #allocation0 [shape = 'u32[]', space=smem, size = 0x4, offset = 0x4, fixed_abs, tag = 'smem constant byte address 0x4 - core index']
  #allocation1 [shape = 'u32[144,128]{1,0:T(1,128)}', space=vmem, size = 0x12000, scoped, tag = 'internal scratch']
  #allocation8 [shape = 's32[]', space=sflag, size = 0x4, offset = 0, fixed_abs, tag = 'sflag constant byte address 0x0 - dummy sync flag']
  %s0 = inlined_call_operand.hbm [shape: f32[16,16], index: 0, kind: input, shape index: {}]
  %s1 = inlined_call_operand.hbm [shape: f32[8,4,2,8,32], index: 1, kind: input, shape index: {}]
  %s2 = inlined_call_operand.hbm [shape: f32[8,8,4,8,8], index: 2, kind: output, shape index: {}]
  %s3 = sld [smem:[#allocation0]]
  $region49: #{tpu_custom_call.1} parent=0
    _
  %s5 = ssub.s32 1, %s3
  %s6 = scalar_select 0, %s5, %s3
  $region1: #{tpu_custom_call.1} parent=0
    #allocation2 [shape = 'u8[8192]{0}', space=vmem, size = 0x2000, scoped, tag = 'input window, operand 0, single buffered']
    #allocation3 [shape = 's32[2]{0}', space=sflag, size = 0x8, scoped, tag = 'scoped memory for tpu_custom_call.1']
    #allocation4 [shape = 's32[2]{0}', space=sflag, size = 0x8, scoped, tag = 'scoped memory for tpu_custom_call.1']
    #allocation5 [shape = 'u8[262144]{0}', space=vmem, size = 0x40000, scoped, tag = 'input window, operand 1']
    #allocation6 [shape = 's32[2]{0}', space=sflag, size = 0x8, scoped, tag = 'scoped memory for tpu_custom_call.1']
    #allocation7 [shape = 'u8[1048576]{0}', space=vmem, size = 0x100000, scoped, tag = 'output window, operand 0']
    %7 = vsyncpa [#allocation3], 0
    %8 = vsyncpa [#allocation6], 0
    %s9 = scalar_lea.sflag [#allocation6], 1
    %10 = vsyncpa %s9, 0
    %11 = vsyncpa [#allocation4], 0
    %s12 = scalar_lea.sflag [#allocation4], 1
    %13 = vsyncpa %s12, 0
    loop: start=0, step=1, limit=4
    $region2: #{tpu_custom_call.1} parent=1 // loop_pre_header
      _
    $region3: #{tpu_custom_call.1} parent=1 // loop_header
      %s15 = sphi 0, %s19
      %p16 = scmp.ge.s32.totalorder %s15, 4
      %s22 = sphi 0, %s41
      %s23 = sphi 0, %s37
      %s24 = sphi 0, %s33
      %s25 = sphi 0, %s22
      %s26 = sphi 0, %s23
      %s27 = sphi 0, %s24
      %s28 = sphi 0, %s25
      %s29 = sphi 0, %s26
      %s30 = sphi 0, %s27
      %s42 = sphi 0, %s42
      %s44 = sphi 0, %s42
      %s45 = sphi 0, %s44
      %s59 = sphi 0, %s45
      %s69 = sphi 0, %s71
      %s72 = sphi 0, %s69
      %s73 = sphi 0, %s72
      %s89 = sphi 0, %s73
      %s99 = sphi 0, %s101
      %s102 = sphi 0, %s99
      %s103 = sphi 0, %s102
      %s119 = sphi 0, %s103
    $region4: #{tpu_custom_call.1} parent=1 // loop_header_branch
      %18 = sbr.rel (%p16) target = $region8
    $region5: #{tpu_custom_call.1} parent=1 // loop_body
      %s20 = ssub.s32 %s15, 1
      %s21 = ssub.s32 %s15, 2
      %s31 = sadd.s32 1, %s24
      %p32 = scmp.ge.s32.totalorder %s31, 2
      %s33 = scalar_select %p32, 0, %s31
      %s34 = sadd.s32 1, %s23
      %s35 = scalar_select %p32, %s34, %s23
      %p36 = scmp.ge.s32.totalorder %s35, 1
      %s37 = scalar_select %p36, 0, %s35
      %s38 = sadd.s32 1, %s22
      %s39 = scalar_select %p36, %s38, %s22
      %p40 = scmp.ge.s32.totalorder %s39, 1
      %s41 = scalar_select %p40, 0, %s39
      %s43 = sadd.s32 %s42, 1
      %p46 = scmp.eq.s32.totalorder %s15, 1
      %p47 = scmp.ne.s32.totalorder %s42, %s44
      %p48 = scmp.eq.s32.totalorder %s15, 0
      %p49 = por %p47, %p48
      %p50 = scmp.ne.s32.totalorder %s42, %s44
      %p51 = scmp.eq.s32.totalorder %s20, 1
      %p52 = por %p50, %p51
      %p53 = scmp.ne.s32.totalorder %s44, %s45
      %p54 = scmp.eq.s32.totalorder %s20, 0
      %p55 = por %p53, %p54
      %p56 = scmp.ne.s32.totalorder %s44, %s45
      %p57 = scmp.eq.s32.totalorder %s21, 1
      %p58 = por %p56, %p57
      %p60 = scmp.ne.s32.totalorder %s45, %s59
      %p61 = scmp.eq.s32.totalorder %s21, 0
      %p62 = por %p60, %p61
      %s63 = ssub.s32 %s22, %s41
      %s64 = ssub.s32 %s23, %s37
      %s65 = sor.u32 %s63, %s64
      %s66 = ssub.s32 %s24, %s33
      %s67 = sor.u32 %s65, %s66
      %p68 = scmp.eq.s32.totalorder %s67, 0
      %s70 = sadd.s32 %s69, 1
      %s71 = scalar_select %p68, %s69, %s70
      %p74 = pneg %p68
      %p75 = scmp.eq.s32.totalorder %s15, 1
      %p76 = por %p74, %p75
      %p77 = scmp.ne.s32.totalorder %s69, %s72
      %p78 = scmp.eq.s32.totalorder %s15, 0
      %p79 = por %p77, %p78
      %p80 = scmp.ne.s32.totalorder %s69, %s72
      %p81 = scmp.eq.s32.totalorder %s20, 1
      %p82 = por %p80, %p81
      %p83 = scmp.ne.s32.totalorder %s72, %s73
      %p84 = scmp.eq.s32.totalorder %s20, 0
      %p85 = por %p83, %p84
      %p86 = scmp.ne.s32.totalorder %s72, %s73
      %p87 = scmp.eq.s32.totalorder %s21, 1
      %p88 = por %p86, %p87
      %p90 = scmp.ne.s32.totalorder %s73, %s89
      %p91 = scmp.eq.s32.totalorder %s21, 0
      %p92 = por %p90, %p91
      %s93 = ssub.s32 %s22, %s41
      %s94 = ssub.s32 %s24, %s33
      %s95 = sor.u32 %s93, %s94
      %s96 = ssub.s32 %s23, %s37
      %s97 = sor.u32 %s95, %s96
      %p98 = scmp.eq.s32.totalorder %s97, 0
      %s100 = sadd.s32 %s99, 1
      %s101 = scalar_select %p98, %s99, %s100
      %p104 = pneg %p98
      %p105 = scmp.eq.s32.totalorder %s15, 1
      %p106 = por %p104, %p105
      %p107 = scmp.ne.s32.totalorder %s99, %s102
      %p108 = scmp.eq.s32.totalorder %s15, 0
      %p109 = por %p107, %p108
      %p110 = scmp.ne.s32.totalorder %s99, %s102
      %p111 = scmp.eq.s32.totalorder %s20, 1
      %p112 = por %p110, %p111
      %p113 = scmp.ne.s32.totalorder %s102, %s103
      %p114 = scmp.eq.s32.totalorder %s20, 0
      %p115 = por %p113, %p114
      %p116 = scmp.ne.s32.totalorder %s102, %s103
      %p117 = scmp.eq.s32.totalorder %s21, 1
      %p118 = por %p116, %p117
      %p120 = scmp.ne.s32.totalorder %s103, %s119
      %p121 = scmp.eq.s32.totalorder %s21, 0
      %p122 = por %p120, %p121
      %p123 = scmp.le.s32.totalorder 1, %s15
      %p124 = scmp.lt.s32.totalorder %s15, 3
      %p125 = pnand %p123, %p124
      %p126 = pneg %p125
      // Predicated region
      $region9: #{tpu_custom_call.1} parent=5 // pred_check
        _
      $region10: #{tpu_custom_call.1} parent=5 // pred_check_branch
        %128 = sbr.rel (%p125) target = $region12
      $region11: #{tpu_custom_call.1} parent=5 // pred_region
        %s129 = ssub.s32 %s15, 1
        // Predicated region
        $region13: #{tpu_custom_call.1} parent=11 // pred_check
          %p130 = pneg %p55
        $region14: #{tpu_custom_call.1} parent=11 // pred_check_branch
          %132 = sbr.rel (%p130) target = $region16
        $region15: #{tpu_custom_call.1} parent=11 // pred_region
          %s134 = ssub.s32 256, 256
          %135 = vsyncadd [#allocation3], %s134
          %s136 = sshll.u32 [#allocation2], 4
          %s137 = int_to_ptr.vmem [resolvable:$true] %s136
          %142 = dma.hbm_to_vmem [thread:$0]  %s0, 256, %s137, [#allocation3], 128, 128, 8
        $region16: #{tpu_custom_call.1} parent=11 // pred_fallthru
          _
      $region12: #{tpu_custom_call.1} parent=5 // pred_fallthru
        _
      %p143 = scmp.lt.s32.totalorder %s15, 2
      // Predicated region
      $region17: #{tpu_custom_call.1} parent=5 // pred_check
        %p144 = pneg %p143
      $region18: #{tpu_custom_call.1} parent=5 // pred_check_branch
        %146 = sbr.rel (%p144) target = $region20
      $region19: #{tpu_custom_call.1} parent=5 // pred_region
        // Predicated region
        $region21: #{tpu_custom_call.1} parent=19 // pred_check
          %p147 = pneg %p79
        $region22: #{tpu_custom_call.1} parent=19 // pred_check_branch
          %149 = sbr.rel (%p147) target = $region24
        $region23: #{tpu_custom_call.1} parent=19 // pred_region
          %s150 = sand.u32 %s69, 1
          %s151 = scalar_lea.sflag [#allocation6], %s150
          %s152 = sand.u32 %s69, 1
          %s153 = smul.addr %s152, 256
          %s154 = scalar_lea.vmem [#allocation5], %s153
          %s155 = smul.u32 8, %s22
          %s156 = smul.u32 4, %s23
          %s158 = ssub.s32 4096, 4096
          %159 = vsyncadd %s151, %s158
          %s160 = smul.addr %s156, 2
          %s161 = sadd.s32 %s24, %s160
          %s162 = smul.addr %s155, 8
          %s163 = sadd.s32 %s161, %s162
          %s164 = smul.addr %s163, 128
          %s165 = scalar_lea.hbm %s1, %s164
          %s166 = sshll.u32 %s154, 4
          %s167 = int_to_ptr.vmem [resolvable:$true] %s166
          %172 = dma.hbm_to_vmem [thread:$0]  %s165, 4096, %s167, %s151, 256, 128, 8
        $region24: #{tpu_custom_call.1} parent=19 // pred_fallthru
          _
      $region20: #{tpu_custom_call.1} parent=5 // pred_fallthru
        _
      %p173 = scmp.le.s32.totalorder 1, %s15
      %p174 = scmp.lt.s32.totalorder %s15, 3
      %p175 = pnand %p173, %p174
      %p176 = pneg %p175
      // Predicated region
      $region25: #{tpu_custom_call.1} parent=5 // pred_check
        _
      $region26: #{tpu_custom_call.1} parent=5 // pred_check_branch
        %178 = sbr.rel (%p175) target = $region28
      $region27: #{tpu_custom_call.1} parent=5 // pred_region
        %s179 = ssub.s32 %s15, 1
        // Predicated region
        $region29: #{tpu_custom_call.1} parent=27 // pred_check
          %p180 = pneg %p55
        $region30: #{tpu_custom_call.1} parent=27 // pred_check_branch
          %182 = sbr.rel (%p180) target = $region32
        $region31: #{tpu_custom_call.1} parent=27 // pred_region
          %183 = dma.done [#allocation3], 256
        $region32: #{tpu_custom_call.1} parent=27 // pred_fallthru
          _
        %s184 = sand.u32 %s72, 1
        %s185 = scalar_lea.sflag [#allocation6], %s184
        %s186 = sand.u32 %s72, 1
        %s187 = smul.addr %s186, 256
        %s188 = scalar_lea.vmem [#allocation5], %s187
        // Predicated region
        $region33: #{tpu_custom_call.1} parent=27 // pred_check
          %p189 = pneg %p85
        $region34: #{tpu_custom_call.1} parent=27 // pred_check_branch
          %191 = sbr.rel (%p189) target = $region36
        $region35: #{tpu_custom_call.1} parent=27 // pred_region
          %192 = dma.done %s185, 4096
        $region36: #{tpu_custom_call.1} parent=27 // pred_fallthru
          _
        %p193 = pneg %p55
        %p194 = pneg %p52
        %s195 = sand.u32 %s72, 1
        %s196 = scalar_lea.sflag [#allocation6], %s195
        %s197 = sand.u32 %s72, 1
        %s198 = smul.addr %s197, 256
        %s199 = scalar_lea.vmem [#allocation5], %s198
        %p200 = pneg %p85
        %p201 = pneg %p82
        %p202 = pneg %p115
        %p203 = pneg %p112
        %s204 = sand.u32 %s102, 1
        %s205 = scalar_lea.sflag [#allocation4], %s204
        %s206 = sand.u32 %s102, 1
        %s207 = smul.addr %s206, 1024
        %s208 = scalar_lea.vmem [#allocation7], %s207
        %s209 = smul.u32 8, %s25
        %s210 = smul.u32 4, %s26
        %s211 = smul.u32 8, %s25
        %s212 = smul.u32 4, %s27
        %s213 = smul.u32 4, %s26
        %v214 = vld [vmem:[%s188] sm:$0xff]
        %v215 = vld [vmem:[%s188 + $0x8] sm:$0xff]
        %v216 = vld [vmem:[%s188 + $0x10] sm:$0xff]
        %v217 = vld [vmem:[%s188 + $0x18] sm:$0xff]
        %v218 = vld [vmem:[%s188 + $0x20] sm:$0xff]
        %v219 = vld [vmem:[%s188 + $0x28] sm:$0xff]
        %v220 = vld [vmem:[%s188 + $0x30] sm:$0xff]
        %v221 = vld [vmem:[%s188 + $0x38] sm:$0xff]
        %v222 = vld [vmem:[%s188 + $0x40] sm:$0xff]
        %v223 = vld [vmem:[%s188 + $0x48] sm:$0xff]
        %v224 = vld [vmem:[%s188 + $0x50] sm:$0xff]
        %v225 = vld [vmem:[%s188 + $0x58] sm:$0xff]
        %v226 = vld [vmem:[%s188 + $0x60] sm:$0xff]
        %v227 = vld [vmem:[%s188 + $0x68] sm:$0xff]
        %v228 = vld [vmem:[%s188 + $0x70] sm:$0xff]
        %v229 = vld [vmem:[%s188 + $0x78] sm:$0xff]
        %v230 = vld [vmem:[%s188 + $0x80] sm:$0xff]
        %v231 = vld [vmem:[%s188 + $0x88] sm:$0xff]
        %v232 = vld [vmem:[%s188 + $0x90] sm:$0xff]
        %v233 = vld [vmem:[%s188 + $0x98] sm:$0xff]
        %v234 = vld [vmem:[%s188 + $0xa0] sm:$0xff]
        %v235 = vld [vmem:[%s188 + $0xa8] sm:$0xff]
        %v236 = vld [vmem:[%s188 + $0xb0] sm:$0xff]
        %v237 = vld [vmem:[%s188 + $0xb8] sm:$0xff]
        %v238 = vld [vmem:[%s188 + $0xc0] sm:$0xff]
        %v239 = vld [vmem:[%s188 + $0xc8] sm:$0xff]
        %v240 = vld [vmem:[%s188 + $0xd0] sm:$0xff]
        %v241 = vld [vmem:[%s188 + $0xd8] sm:$0xff]
        %v242 = vld [vmem:[%s188 + $0xe0] sm:$0xff]
        %v243 = vld [vmem:[%s188 + $0xe8] sm:$0xff]
        %v244 = vld [vmem:[%s188 + $0xf0] sm:$0xff]
        %v245 = vld [vmem:[%s188 + $0xf8] sm:$0xff]
        %v246 = vld [vmem:[#allocation2] sm:$0xff]
        %v247 = vld [vmem:[#allocation2 + $0x8] sm:$0xff]
        %vm248 = vcmask 130048
        %v250 = vsel %vm248, %v214, 0
        %v253 = vsel %vm248, %v215, 0
        %v256 = vsel %vm248, %v216, 0
        %v259 = vsel %vm248, %v217, 0
        %v262 = vsel %vm248, %v218, 0
        %v265 = vsel %vm248, %v219, 0
        %v268 = vsel %vm248, %v220, 0
        %v271 = vsel %vm248, %v221, 0
        %v274 = vsel %vm248, %v222, 0
        %v277 = vsel %vm248, %v223, 0
        %v280 = vsel %vm248, %v224, 0
        %v283 = vsel %vm248, %v225, 0
        %v286 = vsel %vm248, %v226, 0
        %v289 = vsel %vm248, %v227, 0
        %v292 = vsel %vm248, %v228, 0
        %v295 = vsel %vm248, %v229, 0
        %v298 = vsel %vm248, %v230, 0
        %v301 = vsel %vm248, %v231, 0
        %v304 = vsel %vm248, %v232, 0
        %v307 = vsel %vm248, %v233, 0
        %v310 = vsel %vm248, %v234, 0
        %v313 = vsel %vm248, %v235, 0
        %v316 = vsel %vm248, %v236, 0
        %v319 = vsel %vm248, %v237, 0
        %v322 = vsel %vm248, %v238, 0
        %v325 = vsel %vm248, %v239, 0
        %v328 = vsel %vm248, %v240, 0
        %v331 = vsel %vm248, %v241, 0
        %v334 = vsel %vm248, %v242, 0
        %v337 = vsel %vm248, %v243, 0
        %v340 = vsel %vm248, %v244, 0
        %v343 = vsel %vm248, %v245, 0
        %345 = vmatprep.subr.mxu0 0.0
        %346 = vmatpush1.msra.mxu0 0.0
        %347 = vmatprep.subr.mxu0 0.0
        %348 = vmatpush1.msra.mxu0 0.0
        %349 = vmatprep.subr.mxu0 0.0
        %350 = vmatpush1.msra.mxu0 0.0
        %351 = vmatprep.subr.mxu0 0.0
        %352 = vmatpush1.msra.mxu0 0.0
        %353 = vmatprep.subr.mxu0 0.0
        %354 = vmatpush1.msra.mxu0 0.0
        %355 = vmatprep.subr.mxu0 0.0
        %356 = vmatpush1.msra.mxu0 0.0
        %357 = vmatprep.subr.mxu0 0.0
        %358 = vmatpush1.msra.mxu0 0.0
        %359 = vmatprep.subr.mxu0 0.0
        %360 = vmatpush1.msra.mxu0 0.0
        %361 = vmatprep.subr.mxu0 0.0
        %362 = vmatpush1.msra.mxu0 0.0
        %363 = vmatprep.subr.mxu0 0.0
        %364 = vmatpush1.msra.mxu0 0.0
        %365 = vmatprep.subr.mxu0 0.0
        %366 = vmatpush1.msra.mxu0 0.0
        %367 = vmatprep.subr.mxu0 0.0
        %368 = vmatpush1.msra.mxu0 0.0
        %369 = vmatprep.subr.mxu0 0.0
        %370 = vmatpush1.msra.mxu0 0.0
        %371 = vmatprep.subr.mxu0 0.0
        %372 = vmatpush1.msra.mxu0 0.0
        %373 = vmatprep.subr.mxu0 0.0
        %v374 = vand.u32 %v247, 4294901760
        %375 = vmatpush1.msra.mxu0 %v374
        %376 = vmatprep.subr.mxu0 0.0
        %v377 = vand.u32 %v246, 4294901760
        %378 = vmatpush1.msra.mxu0 %v377
        %379 = vmatprep.subr.mxu0 0.0
        %380 = vmatpush2.msra.mxu0 0.0
        %381 = vmatprep.subr.mxu0 0.0
        %382 = vmatpush2.msra.mxu0 0.0
        %383 = vmatprep.subr.mxu0 0.0
        %384 = vmatpush2.msra.mxu0 0.0
        %385 = vmatprep.subr.mxu0 0.0
        %386 = vmatpush2.msra.mxu0 0.0
        %387 = vmatprep.subr.mxu0 0.0
        %388 = vmatpush2.msra.mxu0 0.0
        %389 = vmatprep.subr.mxu0 0.0
        %390 = vmatpush2.msra.mxu0 0.0
        %391 = vmatprep.subr.mxu0 0.0
        %392 = vmatpush2.msra.mxu0 0.0
        %393 = vmatprep.subr.mxu0 0.0
        %394 = vmatpush2.msra.mxu0 0.0
        %395 = vmatprep.subr.mxu0 0.0
        %396 = vmatpush2.msra.mxu0 0.0
        %397 = vmatprep.subr.mxu0 0.0
        %398 = vmatpush2.msra.mxu0 0.0
        %399 = vmatprep.subr.mxu0 0.0
        %400 = vmatpush2.msra.mxu0 0.0
        %401 = vmatprep.subr.mxu0 0.0
        %402 = vmatpush2.msra.mxu0 0.0
        %403 = vmatprep.subr.mxu0 0.0
        %404 = vmatpush2.msra.mxu0 0.0
        %405 = vmatprep.subr.mxu0 0.0
        %406 = vmatpush2.msra.mxu0 0.0
        %407 = vmatprep.subr.mxu0 0.0
        %408 = vmatpush2.msra.mxu0 0.0
        %409 = vmatprep.subr.mxu0 0.0
        %410 = vmatpush2.msra.mxu0 0.0
        %411 = vmatprep.mubr.f32.mxu0 0.0
        %v412 = vand.u32 %v250, 4294901760
        %v413 = vsub.f32 %v250, %v412
        %v414 = vand.u32 %v413, 4294901760
        %v415 = vsub.f32 %v413, %v414
        %v416 = vand.u32 %v415, 4294901760
        %417 = vmatmul.mubr.f32.gmra.mxu0 %v416
        %v418 = vpop.f32.mrf.mxu0
        %v419 = vadd.f32 0.0, %v418
        %v420 = vpop.f32.mrf.mxu0
        %421 = vmatprep.mubr.f32.mxu0 0.0
        %v422 = vand.u32 %v253, 4294901760
        %v423 = vsub.f32 %v253, %v422
        %v424 = vand.u32 %v423, 4294901760
        %v425 = vsub.f32 %v423, %v424
        %v426 = vand.u32 %v425, 4294901760
        %427 = vmatmul.mubr.f32.gmra.mxu0 %v426
        %v428 = vpop.f32.mrf.mxu0
        %v429 = vadd.f32 0.0, %v428
        %v430 = vpop.f32.mrf.mxu0
        %431 = vmatprep.mubr.f32.mxu0 0.0
        %v432 = vand.u32 %v256, 4294901760
        %v433 = vsub.f32 %v256, %v432
        %v434 = vand.u32 %v433, 4294901760
        %v435 = vsub.f32 %v433, %v434
        %v436 = vand.u32 %v435, 4294901760
        %437 = vmatmul.mubr.f32.gmra.mxu0 %v436
        %v438 = vpop.f32.mrf.mxu0
        %v439 = vadd.f32 0.0, %v438
        %v440 = vpop.f32.mrf.mxu0
        %441 = vmatprep.mubr.f32.mxu0 0.0
        %v442 = vand.u32 %v259, 4294901760
        %v443 = vsub.f32 %v259, %v442
        %v444 = vand.u32 %v443, 4294901760
        %v445 = vsub.f32 %v443, %v444
        %v446 = vand.u32 %v445, 4294901760
        %447 = vmatmul.mubr.f32.gmra.mxu0 %v446
        %v448 = vpop.f32.mrf.mxu0
        %v449 = vadd.f32 0.0, %v448
        %v450 = vpop.f32.mrf.mxu0
        %451 = vmatprep.mubr.f32.mxu0 0.0
        %v452 = vand.u32 %v262, 4294901760
        %v453 = vsub.f32 %v262, %v452
        %v454 = vand.u32 %v453, 4294901760
        %v455 = vsub.f32 %v453, %v454
        %v456 = vand.u32 %v455, 4294901760
        %457 = vmatmul.mubr.f32.gmra.mxu0 %v456
        %v458 = vpop.f32.mrf.mxu0
        %v459 = vadd.f32 0.0, %v458
        %v460 = vpop.f32.mrf.mxu0
        %461 = vmatprep.mubr.f32.mxu0 0.0
        %v462 = vand.u32 %v265, 4294901760
        %v463 = vsub.f32 %v265, %v462
        %v464 = vand.u32 %v463, 4294901760
        %v465 = vsub.f32 %v463, %v464
        %v466 = vand.u32 %v465, 4294901760
        %467 = vmatmul.mubr.f32.gmra.mxu0 %v466
        %v468 = vpop.f32.mrf.mxu0
        %v469 = vadd.f32 0.0, %v468
        %v470 = vpop.f32.mrf.mxu0
        %471 = vmatprep.mubr.f32.mxu0 0.0
        %v472 = vand.u32 %v268, 4294901760
        %v473 = vsub.f32 %v268, %v472
        %v474 = vand.u32 %v473, 4294901760
        %v475 = vsub.f32 %v473, %v474
        %v476 = vand.u32 %v475, 4294901760
        %477 = vmatmul.mubr.f32.gmra.mxu0 %v476
        %v478 = vpop.f32.mrf.mxu0
        %v479 = vadd.f32 0.0, %v478
        %v480 = vpop.f32.mrf.mxu0
        %481 = vmatprep.mubr.f32.mxu0 0.0
        %v482 = vand.u32 %v271, 4294901760
        %v483 = vsub.f32 %v271, %v482
        %v484 = vand.u32 %v483, 4294901760
        %v485 = vsub.f32 %v483, %v484
        %v486 = vand.u32 %v485, 4294901760
        %487 = vmatmul.mubr.f32.gmra.mxu0 %v486
        %v488 = vpop.f32.mrf.mxu0
        %v489 = vadd.f32 0.0, %v488
        %v490 = vpop.f32.mrf.mxu0
        %491 = vmatprep.mubr.f32.mxu0 0.0
        %v492 = vand.u32 %v274, 4294901760
        %v493 = vsub.f32 %v274, %v492
        %v494 = vand.u32 %v493, 4294901760
        %v495 = vsub.f32 %v493, %v494
        %v496 = vand.u32 %v495, 4294901760
        %497 = vmatmul.mubr.f32.gmra.mxu0 %v496
        %v498 = vpop.f32.mrf.mxu0
        %v499 = vadd.f32 0.0, %v498
        %v500 = vpop.f32.mrf.mxu0
        %501 = vmatprep.mubr.f32.mxu0 0.0
        %v502 = vand.u32 %v277, 4294901760
        %v503 = vsub.f32 %v277, %v502
        %v504 = vand.u32 %v503, 4294901760
        %v505 = vsub.f32 %v503, %v504
        %v506 = vand.u32 %v505, 4294901760
        %507 = vmatmul.mubr.f32.gmra.mxu0 %v506
        %v508 = vpop.f32.mrf.mxu0
        %v509 = vadd.f32 0.0, %v508
        %v510 = vpop.f32.mrf.mxu0
        %511 = vmatprep.mubr.f32.mxu0 0.0
        %v512 = vand.u32 %v280, 4294901760
        %v513 = vsub.f32 %v280, %v512
        %v514 = vand.u32 %v513, 4294901760
        %v515 = vsub.f32 %v513, %v514
        %v516 = vand.u32 %v515, 4294901760
        %517 = vmatmul.mubr.f32.gmra.mxu0 %v516
        %v518 = vpop.f32.mrf.mxu0
        %v519 = vadd.f32 0.0, %v518
        %v520 = vpop.f32.mrf.mxu0
        %521 = vmatprep.mubr.f32.mxu0 0.0
        %v522 = vand.u32 %v283, 4294901760
        %v523 = vsub.f32 %v283, %v522
        %v524 = vand.u32 %v523, 4294901760
        %v525 = vsub.f32 %v523, %v524
        %v526 = vand.u32 %v525, 4294901760
        %527 = vmatmul.mubr.f32.gmra.mxu0 %v526
        %v528 = vpop.f32.mrf.mxu0
        %v529 = vadd.f32 0.0, %v528
        %v530 = vpop.f32.mrf.mxu0
        %531 = vmatprep.mubr.f32.mxu0 0.0
        %v532 = vand.u32 %v286, 4294901760
        %v533 = vsub.f32 %v286, %v532
        %v534 = vand.u32 %v533, 4294901760
        %v535 = vsub.f32 %v533, %v534
        %v536 = vand.u32 %v535, 4294901760
        %537 = vmatmul.mubr.f32.gmra.mxu0 %v536
        %v538 = vpop.f32.mrf.mxu0
        %v539 = vadd.f32 0.0, %v538
        %v540 = vpop.f32.mrf.mxu0
        %541 = vmatprep.mubr.f32.mxu0 0.0
        %v542 = vand.u32 %v289, 4294901760
        %v543 = vsub.f32 %v289, %v542
        %v544 = vand.u32 %v543, 4294901760
        %v545 = vsub.f32 %v543, %v544
        %v546 = vand.u32 %v545, 4294901760
        %547 = vmatmul.mubr.f32.gmra.mxu0 %v546
        %v548 = vpop.f32.mrf.mxu0
        %v549 = vadd.f32 0.0, %v548
        %v550 = vpop.f32.mrf.mxu0
        %551 = vmatprep.mubr.f32.mxu0 0.0
        %v552 = vand.u32 %v292, 4294901760
        %v553 = vsub.f32 %v292, %v552
        %v554 = vand.u32 %v553, 4294901760
        %v555 = vsub.f32 %v553, %v554
        %v556 = vand.u32 %v555, 4294901760
        %557 = vmatmul.mubr.f32.gmra.mxu0 %v556
        %v558 = vpop.f32.mrf.mxu0
        %v559 = vadd.f32 0.0, %v558
        %v560 = vpop.f32.mrf.mxu0
        %561 = vmatprep.mubr.f32.mxu0 0.0
        %v562 = vand.u32 %v295, 4294901760
        %v563 = vsub.f32 %v295, %v562
        %v564 = vand.u32 %v563, 4294901760
        %v565 = vsub.f32 %v563, %v564
        %v566 = vand.u32 %v565, 4294901760
        %567 = vmatmul.mubr.f32.gmra.mxu0 %v566
        %v568 = vpop.f32.mrf.mxu0
        %v569 = vadd.f32 0.0, %v568
        %v570 = vpop.f32.mrf.mxu0
        %571 = vmatprep.mubr.f32.mxu0 0.0
        %v572 = vand.u32 %v298, 4294901760
        %v573 = vsub.f32 %v298, %v572
        %v574 = vand.u32 %v573, 4294901760
        %v575 = vsub.f32 %v573, %v574
        %v576 = vand.u32 %v575, 4294901760
        %577 = vmatmul.mubr.f32.gmra.mxu0 %v576
        %v578 = vpop.f32.mrf.mxu0
        %v579 = vadd.f32 0.0, %v578
        %v580 = vpop.f32.mrf.mxu0
        %581 = vmatprep.mubr.f32.mxu0 0.0
        %v582 = vand.u32 %v301, 4294901760
        %v583 = vsub.f32 %v301, %v582
        %v584 = vand.u32 %v583, 4294901760
        %v585 = vsub.f32 %v583, %v584
        %v586 = vand.u32 %v585, 4294901760
        %587 = vmatmul.mubr.f32.gmra.mxu0 %v586
        %v588 = vpop.f32.mrf.mxu0
        %v589 = vadd.f32 0.0, %v588
        %v590 = vpop.f32.mrf.mxu0
        %591 = vmatprep.mubr.f32.mxu0 0.0
        %v592 = vand.u32 %v304, 4294901760
        %v593 = vsub.f32 %v304, %v592
        %v594 = vand.u32 %v593, 4294901760
        %v595 = vsub.f32 %v593, %v594
        %v596 = vand.u32 %v595, 4294901760
        %597 = vmatmul.mubr.f32.gmra.mxu0 %v596
        %v598 = vpop.f32.mrf.mxu0
        %v599 = vadd.f32 0.0, %v598
        %v600 = vpop.f32.mrf.mxu0
        %601 = vmatprep.mubr.f32.mxu0 0.0
        %v602 = vand.u32 %v307, 4294901760
        %v603 = vsub.f32 %v307, %v602
        %v604 = vand.u32 %v603, 4294901760
        %v605 = vsub.f32 %v603, %v604
        %v606 = vand.u32 %v605, 4294901760
        %607 = vmatmul.mubr.f32.gmra.mxu0 %v606
        %v608 = vpop.f32.mrf.mxu0
        %v609 = vadd.f32 0.0, %v608
        %v610 = vpop.f32.mrf.mxu0
        %611 = vmatprep.mubr.f32.mxu0 0.0
        %v612 = vand.u32 %v310, 4294901760
        %v613 = vsub.f32 %v310, %v612
        %v614 = vand.u32 %v613, 4294901760
        %v615 = vsub.f32 %v613, %v614
        %v616 = vand.u32 %v615, 4294901760
        %617 = vmatmul.mubr.f32.gmra.mxu0 %v616
        %v618 = vpop.f32.mrf.mxu0
        %v619 = vadd.f32 0.0, %v618
        %v620 = vpop.f32.mrf.mxu0
        %621 = vmatprep.mubr.f32.mxu0 0.0
        %v622 = vand.u32 %v313, 4294901760
        %v623 = vsub.f32 %v313, %v622
        %v624 = vand.u32 %v623, 4294901760
        %v625 = vsub.f32 %v623, %v624
        %v626 = vand.u32 %v625, 4294901760
        %627 = vmatmul.mubr.f32.gmra.mxu0 %v626
        %v628 = vpop.f32.mrf.mxu0
        %v629 = vadd.f32 0.0, %v628
        %v630 = vpop.f32.mrf.mxu0
        %631 = vmatprep.mubr.f32.mxu0 0.0
        %v632 = vand.u32 %v316, 4294901760
        %v633 = vsub.f32 %v316, %v632
        %v634 = vand.u32 %v633, 4294901760
        %v635 = vsub.f32 %v633, %v634
        %v636 = vand.u32 %v635, 4294901760
        %637 = vmatmul.mubr.f32.gmra.mxu0 %v636
        %v638 = vpop.f32.mrf.mxu0
        %v639 = vadd.f32 0.0, %v638
        %v640 = vpop.f32.mrf.mxu0
        %641 = vmatprep.mubr.f32.mxu0 0.0
        %v642 = vand.u32 %v319, 4294901760
        %v643 = vsub.f32 %v319, %v642
        %v644 = vand.u32 %v643, 4294901760
        %v645 = vsub.f32 %v643, %v644
        %v646 = vand.u32 %v645, 4294901760
        %647 = vmatmul.mubr.f32.gmra.mxu0 %v646
        %v648 = vpop.f32.mrf.mxu0
        %v649 = vadd.f32 0.0, %v648
        %v650 = vpop.f32.mrf.mxu0
        %651 = vmatprep.mubr.f32.mxu0 0.0
        %v652 = vand.u32 %v322, 4294901760
        %v653 = vsub.f32 %v322, %v652
        %v654 = vand.u32 %v653, 4294901760
        %v655 = vsub.f32 %v653, %v654
        %v656 = vand.u32 %v655, 4294901760
        %657 = vmatmul.mubr.f32.gmra.mxu0 %v656
        %v658 = vpop.f32.mrf.mxu0
        %v659 = vadd.f32 0.0, %v658
        %v660 = vpop.f32.mrf.mxu0
        %661 = vmatprep.mubr.f32.mxu0 0.0
        %v662 = vand.u32 %v325, 4294901760
        %v663 = vsub.f32 %v325, %v662
        %v664 = vand.u32 %v663, 4294901760
        %v665 = vsub.f32 %v663, %v664
        %v666 = vand.u32 %v665, 4294901760
        %667 = vmatmul.mubr.f32.gmra.mxu0 %v666
        %v668 = vpop.f32.mrf.mxu0
        %v669 = vadd.f32 0.0, %v668
        %v670 = vpop.f32.mrf.mxu0
        %671 = vmatprep.mubr.f32.mxu0 0.0
        %v672 = vand.u32 %v328, 4294901760
        %v673 = vsub.f32 %v328, %v672
        %v674 = vand.u32 %v673, 4294901760
        %v675 = vsub.f32 %v673, %v674
        %v676 = vand.u32 %v675, 4294901760
        %677 = vmatmul.mubr.f32.gmra.mxu0 %v676
        %v678 = vpop.f32.mrf.mxu0
        %v679 = vadd.f32 0.0, %v678
        %v680 = vpop.f32.mrf.mxu0
        %681 = vmatprep.mubr.f32.mxu0 0.0
        %v682 = vand.u32 %v331, 4294901760
        %v683 = vsub.f32 %v331, %v682
        %v684 = vand.u32 %v683, 4294901760
        %v685 = vsub.f32 %v683, %v684
        %v686 = vand.u32 %v685, 4294901760
        %687 = vmatmul.mubr.f32.gmra.mxu0 %v686
        %v688 = vpop.f32.mrf.mxu0
        %v689 = vadd.f32 0.0, %v688
        %v690 = vpop.f32.mrf.mxu0
        %691 = vmatprep.mubr.f32.mxu0 0.0
        %v692 = vand.u32 %v334, 4294901760
        %v693 = vsub.f32 %v334, %v692
        %v694 = vand.u32 %v693, 4294901760
        %v695 = vsub.f32 %v693, %v694
        %v696 = vand.u32 %v695, 4294901760
        %697 = vmatmul.mubr.f32.gmra.mxu0 %v696
        %v698 = vpop.f32.mrf.mxu0
        %v699 = vadd.f32 0.0, %v698
        %v700 = vpop.f32.mrf.mxu0
        %701 = vmatprep.mubr.f32.mxu0 0.0
        %v702 = vand.u32 %v337, 4294901760
        %v703 = vsub.f32 %v337, %v702
        %v704 = vand.u32 %v703, 4294901760
        %v705 = vsub.f32 %v703, %v704
        %v706 = vand.u32 %v705, 4294901760
        %707 = vmatmul.mubr.f32.gmra.mxu0 %v706
        %v708 = vpop.f32.mrf.mxu0
        %v709 = vadd.f32 0.0, %v708
        %v710 = vpop.f32.mrf.mxu0
        %711 = vmatprep.mubr.f32.mxu0 0.0
        %v712 = vand.u32 %v340, 4294901760
        %v713 = vsub.f32 %v340, %v712
        %v714 = vand.u32 %v713, 4294901760
        %v715 = vsub.f32 %v713, %v714
        %v716 = vand.u32 %v715, 4294901760
        %717 = vmatmul.mubr.f32.gmra.mxu0 %v716
        %v718 = vpop.f32.mrf.mxu0
        %v719 = vadd.f32 0.0, %v718
        %v720 = vpop.f32.mrf.mxu0
        %721 = vmatprep.mubr.f32.mxu0 0.0
        %v722 = vand.u32 %v343, 4294901760
        %v723 = vsub.f32 %v343, %v722
        %v724 = vand.u32 %v723, 4294901760
        %v725 = vsub.f32 %v723, %v724
        %v726 = vand.u32 %v725, 4294901760
        %727 = vmatmul.mubr.f32.gmra.mxu0 %v726
        %v728 = vpop.f32.mrf.mxu0
        %v729 = vadd.f32 0.0, %v728
        %v730 = vpop.f32.mrf.mxu0
        %731 = vdwg.mxu0
        %732 = vmatprep.subr.mxu0 0.0
        %733 = vmatpush1.msra.mxu0 0.0
        %734 = vmatprep.subr.mxu0 0.0
        %735 = vmatpush1.msra.mxu0 0.0
        %736 = vmatprep.subr.mxu0 0.0
        %737 = vmatpush1.msra.mxu0 0.0
        %738 = vmatprep.subr.mxu0 0.0
        %739 = vmatpush1.msra.mxu0 0.0
        %740 = vmatprep.subr.mxu0 0.0
        %741 = vmatpush1.msra.mxu0 0.0
        %742 = vmatprep.subr.mxu0 0.0
        %743 = vmatpush1.msra.mxu0 0.0
        %744 = vmatprep.subr.mxu0 0.0
        %745 = vmatpush1.msra.mxu0 0.0
        %746 = vmatprep.subr.mxu0 0.0
        %747 = vmatpush1.msra.mxu0 0.0
        %748 = vmatprep.subr.mxu0 0.0
        %749 = vmatpush1.msra.mxu0 0.0
        %750 = vmatprep.subr.mxu0 0.0
        %751 = vmatpush1.msra.mxu0 0.0
        %752 = vmatprep.subr.mxu0 0.0
        %753 = vmatpush1.msra.mxu0 0.0
        %754 = vmatprep.subr.mxu0 0.0
        %755 = vmatpush1.msra.mxu0 0.0
        %756 = vmatprep.subr.mxu0 0.0
        %757 = vmatpush1.msra.mxu0 0.0
        %758 = vmatprep.subr.mxu0 0.0
        %759 = vmatpush1.msra.mxu0 0.0
        %760 = vmatprep.subr.mxu0 0.0
        %v761 = vand.u32 %v247, 4294901760
        %v762 = vsub.f32 %v247, %v761
        %v763 = vand.u32 %v762, 4294901760
        %v764 = vsub.f32 %v762, %v763
        %v765 = vand.u32 %v764, 4294901760
        %766 = vmatpush1.msra.mxu0 %v765
        %767 = vmatprep.subr.mxu0 0.0
        %v768 = vand.u32 %v246, 4294901760
        %v769 = vsub.f32 %v246, %v768
        %v770 = vand.u32 %v769, 4294901760
        %v771 = vsub.f32 %v769, %v770
        %v772 = vand.u32 %v771, 4294901760
        %773 = vmatpush1.msra.mxu0 %v772
        %774 = vmatprep.subr.mxu0 0.0
        %775 = vmatpush2.msra.mxu0 0.0
        %776 = vmatprep.subr.mxu0 0.0
        %777 = vmatpush2.msra.mxu0 0.0
        %778 = vmatprep.subr.mxu0 0.0
        %779 = vmatpush2.msra.mxu0 0.0
        %780 = vmatprep.subr.mxu0 0.0
        %781 = vmatpush2.msra.mxu0 0.0
        %782 = vmatprep.subr.mxu0 0.0
        %783 = vmatpush2.msra.mxu0 0.0
        %784 = vmatprep.subr.mxu0 0.0
        %785 = vmatpush2.msra.mxu0 0.0
        %786 = vmatprep.subr.mxu0 0.0
        %787 = vmatpush2.msra.mxu0 0.0
        %788 = vmatprep.subr.mxu0 0.0
        %789 = vmatpush2.msra.mxu0 0.0
        %790 = vmatprep.subr.mxu0 0.0
        %791 = vmatpush2.msra.mxu0 0.0
        %792 = vmatprep.subr.mxu0 0.0
        %793 = vmatpush2.msra.mxu0 0.0
        %794 = vmatprep.subr.mxu0 0.0
        %795 = vmatpush2.msra.mxu0 0.0
        %796 = vmatprep.subr.mxu0 0.0
        %797 = vmatpush2.msra.mxu0 0.0
        %798 = vmatprep.subr.mxu0 0.0
        %799 = vmatpush2.msra.mxu0 0.0
        %800 = vmatprep.subr.mxu0 0.0
        %801 = vmatpush2.msra.mxu0 0.0
        %802 = vmatprep.subr.mxu0 0.0
        %803 = vmatpush2.msra.mxu0 0.0
        %804 = vmatprep.subr.mxu0 0.0
        %805 = vmatpush2.msra.mxu0 0.0
        %806 = vmatprep.mubr.f32.mxu0 0.0
        %v807 = vand.u32 %v250, 4294901760
        %808 = vmatmul.mubr.f32.gmra.mxu0 %v807
        %v809 = vpop.f32.mrf.mxu0
        %v810 = vadd.f32 %v419, %v809
        %v811 = vpop.f32.mrf.mxu0
        %812 = vmatprep.mubr.f32.mxu0 0.0
        %v813 = vand.u32 %v253, 4294901760
        %814 = vmatmul.mubr.f32.gmra.mxu0 %v813
        %v815 = vpop.f32.mrf.mxu0
        %v816 = vadd.f32 %v429, %v815
        %v817 = vpop.f32.mrf.mxu0
        %818 = vmatprep.mubr.f32.mxu0 0.0
        %v819 = vand.u32 %v256, 4294901760
        %820 = vmatmul.mubr.f32.gmra.mxu0 %v819
        %v821 = vpop.f32.mrf.mxu0
        %v822 = vadd.f32 %v439, %v821
        %v823 = vpop.f32.mrf.mxu0
        %824 = vmatprep.mubr.f32.mxu0 0.0
        %v825 = vand.u32 %v259, 4294901760
        %826 = vmatmul.mubr.f32.gmra.mxu0 %v825
        %v827 = vpop.f32.mrf.mxu0
        %v828 = vadd.f32 %v449, %v827
        %v829 = vpop.f32.mrf.mxu0
        %830 = vmatprep.mubr.f32.mxu0 0.0
        %v831 = vand.u32 %v262, 4294901760
        %832 = vmatmul.mubr.f32.gmra.mxu0 %v831
        %v833 = vpop.f32.mrf.mxu0
        %v834 = vadd.f32 %v459, %v833
        %v835 = vpop.f32.mrf.mxu0
        %836 = vmatprep.mubr.f32.mxu0 0.0
        %v837 = vand.u32 %v265, 4294901760
        %838 = vmatmul.mubr.f32.gmra.mxu0 %v837
        %v839 = vpop.f32.mrf.mxu0
        %v840 = vadd.f32 %v469, %v839
        %v841 = vpop.f32.mrf.mxu0
        %842 = vmatprep.mubr.f32.mxu0 0.0
        %v843 = vand.u32 %v268, 4294901760
        %844 = vmatmul.mubr.f32.gmra.mxu0 %v843
        %v845 = vpop.f32.mrf.mxu0
        %v846 = vadd.f32 %v479, %v845
        %v847 = vpop.f32.mrf.mxu0
        %848 = vmatprep.mubr.f32.mxu0 0.0
        %v849 = vand.u32 %v271, 4294901760
        %850 = vmatmul.mubr.f32.gmra.mxu0 %v849
        %v851 = vpop.f32.mrf.mxu0
        %v852 = vadd.f32 %v489, %v851
        %v853 = vpop.f32.mrf.mxu0
        %854 = vmatprep.mubr.f32.mxu0 0.0
        %v855 = vand.u32 %v274, 4294901760
        %856 = vmatmul.mubr.f32.gmra.mxu0 %v855
        %v857 = vpop.f32.mrf.mxu0
        %v858 = vadd.f32 %v499, %v857
        %v859 = vpop.f32.mrf.mxu0
        %860 = vmatprep.mubr.f32.mxu0 0.0
        %v861 = vand.u32 %v277, 4294901760
        %862 = vmatmul.mubr.f32.gmra.mxu0 %v861
        %v863 = vpop.f32.mrf.mxu0
        %v864 = vadd.f32 %v509, %v863
        %v865 = vpop.f32.mrf.mxu0
        %866 = vmatprep.mubr.f32.mxu0 0.0
        %v867 = vand.u32 %v280, 4294901760
        %868 = vmatmul.mubr.f32.gmra.mxu0 %v867
        %v869 = vpop.f32.mrf.mxu0
        %v870 = vadd.f32 %v519, %v869
        %v871 = vpop.f32.mrf.mxu0
        %872 = vmatprep.mubr.f32.mxu0 0.0
        %v873 = vand.u32 %v283, 4294901760
        %874 = vmatmul.mubr.f32.gmra.mxu0 %v873
        %v875 = vpop.f32.mrf.mxu0
        %v876 = vadd.f32 %v529, %v875
        %v877 = vpop.f32.mrf.mxu0
        %878 = vmatprep.mubr.f32.mxu0 0.0
        %v879 = vand.u32 %v286, 4294901760
        %880 = vmatmul.mubr.f32.gmra.mxu0 %v879
        %v881 = vpop.f32.mrf.mxu0
        %v882 = vadd.f32 %v539, %v881
        %v883 = vpop.f32.mrf.mxu0
        %884 = vmatprep.mubr.f32.mxu0 0.0
        %v885 = vand.u32 %v289, 4294901760
        %886 = vmatmul.mubr.f32.gmra.mxu0 %v885
        %v887 = vpop.f32.mrf.mxu0
        %v888 = vadd.f32 %v549, %v887
        %v889 = vpop.f32.mrf.mxu0
        %890 = vmatprep.mubr.f32.mxu0 0.0
        %v891 = vand.u32 %v292, 4294901760
        %892 = vmatmul.mubr.f32.gmra.mxu0 %v891
        %v893 = vpop.f32.mrf.mxu0
        %v894 = vadd.f32 %v559, %v893
        %v895 = vpop.f32.mrf.mxu0
        %896 = vmatprep.mubr.f32.mxu0 0.0
        %v897 = vand.u32 %v295, 4294901760
        %898 = vmatmul.mubr.f32.gmra.mxu0 %v897
        %v899 = vpop.f32.mrf.mxu0
        %v900 = vadd.f32 %v569, %v899
        %v901 = vpop.f32.mrf.mxu0
        %902 = vmatprep.mubr.f32.mxu0 0.0
        %v903 = vand.u32 %v298, 4294901760
        %904 = vmatmul.mubr.f32.gmra.mxu0 %v903
        %v905 = vpop.f32.mrf.mxu0
        %v906 = vadd.f32 %v579, %v905
        %v907 = vpop.f32.mrf.mxu0
        %908 = vmatprep.mubr.f32.mxu0 0.0
        %v909 = vand.u32 %v301, 4294901760
        %910 = vmatmul.mubr.f32.gmra.mxu0 %v909
        %v911 = vpop.f32.mrf.mxu0
        %v912 = vadd.f32 %v589, %v911
        %v913 = vpop.f32.mrf.mxu0
        %914 = vmatprep.mubr.f32.mxu0 0.0
        %v915 = vand.u32 %v304, 4294901760
        %916 = vmatmul.mubr.f32.gmra.mxu0 %v915
        %v917 = vpop.f32.mrf.mxu0
        %v918 = vadd.f32 %v599, %v917
        %v919 = vpop.f32.mrf.mxu0
        %920 = vmatprep.mubr.f32.mxu0 0.0
        %v921 = vand.u32 %v307, 4294901760
        %922 = vmatmul.mubr.f32.gmra.mxu0 %v921
        %v923 = vpop.f32.mrf.mxu0
        %v924 = vadd.f32 %v609, %v923
        %v925 = vpop.f32.mrf.mxu0
        %926 = vmatprep.mubr.f32.mxu0 0.0
        %v927 = vand.u32 %v310, 4294901760
        %928 = vmatmul.mubr.f32.gmra.mxu0 %v927
        %v929 = vpop.f32.mrf.mxu0
        %v930 = vadd.f32 %v619, %v929
        %v931 = vpop.f32.mrf.mxu0
        %932 = vmatprep.mubr.f32.mxu0 0.0
        %v933 = vand.u32 %v313, 4294901760
        %934 = vmatmul.mubr.f32.gmra.mxu0 %v933
        %v935 = vpop.f32.mrf.mxu0
        %v936 = vadd.f32 %v629, %v935
        %v937 = vpop.f32.mrf.mxu0
        %938 = vmatprep.mubr.f32.mxu0 0.0
        %v939 = vand.u32 %v316, 4294901760
        %940 = vmatmul.mubr.f32.gmra.mxu0 %v939
        %v941 = vpop.f32.mrf.mxu0
        %v942 = vadd.f32 %v639, %v941
        %v943 = vpop.f32.mrf.mxu0
        %944 = vmatprep.mubr.f32.mxu0 0.0
        %v945 = vand.u32 %v319, 4294901760
        %946 = vmatmul.mubr.f32.gmra.mxu0 %v945
        %v947 = vpop.f32.mrf.mxu0
        %v948 = vadd.f32 %v649, %v947
        %v949 = vpop.f32.mrf.mxu0
        %950 = vmatprep.mubr.f32.mxu0 0.0
        %v951 = vand.u32 %v322, 4294901760
        %952 = vmatmul.mubr.f32.gmra.mxu0 %v951
        %v953 = vpop.f32.mrf.mxu0
        %v954 = vadd.f32 %v659, %v953
        %v955 = vpop.f32.mrf.mxu0
        %956 = vmatprep.mubr.f32.mxu0 0.0
        %v957 = vand.u32 %v325, 4294901760
        %958 = vmatmul.mubr.f32.gmra.mxu0 %v957
        %v959 = vpop.f32.mrf.mxu0
        %v960 = vadd.f32 %v669, %v959
        %v961 = vpop.f32.mrf.mxu0
        %962 = vmatprep.mubr.f32.mxu0 0.0
        %v963 = vand.u32 %v328, 4294901760
        %964 = vmatmul.mubr.f32.gmra.mxu0 %v963
        %v965 = vpop.f32.mrf.mxu0
        %v966 = vadd.f32 %v679, %v965
        %v967 = vpop.f32.mrf.mxu0
        %968 = vmatprep.mubr.f32.mxu0 0.0
        %v969 = vand.u32 %v331, 4294901760
        %970 = vmatmul.mubr.f32.gmra.mxu0 %v969
        %v971 = vpop.f32.mrf.mxu0
        %v972 = vadd.f32 %v689, %v971
        %v973 = vpop.f32.mrf.mxu0
        %974 = vmatprep.mubr.f32.mxu0 0.0
        %v975 = vand.u32 %v334, 4294901760
        %976 = vmatmul.mubr.f32.gmra.mxu0 %v975
        %v977 = vpop.f32.mrf.mxu0
        %v978 = vadd.f32 %v699, %v977
        %v979 = vpop.f32.mrf.mxu0
        %980 = vmatprep.mubr.f32.mxu0 0.0
        %v981 = vand.u32 %v337, 4294901760
        %982 = vmatmul.mubr.f32.gmra.mxu0 %v981
        %v983 = vpop.f32.mrf.mxu0
        %v984 = vadd.f32 %v709, %v983
        %v985 = vpop.f32.mrf.mxu0
        %986 = vmatprep.mubr.f32.mxu0 0.0
        %v987 = vand.u32 %v340, 4294901760
        %988 = vmatmul.mubr.f32.gmra.mxu0 %v987
        %v989 = vpop.f32.mrf.mxu0
        %v990 = vadd.f32 %v719, %v989
        %v991 = vpop.f32.mrf.mxu0
        %992 = vmatprep.mubr.f32.mxu0 0.0
        %v993 = vand.u32 %v343, 4294901760
        %994 = vmatmul.mubr.f32.gmra.mxu0 %v993
        %v995 = vpop.f32.mrf.mxu0
        %v996 = vadd.f32 %v729, %v995
        %v997 = vpop.f32.mrf.mxu0
        %998 = vdwg.mxu0
        %999 = vmatprep.subr.mxu0 0.0
        %1000 = vmatpush1.msra.mxu0 0.0
        %1001 = vmatprep.subr.mxu0 0.0
        %1002 = vmatpush1.msra.mxu0 0.0
        %1003 = vmatprep.subr.mxu0 0.0
        %1004 = vmatpush1.msra.mxu0 0.0
        %1005 = vmatprep.subr.mxu0 0.0
        %1006 = vmatpush1.msra.mxu0 0.0
        %1007 = vmatprep.subr.mxu0 0.0
        %1008 = vmatpush1.msra.mxu0 0.0
        %1009 = vmatprep.subr.mxu0 0.0
        %1010 = vmatpush1.msra.mxu0 0.0
        %1011 = vmatprep.subr.mxu0 0.0
        %1012 = vmatpush1.msra.mxu0 0.0
        %1013 = vmatprep.subr.mxu0 0.0
        %1014 = vmatpush1.msra.mxu0 0.0
        %1015 = vmatprep.subr.mxu0 0.0
        %1016 = vmatpush1.msra.mxu0 0.0
        %1017 = vmatprep.subr.mxu0 0.0
        %1018 = vmatpush1.msra.mxu0 0.0
        %1019 = vmatprep.subr.mxu0 0.0
        %1020 = vmatpush1.msra.mxu0 0.0
        %1021 = vmatprep.subr.mxu0 0.0
        %1022 = vmatpush1.msra.mxu0 0.0
        %1023 = vmatprep.subr.mxu0 0.0
        %1024 = vmatpush1.msra.mxu0 0.0
        %1025 = vmatprep.subr.mxu0 0.0
        %1026 = vmatpush1.msra.mxu0 0.0
        %1027 = vmatprep.subr.mxu0 0.0
        %v1028 = vand.u32 %v247, 4294901760
        %v1029 = vsub.f32 %v247, %v1028
        %1030 = vmatpush1.msra.mxu0 %v1029
        %1031 = vmatprep.subr.mxu0 0.0
        %v1032 = vand.u32 %v246, 4294901760
        %v1033 = vsub.f32 %v246, %v1032
        %1034 = vmatpush1.msra.mxu0 %v1033
        %1035 = vmatprep.subr.mxu0 0.0
        %1036 = vmatpush2.msra.mxu0 0.0
        %1037 = vmatprep.subr.mxu0 0.0
        %1038 = vmatpush2.msra.mxu0 0.0
        %1039 = vmatprep.subr.mxu0 0.0
        %1040 = vmatpush2.msra.mxu0 0.0
        %1041 = vmatprep.subr.mxu0 0.0
        %1042 = vmatpush2.msra.mxu0 0.0
        %1043 = vmatprep.subr.mxu0 0.0
        %1044 = vmatpush2.msra.mxu0 0.0
        %1045 = vmatprep.subr.mxu0 0.0
        %1046 = vmatpush2.msra.mxu0 0.0
        %1047 = vmatprep.subr.mxu0 0.0
        %1048 = vmatpush2.msra.mxu0 0.0
        %1049 = vmatprep.subr.mxu0 0.0
        %1050 = vmatpush2.msra.mxu0 0.0
        %1051 = vmatprep.subr.mxu0 0.0
        %1052 = vmatpush2.msra.mxu0 0.0
        %1053 = vmatprep.subr.mxu0 0.0
        %1054 = vmatpush2.msra.mxu0 0.0
        %1055 = vmatprep.subr.mxu0 0.0
        %1056 = vmatpush2.msra.mxu0 0.0
        %1057 = vmatprep.subr.mxu0 0.0
        %1058 = vmatpush2.msra.mxu0 0.0
        %1059 = vmatprep.subr.mxu0 0.0
        %1060 = vmatpush2.msra.mxu0 0.0
        %1061 = vmatprep.subr.mxu0 0.0
        %1062 = vmatpush2.msra.mxu0 0.0
        %1063 = vmatprep.subr.mxu0 0.0
        %1064 = vmatpush2.msra.mxu0 0.0
        %1065 = vmatprep.subr.mxu0 0.0
        %1066 = vmatpush2.msra.mxu0 0.0
        %1067 = vmatprep.mubr.f32.mxu0 0.0
        %v1068 = vand.u32 %v250, 4294901760
        %v1069 = vsub.f32 %v250, %v1068
        %1070 = vmatmul.mubr.f32.gmra.mxu0 %v1069
        %v1071 = vpop.f32.mrf.mxu0
        %v1072 = vadd.f32 %v810, %v1071
        %v1073 = vpop.f32.mrf.mxu0
        %1074 = vmatprep.mubr.f32.mxu0 0.0
        %v1075 = vand.u32 %v253, 4294901760
        %v1076 = vsub.f32 %v253, %v1075
        %1077 = vmatmul.mubr.f32.gmra.mxu0 %v1076
        %v1078 = vpop.f32.mrf.mxu0
        %v1079 = vadd.f32 %v816, %v1078
        %v1080 = vpop.f32.mrf.mxu0
        %1081 = vmatprep.mubr.f32.mxu0 0.0
        %v1082 = vand.u32 %v256, 4294901760
        %v1083 = vsub.f32 %v256, %v1082
        %1084 = vmatmul.mubr.f32.gmra.mxu0 %v1083
        %v1085 = vpop.f32.mrf.mxu0
        %v1086 = vadd.f32 %v822, %v1085
        %v1087 = vpop.f32.mrf.mxu0
        %1088 = vmatprep.mubr.f32.mxu0 0.0
        %v1089 = vand.u32 %v259, 4294901760
        %v1090 = vsub.f32 %v259, %v1089
        %1091 = vmatmul.mubr.f32.gmra.mxu0 %v1090
        %v1092 = vpop.f32.mrf.mxu0
        %v1093 = vadd.f32 %v828, %v1092
        %v1094 = vpop.f32.mrf.mxu0
        %1095 = vmatprep.mubr.f32.mxu0 0.0
        %v1096 = vand.u32 %v262, 4294901760
        %v1097 = vsub.f32 %v262, %v1096
        %1098 = vmatmul.mubr.f32.gmra.mxu0 %v1097
        %v1099 = vpop.f32.mrf.mxu0
        %v1100 = vadd.f32 %v834, %v1099
        %v1101 = vpop.f32.mrf.mxu0
        %1102 = vmatprep.mubr.f32.mxu0 0.0
        %v1103 = vand.u32 %v265, 4294901760
        %v1104 = vsub.f32 %v265, %v1103
        %1105 = vmatmul.mubr.f32.gmra.mxu0 %v1104
        %v1106 = vpop.f32.mrf.mxu0
        %v1107 = vadd.f32 %v840, %v1106
        %v1108 = vpop.f32.mrf.mxu0
        %1109 = vmatprep.mubr.f32.mxu0 0.0
        %v1110 = vand.u32 %v268, 4294901760
        %v1111 = vsub.f32 %v268, %v1110
        %1112 = vmatmul.mubr.f32.gmra.mxu0 %v1111
        %v1113 = vpop.f32.mrf.mxu0
        %v1114 = vadd.f32 %v846, %v1113
        %v1115 = vpop.f32.mrf.mxu0
        %1116 = vmatprep.mubr.f32.mxu0 0.0
        %v1117 = vand.u32 %v271, 4294901760
        %v1118 = vsub.f32 %v271, %v1117
        %1119 = vmatmul.mubr.f32.gmra.mxu0 %v1118
        %v1120 = vpop.f32.mrf.mxu0
        %v1121 = vadd.f32 %v852, %v1120
        %v1122 = vpop.f32.mrf.mxu0
        %1123 = vmatprep.mubr.f32.mxu0 0.0
        %v1124 = vand.u32 %v274, 4294901760
        %v1125 = vsub.f32 %v274, %v1124
        %1126 = vmatmul.mubr.f32.gmra.mxu0 %v1125
        %v1127 = vpop.f32.mrf.mxu0
        %v1128 = vadd.f32 %v858, %v1127
        %v1129 = vpop.f32.mrf.mxu0
        %1130 = vmatprep.mubr.f32.mxu0 0.0
        %v1131 = vand.u32 %v277, 4294901760
        %v1132 = vsub.f32 %v277, %v1131
        %1133 = vmatmul.mubr.f32.gmra.mxu0 %v1132
        %v1134 = vpop.f32.mrf.mxu0
        %v1135 = vadd.f32 %v864, %v1134
        %v1136 = vpop.f32.mrf.mxu0
        %1137 = vmatprep.mubr.f32.mxu0 0.0
        %v1138 = vand.u32 %v280, 4294901760
        %v1139 = vsub.f32 %v280, %v1138
        %1140 = vmatmul.mubr.f32.gmra.mxu0 %v1139
        %v1141 = vpop.f32.mrf.mxu0
        %v1142 = vadd.f32 %v870, %v1141
        %v1143 = vpop.f32.mrf.mxu0
        %1144 = vmatprep.mubr.f32.mxu0 0.0
        %v1145 = vand.u32 %v283, 4294901760
        %v1146 = vsub.f32 %v283, %v1145
        %1147 = vmatmul.mubr.f32.gmra.mxu0 %v1146
        %v1148 = vpop.f32.mrf.mxu0
        %v1149 = vadd.f32 %v876, %v1148
        %v1150 = vpop.f32.mrf.mxu0
        %1151 = vmatprep.mubr.f32.mxu0 0.0
        %v1152 = vand.u32 %v286, 4294901760
        %v1153 = vsub.f32 %v286, %v1152
        %1154 = vmatmul.mubr.f32.gmra.mxu0 %v1153
        %v1155 = vpop.f32.mrf.mxu0
        %v1156 = vadd.f32 %v882, %v1155
        %v1157 = vpop.f32.mrf.mxu0
        %1158 = vmatprep.mubr.f32.mxu0 0.0
        %v1159 = vand.u32 %v289, 4294901760
        %v1160 = vsub.f32 %v289, %v1159
        %1161 = vmatmul.mubr.f32.gmra.mxu0 %v1160
        %v1162 = vpop.f32.mrf.mxu0
        %v1163 = vadd.f32 %v888, %v1162
        %v1164 = vpop.f32.mrf.mxu0
        %1165 = vmatprep.mubr.f32.mxu0 0.0
        %v1166 = vand.u32 %v292, 4294901760
        %v1167 = vsub.f32 %v292, %v1166
        %1168 = vmatmul.mubr.f32.gmra.mxu0 %v1167
        %v1169 = vpop.f32.mrf.mxu0
        %v1170 = vadd.f32 %v894, %v1169
        %v1171 = vpop.f32.mrf.mxu0
        %1172 = vmatprep.mubr.f32.mxu0 0.0
        %v1173 = vand.u32 %v295, 4294901760
        %v1174 = vsub.f32 %v295, %v1173
        %1175 = vmatmul.mubr.f32.gmra.mxu0 %v1174
        %v1176 = vpop.f32.mrf.mxu0
        %v1177 = vadd.f32 %v900, %v1176
        %v1178 = vpop.f32.mrf.mxu0
        %1179 = vmatprep.mubr.f32.mxu0 0.0
        %v1180 = vand.u32 %v298, 4294901760
        %v1181 = vsub.f32 %v298, %v1180
        %1182 = vmatmul.mubr.f32.gmra.mxu0 %v1181
        %v1183 = vpop.f32.mrf.mxu0
        %v1184 = vadd.f32 %v906, %v1183
        %v1185 = vpop.f32.mrf.mxu0
        %1186 = vmatprep.mubr.f32.mxu0 0.0
        %v1187 = vand.u32 %v301, 4294901760
        %v1188 = vsub.f32 %v301, %v1187
        %1189 = vmatmul.mubr.f32.gmra.mxu0 %v1188
        %v1190 = vpop.f32.mrf.mxu0
        %v1191 = vadd.f32 %v912, %v1190
        %v1192 = vpop.f32.mrf.mxu0
        %1193 = vmatprep.mubr.f32.mxu0 0.0
        %v1194 = vand.u32 %v304, 4294901760
        %v1195 = vsub.f32 %v304, %v1194
        %1196 = vmatmul.mubr.f32.gmra.mxu0 %v1195
        %v1197 = vpop.f32.mrf.mxu0
        %v1198 = vadd.f32 %v918, %v1197
        %v1199 = vpop.f32.mrf.mxu0
        %1200 = vmatprep.mubr.f32.mxu0 0.0
        %v1201 = vand.u32 %v307, 4294901760
        %v1202 = vsub.f32 %v307, %v1201
        %1203 = vmatmul.mubr.f32.gmra.mxu0 %v1202
        %v1204 = vpop.f32.mrf.mxu0
        %v1205 = vadd.f32 %v924, %v1204
        %v1206 = vpop.f32.mrf.mxu0
        %1207 = vmatprep.mubr.f32.mxu0 0.0
        %v1208 = vand.u32 %v310, 4294901760
        %v1209 = vsub.f32 %v310, %v1208
        %1210 = vmatmul.mubr.f32.gmra.mxu0 %v1209
        %v1211 = vpop.f32.mrf.mxu0
        %v1212 = vadd.f32 %v930, %v1211
        %v1213 = vpop.f32.mrf.mxu0
        %1214 = vmatprep.mubr.f32.mxu0 0.0
        %v1215 = vand.u32 %v313, 4294901760
        %v1216 = vsub.f32 %v313, %v1215
        %1217 = vmatmul.mubr.f32.gmra.mxu0 %v1216
        %v1218 = vpop.f32.mrf.mxu0
        %v1219 = vadd.f32 %v936, %v1218
        %v1220 = vpop.f32.mrf.mxu0
        %1221 = vmatprep.mubr.f32.mxu0 0.0
        %v1222 = vand.u32 %v316, 4294901760
        %v1223 = vsub.f32 %v316, %v1222
        %1224 = vmatmul.mubr.f32.gmra.mxu0 %v1223
        %v1225 = vpop.f32.mrf.mxu0
        %v1226 = vadd.f32 %v942, %v1225
        %v1227 = vpop.f32.mrf.mxu0
        %1228 = vmatprep.mubr.f32.mxu0 0.0
        %v1229 = vand.u32 %v319, 4294901760
        %v1230 = vsub.f32 %v319, %v1229
        %1231 = vmatmul.mubr.f32.gmra.mxu0 %v1230
        %v1232 = vpop.f32.mrf.mxu0
        %v1233 = vadd.f32 %v948, %v1232
        %v1234 = vpop.f32.mrf.mxu0
        %1235 = vmatprep.mubr.f32.mxu0 0.0
        %v1236 = vand.u32 %v322, 4294901760
        %v1237 = vsub.f32 %v322, %v1236
        %1238 = vmatmul.mubr.f32.gmra.mxu0 %v1237
        %v1239 = vpop.f32.mrf.mxu0
        %v1240 = vadd.f32 %v954, %v1239
        %v1241 = vpop.f32.mrf.mxu0
        %1242 = vmatprep.mubr.f32.mxu0 0.0
        %v1243 = vand.u32 %v325, 4294901760
        %v1244 = vsub.f32 %v325, %v1243
        %1245 = vmatmul.mubr.f32.gmra.mxu0 %v1244
        %v1246 = vpop.f32.mrf.mxu0
        %v1247 = vadd.f32 %v960, %v1246
        %v1248 = vpop.f32.mrf.mxu0
        %1249 = vmatprep.mubr.f32.mxu0 0.0
        %v1250 = vand.u32 %v328, 4294901760
        %v1251 = vsub.f32 %v328, %v1250
        %1252 = vmatmul.mubr.f32.gmra.mxu0 %v1251
        %v1253 = vpop.f32.mrf.mxu0
        %v1254 = vadd.f32 %v966, %v1253
        %v1255 = vpop.f32.mrf.mxu0
        %1256 = vmatprep.mubr.f32.mxu0 0.0
        %v1257 = vand.u32 %v331, 4294901760
        %v1258 = vsub.f32 %v331, %v1257
        %1259 = vmatmul.mubr.f32.gmra.mxu0 %v1258
        %v1260 = vpop.f32.mrf.mxu0
        %v1261 = vadd.f32 %v972, %v1260
        %v1262 = vpop.f32.mrf.mxu0
        %1263 = vmatprep.mubr.f32.mxu0 0.0
        %v1264 = vand.u32 %v334, 4294901760
        %v1265 = vsub.f32 %v334, %v1264
        %1266 = vmatmul.mubr.f32.gmra.mxu0 %v1265
        %v1267 = vpop.f32.mrf.mxu0
        %v1268 = vadd.f32 %v978, %v1267
        %v1269 = vpop.f32.mrf.mxu0
        %1270 = vmatprep.mubr.f32.mxu0 0.0
        %v1271 = vand.u32 %v337, 4294901760
        %v1272 = vsub.f32 %v337, %v1271
        %1273 = vmatmul.mubr.f32.gmra.mxu0 %v1272
        %v1274 = vpop.f32.mrf.mxu0
        %v1275 = vadd.f32 %v984, %v1274
        %v1276 = vpop.f32.mrf.mxu0
        %1277 = vmatprep.mubr.f32.mxu0 0.0
        %v1278 = vand.u32 %v340, 4294901760
        %v1279 = vsub.f32 %v340, %v1278
        %1280 = vmatmul.mubr.f32.gmra.mxu0 %v1279
        %v1281 = vpop.f32.mrf.mxu0
        %v1282 = vadd.f32 %v990, %v1281
        %v1283 = vpop.f32.mrf.mxu0
        %1284 = vmatprep.mubr.f32.mxu0 0.0
        %v1285 = vand.u32 %v343, 4294901760
        %v1286 = vsub.f32 %v343, %v1285
        %1287 = vmatmul.mubr.f32.gmra.mxu0 %v1286
        %v1288 = vpop.f32.mrf.mxu0
        %v1289 = vadd.f32 %v996, %v1288
        %v1290 = vpop.f32.mrf.mxu0
        %1291 = vdwg.mxu0
        %1292 = vmatprep.subr.mxu0 0.0
        %1293 = vmatpush1.msra.mxu0 0.0
        %1294 = vmatprep.subr.mxu0 0.0
        %1295 = vmatpush1.msra.mxu0 0.0
        %1296 = vmatprep.subr.mxu0 0.0
        %1297 = vmatpush1.msra.mxu0 0.0
        %1298 = vmatprep.subr.mxu0 0.0
        %1299 = vmatpush1.msra.mxu0 0.0
        %1300 = vmatprep.subr.mxu0 0.0
        %1301 = vmatpush1.msra.mxu0 0.0
        %1302 = vmatprep.subr.mxu0 0.0
        %1303 = vmatpush1.msra.mxu0 0.0
        %1304 = vmatprep.subr.mxu0 0.0
        %1305 = vmatpush1.msra.mxu0 0.0
        %1306 = vmatprep.subr.mxu0 0.0
        %1307 = vmatpush1.msra.mxu0 0.0
        %1308 = vmatprep.subr.mxu0 0.0
        %1309 = vmatpush1.msra.mxu0 0.0
        %1310 = vmatprep.subr.mxu0 0.0
        %1311 = vmatpush1.msra.mxu0 0.0
        %1312 = vmatprep.subr.mxu0 0.0
        %1313 = vmatpush1.msra.mxu0 0.0
        %1314 = vmatprep.subr.mxu0 0.0
        %1315 = vmatpush1.msra.mxu0 0.0
        %1316 = vmatprep.subr.mxu0 0.0
        %1317 = vmatpush1.msra.mxu0 0.0
        %1318 = vmatprep.subr.mxu0 0.0
        %1319 = vmatpush1.msra.mxu0 0.0
        %1320 = vmatprep.subr.mxu0 0.0
        %v1321 = vand.u32 %v247, 4294901760
        %1322 = vmatpush1.msra.mxu0 %v1321
        %1323 = vmatprep.subr.mxu0 0.0
        %v1324 = vand.u32 %v246, 4294901760
        %1325 = vmatpush1.msra.mxu0 %v1324
        %1326 = vmatprep.subr.mxu0 0.0
        %1327 = vmatpush2.msra.mxu0 0.0
        %1328 = vmatprep.subr.mxu0 0.0
        %1329 = vmatpush2.msra.mxu0 0.0
        %1330 = vmatprep.subr.mxu0 0.0
        %1331 = vmatpush2.msra.mxu0 0.0
        %1332 = vmatprep.subr.mxu0 0.0
        %1333 = vmatpush2.msra.mxu0 0.0
        %1334 = vmatprep.subr.mxu0 0.0
        %1335 = vmatpush2.msra.mxu0 0.0
        %1336 = vmatprep.subr.mxu0 0.0
        %1337 = vmatpush2.msra.mxu0 0.0
        %1338 = vmatprep.subr.mxu0 0.0
        %1339 = vmatpush2.msra.mxu0 0.0
        %1340 = vmatprep.subr.mxu0 0.0
        %1341 = vmatpush2.msra.mxu0 0.0
        %1342 = vmatprep.subr.mxu0 0.0
        %1343 = vmatpush2.msra.mxu0 0.0
        %1344 = vmatprep.subr.mxu0 0.0
        %1345 = vmatpush2.msra.mxu0 0.0
        %1346 = vmatprep.subr.mxu0 0.0
        %1347 = vmatpush2.msra.mxu0 0.0
        %1348 = vmatprep.subr.mxu0 0.0
        %1349 = vmatpush2.msra.mxu0 0.0
        %1350 = vmatprep.subr.mxu0 0.0
        %1351 = vmatpush2.msra.mxu0 0.0
        %1352 = vmatprep.subr.mxu0 0.0
        %1353 = vmatpush2.msra.mxu0 0.0
        %1354 = vmatprep.subr.mxu0 0.0
        %1355 = vmatpush2.msra.mxu0 0.0
        %1356 = vmatprep.subr.mxu0 0.0
        %1357 = vmatpush2.msra.mxu0 0.0
        %1358 = vmatprep.mubr.f32.mxu0 0.0
        %v1359 = vand.u32 %v250, 4294901760
        %v1360 = vsub.f32 %v250, %v1359
        %v1361 = vand.u32 %v1360, 4294901760
        %1362 = vmatmul.mubr.f32.gmra.mxu0 %v1361
        %v1363 = vpop.f32.mrf.mxu0
        %v1364 = vadd.f32 %v1072, %v1363
        %v1365 = vpop.f32.mrf.mxu0
        %1366 = vmatprep.mubr.f32.mxu0 0.0
        %v1367 = vand.u32 %v253, 4294901760
        %v1368 = vsub.f32 %v253, %v1367
        %v1369 = vand.u32 %v1368, 4294901760
        %1370 = vmatmul.mubr.f32.gmra.mxu0 %v1369
        %v1371 = vpop.f32.mrf.mxu0
        %v1372 = vadd.f32 %v1079, %v1371
        %v1373 = vpop.f32.mrf.mxu0
        %1374 = vmatprep.mubr.f32.mxu0 0.0
        %v1375 = vand.u32 %v256, 4294901760
        %v1376 = vsub.f32 %v256, %v1375
        %v1377 = vand.u32 %v1376, 4294901760
        %1378 = vmatmul.mubr.f32.gmra.mxu0 %v1377
        %v1379 = vpop.f32.mrf.mxu0
        %v1380 = vadd.f32 %v1086, %v1379
        %v1381 = vpop.f32.mrf.mxu0
        %1382 = vmatprep.mubr.f32.mxu0 0.0
        %v1383 = vand.u32 %v259, 4294901760
        %v1384 = vsub.f32 %v259, %v1383
        %v1385 = vand.u32 %v1384, 4294901760
        %1386 = vmatmul.mubr.f32.gmra.mxu0 %v1385
        %v1387 = vpop.f32.mrf.mxu0
        %v1388 = vadd.f32 %v1093, %v1387
        %v1389 = vpop.f32.mrf.mxu0
        %1390 = vmatprep.mubr.f32.mxu0 0.0
        %v1391 = vand.u32 %v262, 4294901760
        %v1392 = vsub.f32 %v262, %v1391
        %v1393 = vand.u32 %v1392, 4294901760
        %1394 = vmatmul.mubr.f32.gmra.mxu0 %v1393
        %v1395 = vpop.f32.mrf.mxu0
        %v1396 = vadd.f32 %v1100, %v1395
        %v1397 = vpop.f32.mrf.mxu0
        %1398 = vmatprep.mubr.f32.mxu0 0.0
        %v1399 = vand.u32 %v265, 4294901760
        %v1400 = vsub.f32 %v265, %v1399
        %v1401 = vand.u32 %v1400, 4294901760
        %1402 = vmatmul.mubr.f32.gmra.mxu0 %v1401
        %v1403 = vpop.f32.mrf.mxu0
        %v1404 = vadd.f32 %v1107, %v1403
        %v1405 = vpop.f32.mrf.mxu0
        %1406 = vmatprep.mubr.f32.mxu0 0.0
        %v1407 = vand.u32 %v268, 4294901760
        %v1408 = vsub.f32 %v268, %v1407
        %v1409 = vand.u32 %v1408, 4294901760
        %1410 = vmatmul.mubr.f32.gmra.mxu0 %v1409
        %v1411 = vpop.f32.mrf.mxu0
        %v1412 = vadd.f32 %v1114, %v1411
        %v1413 = vpop.f32.mrf.mxu0
        %1414 = vmatprep.mubr.f32.mxu0 0.0
        %v1415 = vand.u32 %v271, 4294901760
        %v1416 = vsub.f32 %v271, %v1415
        %v1417 = vand.u32 %v1416, 4294901760
        %1418 = vmatmul.mubr.f32.gmra.mxu0 %v1417
        %v1419 = vpop.f32.mrf.mxu0
        %v1420 = vadd.f32 %v1121, %v1419
        %v1421 = vpop.f32.mrf.mxu0
        %1422 = vmatprep.mubr.f32.mxu0 0.0
        %v1423 = vand.u32 %v274, 4294901760
        %v1424 = vsub.f32 %v274, %v1423
        %v1425 = vand.u32 %v1424, 4294901760
        %1426 = vmatmul.mubr.f32.gmra.mxu0 %v1425
        %v1427 = vpop.f32.mrf.mxu0
        %v1428 = vadd.f32 %v1128, %v1427
        %v1429 = vpop.f32.mrf.mxu0
        %1430 = vmatprep.mubr.f32.mxu0 0.0
        %v1431 = vand.u32 %v277, 4294901760
        %v1432 = vsub.f32 %v277, %v1431
        %v1433 = vand.u32 %v1432, 4294901760
        %1434 = vmatmul.mubr.f32.gmra.mxu0 %v1433
        %v1435 = vpop.f32.mrf.mxu0
        %v1436 = vadd.f32 %v1135, %v1435
        %v1437 = vpop.f32.mrf.mxu0
        %1438 = vmatprep.mubr.f32.mxu0 0.0
        %v1439 = vand.u32 %v280, 4294901760
        %v1440 = vsub.f32 %v280, %v1439
        %v1441 = vand.u32 %v1440, 4294901760
        %1442 = vmatmul.mubr.f32.gmra.mxu0 %v1441
        %v1443 = vpop.f32.mrf.mxu0
        %v1444 = vadd.f32 %v1142, %v1443
        %v1445 = vpop.f32.mrf.mxu0
        %1446 = vmatprep.mubr.f32.mxu0 0.0
        %v1447 = vand.u32 %v283, 4294901760
        %v1448 = vsub.f32 %v283, %v1447
        %v1449 = vand.u32 %v1448, 4294901760
        %1450 = vmatmul.mubr.f32.gmra.mxu0 %v1449
        %v1451 = vpop.f32.mrf.mxu0
        %v1452 = vadd.f32 %v1149, %v1451
        %v1453 = vpop.f32.mrf.mxu0
        %1454 = vmatprep.mubr.f32.mxu0 0.0
        %v1455 = vand.u32 %v286, 4294901760
        %v1456 = vsub.f32 %v286, %v1455
        %v1457 = vand.u32 %v1456, 4294901760
        %1458 = vmatmul.mubr.f32.gmra.mxu0 %v1457
        %v1459 = vpop.f32.mrf.mxu0
        %v1460 = vadd.f32 %v1156, %v1459
        %v1461 = vpop.f32.mrf.mxu0
        %1462 = vmatprep.mubr.f32.mxu0 0.0
        %v1463 = vand.u32 %v289, 4294901760
        %v1464 = vsub.f32 %v289, %v1463
        %v1465 = vand.u32 %v1464, 4294901760
        %1466 = vmatmul.mubr.f32.gmra.mxu0 %v1465
        %v1467 = vpop.f32.mrf.mxu0
        %v1468 = vadd.f32 %v1163, %v1467
        %v1469 = vpop.f32.mrf.mxu0
        %1470 = vmatprep.mubr.f32.mxu0 0.0
        %v1471 = vand.u32 %v292, 4294901760
        %v1472 = vsub.f32 %v292, %v1471
        %v1473 = vand.u32 %v1472, 4294901760
        %1474 = vmatmul.mubr.f32.gmra.mxu0 %v1473
        %v1475 = vpop.f32.mrf.mxu0
        %v1476 = vadd.f32 %v1170, %v1475
        %v1477 = vpop.f32.mrf.mxu0
        %1478 = vmatprep.mubr.f32.mxu0 0.0
        %v1479 = vand.u32 %v295, 4294901760
        %v1480 = vsub.f32 %v295, %v1479
        %v1481 = vand.u32 %v1480, 4294901760
        %1482 = vmatmul.mubr.f32.gmra.mxu0 %v1481
        %v1483 = vpop.f32.mrf.mxu0
        %v1484 = vadd.f32 %v1177, %v1483
        %v1485 = vpop.f32.mrf.mxu0
        %1486 = vmatprep.mubr.f32.mxu0 0.0
        %v1487 = vand.u32 %v298, 4294901760
        %v1488 = vsub.f32 %v298, %v1487
        %v1489 = vand.u32 %v1488, 4294901760
        %1490 = vmatmul.mubr.f32.gmra.mxu0 %v1489
        %v1491 = vpop.f32.mrf.mxu0
        %v1492 = vadd.f32 %v1184, %v1491
        %v1493 = vpop.f32.mrf.mxu0
        %1494 = vmatprep.mubr.f32.mxu0 0.0
        %v1495 = vand.u32 %v301, 4294901760
        %v1496 = vsub.f32 %v301, %v1495
        %v1497 = vand.u32 %v1496, 4294901760
        %1498 = vmatmul.mubr.f32.gmra.mxu0 %v1497
        %v1499 = vpop.f32.mrf.mxu0
        %v1500 = vadd.f32 %v1191, %v1499
        %v1501 = vpop.f32.mrf.mxu0
        %1502 = vmatprep.mubr.f32.mxu0 0.0
        %v1503 = vand.u32 %v304, 4294901760
        %v1504 = vsub.f32 %v304, %v1503
        %v1505 = vand.u32 %v1504, 4294901760
        %1506 = vmatmul.mubr.f32.gmra.mxu0 %v1505
        %v1507 = vpop.f32.mrf.mxu0
        %v1508 = vadd.f32 %v1198, %v1507
        %v1509 = vpop.f32.mrf.mxu0
        %1510 = vmatprep.mubr.f32.mxu0 0.0
        %v1511 = vand.u32 %v307, 4294901760
        %v1512 = vsub.f32 %v307, %v1511
        %v1513 = vand.u32 %v1512, 4294901760
        %1514 = vmatmul.mubr.f32.gmra.mxu0 %v1513
        %v1515 = vpop.f32.mrf.mxu0
        %v1516 = vadd.f32 %v1205, %v1515
        %v1517 = vpop.f32.mrf.mxu0
        %1518 = vmatprep.mubr.f32.mxu0 0.0
        %v1519 = vand.u32 %v310, 4294901760
        %v1520 = vsub.f32 %v310, %v1519
        %v1521 = vand.u32 %v1520, 4294901760
        %1522 = vmatmul.mubr.f32.gmra.mxu0 %v1521
        %v1523 = vpop.f32.mrf.mxu0
        %v1524 = vadd.f32 %v1212, %v1523
        %v1525 = vpop.f32.mrf.mxu0
        %1526 = vmatprep.mubr.f32.mxu0 0.0
        %v1527 = vand.u32 %v313, 4294901760
        %v1528 = vsub.f32 %v313, %v1527
        %v1529 = vand.u32 %v1528, 4294901760
        %1530 = vmatmul.mubr.f32.gmra.mxu0 %v1529
        %v1531 = vpop.f32.mrf.mxu0
        %v1532 = vadd.f32 %v1219, %v1531
        %v1533 = vpop.f32.mrf.mxu0
        %1534 = vmatprep.mubr.f32.mxu0 0.0
        %v1535 = vand.u32 %v316, 4294901760
        %v1536 = vsub.f32 %v316, %v1535
        %v1537 = vand.u32 %v1536, 4294901760
        %1538 = vmatmul.mubr.f32.gmra.mxu0 %v1537
        %v1539 = vpop.f32.mrf.mxu0
        %v1540 = vadd.f32 %v1226, %v1539
        %v1541 = vpop.f32.mrf.mxu0
        %1542 = vmatprep.mubr.f32.mxu0 0.0
        %v1543 = vand.u32 %v319, 4294901760
        %v1544 = vsub.f32 %v319, %v1543
        %v1545 = vand.u32 %v1544, 4294901760
        %1546 = vmatmul.mubr.f32.gmra.mxu0 %v1545
        %v1547 = vpop.f32.mrf.mxu0
        %v1548 = vadd.f32 %v1233, %v1547
        %v1549 = vpop.f32.mrf.mxu0
        %1550 = vmatprep.mubr.f32.mxu0 0.0
        %v1551 = vand.u32 %v322, 4294901760
        %v1552 = vsub.f32 %v322, %v1551
        %v1553 = vand.u32 %v1552, 4294901760
        %1554 = vmatmul.mubr.f32.gmra.mxu0 %v1553
        %v1555 = vpop.f32.mrf.mxu0
        %v1556 = vadd.f32 %v1240, %v1555
        %v1557 = vpop.f32.mrf.mxu0
        %1558 = vmatprep.mubr.f32.mxu0 0.0
        %v1559 = vand.u32 %v325, 4294901760
        %v1560 = vsub.f32 %v325, %v1559
        %v1561 = vand.u32 %v1560, 4294901760
        %1562 = vmatmul.mubr.f32.gmra.mxu0 %v1561
        %v1563 = vpop.f32.mrf.mxu0
        %v1564 = vadd.f32 %v1247, %v1563
        %v1565 = vpop.f32.mrf.mxu0
        %1566 = vmatprep.mubr.f32.mxu0 0.0
        %v1567 = vand.u32 %v328, 4294901760
        %v1568 = vsub.f32 %v328, %v1567
        %v1569 = vand.u32 %v1568, 4294901760
        %1570 = vmatmul.mubr.f32.gmra.mxu0 %v1569
        %v1571 = vpop.f32.mrf.mxu0
        %v1572 = vadd.f32 %v1254, %v1571
        %v1573 = vpop.f32.mrf.mxu0
        %1574 = vmatprep.mubr.f32.mxu0 0.0
        %v1575 = vand.u32 %v331, 4294901760
        %v1576 = vsub.f32 %v331, %v1575
        %v1577 = vand.u32 %v1576, 4294901760
        %1578 = vmatmul.mubr.f32.gmra.mxu0 %v1577
        %v1579 = vpop.f32.mrf.mxu0
        %v1580 = vadd.f32 %v1261, %v1579
        %v1581 = vpop.f32.mrf.mxu0
        %1582 = vmatprep.mubr.f32.mxu0 0.0
        %v1583 = vand.u32 %v334, 4294901760
        %v1584 = vsub.f32 %v334, %v1583
        %v1585 = vand.u32 %v1584, 4294901760
        %1586 = vmatmul.mubr.f32.gmra.mxu0 %v1585
        %v1587 = vpop.f32.mrf.mxu0
        %v1588 = vadd.f32 %v1268, %v1587
        %v1589 = vpop.f32.mrf.mxu0
        %1590 = vmatprep.mubr.f32.mxu0 0.0
        %v1591 = vand.u32 %v337, 4294901760
        %v1592 = vsub.f32 %v337, %v1591
        %v1593 = vand.u32 %v1592, 4294901760
        %1594 = vmatmul.mubr.f32.gmra.mxu0 %v1593
        %v1595 = vpop.f32.mrf.mxu0
        %v1596 = vadd.f32 %v1275, %v1595
        %v1597 = vpop.f32.mrf.mxu0
        %1598 = vmatprep.mubr.f32.mxu0 0.0
        %v1599 = vand.u32 %v340, 4294901760
        %v1600 = vsub.f32 %v340, %v1599
        %v1601 = vand.u32 %v1600, 4294901760
        %1602 = vmatmul.mubr.f32.gmra.mxu0 %v1601
        %v1603 = vpop.f32.mrf.mxu0
        %v1604 = vadd.f32 %v1282, %v1603
        %v1605 = vpop.f32.mrf.mxu0
        %1606 = vmatprep.mubr.f32.mxu0 0.0
        %v1607 = vand.u32 %v343, 4294901760
        %v1608 = vsub.f32 %v343, %v1607
        %v1609 = vand.u32 %v1608, 4294901760
        %1610 = vmatmul.mubr.f32.gmra.mxu0 %v1609
        %v1611 = vpop.f32.mrf.mxu0
        %v1612 = vadd.f32 %v1289, %v1611
        %v1613 = vpop.f32.mrf.mxu0
        %1614 = vdwg.mxu0
        %1615 = vmatprep.subr.mxu0 0.0
        %1616 = vmatpush1.msra.mxu0 0.0
        %1617 = vmatprep.subr.mxu0 0.0
        %1618 = vmatpush1.msra.mxu0 0.0
        %1619 = vmatprep.subr.mxu0 0.0
        %1620 = vmatpush1.msra.mxu0 0.0
        %1621 = vmatprep.subr.mxu0 0.0
        %1622 = vmatpush1.msra.mxu0 0.0
        %1623 = vmatprep.subr.mxu0 0.0
        %1624 = vmatpush1.msra.mxu0 0.0
        %1625 = vmatprep.subr.mxu0 0.0
        %1626 = vmatpush1.msra.mxu0 0.0
        %1627 = vmatprep.subr.mxu0 0.0
        %1628 = vmatpush1.msra.mxu0 0.0
        %1629 = vmatprep.subr.mxu0 0.0
        %1630 = vmatpush1.msra.mxu0 0.0
        %1631 = vmatprep.subr.mxu0 0.0
        %1632 = vmatpush1.msra.mxu0 0.0
        %1633 = vmatprep.subr.mxu0 0.0
        %1634 = vmatpush1.msra.mxu0 0.0
        %1635 = vmatprep.subr.mxu0 0.0
        %1636 = vmatpush1.msra.mxu0 0.0
        %1637 = vmatprep.subr.mxu0 0.0
        %1638 = vmatpush1.msra.mxu0 0.0
        %1639 = vmatprep.subr.mxu0 0.0
        %1640 = vmatpush1.msra.mxu0 0.0
        %1641 = vmatprep.subr.mxu0 0.0
        %1642 = vmatpush1.msra.mxu0 0.0
        %1643 = vmatprep.subr.mxu0 0.0
        %v1644 = vand.u32 %v247, 4294901760
        %v1645 = vsub.f32 %v247, %v1644
        %v1646 = vand.u32 %v1645, 4294901760
        %1647 = vmatpush1.msra.mxu0 %v1646
        %1648 = vmatprep.subr.mxu0 0.0
        %v1649 = vand.u32 %v246, 4294901760
        %v1650 = vsub.f32 %v246, %v1649
        %v1651 = vand.u32 %v1650, 4294901760
        %1652 = vmatpush1.msra.mxu0 %v1651
        %1653 = vmatprep.subr.mxu0 0.0
        %1654 = vmatpush2.msra.mxu0 0.0
        %1655 = vmatprep.subr.mxu0 0.0
        %1656 = vmatpush2.msra.mxu0 0.0
        %1657 = vmatprep.subr.mxu0 0.0
        %1658 = vmatpush2.msra.mxu0 0.0
        %1659 = vmatprep.subr.mxu0 0.0
        %1660 = vmatpush2.msra.mxu0 0.0
        %1661 = vmatprep.subr.mxu0 0.0
        %1662 = vmatpush2.msra.mxu0 0.0
        %1663 = vmatprep.subr.mxu0 0.0
        %1664 = vmatpush2.msra.mxu0 0.0
        %1665 = vmatprep.subr.mxu0 0.0
        %1666 = vmatpush2.msra.mxu0 0.0
        %1667 = vmatprep.subr.mxu0 0.0
        %1668 = vmatpush2.msra.mxu0 0.0
        %1669 = vmatprep.subr.mxu0 0.0
        %1670 = vmatpush2.msra.mxu0 0.0
        %1671 = vmatprep.subr.mxu0 0.0
        %1672 = vmatpush2.msra.mxu0 0.0
        %1673 = vmatprep.subr.mxu0 0.0
        %1674 = vmatpush2.msra.mxu0 0.0
        %1675 = vmatprep.subr.mxu0 0.0
        %1676 = vmatpush2.msra.mxu0 0.0
        %1677 = vmatprep.subr.mxu0 0.0
        %1678 = vmatpush2.msra.mxu0 0.0
        %1679 = vmatprep.subr.mxu0 0.0
        %1680 = vmatpush2.msra.mxu0 0.0
        %1681 = vmatprep.subr.mxu0 0.0
        %1682 = vmatpush2.msra.mxu0 0.0
        %1683 = vmatprep.subr.mxu0 0.0
        %1684 = vmatpush2.msra.mxu0 0.0
        %1685 = vmatprep.mubr.f32.mxu0 0.0
        %v1686 = vand.u32 %v250, 4294901760
        %1687 = vmatmul.mubr.f32.gmra.mxu0 %v1686
        %v1688 = vpop.f32.mrf.mxu0
        %v1689 = vadd.f32 %v1364, %v1688
        %v1690 = vpop.f32.mrf.mxu0
        %1691 = vmatprep.mubr.f32.mxu0 0.0
        %v1692 = vand.u32 %v253, 4294901760
        %1693 = vmatmul.mubr.f32.gmra.mxu0 %v1692
        %v1694 = vpop.f32.mrf.mxu0
        %v1695 = vadd.f32 %v1372, %v1694
        %v1696 = vpop.f32.mrf.mxu0
        %1697 = vmatprep.mubr.f32.mxu0 0.0
        %v1698 = vand.u32 %v256, 4294901760
        %1699 = vmatmul.mubr.f32.gmra.mxu0 %v1698
        %v1700 = vpop.f32.mrf.mxu0
        %v1701 = vadd.f32 %v1380, %v1700
        %v1702 = vpop.f32.mrf.mxu0
        %1703 = vmatprep.mubr.f32.mxu0 0.0
        %v1704 = vand.u32 %v259, 4294901760
        %1705 = vmatmul.mubr.f32.gmra.mxu0 %v1704
        %v1706 = vpop.f32.mrf.mxu0
        %v1707 = vadd.f32 %v1388, %v1706
        %v1708 = vpop.f32.mrf.mxu0
        %1709 = vmatprep.mubr.f32.mxu0 0.0
        %v1710 = vand.u32 %v262, 4294901760
        %1711 = vmatmul.mubr.f32.gmra.mxu0 %v1710
        %v1712 = vpop.f32.mrf.mxu0
        %v1713 = vadd.f32 %v1396, %v1712
        %v1714 = vpop.f32.mrf.mxu0
        %1715 = vmatprep.mubr.f32.mxu0 0.0
        %v1716 = vand.u32 %v265, 4294901760
        %1717 = vmatmul.mubr.f32.gmra.mxu0 %v1716
        %v1718 = vpop.f32.mrf.mxu0
        %v1719 = vadd.f32 %v1404, %v1718
        %v1720 = vpop.f32.mrf.mxu0
        %1721 = vmatprep.mubr.f32.mxu0 0.0
        %v1722 = vand.u32 %v268, 4294901760
        %1723 = vmatmul.mubr.f32.gmra.mxu0 %v1722
        %v1724 = vpop.f32.mrf.mxu0
        %v1725 = vadd.f32 %v1412, %v1724
        %v1726 = vpop.f32.mrf.mxu0
        %1727 = vmatprep.mubr.f32.mxu0 0.0
        %v1728 = vand.u32 %v271, 4294901760
        %1729 = vmatmul.mubr.f32.gmra.mxu0 %v1728
        %v1730 = vpop.f32.mrf.mxu0
        %v1731 = vadd.f32 %v1420, %v1730
        %v1732 = vpop.f32.mrf.mxu0
        %1733 = vmatprep.mubr.f32.mxu0 0.0
        %v1734 = vand.u32 %v274, 4294901760
        %1735 = vmatmul.mubr.f32.gmra.mxu0 %v1734
        %v1736 = vpop.f32.mrf.mxu0
        %v1737 = vadd.f32 %v1428, %v1736
        %v1738 = vpop.f32.mrf.mxu0
        %1739 = vmatprep.mubr.f32.mxu0 0.0
        %v1740 = vand.u32 %v277, 4294901760
        %1741 = vmatmul.mubr.f32.gmra.mxu0 %v1740
        %v1742 = vpop.f32.mrf.mxu0
        %v1743 = vadd.f32 %v1436, %v1742
        %v1744 = vpop.f32.mrf.mxu0
        %1745 = vmatprep.mubr.f32.mxu0 0.0
        %v1746 = vand.u32 %v280, 4294901760
        %1747 = vmatmul.mubr.f32.gmra.mxu0 %v1746
        %v1748 = vpop.f32.mrf.mxu0
        %v1749 = vadd.f32 %v1444, %v1748
        %v1750 = vpop.f32.mrf.mxu0
        %1751 = vmatprep.mubr.f32.mxu0 0.0
        %v1752 = vand.u32 %v283, 4294901760
        %1753 = vmatmul.mubr.f32.gmra.mxu0 %v1752
        %v1754 = vpop.f32.mrf.mxu0
        %v1755 = vadd.f32 %v1452, %v1754
        %v1756 = vpop.f32.mrf.mxu0
        %1757 = vmatprep.mubr.f32.mxu0 0.0
        %v1758 = vand.u32 %v286, 4294901760
        %1759 = vmatmul.mubr.f32.gmra.mxu0 %v1758
        %v1760 = vpop.f32.mrf.mxu0
        %v1761 = vadd.f32 %v1460, %v1760
        %v1762 = vpop.f32.mrf.mxu0
        %1763 = vmatprep.mubr.f32.mxu0 0.0
        %v1764 = vand.u32 %v289, 4294901760
        %1765 = vmatmul.mubr.f32.gmra.mxu0 %v1764
        %v1766 = vpop.f32.mrf.mxu0
        %v1767 = vadd.f32 %v1468, %v1766
        %v1768 = vpop.f32.mrf.mxu0
        %1769 = vmatprep.mubr.f32.mxu0 0.0
        %v1770 = vand.u32 %v292, 4294901760
        %1771 = vmatmul.mubr.f32.gmra.mxu0 %v1770
        %v1772 = vpop.f32.mrf.mxu0
        %v1773 = vadd.f32 %v1476, %v1772
        %v1774 = vpop.f32.mrf.mxu0
        %1775 = vmatprep.mubr.f32.mxu0 0.0
        %v1776 = vand.u32 %v295, 4294901760
        %1777 = vmatmul.mubr.f32.gmra.mxu0 %v1776
        %v1778 = vpop.f32.mrf.mxu0
        %v1779 = vadd.f32 %v1484, %v1778
        %v1780 = vpop.f32.mrf.mxu0
        %1781 = vmatprep.mubr.f32.mxu0 0.0
        %v1782 = vand.u32 %v298, 4294901760
        %1783 = vmatmul.mubr.f32.gmra.mxu0 %v1782
        %v1784 = vpop.f32.mrf.mxu0
        %v1785 = vadd.f32 %v1492, %v1784
        %v1786 = vpop.f32.mrf.mxu0
        %1787 = vmatprep.mubr.f32.mxu0 0.0
        %v1788 = vand.u32 %v301, 4294901760
        %1789 = vmatmul.mubr.f32.gmra.mxu0 %v1788
        %v1790 = vpop.f32.mrf.mxu0
        %v1791 = vadd.f32 %v1500, %v1790
        %v1792 = vpop.f32.mrf.mxu0
        %1793 = vmatprep.mubr.f32.mxu0 0.0
        %v1794 = vand.u32 %v304, 4294901760
        %1795 = vmatmul.mubr.f32.gmra.mxu0 %v1794
        %v1796 = vpop.f32.mrf.mxu0
        %v1797 = vadd.f32 %v1508, %v1796
        %v1798 = vpop.f32.mrf.mxu0
        %1799 = vmatprep.mubr.f32.mxu0 0.0
        %v1800 = vand.u32 %v307, 4294901760
        %1801 = vmatmul.mubr.f32.gmra.mxu0 %v1800
        %v1802 = vpop.f32.mrf.mxu0
        %v1803 = vadd.f32 %v1516, %v1802
        %v1804 = vpop.f32.mrf.mxu0
        %1805 = vmatprep.mubr.f32.mxu0 0.0
        %v1806 = vand.u32 %v310, 4294901760
        %1807 = vmatmul.mubr.f32.gmra.mxu0 %v1806
        %v1808 = vpop.f32.mrf.mxu0
        %v1809 = vadd.f32 %v1524, %v1808
        %v1810 = vpop.f32.mrf.mxu0
        %1811 = vmatprep.mubr.f32.mxu0 0.0
        %v1812 = vand.u32 %v313, 4294901760
        %1813 = vmatmul.mubr.f32.gmra.mxu0 %v1812
        %v1814 = vpop.f32.mrf.mxu0
        %v1815 = vadd.f32 %v1532, %v1814
        %v1816 = vpop.f32.mrf.mxu0
        %1817 = vmatprep.mubr.f32.mxu0 0.0
        %v1818 = vand.u32 %v316, 4294901760
        %1819 = vmatmul.mubr.f32.gmra.mxu0 %v1818
        %v1820 = vpop.f32.mrf.mxu0
        %v1821 = vadd.f32 %v1540, %v1820
        %v1822 = vpop.f32.mrf.mxu0
        %1823 = vmatprep.mubr.f32.mxu0 0.0
        %v1824 = vand.u32 %v319, 4294901760
        %1825 = vmatmul.mubr.f32.gmra.mxu0 %v1824
        %v1826 = vpop.f32.mrf.mxu0
        %v1827 = vadd.f32 %v1548, %v1826
        %v1828 = vpop.f32.mrf.mxu0
        %1829 = vmatprep.mubr.f32.mxu0 0.0
        %v1830 = vand.u32 %v322, 4294901760
        %1831 = vmatmul.mubr.f32.gmra.mxu0 %v1830
        %v1832 = vpop.f32.mrf.mxu0
        %v1833 = vadd.f32 %v1556, %v1832
        %v1834 = vpop.f32.mrf.mxu0
        %1835 = vmatprep.mubr.f32.mxu0 0.0
        %v1836 = vand.u32 %v325, 4294901760
        %1837 = vmatmul.mubr.f32.gmra.mxu0 %v1836
        %v1838 = vpop.f32.mrf.mxu0
        %v1839 = vadd.f32 %v1564, %v1838
        %v1840 = vpop.f32.mrf.mxu0
        %1841 = vmatprep.mubr.f32.mxu0 0.0
        %v1842 = vand.u32 %v328, 4294901760
        %1843 = vmatmul.mubr.f32.gmra.mxu0 %v1842
        %v1844 = vpop.f32.mrf.mxu0
        %v1845 = vadd.f32 %v1572, %v1844
        %v1846 = vpop.f32.mrf.mxu0
        %1847 = vmatprep.mubr.f32.mxu0 0.0
        %v1848 = vand.u32 %v331, 4294901760
        %1849 = vmatmul.mubr.f32.gmra.mxu0 %v1848
        %v1850 = vpop.f32.mrf.mxu0
        %v1851 = vadd.f32 %v1580, %v1850
        %v1852 = vpop.f32.mrf.mxu0
        %1853 = vmatprep.mubr.f32.mxu0 0.0
        %v1854 = vand.u32 %v334, 4294901760
        %1855 = vmatmul.mubr.f32.gmra.mxu0 %v1854
        %v1856 = vpop.f32.mrf.mxu0
        %v1857 = vadd.f32 %v1588, %v1856
        %v1858 = vpop.f32.mrf.mxu0
        %1859 = vmatprep.mubr.f32.mxu0 0.0
        %v1860 = vand.u32 %v337, 4294901760
        %1861 = vmatmul.mubr.f32.gmra.mxu0 %v1860
        %v1862 = vpop.f32.mrf.mxu0
        %v1863 = vadd.f32 %v1596, %v1862
        %v1864 = vpop.f32.mrf.mxu0
        %1865 = vmatprep.mubr.f32.mxu0 0.0
        %v1866 = vand.u32 %v340, 4294901760
        %1867 = vmatmul.mubr.f32.gmra.mxu0 %v1866
        %v1868 = vpop.f32.mrf.mxu0
        %v1869 = vadd.f32 %v1604, %v1868
        %v1870 = vpop.f32.mrf.mxu0
        %1871 = vmatprep.mubr.f32.mxu0 0.0
        %v1872 = vand.u32 %v343, 4294901760
        %1873 = vmatmul.mubr.f32.gmra.mxu0 %v1872
        %v1874 = vpop.f32.mrf.mxu0
        %v1875 = vadd.f32 %v1612, %v1874
        %v1876 = vpop.f32.mrf.mxu0
        %1877 = vdwg.mxu0
        %1878 = vmatprep.subr.mxu0 0.0
        %1879 = vmatpush1.msra.mxu0 0.0
        %1880 = vmatprep.subr.mxu0 0.0
        %1881 = vmatpush1.msra.mxu0 0.0
        %1882 = vmatprep.subr.mxu0 0.0
        %1883 = vmatpush1.msra.mxu0 0.0
        %1884 = vmatprep.subr.mxu0 0.0
        %1885 = vmatpush1.msra.mxu0 0.0
        %1886 = vmatprep.subr.mxu0 0.0
        %1887 = vmatpush1.msra.mxu0 0.0
        %1888 = vmatprep.subr.mxu0 0.0
        %1889 = vmatpush1.msra.mxu0 0.0
        %1890 = vmatprep.subr.mxu0 0.0
        %1891 = vmatpush1.msra.mxu0 0.0
        %1892 = vmatprep.subr.mxu0 0.0
        %1893 = vmatpush1.msra.mxu0 0.0
        %1894 = vmatprep.subr.mxu0 0.0
        %1895 = vmatpush1.msra.mxu0 0.0
        %1896 = vmatprep.subr.mxu0 0.0
        %1897 = vmatpush1.msra.mxu0 0.0
        %1898 = vmatprep.subr.mxu0 0.0
        %1899 = vmatpush1.msra.mxu0 0.0
        %1900 = vmatprep.subr.mxu0 0.0
        %1901 = vmatpush1.msra.mxu0 0.0
        %1902 = vmatprep.subr.mxu0 0.0
        %1903 = vmatpush1.msra.mxu0 0.0
        %1904 = vmatprep.subr.mxu0 0.0
        %1905 = vmatpush1.msra.mxu0 0.0
        %1906 = vmatprep.subr.mxu0 0.0
        %v1907 = vand.u32 %v247, 4294901760
        %1908 = vmatpush1.msra.mxu0 %v1907
        %1909 = vmatprep.subr.mxu0 0.0
        %v1910 = vand.u32 %v246, 4294901760
        %1911 = vmatpush1.msra.mxu0 %v1910
        %1912 = vmatprep.subr.mxu0 0.0
        %1913 = vmatpush2.msra.mxu0 0.0
        %1914 = vmatprep.subr.mxu0 0.0
        %1915 = vmatpush2.msra.mxu0 0.0
        %1916 = vmatprep.subr.mxu0 0.0
        %1917 = vmatpush2.msra.mxu0 0.0
        %1918 = vmatprep.subr.mxu0 0.0
        %1919 = vmatpush2.msra.mxu0 0.0
        %1920 = vmatprep.subr.mxu0 0.0
        %1921 = vmatpush2.msra.mxu0 0.0
        %1922 = vmatprep.subr.mxu0 0.0
        %1923 = vmatpush2.msra.mxu0 0.0
        %1924 = vmatprep.subr.mxu0 0.0
        %1925 = vmatpush2.msra.mxu0 0.0
        %1926 = vmatprep.subr.mxu0 0.0
        %1927 = vmatpush2.msra.mxu0 0.0
        %1928 = vmatprep.subr.mxu0 0.0
        %1929 = vmatpush2.msra.mxu0 0.0
        %1930 = vmatprep.subr.mxu0 0.0
        %1931 = vmatpush2.msra.mxu0 0.0
        %1932 = vmatprep.subr.mxu0 0.0
        %1933 = vmatpush2.msra.mxu0 0.0
        %1934 = vmatprep.subr.mxu0 0.0
        %1935 = vmatpush2.msra.mxu0 0.0
        %1936 = vmatprep.subr.mxu0 0.0
        %1937 = vmatpush2.msra.mxu0 0.0
        %1938 = vmatprep.subr.mxu0 0.0
        %1939 = vmatpush2.msra.mxu0 0.0
        %1940 = vmatprep.subr.mxu0 0.0
        %1941 = vmatpush2.msra.mxu0 0.0
        %1942 = vmatprep.subr.mxu0 0.0
        %1943 = vmatpush2.msra.mxu0 0.0
        %1944 = vmatprep.mubr.f32.mxu0 0.0
        %v1945 = vand.u32 %v250, 4294901760
        %1946 = vmatmul.mubr.f32.gmra.mxu0 %v1945
        %v1947 = vpop.f32.mrf.mxu0
        %v1948 = vadd.f32 %v1689, %v1947
        %v1949 = vpop.f32.mrf.mxu0
        %1950 = vmatprep.mubr.f32.mxu0 0.0
        %v1951 = vand.u32 %v253, 4294901760
        %1952 = vmatmul.mubr.f32.gmra.mxu0 %v1951
        %v1953 = vpop.f32.mrf.mxu0
        %v1954 = vadd.f32 %v1695, %v1953
        %v1955 = vpop.f32.mrf.mxu0
        %1956 = vmatprep.mubr.f32.mxu0 0.0
        %v1957 = vand.u32 %v256, 4294901760
        %1958 = vmatmul.mubr.f32.gmra.mxu0 %v1957
        %v1959 = vpop.f32.mrf.mxu0
        %v1960 = vadd.f32 %v1701, %v1959
        %v1961 = vpop.f32.mrf.mxu0
        %1962 = vmatprep.mubr.f32.mxu0 0.0
        %v1963 = vand.u32 %v259, 4294901760
        %1964 = vmatmul.mubr.f32.gmra.mxu0 %v1963
        %v1965 = vpop.f32.mrf.mxu0
        %v1966 = vadd.f32 %v1707, %v1965
        %v1967 = vpop.f32.mrf.mxu0
        %1968 = vmatprep.mubr.f32.mxu0 0.0
        %v1969 = vand.u32 %v262, 4294901760
        %1970 = vmatmul.mubr.f32.gmra.mxu0 %v1969
        %v1971 = vpop.f32.mrf.mxu0
        %v1972 = vadd.f32 %v1713, %v1971
        %v1973 = vpop.f32.mrf.mxu0
        %1974 = vmatprep.mubr.f32.mxu0 0.0
        %v1975 = vand.u32 %v265, 4294901760
        %1976 = vmatmul.mubr.f32.gmra.mxu0 %v1975
        %v1977 = vpop.f32.mrf.mxu0
        %v1978 = vadd.f32 %v1719, %v1977
        %v1979 = vpop.f32.mrf.mxu0
        %1980 = vmatprep.mubr.f32.mxu0 0.0
        %v1981 = vand.u32 %v268, 4294901760
        %1982 = vmatmul.mubr.f32.gmra.mxu0 %v1981
        %v1983 = vpop.f32.mrf.mxu0
        %v1984 = vadd.f32 %v1725, %v1983
        %v1985 = vpop.f32.mrf.mxu0
        %1986 = vmatprep.mubr.f32.mxu0 0.0
        %v1987 = vand.u32 %v271, 4294901760
        %1988 = vmatmul.mubr.f32.gmra.mxu0 %v1987
        %v1989 = vpop.f32.mrf.mxu0
        %v1990 = vadd.f32 %v1731, %v1989
        %v1991 = vpop.f32.mrf.mxu0
        %1992 = vmatprep.mubr.f32.mxu0 0.0
        %v1993 = vand.u32 %v274, 4294901760
        %1994 = vmatmul.mubr.f32.gmra.mxu0 %v1993
        %v1995 = vpop.f32.mrf.mxu0
        %v1996 = vadd.f32 %v1737, %v1995
        %v1997 = vpop.f32.mrf.mxu0
        %1998 = vmatprep.mubr.f32.mxu0 0.0
        %v1999 = vand.u32 %v277, 4294901760
        %2000 = vmatmul.mubr.f32.gmra.mxu0 %v1999
        %v2001 = vpop.f32.mrf.mxu0
        %v2002 = vadd.f32 %v1743, %v2001
        %v2003 = vpop.f32.mrf.mxu0
        %2004 = vmatprep.mubr.f32.mxu0 0.0
        %v2005 = vand.u32 %v280, 4294901760
        %2006 = vmatmul.mubr.f32.gmra.mxu0 %v2005
        %v2007 = vpop.f32.mrf.mxu0
        %v2008 = vadd.f32 %v1749, %v2007
        %v2009 = vpop.f32.mrf.mxu0
        %2010 = vmatprep.mubr.f32.mxu0 0.0
        %v2011 = vand.u32 %v283, 4294901760
        %2012 = vmatmul.mubr.f32.gmra.mxu0 %v2011
        %v2013 = vpop.f32.mrf.mxu0
        %v2014 = vadd.f32 %v1755, %v2013
        %v2015 = vpop.f32.mrf.mxu0
        %2016 = vmatprep.mubr.f32.mxu0 0.0
        %v2017 = vand.u32 %v286, 4294901760
        %2018 = vmatmul.mubr.f32.gmra.mxu0 %v2017
        %v2019 = vpop.f32.mrf.mxu0
        %v2020 = vadd.f32 %v1761, %v2019
        %v2021 = vpop.f32.mrf.mxu0
        %2022 = vmatprep.mubr.f32.mxu0 0.0
        %v2023 = vand.u32 %v289, 4294901760
        %2024 = vmatmul.mubr.f32.gmra.mxu0 %v2023
        %v2025 = vpop.f32.mrf.mxu0
        %v2026 = vadd.f32 %v1767, %v2025
        %v2027 = vpop.f32.mrf.mxu0
        %2028 = vmatprep.mubr.f32.mxu0 0.0
        %v2029 = vand.u32 %v292, 4294901760
        %2030 = vmatmul.mubr.f32.gmra.mxu0 %v2029
        %v2031 = vpop.f32.mrf.mxu0
        %v2032 = vadd.f32 %v1773, %v2031
        %v2033 = vpop.f32.mrf.mxu0
        %2034 = vmatprep.mubr.f32.mxu0 0.0
        %v2035 = vand.u32 %v295, 4294901760
        %2036 = vmatmul.mubr.f32.gmra.mxu0 %v2035
        %v2037 = vpop.f32.mrf.mxu0
        %v2038 = vadd.f32 %v1779, %v2037
        %v2039 = vpop.f32.mrf.mxu0
        %2040 = vmatprep.mubr.f32.mxu0 0.0
        %v2041 = vand.u32 %v298, 4294901760
        %2042 = vmatmul.mubr.f32.gmra.mxu0 %v2041
        %v2043 = vpop.f32.mrf.mxu0
        %v2044 = vadd.f32 %v1785, %v2043
        %v2045 = vpop.f32.mrf.mxu0
        %2046 = vmatprep.mubr.f32.mxu0 0.0
        %v2047 = vand.u32 %v301, 4294901760
        %2048 = vmatmul.mubr.f32.gmra.mxu0 %v2047
        %v2049 = vpop.f32.mrf.mxu0
        %v2050 = vadd.f32 %v1791, %v2049
        %v2051 = vpop.f32.mrf.mxu0
        %2052 = vmatprep.mubr.f32.mxu0 0.0
        %v2053 = vand.u32 %v304, 4294901760
        %2054 = vmatmul.mubr.f32.gmra.mxu0 %v2053
        %v2055 = vpop.f32.mrf.mxu0
        %v2056 = vadd.f32 %v1797, %v2055
        %v2057 = vpop.f32.mrf.mxu0
        %2058 = vmatprep.mubr.f32.mxu0 0.0
        %v2059 = vand.u32 %v307, 4294901760
        %2060 = vmatmul.mubr.f32.gmra.mxu0 %v2059
        %v2061 = vpop.f32.mrf.mxu0
        %v2062 = vadd.f32 %v1803, %v2061
        %v2063 = vpop.f32.mrf.mxu0
        %2064 = vmatprep.mubr.f32.mxu0 0.0
        %v2065 = vand.u32 %v310, 4294901760
        %2066 = vmatmul.mubr.f32.gmra.mxu0 %v2065
        %v2067 = vpop.f32.mrf.mxu0
        %v2068 = vadd.f32 %v1809, %v2067
        %v2069 = vpop.f32.mrf.mxu0
        %2070 = vmatprep.mubr.f32.mxu0 0.0
        %v2071 = vand.u32 %v313, 4294901760
        %2072 = vmatmul.mubr.f32.gmra.mxu0 %v2071
        %v2073 = vpop.f32.mrf.mxu0
        %v2074 = vadd.f32 %v1815, %v2073
        %v2075 = vpop.f32.mrf.mxu0
        %2076 = vmatprep.mubr.f32.mxu0 0.0
        %v2077 = vand.u32 %v316, 4294901760
        %2078 = vmatmul.mubr.f32.gmra.mxu0 %v2077
        %v2079 = vpop.f32.mrf.mxu0
        %v2080 = vadd.f32 %v1821, %v2079
        %v2081 = vpop.f32.mrf.mxu0
        %2082 = vmatprep.mubr.f32.mxu0 0.0
        %v2083 = vand.u32 %v319, 4294901760
        %2084 = vmatmul.mubr.f32.gmra.mxu0 %v2083
        %v2085 = vpop.f32.mrf.mxu0
        %v2086 = vadd.f32 %v1827, %v2085
        %v2087 = vpop.f32.mrf.mxu0
        %2088 = vmatprep.mubr.f32.mxu0 0.0
        %v2089 = vand.u32 %v322, 4294901760
        %2090 = vmatmul.mubr.f32.gmra.mxu0 %v2089
        %v2091 = vpop.f32.mrf.mxu0
        %v2092 = vadd.f32 %v1833, %v2091
        %v2093 = vpop.f32.mrf.mxu0
        %2094 = vmatprep.mubr.f32.mxu0 0.0
        %v2095 = vand.u32 %v325, 4294901760
        %2096 = vmatmul.mubr.f32.gmra.mxu0 %v2095
        %v2097 = vpop.f32.mrf.mxu0
        %v2098 = vadd.f32 %v1839, %v2097
        %v2099 = vpop.f32.mrf.mxu0
        %2100 = vmatprep.mubr.f32.mxu0 0.0
        %v2101 = vand.u32 %v328, 4294901760
        %2102 = vmatmul.mubr.f32.gmra.mxu0 %v2101
        %v2103 = vpop.f32.mrf.mxu0
        %v2104 = vadd.f32 %v1845, %v2103
        %v2105 = vpop.f32.mrf.mxu0
        %2106 = vmatprep.mubr.f32.mxu0 0.0
        %v2107 = vand.u32 %v331, 4294901760
        %2108 = vmatmul.mubr.f32.gmra.mxu0 %v2107
        %v2109 = vpop.f32.mrf.mxu0
        %v2110 = vadd.f32 %v1851, %v2109
        %v2111 = vpop.f32.mrf.mxu0
        %2112 = vmatprep.mubr.f32.mxu0 0.0
        %v2113 = vand.u32 %v334, 4294901760
        %2114 = vmatmul.mubr.f32.gmra.mxu0 %v2113
        %v2115 = vpop.f32.mrf.mxu0
        %v2116 = vadd.f32 %v1857, %v2115
        %v2117 = vpop.f32.mrf.mxu0
        %2118 = vmatprep.mubr.f32.mxu0 0.0
        %v2119 = vand.u32 %v337, 4294901760
        %2120 = vmatmul.mubr.f32.gmra.mxu0 %v2119
        %v2121 = vpop.f32.mrf.mxu0
        %v2122 = vadd.f32 %v1863, %v2121
        %v2123 = vpop.f32.mrf.mxu0
        %2124 = vmatprep.mubr.f32.mxu0 0.0
        %v2125 = vand.u32 %v340, 4294901760
        %2126 = vmatmul.mubr.f32.gmra.mxu0 %v2125
        %v2127 = vpop.f32.mrf.mxu0
        %v2128 = vadd.f32 %v1869, %v2127
        %v2129 = vpop.f32.mrf.mxu0
        %2130 = vmatprep.mubr.f32.mxu0 0.0
        %v2131 = vand.u32 %v343, 4294901760
        %2132 = vmatmul.mubr.f32.gmra.mxu0 %v2131
        %v2133 = vpop.f32.mrf.mxu0
        %v2134 = vadd.f32 %v1875, %v2133
        %v2135 = vpop.f32.mrf.mxu0
        %2136 = vdwg.mxu0
        %vm2137 = vcmask 64512
        %2138 = vst.msk [vmem:[%s208] sm:$0xff] %vm2137, %v1948
        %2139 = vst.msk [vmem:[%s208 + $0x8] sm:$0xff] %vm2137, %v1954
        %2140 = vst.msk [vmem:[%s208 + $0x10] sm:$0xff] %vm2137, %v1960
        %2141 = vst.msk [vmem:[%s208 + $0x18] sm:$0xff] %vm2137, %v1966
        %2142 = vst.msk [vmem:[%s208 + $0x80] sm:$0xff] %vm2137, %v1972
        %2143 = vst.msk [vmem:[%s208 + $0x88] sm:$0xff] %vm2137, %v1978
        %2144 = vst.msk [vmem:[%s208 + $0x90] sm:$0xff] %vm2137, %v1984
        %2145 = vst.msk [vmem:[%s208 + $0x98] sm:$0xff] %vm2137, %v1990
        %2146 = vst.msk [vmem:[%s208 + $0x100] sm:$0xff] %vm2137, %v1996
        %2147 = vst.msk [vmem:[%s208 + $0x108] sm:$0xff] %vm2137, %v2002
        %2148 = vst.msk [vmem:[%s208 + $0x110] sm:$0xff] %vm2137, %v2008
        %2149 = vst.msk [vmem:[%s208 + $0x118] sm:$0xff] %vm2137, %v2014
        %2150 = vst.msk [vmem:[%s208 + $0x180] sm:$0xff] %vm2137, %v2020
        %2151 = vst.msk [vmem:[%s208 + $0x188] sm:$0xff] %vm2137, %v2026
        %2152 = vst.msk [vmem:[%s208 + $0x190] sm:$0xff] %vm2137, %v2032
        %2153 = vst.msk [vmem:[%s208 + $0x198] sm:$0xff] %vm2137, %v2038
        %2154 = vst.msk [vmem:[%s208 + $0x200] sm:$0xff] %vm2137, %v2044
        %2155 = vst.msk [vmem:[%s208 + $0x208] sm:$0xff] %vm2137, %v2050
        %2156 = vst.msk [vmem:[%s208 + $0x210] sm:$0xff] %vm2137, %v2056
        %2157 = vst.msk [vmem:[%s208 + $0x218] sm:$0xff] %vm2137, %v2062
        %2158 = vst.msk [vmem:[%s208 + $0x280] sm:$0xff] %vm2137, %v2068
        %2159 = vst.msk [vmem:[%s208 + $0x288] sm:$0xff] %vm2137, %v2074
        %2160 = vst.msk [vmem:[%s208 + $0x290] sm:$0xff] %vm2137, %v2080
        %2161 = vst.msk [vmem:[%s208 + $0x298] sm:$0xff] %vm2137, %v2086
        %2162 = vst.msk [vmem:[%s208 + $0x300] sm:$0xff] %vm2137, %v2092
        %2163 = vst.msk [vmem:[%s208 + $0x308] sm:$0xff] %vm2137, %v2098
        %2164 = vst.msk [vmem:[%s208 + $0x310] sm:$0xff] %vm2137, %v2104
        %2165 = vst.msk [vmem:[%s208 + $0x318] sm:$0xff] %vm2137, %v2110
        %2166 = vst.msk [vmem:[%s208 + $0x380] sm:$0xff] %vm2137, %v2116
        %2167 = vst.msk [vmem:[%s208 + $0x388] sm:$0xff] %vm2137, %v2122
        %2168 = vst.msk [vmem:[%s208 + $0x390] sm:$0xff] %vm2137, %v2128
        %2169 = vst.msk [vmem:[%s208 + $0x398] sm:$0xff] %vm2137, %v2134
        %v2170 = vld [vmem:[#allocation2] sm:$0xff]
        %v2171 = vld [vmem:[#allocation2 + $0x8] sm:$0xff]
        %2174 = vrot.lane.b32.xlu0 %v2170, 120
        %v2175 = vpop.permute.xlu0 %2174
        %2176 = vrot.lane.b32.xlu0 %v2171, 120
        %v2177 = vpop.permute.xlu0 %2176
        %2180 = vmatprep.subr.mxu0 0.0
        %2181 = vmatpush1.msra.mxu0 0.0
        %2182 = vmatprep.subr.mxu0 0.0
        %2183 = vmatpush1.msra.mxu0 0.0
        %2184 = vmatprep.subr.mxu0 0.0
        %2185 = vmatpush1.msra.mxu0 0.0
        %2186 = vmatprep.subr.mxu0 0.0
        %2187 = vmatpush1.msra.mxu0 0.0
        %2188 = vmatprep.subr.mxu0 0.0
        %2189 = vmatpush1.msra.mxu0 0.0
        %2190 = vmatprep.subr.mxu0 0.0
        %2191 = vmatpush1.msra.mxu0 0.0
        %2192 = vmatprep.subr.mxu0 0.0
        %2193 = vmatpush1.msra.mxu0 0.0
        %2194 = vmatprep.subr.mxu0 0.0
        %2195 = vmatpush1.msra.mxu0 0.0
        %2196 = vmatprep.subr.mxu0 0.0
        %2197 = vmatpush1.msra.mxu0 0.0
        %2198 = vmatprep.subr.mxu0 0.0
        %2199 = vmatpush1.msra.mxu0 0.0
        %2200 = vmatprep.subr.mxu0 0.0
        %2201 = vmatpush1.msra.mxu0 0.0
        %2202 = vmatprep.subr.mxu0 0.0
        %2203 = vmatpush1.msra.mxu0 0.0
        %2204 = vmatprep.subr.mxu0 0.0
        %2205 = vmatpush1.msra.mxu0 0.0
        %2206 = vmatprep.subr.mxu0 0.0
        %2207 = vmatpush1.msra.mxu0 0.0
        %2208 = vmatprep.subr.mxu0 0.0
        %v2209 = vand.u32 %v2177, 4294901760
        %2210 = vmatpush1.msra.mxu0 %v2209
        %2211 = vmatprep.subr.mxu0 0.0
        %v2212 = vand.u32 %v2175, 4294901760
        %2213 = vmatpush1.msra.mxu0 %v2212
        %2214 = vmatprep.subr.mxu0 0.0
        %2215 = vmatpush2.msra.mxu0 0.0
        %2216 = vmatprep.subr.mxu0 0.0
        %2217 = vmatpush2.msra.mxu0 0.0
        %2218 = vmatprep.subr.mxu0 0.0
        %2219 = vmatpush2.msra.mxu0 0.0
        %2220 = vmatprep.subr.mxu0 0.0
        %2221 = vmatpush2.msra.mxu0 0.0
        %2222 = vmatprep.subr.mxu0 0.0
        %2223 = vmatpush2.msra.mxu0 0.0
        %2224 = vmatprep.subr.mxu0 0.0
        %2225 = vmatpush2.msra.mxu0 0.0
        %2226 = vmatprep.subr.mxu0 0.0
        %2227 = vmatpush2.msra.mxu0 0.0
        %2228 = vmatprep.subr.mxu0 0.0
        %2229 = vmatpush2.msra.mxu0 0.0
        %2230 = vmatprep.subr.mxu0 0.0
        %2231 = vmatpush2.msra.mxu0 0.0
        %2232 = vmatprep.subr.mxu0 0.0
        %2233 = vmatpush2.msra.mxu0 0.0
        %2234 = vmatprep.subr.mxu0 0.0
        %2235 = vmatpush2.msra.mxu0 0.0
        %2236 = vmatprep.subr.mxu0 0.0
        %2237 = vmatpush2.msra.mxu0 0.0
        %2238 = vmatprep.subr.mxu0 0.0
        %2239 = vmatpush2.msra.mxu0 0.0
        %2240 = vmatprep.subr.mxu0 0.0
        %2241 = vmatpush2.msra.mxu0 0.0
        %2242 = vmatprep.subr.mxu0 0.0
        %2243 = vmatpush2.msra.mxu0 0.0
        %2244 = vmatprep.subr.mxu0 0.0
        %2245 = vmatpush2.msra.mxu0 0.0
        %2246 = vmatprep.mubr.f32.mxu0 0.0
        %v2247 = vand.u32 %v250, 4294901760
        %v2248 = vsub.f32 %v250, %v2247
        %v2249 = vand.u32 %v2248, 4294901760
        %v2250 = vsub.f32 %v2248, %v2249
        %v2251 = vand.u32 %v2250, 4294901760
        %2252 = vmatmul.mubr.f32.gmra.mxu0 %v2251
        %v2253 = vpop.f32.mrf.mxu0
        %v2254 = vadd.f32 0.0, %v2253
        %v2255 = vpop.f32.mrf.mxu0
        %2256 = vmatprep.mubr.f32.mxu0 0.0
        %v2257 = vand.u32 %v253, 4294901760
        %v2258 = vsub.f32 %v253, %v2257
        %v2259 = vand.u32 %v2258, 4294901760
        %v2260 = vsub.f32 %v2258, %v2259
        %v2261 = vand.u32 %v2260, 4294901760
        %2262 = vmatmul.mubr.f32.gmra.mxu0 %v2261
        %v2263 = vpop.f32.mrf.mxu0
        %v2264 = vadd.f32 0.0, %v2263
        %v2265 = vpop.f32.mrf.mxu0
        %2266 = vmatprep.mubr.f32.mxu0 0.0
        %v2267 = vand.u32 %v256, 4294901760
        %v2268 = vsub.f32 %v256, %v2267
        %v2269 = vand.u32 %v2268, 4294901760
        %v2270 = vsub.f32 %v2268, %v2269
        %v2271 = vand.u32 %v2270, 4294901760
        %2272 = vmatmul.mubr.f32.gmra.mxu0 %v2271
        %v2273 = vpop.f32.mrf.mxu0
        %v2274 = vadd.f32 0.0, %v2273
        %v2275 = vpop.f32.mrf.mxu0
        %2276 = vmatprep.mubr.f32.mxu0 0.0
        %v2277 = vand.u32 %v259, 4294901760
        %v2278 = vsub.f32 %v259, %v2277
        %v2279 = vand.u32 %v2278, 4294901760
        %v2280 = vsub.f32 %v2278, %v2279
        %v2281 = vand.u32 %v2280, 4294901760
        %2282 = vmatmul.mubr.f32.gmra.mxu0 %v2281
        %v2283 = vpop.f32.mrf.mxu0
        %v2284 = vadd.f32 0.0, %v2283
        %v2285 = vpop.f32.mrf.mxu0
        %2286 = vmatprep.mubr.f32.mxu0 0.0
        %v2287 = vand.u32 %v262, 4294901760
        %v2288 = vsub.f32 %v262, %v2287
        %v2289 = vand.u32 %v2288, 4294901760
        %v2290 = vsub.f32 %v2288, %v2289
        %v2291 = vand.u32 %v2290, 4294901760
        %2292 = vmatmul.mubr.f32.gmra.mxu0 %v2291
        %v2293 = vpop.f32.mrf.mxu0
        %v2294 = vadd.f32 0.0, %v2293
        %v2295 = vpop.f32.mrf.mxu0
        %2296 = vmatprep.mubr.f32.mxu0 0.0
        %v2297 = vand.u32 %v265, 4294901760
        %v2298 = vsub.f32 %v265, %v2297
        %v2299 = vand.u32 %v2298, 4294901760
        %v2300 = vsub.f32 %v2298, %v2299
        %v2301 = vand.u32 %v2300, 4294901760
        %2302 = vmatmul.mubr.f32.gmra.mxu0 %v2301
        %v2303 = vpop.f32.mrf.mxu0
        %v2304 = vadd.f32 0.0, %v2303
        %v2305 = vpop.f32.mrf.mxu0
        %2306 = vmatprep.mubr.f32.mxu0 0.0
        %v2307 = vand.u32 %v268, 4294901760
        %v2308 = vsub.f32 %v268, %v2307
        %v2309 = vand.u32 %v2308, 4294901760
        %v2310 = vsub.f32 %v2308, %v2309
        %v2311 = vand.u32 %v2310, 4294901760
        %2312 = vmatmul.mubr.f32.gmra.mxu0 %v2311
        %v2313 = vpop.f32.mrf.mxu0
        %v2314 = vadd.f32 0.0, %v2313
        %v2315 = vpop.f32.mrf.mxu0
        %2316 = vmatprep.mubr.f32.mxu0 0.0
        %v2317 = vand.u32 %v271, 4294901760
        %v2318 = vsub.f32 %v271, %v2317
        %v2319 = vand.u32 %v2318, 4294901760
        %v2320 = vsub.f32 %v2318, %v2319
        %v2321 = vand.u32 %v2320, 4294901760
        %2322 = vmatmul.mubr.f32.gmra.mxu0 %v2321
        %v2323 = vpop.f32.mrf.mxu0
        %v2324 = vadd.f32 0.0, %v2323
        %v2325 = vpop.f32.mrf.mxu0
        %2326 = vmatprep.mubr.f32.mxu0 0.0
        %v2327 = vand.u32 %v274, 4294901760
        %v2328 = vsub.f32 %v274, %v2327
        %v2329 = vand.u32 %v2328, 4294901760
        %v2330 = vsub.f32 %v2328, %v2329
        %v2331 = vand.u32 %v2330, 4294901760
        %2332 = vmatmul.mubr.f32.gmra.mxu0 %v2331
        %v2333 = vpop.f32.mrf.mxu0
        %v2334 = vadd.f32 0.0, %v2333
        %v2335 = vpop.f32.mrf.mxu0
        %2336 = vmatprep.mubr.f32.mxu0 0.0
        %v2337 = vand.u32 %v277, 4294901760
        %v2338 = vsub.f32 %v277, %v2337
        %v2339 = vand.u32 %v2338, 4294901760
        %v2340 = vsub.f32 %v2338, %v2339
        %v2341 = vand.u32 %v2340, 4294901760
        %2342 = vmatmul.mubr.f32.gmra.mxu0 %v2341
        %v2343 = vpop.f32.mrf.mxu0
        %v2344 = vadd.f32 0.0, %v2343
        %v2345 = vpop.f32.mrf.mxu0
        %2346 = vmatprep.mubr.f32.mxu0 0.0
        %v2347 = vand.u32 %v280, 4294901760
        %v2348 = vsub.f32 %v280, %v2347
        %v2349 = vand.u32 %v2348, 4294901760
        %v2350 = vsub.f32 %v2348, %v2349
        %v2351 = vand.u32 %v2350, 4294901760
        %2352 = vmatmul.mubr.f32.gmra.mxu0 %v2351
        %v2353 = vpop.f32.mrf.mxu0
        %v2354 = vadd.f32 0.0, %v2353
        %v2355 = vpop.f32.mrf.mxu0
        %2356 = vmatprep.mubr.f32.mxu0 0.0
        %v2357 = vand.u32 %v283, 4294901760
        %v2358 = vsub.f32 %v283, %v2357
        %v2359 = vand.u32 %v2358, 4294901760
        %v2360 = vsub.f32 %v2358, %v2359
        %v2361 = vand.u32 %v2360, 4294901760
        %2362 = vmatmul.mubr.f32.gmra.mxu0 %v2361
        %v2363 = vpop.f32.mrf.mxu0
        %v2364 = vadd.f32 0.0, %v2363
        %v2365 = vpop.f32.mrf.mxu0
        %2366 = vmatprep.mubr.f32.mxu0 0.0
        %v2367 = vand.u32 %v286, 4294901760
        %v2368 = vsub.f32 %v286, %v2367
        %v2369 = vand.u32 %v2368, 4294901760
        %v2370 = vsub.f32 %v2368, %v2369
        %v2371 = vand.u32 %v2370, 4294901760
        %2372 = vmatmul.mubr.f32.gmra.mxu0 %v2371
        %v2373 = vpop.f32.mrf.mxu0
        %v2374 = vadd.f32 0.0, %v2373
        %v2375 = vpop.f32.mrf.mxu0
        %2376 = vmatprep.mubr.f32.mxu0 0.0
        %v2377 = vand.u32 %v289, 4294901760
        %v2378 = vsub.f32 %v289, %v2377
        %v2379 = vand.u32 %v2378, 4294901760
        %v2380 = vsub.f32 %v2378, %v2379
        %v2381 = vand.u32 %v2380, 4294901760
        %2382 = vmatmul.mubr.f32.gmra.mxu0 %v2381
        %v2383 = vpop.f32.mrf.mxu0
        %v2384 = vadd.f32 0.0, %v2383
        %v2385 = vpop.f32.mrf.mxu0
        %2386 = vmatprep.mubr.f32.mxu0 0.0
        %v2387 = vand.u32 %v292, 4294901760
        %v2388 = vsub.f32 %v292, %v2387
        %v2389 = vand.u32 %v2388, 4294901760
        %v2390 = vsub.f32 %v2388, %v2389
        %v2391 = vand.u32 %v2390, 4294901760
        %2392 = vmatmul.mubr.f32.gmra.mxu0 %v2391
        %v2393 = vpop.f32.mrf.mxu0
        %v2394 = vadd.f32 0.0, %v2393
        %v2395 = vpop.f32.mrf.mxu0
        %2396 = vmatprep.mubr.f32.mxu0 0.0
        %v2397 = vand.u32 %v295, 4294901760
        %v2398 = vsub.f32 %v295, %v2397
        %v2399 = vand.u32 %v2398, 4294901760
        %v2400 = vsub.f32 %v2398, %v2399
        %v2401 = vand.u32 %v2400, 4294901760
        %2402 = vmatmul.mubr.f32.gmra.mxu0 %v2401
        %v2403 = vpop.f32.mrf.mxu0
        %v2404 = vadd.f32 0.0, %v2403
        %v2405 = vpop.f32.mrf.mxu0
        %2406 = vmatprep.mubr.f32.mxu0 0.0
        %v2407 = vand.u32 %v298, 4294901760
        %v2408 = vsub.f32 %v298, %v2407
        %v2409 = vand.u32 %v2408, 4294901760
        %v2410 = vsub.f32 %v2408, %v2409
        %v2411 = vand.u32 %v2410, 4294901760
        %2412 = vmatmul.mubr.f32.gmra.mxu0 %v2411
        %v2413 = vpop.f32.mrf.mxu0
        %v2414 = vadd.f32 0.0, %v2413
        %v2415 = vpop.f32.mrf.mxu0
        %2416 = vmatprep.mubr.f32.mxu0 0.0
        %v2417 = vand.u32 %v301, 4294901760
        %v2418 = vsub.f32 %v301, %v2417
        %v2419 = vand.u32 %v2418, 4294901760
        %v2420 = vsub.f32 %v2418, %v2419
        %v2421 = vand.u32 %v2420, 4294901760
        %2422 = vmatmul.mubr.f32.gmra.mxu0 %v2421
        %v2423 = vpop.f32.mrf.mxu0
        %v2424 = vadd.f32 0.0, %v2423
        %v2425 = vpop.f32.mrf.mxu0
        %2426 = vmatprep.mubr.f32.mxu0 0.0
        %v2427 = vand.u32 %v304, 4294901760
        %v2428 = vsub.f32 %v304, %v2427
        %v2429 = vand.u32 %v2428, 4294901760
        %v2430 = vsub.f32 %v2428, %v2429
        %v2431 = vand.u32 %v2430, 4294901760
        %2432 = vmatmul.mubr.f32.gmra.mxu0 %v2431
        %v2433 = vpop.f32.mrf.mxu0
        %v2434 = vadd.f32 0.0, %v2433
        %v2435 = vpop.f32.mrf.mxu0
        %2436 = vmatprep.mubr.f32.mxu0 0.0
        %v2437 = vand.u32 %v307, 4294901760
        %v2438 = vsub.f32 %v307, %v2437
        %v2439 = vand.u32 %v2438, 4294901760
        %v2440 = vsub.f32 %v2438, %v2439
        %v2441 = vand.u32 %v2440, 4294901760
        %2442 = vmatmul.mubr.f32.gmra.mxu0 %v2441
        %v2443 = vpop.f32.mrf.mxu0
        %v2444 = vadd.f32 0.0, %v2443
        %v2445 = vpop.f32.mrf.mxu0
        %2446 = vmatprep.mubr.f32.mxu0 0.0
        %v2447 = vand.u32 %v310, 4294901760
        %v2448 = vsub.f32 %v310, %v2447
        %v2449 = vand.u32 %v2448, 4294901760
        %v2450 = vsub.f32 %v2448, %v2449
        %v2451 = vand.u32 %v2450, 4294901760
        %2452 = vmatmul.mubr.f32.gmra.mxu0 %v2451
        %v2453 = vpop.f32.mrf.mxu0
        %v2454 = vadd.f32 0.0, %v2453
        %v2455 = vpop.f32.mrf.mxu0
        %2456 = vmatprep.mubr.f32.mxu0 0.0
        %v2457 = vand.u32 %v313, 4294901760
        %v2458 = vsub.f32 %v313, %v2457
        %v2459 = vand.u32 %v2458, 4294901760
        %v2460 = vsub.f32 %v2458, %v2459
        %v2461 = vand.u32 %v2460, 4294901760
        %2462 = vmatmul.mubr.f32.gmra.mxu0 %v2461
        %v2463 = vpop.f32.mrf.mxu0
        %v2464 = vadd.f32 0.0, %v2463
        %v2465 = vpop.f32.mrf.mxu0
        %2466 = vmatprep.mubr.f32.mxu0 0.0
        %v2467 = vand.u32 %v316, 4294901760
        %v2468 = vsub.f32 %v316, %v2467
        %v2469 = vand.u32 %v2468, 4294901760
        %v2470 = vsub.f32 %v2468, %v2469
        %v2471 = vand.u32 %v2470, 4294901760
        %2472 = vmatmul.mubr.f32.gmra.mxu0 %v2471
        %v2473 = vpop.f32.mrf.mxu0
        %v2474 = vadd.f32 0.0, %v2473
        %v2475 = vpop.f32.mrf.mxu0
        %2476 = vmatprep.mubr.f32.mxu0 0.0
        %v2477 = vand.u32 %v319, 4294901760
        %v2478 = vsub.f32 %v319, %v2477
        %v2479 = vand.u32 %v2478, 4294901760
        %v2480 = vsub.f32 %v2478, %v2479
        %v2481 = vand.u32 %v2480, 4294901760
        %2482 = vmatmul.mubr.f32.gmra.mxu0 %v2481
        %v2483 = vpop.f32.mrf.mxu0
        %v2484 = vadd.f32 0.0, %v2483
        %v2485 = vpop.f32.mrf.mxu0
        %2486 = vmatprep.mubr.f32.mxu0 0.0
        %v2487 = vand.u32 %v322, 4294901760
        %v2488 = vsub.f32 %v322, %v2487
        %v2489 = vand.u32 %v2488, 4294901760
        %v2490 = vsub.f32 %v2488, %v2489
        %v2491 = vand.u32 %v2490, 4294901760
        %2492 = vmatmul.mubr.f32.gmra.mxu0 %v2491
        %v2493 = vpop.f32.mrf.mxu0
        %v2494 = vadd.f32 0.0, %v2493
        %v2495 = vpop.f32.mrf.mxu0
        %2496 = vmatprep.mubr.f32.mxu0 0.0
        %v2497 = vand.u32 %v325, 4294901760
        %v2498 = vsub.f32 %v325, %v2497
        %v2499 = vand.u32 %v2498, 4294901760
        %v2500 = vsub.f32 %v2498, %v2499
        %v2501 = vand.u32 %v2500, 4294901760
        %2502 = vmatmul.mubr.f32.gmra.mxu0 %v2501
        %v2503 = vpop.f32.mrf.mxu0
        %v2504 = vadd.f32 0.0, %v2503
        %v2505 = vpop.f32.mrf.mxu0
        %2506 = vmatprep.mubr.f32.mxu0 0.0
        %v2507 = vand.u32 %v328, 4294901760
        %v2508 = vsub.f32 %v328, %v2507
        %v2509 = vand.u32 %v2508, 4294901760
        %v2510 = vsub.f32 %v2508, %v2509
        %v2511 = vand.u32 %v2510, 4294901760
        %2512 = vmatmul.mubr.f32.gmra.mxu0 %v2511
        %v2513 = vpop.f32.mrf.mxu0
        %v2514 = vadd.f32 0.0, %v2513
        %v2515 = vpop.f32.mrf.mxu0
        %2516 = vmatprep.mubr.f32.mxu0 0.0
        %v2517 = vand.u32 %v331, 4294901760
        %v2518 = vsub.f32 %v331, %v2517
        %v2519 = vand.u32 %v2518, 4294901760
        %v2520 = vsub.f32 %v2518, %v2519
        %v2521 = vand.u32 %v2520, 4294901760
        %2522 = vmatmul.mubr.f32.gmra.mxu0 %v2521
        %v2523 = vpop.f32.mrf.mxu0
        %v2524 = vadd.f32 0.0, %v2523
        %v2525 = vpop.f32.mrf.mxu0
        %2526 = vmatprep.mubr.f32.mxu0 0.0
        %v2527 = vand.u32 %v334, 4294901760
        %v2528 = vsub.f32 %v334, %v2527
        %v2529 = vand.u32 %v2528, 4294901760
        %v2530 = vsub.f32 %v2528, %v2529
        %v2531 = vand.u32 %v2530, 4294901760
        %2532 = vmatmul.mubr.f32.gmra.mxu0 %v2531
        %v2533 = vpop.f32.mrf.mxu0
        %v2534 = vadd.f32 0.0, %v2533
        %v2535 = vpop.f32.mrf.mxu0
        %2536 = vmatprep.mubr.f32.mxu0 0.0
        %v2537 = vand.u32 %v337, 4294901760
        %v2538 = vsub.f32 %v337, %v2537
        %v2539 = vand.u32 %v2538, 4294901760
        %v2540 = vsub.f32 %v2538, %v2539
        %v2541 = vand.u32 %v2540, 4294901760
        %2542 = vmatmul.mubr.f32.gmra.mxu0 %v2541
        %v2543 = vpop.f32.mrf.mxu0
        %v2544 = vadd.f32 0.0, %v2543
        %v2545 = vpop.f32.mrf.mxu0
        %2546 = vmatprep.mubr.f32.mxu0 0.0
        %v2547 = vand.u32 %v340, 4294901760
        %v2548 = vsub.f32 %v340, %v2547
        %v2549 = vand.u32 %v2548, 4294901760
        %v2550 = vsub.f32 %v2548, %v2549
        %v2551 = vand.u32 %v2550, 4294901760
        %2552 = vmatmul.mubr.f32.gmra.mxu0 %v2551
        %v2553 = vpop.f32.mrf.mxu0
        %v2554 = vadd.f32 0.0, %v2553
        %v2555 = vpop.f32.mrf.mxu0
        %2556 = vmatprep.mubr.f32.mxu0 0.0
        %v2557 = vand.u32 %v343, 4294901760
        %v2558 = vsub.f32 %v343, %v2557
        %v2559 = vand.u32 %v2558, 4294901760
        %v2560 = vsub.f32 %v2558, %v2559
        %v2561 = vand.u32 %v2560, 4294901760
        %2562 = vmatmul.mubr.f32.gmra.mxu0 %v2561
        %v2563 = vpop.f32.mrf.mxu0
        %v2564 = vadd.f32 0.0, %v2563
        %v2565 = vpop.f32.mrf.mxu0
        %2566 = vdwg.mxu0
        %2567 = vmatprep.subr.mxu0 0.0
        %2568 = vmatpush1.msra.mxu0 0.0
        %2569 = vmatprep.subr.mxu0 0.0
        %2570 = vmatpush1.msra.mxu0 0.0
        %2571 = vmatprep.subr.mxu0 0.0
        %2572 = vmatpush1.msra.mxu0 0.0
        %2573 = vmatprep.subr.mxu0 0.0
        %2574 = vmatpush1.msra.mxu0 0.0
        %2575 = vmatprep.subr.mxu0 0.0
        %2576 = vmatpush1.msra.mxu0 0.0
        %2577 = vmatprep.subr.mxu0 0.0
        %2578 = vmatpush1.msra.mxu0 0.0
        %2579 = vmatprep.subr.mxu0 0.0
        %2580 = vmatpush1.msra.mxu0 0.0
        %2581 = vmatprep.subr.mxu0 0.0
        %2582 = vmatpush1.msra.mxu0 0.0
        %2583 = vmatprep.subr.mxu0 0.0
        %2584 = vmatpush1.msra.mxu0 0.0
        %2585 = vmatprep.subr.mxu0 0.0
        %2586 = vmatpush1.msra.mxu0 0.0
        %2587 = vmatprep.subr.mxu0 0.0
        %2588 = vmatpush1.msra.mxu0 0.0
        %2589 = vmatprep.subr.mxu0 0.0
        %2590 = vmatpush1.msra.mxu0 0.0
        %2591 = vmatprep.subr.mxu0 0.0
        %2592 = vmatpush1.msra.mxu0 0.0
        %2593 = vmatprep.subr.mxu0 0.0
        %2594 = vmatpush1.msra.mxu0 0.0
        %2595 = vmatprep.subr.mxu0 0.0
        %v2596 = vand.u32 %v2177, 4294901760
        %v2597 = vsub.f32 %v2177, %v2596
        %v2598 = vand.u32 %v2597, 4294901760
        %v2599 = vsub.f32 %v2597, %v2598
        %v2600 = vand.u32 %v2599, 4294901760
        %2601 = vmatpush1.msra.mxu0 %v2600
        %2602 = vmatprep.subr.mxu0 0.0
        %v2603 = vand.u32 %v2175, 4294901760
        %v2604 = vsub.f32 %v2175, %v2603
        %v2605 = vand.u32 %v2604, 4294901760
        %v2606 = vsub.f32 %v2604, %v2605
        %v2607 = vand.u32 %v2606, 4294901760
        %2608 = vmatpush1.msra.mxu0 %v2607
        %2609 = vmatprep.subr.mxu0 0.0
        %2610 = vmatpush2.msra.mxu0 0.0
        %2611 = vmatprep.subr.mxu0 0.0
        %2612 = vmatpush2.msra.mxu0 0.0
        %2613 = vmatprep.subr.mxu0 0.0
        %2614 = vmatpush2.msra.mxu0 0.0
        %2615 = vmatprep.subr.mxu0 0.0
        %2616 = vmatpush2.msra.mxu0 0.0
        %2617 = vmatprep.subr.mxu0 0.0
        %2618 = vmatpush2.msra.mxu0 0.0
        %2619 = vmatprep.subr.mxu0 0.0
        %2620 = vmatpush2.msra.mxu0 0.0
        %2621 = vmatprep.subr.mxu0 0.0
        %2622 = vmatpush2.msra.mxu0 0.0
        %2623 = vmatprep.subr.mxu0 0.0
        %2624 = vmatpush2.msra.mxu0 0.0
        %2625 = vmatprep.subr.mxu0 0.0
        %2626 = vmatpush2.msra.mxu0 0.0
        %2627 = vmatprep.subr.mxu0 0.0
        %2628 = vmatpush2.msra.mxu0 0.0
        %2629 = vmatprep.subr.mxu0 0.0
        %2630 = vmatpush2.msra.mxu0 0.0
        %2631 = vmatprep.subr.mxu0 0.0
        %2632 = vmatpush2.msra.mxu0 0.0
        %2633 = vmatprep.subr.mxu0 0.0
        %2634 = vmatpush2.msra.mxu0 0.0
        %2635 = vmatprep.subr.mxu0 0.0
        %2636 = vmatpush2.msra.mxu0 0.0
        %2637 = vmatprep.subr.mxu0 0.0
        %2638 = vmatpush2.msra.mxu0 0.0
        %2639 = vmatprep.subr.mxu0 0.0
        %2640 = vmatpush2.msra.mxu0 0.0
        %2641 = vmatprep.mubr.f32.mxu0 0.0
        %v2642 = vand.u32 %v250, 4294901760
        %2643 = vmatmul.mubr.f32.gmra.mxu0 %v2642
        %v2644 = vpop.f32.mrf.mxu0
        %v2645 = vadd.f32 %v2254, %v2644
        %v2646 = vpop.f32.mrf.mxu0
        %2647 = vmatprep.mubr.f32.mxu0 0.0
        %v2648 = vand.u32 %v253, 4294901760
        %2649 = vmatmul.mubr.f32.gmra.mxu0 %v2648
        %v2650 = vpop.f32.mrf.mxu0
        %v2651 = vadd.f32 %v2264, %v2650
        %v2652 = vpop.f32.mrf.mxu0
        %2653 = vmatprep.mubr.f32.mxu0 0.0
        %v2654 = vand.u32 %v256, 4294901760
        %2655 = vmatmul.mubr.f32.gmra.mxu0 %v2654
        %v2656 = vpop.f32.mrf.mxu0
        %v2657 = vadd.f32 %v2274, %v2656
        %v2658 = vpop.f32.mrf.mxu0
        %2659 = vmatprep.mubr.f32.mxu0 0.0
        %v2660 = vand.u32 %v259, 4294901760
        %2661 = vmatmul.mubr.f32.gmra.mxu0 %v2660
        %v2662 = vpop.f32.mrf.mxu0
        %v2663 = vadd.f32 %v2284, %v2662
        %v2664 = vpop.f32.mrf.mxu0
        %2665 = vmatprep.mubr.f32.mxu0 0.0
        %v2666 = vand.u32 %v262, 4294901760
        %2667 = vmatmul.mubr.f32.gmra.mxu0 %v2666
        %v2668 = vpop.f32.mrf.mxu0
        %v2669 = vadd.f32 %v2294, %v2668
        %v2670 = vpop.f32.mrf.mxu0
        %2671 = vmatprep.mubr.f32.mxu0 0.0
        %v2672 = vand.u32 %v265, 4294901760
        %2673 = vmatmul.mubr.f32.gmra.mxu0 %v2672
        %v2674 = vpop.f32.mrf.mxu0
        %v2675 = vadd.f32 %v2304, %v2674
        %v2676 = vpop.f32.mrf.mxu0
        %2677 = vmatprep.mubr.f32.mxu0 0.0
        %v2678 = vand.u32 %v268, 4294901760
        %2679 = vmatmul.mubr.f32.gmra.mxu0 %v2678
        %v2680 = vpop.f32.mrf.mxu0
        %v2681 = vadd.f32 %v2314, %v2680
        %v2682 = vpop.f32.mrf.mxu0
        %2683 = vmatprep.mubr.f32.mxu0 0.0
        %v2684 = vand.u32 %v271, 4294901760
        %2685 = vmatmul.mubr.f32.gmra.mxu0 %v2684
        %v2686 = vpop.f32.mrf.mxu0
        %v2687 = vadd.f32 %v2324, %v2686
        %v2688 = vpop.f32.mrf.mxu0
        %2689 = vmatprep.mubr.f32.mxu0 0.0
        %v2690 = vand.u32 %v274, 4294901760
        %2691 = vmatmul.mubr.f32.gmra.mxu0 %v2690
        %v2692 = vpop.f32.mrf.mxu0
        %v2693 = vadd.f32 %v2334, %v2692
        %v2694 = vpop.f32.mrf.mxu0
        %2695 = vmatprep.mubr.f32.mxu0 0.0
        %v2696 = vand.u32 %v277, 4294901760
        %2697 = vmatmul.mubr.f32.gmra.mxu0 %v2696
        %v2698 = vpop.f32.mrf.mxu0
        %v2699 = vadd.f32 %v2344, %v2698
        %v2700 = vpop.f32.mrf.mxu0
        %2701 = vmatprep.mubr.f32.mxu0 0.0
        %v2702 = vand.u32 %v280, 4294901760
        %2703 = vmatmul.mubr.f32.gmra.mxu0 %v2702
        %v2704 = vpop.f32.mrf.mxu0
        %v2705 = vadd.f32 %v2354, %v2704
        %v2706 = vpop.f32.mrf.mxu0
        %2707 = vmatprep.mubr.f32.mxu0 0.0
        %v2708 = vand.u32 %v283, 4294901760
        %2709 = vmatmul.mubr.f32.gmra.mxu0 %v2708
        %v2710 = vpop.f32.mrf.mxu0
        %v2711 = vadd.f32 %v2364, %v2710
        %v2712 = vpop.f32.mrf.mxu0
        %2713 = vmatprep.mubr.f32.mxu0 0.0
        %v2714 = vand.u32 %v286, 4294901760
        %2715 = vmatmul.mubr.f32.gmra.mxu0 %v2714
        %v2716 = vpop.f32.mrf.mxu0
        %v2717 = vadd.f32 %v2374, %v2716
        %v2718 = vpop.f32.mrf.mxu0
        %2719 = vmatprep.mubr.f32.mxu0 0.0
        %v2720 = vand.u32 %v289, 4294901760
        %2721 = vmatmul.mubr.f32.gmra.mxu0 %v2720
        %v2722 = vpop.f32.mrf.mxu0
        %v2723 = vadd.f32 %v2384, %v2722
        %v2724 = vpop.f32.mrf.mxu0
        %2725 = vmatprep.mubr.f32.mxu0 0.0
        %v2726 = vand.u32 %v292, 4294901760
        %2727 = vmatmul.mubr.f32.gmra.mxu0 %v2726
        %v2728 = vpop.f32.mrf.mxu0
        %v2729 = vadd.f32 %v2394, %v2728
        %v2730 = vpop.f32.mrf.mxu0
        %2731 = vmatprep.mubr.f32.mxu0 0.0
        %v2732 = vand.u32 %v295, 4294901760
        %2733 = vmatmul.mubr.f32.gmra.mxu0 %v2732
        %v2734 = vpop.f32.mrf.mxu0
        %v2735 = vadd.f32 %v2404, %v2734
        %v2736 = vpop.f32.mrf.mxu0
        %2737 = vmatprep.mubr.f32.mxu0 0.0
        %v2738 = vand.u32 %v298, 4294901760
        %2739 = vmatmul.mubr.f32.gmra.mxu0 %v2738
        %v2740 = vpop.f32.mrf.mxu0
        %v2741 = vadd.f32 %v2414, %v2740
        %v2742 = vpop.f32.mrf.mxu0
        %2743 = vmatprep.mubr.f32.mxu0 0.0
        %v2744 = vand.u32 %v301, 4294901760
        %2745 = vmatmul.mubr.f32.gmra.mxu0 %v2744
        %v2746 = vpop.f32.mrf.mxu0
        %v2747 = vadd.f32 %v2424, %v2746
        %v2748 = vpop.f32.mrf.mxu0
        %2749 = vmatprep.mubr.f32.mxu0 0.0
        %v2750 = vand.u32 %v304, 4294901760
        %2751 = vmatmul.mubr.f32.gmra.mxu0 %v2750
        %v2752 = vpop.f32.mrf.mxu0
        %v2753 = vadd.f32 %v2434, %v2752
        %v2754 = vpop.f32.mrf.mxu0
        %2755 = vmatprep.mubr.f32.mxu0 0.0
        %v2756 = vand.u32 %v307, 4294901760
        %2757 = vmatmul.mubr.f32.gmra.mxu0 %v2756
        %v2758 = vpop.f32.mrf.mxu0
        %v2759 = vadd.f32 %v2444, %v2758
        %v2760 = vpop.f32.mrf.mxu0
        %2761 = vmatprep.mubr.f32.mxu0 0.0
        %v2762 = vand.u32 %v310, 4294901760
        %2763 = vmatmul.mubr.f32.gmra.mxu0 %v2762
        %v2764 = vpop.f32.mrf.mxu0
        %v2765 = vadd.f32 %v2454, %v2764
        %v2766 = vpop.f32.mrf.mxu0
        %2767 = vmatprep.mubr.f32.mxu0 0.0
        %v2768 = vand.u32 %v313, 4294901760
        %2769 = vmatmul.mubr.f32.gmra.mxu0 %v2768
        %v2770 = vpop.f32.mrf.mxu0
        %v2771 = vadd.f32 %v2464, %v2770
        %v2772 = vpop.f32.mrf.mxu0
        %2773 = vmatprep.mubr.f32.mxu0 0.0
        %v2774 = vand.u32 %v316, 4294901760
        %2775 = vmatmul.mubr.f32.gmra.mxu0 %v2774
        %v2776 = vpop.f32.mrf.mxu0
        %v2777 = vadd.f32 %v2474, %v2776
        %v2778 = vpop.f32.mrf.mxu0
        %2779 = vmatprep.mubr.f32.mxu0 0.0
        %v2780 = vand.u32 %v319, 4294901760
        %2781 = vmatmul.mubr.f32.gmra.mxu0 %v2780
        %v2782 = vpop.f32.mrf.mxu0
        %v2783 = vadd.f32 %v2484, %v2782
        %v2784 = vpop.f32.mrf.mxu0
        %2785 = vmatprep.mubr.f32.mxu0 0.0
        %v2786 = vand.u32 %v322, 4294901760
        %2787 = vmatmul.mubr.f32.gmra.mxu0 %v2786
        %v2788 = vpop.f32.mrf.mxu0
        %v2789 = vadd.f32 %v2494, %v2788
        %v2790 = vpop.f32.mrf.mxu0
        %2791 = vmatprep.mubr.f32.mxu0 0.0
        %v2792 = vand.u32 %v325, 4294901760
        %2793 = vmatmul.mubr.f32.gmra.mxu0 %v2792
        %v2794 = vpop.f32.mrf.mxu0
        %v2795 = vadd.f32 %v2504, %v2794
        %v2796 = vpop.f32.mrf.mxu0
        %2797 = vmatprep.mubr.f32.mxu0 0.0
        %v2798 = vand.u32 %v328, 4294901760
        %2799 = vmatmul.mubr.f32.gmra.mxu0 %v2798
        %v2800 = vpop.f32.mrf.mxu0
        %v2801 = vadd.f32 %v2514, %v2800
        %v2802 = vpop.f32.mrf.mxu0
        %2803 = vmatprep.mubr.f32.mxu0 0.0
        %v2804 = vand.u32 %v331, 4294901760
        %2805 = vmatmul.mubr.f32.gmra.mxu0 %v2804
        %v2806 = vpop.f32.mrf.mxu0
        %v2807 = vadd.f32 %v2524, %v2806
        %v2808 = vpop.f32.mrf.mxu0
        %2809 = vmatprep.mubr.f32.mxu0 0.0
        %v2810 = vand.u32 %v334, 4294901760
        %2811 = vmatmul.mubr.f32.gmra.mxu0 %v2810
        %v2812 = vpop.f32.mrf.mxu0
        %v2813 = vadd.f32 %v2534, %v2812
        %v2814 = vpop.f32.mrf.mxu0
        %2815 = vmatprep.mubr.f32.mxu0 0.0
        %v2816 = vand.u32 %v337, 4294901760
        %2817 = vmatmul.mubr.f32.gmra.mxu0 %v2816
        %v2818 = vpop.f32.mrf.mxu0
        %v2819 = vadd.f32 %v2544, %v2818
        %v2820 = vpop.f32.mrf.mxu0
        %2821 = vmatprep.mubr.f32.mxu0 0.0
        %v2822 = vand.u32 %v340, 4294901760
        %2823 = vmatmul.mubr.f32.gmra.mxu0 %v2822
        %v2824 = vpop.f32.mrf.mxu0
        %v2825 = vadd.f32 %v2554, %v2824
        %v2826 = vpop.f32.mrf.mxu0
        %2827 = vmatprep.mubr.f32.mxu0 0.0
        %v2828 = vand.u32 %v343, 4294901760
        %2829 = vmatmul.mubr.f32.gmra.mxu0 %v2828
        %v2830 = vpop.f32.mrf.mxu0
        %v2831 = vadd.f32 %v2564, %v2830
        %v2832 = vpop.f32.mrf.mxu0
        %2833 = vdwg.mxu0
        %2834 = vmatprep.subr.mxu0 0.0
        %2835 = vmatpush1.msra.mxu0 0.0
        %2836 = vmatprep.subr.mxu0 0.0
        %2837 = vmatpush1.msra.mxu0 0.0
        %2838 = vmatprep.subr.mxu0 0.0
        %2839 = vmatpush1.msra.mxu0 0.0
        %2840 = vmatprep.subr.mxu0 0.0
        %2841 = vmatpush1.msra.mxu0 0.0
        %2842 = vmatprep.subr.mxu0 0.0
        %2843 = vmatpush1.msra.mxu0 0.0
        %2844 = vmatprep.subr.mxu0 0.0
        %2845 = vmatpush1.msra.mxu0 0.0
        %2846 = vmatprep.subr.mxu0 0.0
        %2847 = vmatpush1.msra.mxu0 0.0
        %2848 = vmatprep.subr.mxu0 0.0
        %2849 = vmatpush1.msra.mxu0 0.0
        %2850 = vmatprep.subr.mxu0 0.0
        %2851 = vmatpush1.msra.mxu0 0.0
        %2852 = vmatprep.subr.mxu0 0.0
        %2853 = vmatpush1.msra.mxu0 0.0
        %2854 = vmatprep.subr.mxu0 0.0
        %2855 = vmatpush1.msra.mxu0 0.0
        %2856 = vmatprep.subr.mxu0 0.0
        %2857 = vmatpush1.msra.mxu0 0.0
        %2858 = vmatprep.subr.mxu0 0.0
        %2859 = vmatpush1.msra.mxu0 0.0
        %2860 = vmatprep.subr.mxu0 0.0
        %2861 = vmatpush1.msra.mxu0 0.0
        %2862 = vmatprep.subr.mxu0 0.0
        %v2863 = vand.u32 %v2177, 4294901760
        %v2864 = vsub.f32 %v2177, %v2863
        %2865 = vmatpush1.msra.mxu0 %v2864
        %2866 = vmatprep.subr.mxu0 0.0
        %v2867 = vand.u32 %v2175, 4294901760
        %v2868 = vsub.f32 %v2175, %v2867
        %2869 = vmatpush1.msra.mxu0 %v2868
        %2870 = vmatprep.subr.mxu0 0.0
        %2871 = vmatpush2.msra.mxu0 0.0
        %2872 = vmatprep.subr.mxu0 0.0
        %2873 = vmatpush2.msra.mxu0 0.0
        %2874 = vmatprep.subr.mxu0 0.0
        %2875 = vmatpush2.msra.mxu0 0.0
        %2876 = vmatprep.subr.mxu0 0.0
        %2877 = vmatpush2.msra.mxu0 0.0
        %2878 = vmatprep.subr.mxu0 0.0
        %2879 = vmatpush2.msra.mxu0 0.0
        %2880 = vmatprep.subr.mxu0 0.0
        %2881 = vmatpush2.msra.mxu0 0.0
        %2882 = vmatprep.subr.mxu0 0.0
        %2883 = vmatpush2.msra.mxu0 0.0
        %2884 = vmatprep.subr.mxu0 0.0
        %2885 = vmatpush2.msra.mxu0 0.0
        %2886 = vmatprep.subr.mxu0 0.0
        %2887 = vmatpush2.msra.mxu0 0.0
        %2888 = vmatprep.subr.mxu0 0.0
        %2889 = vmatpush2.msra.mxu0 0.0
        %2890 = vmatprep.subr.mxu0 0.0
        %2891 = vmatpush2.msra.mxu0 0.0
        %2892 = vmatprep.subr.mxu0 0.0
        %2893 = vmatpush2.msra.mxu0 0.0
        %2894 = vmatprep.subr.mxu0 0.0
        %2895 = vmatpush2.msra.mxu0 0.0
        %2896 = vmatprep.subr.mxu0 0.0
        %2897 = vmatpush2.msra.mxu0 0.0
        %2898 = vmatprep.subr.mxu0 0.0
        %2899 = vmatpush2.msra.mxu0 0.0
        %2900 = vmatprep.subr.mxu0 0.0
        %2901 = vmatpush2.msra.mxu0 0.0
        %2902 = vmatprep.mubr.f32.mxu0 0.0
        %v2903 = vand.u32 %v250, 4294901760
        %v2904 = vsub.f32 %v250, %v2903
        %2905 = vmatmul.mubr.f32.gmra.mxu0 %v2904
        %v2906 = vpop.f32.mrf.mxu0
        %v2907 = vadd.f32 %v2645, %v2906
        %v2908 = vpop.f32.mrf.mxu0
        %2909 = vmatprep.mubr.f32.mxu0 0.0
        %v2910 = vand.u32 %v253, 4294901760
        %v2911 = vsub.f32 %v253, %v2910
        %2912 = vmatmul.mubr.f32.gmra.mxu0 %v2911
        %v2913 = vpop.f32.mrf.mxu0
        %v2914 = vadd.f32 %v2651, %v2913
        %v2915 = vpop.f32.mrf.mxu0
        %2916 = vmatprep.mubr.f32.mxu0 0.0
        %v2917 = vand.u32 %v256, 4294901760
        %v2918 = vsub.f32 %v256, %v2917
        %2919 = vmatmul.mubr.f32.gmra.mxu0 %v2918
        %v2920 = vpop.f32.mrf.mxu0
        %v2921 = vadd.f32 %v2657, %v2920
        %v2922 = vpop.f32.mrf.mxu0
        %2923 = vmatprep.mubr.f32.mxu0 0.0
        %v2924 = vand.u32 %v259, 4294901760
        %v2925 = vsub.f32 %v259, %v2924
        %2926 = vmatmul.mubr.f32.gmra.mxu0 %v2925
        %v2927 = vpop.f32.mrf.mxu0
        %v2928 = vadd.f32 %v2663, %v2927
        %v2929 = vpop.f32.mrf.mxu0
        %2930 = vmatprep.mubr.f32.mxu0 0.0
        %v2931 = vand.u32 %v262, 4294901760
        %v2932 = vsub.f32 %v262, %v2931
        %2933 = vmatmul.mubr.f32.gmra.mxu0 %v2932
        %v2934 = vpop.f32.mrf.mxu0
        %v2935 = vadd.f32 %v2669, %v2934
        %v2936 = vpop.f32.mrf.mxu0
        %2937 = vmatprep.mubr.f32.mxu0 0.0
        %v2938 = vand.u32 %v265, 4294901760
        %v2939 = vsub.f32 %v265, %v2938
        %2940 = vmatmul.mubr.f32.gmra.mxu0 %v2939
        %v2941 = vpop.f32.mrf.mxu0
        %v2942 = vadd.f32 %v2675, %v2941
        %v2943 = vpop.f32.mrf.mxu0
        %2944 = vmatprep.mubr.f32.mxu0 0.0
        %v2945 = vand.u32 %v268, 4294901760
        %v2946 = vsub.f32 %v268, %v2945
        %2947 = vmatmul.mubr.f32.gmra.mxu0 %v2946
        %v2948 = vpop.f32.mrf.mxu0
        %v2949 = vadd.f32 %v2681, %v2948
        %v2950 = vpop.f32.mrf.mxu0
        %2951 = vmatprep.mubr.f32.mxu0 0.0
        %v2952 = vand.u32 %v271, 4294901760
        %v2953 = vsub.f32 %v271, %v2952
        %2954 = vmatmul.mubr.f32.gmra.mxu0 %v2953
        %v2955 = vpop.f32.mrf.mxu0
        %v2956 = vadd.f32 %v2687, %v2955
        %v2957 = vpop.f32.mrf.mxu0
        %2958 = vmatprep.mubr.f32.mxu0 0.0
        %v2959 = vand.u32 %v274, 4294901760
        %v2960 = vsub.f32 %v274, %v2959
        %2961 = vmatmul.mubr.f32.gmra.mxu0 %v2960
        %v2962 = vpop.f32.mrf.mxu0
        %v2963 = vadd.f32 %v2693, %v2962
        %v2964 = vpop.f32.mrf.mxu0
        %2965 = vmatprep.mubr.f32.mxu0 0.0
        %v2966 = vand.u32 %v277, 4294901760
        %v2967 = vsub.f32 %v277, %v2966
        %2968 = vmatmul.mubr.f32.gmra.mxu0 %v2967
        %v2969 = vpop.f32.mrf.mxu0
        %v2970 = vadd.f32 %v2699, %v2969
        %v2971 = vpop.f32.mrf.mxu0
        %2972 = vmatprep.mubr.f32.mxu0 0.0
        %v2973 = vand.u32 %v280, 4294901760
        %v2974 = vsub.f32 %v280, %v2973
        %2975 = vmatmul.mubr.f32.gmra.mxu0 %v2974
        %v2976 = vpop.f32.mrf.mxu0
        %v2977 = vadd.f32 %v2705, %v2976
        %v2978 = vpop.f32.mrf.mxu0
        %2979 = vmatprep.mubr.f32.mxu0 0.0
        %v2980 = vand.u32 %v283, 4294901760
        %v2981 = vsub.f32 %v283, %v2980
        %2982 = vmatmul.mubr.f32.gmra.mxu0 %v2981
        %v2983 = vpop.f32.mrf.mxu0
        %v2984 = vadd.f32 %v2711, %v2983
        %v2985 = vpop.f32.mrf.mxu0
        %2986 = vmatprep.mubr.f32.mxu0 0.0
        %v2987 = vand.u32 %v286, 4294901760
        %v2988 = vsub.f32 %v286, %v2987
        %2989 = vmatmul.mubr.f32.gmra.mxu0 %v2988
        %v2990 = vpop.f32.mrf.mxu0
        %v2991 = vadd.f32 %v2717, %v2990
        %v2992 = vpop.f32.mrf.mxu0
        %2993 = vmatprep.mubr.f32.mxu0 0.0
        %v2994 = vand.u32 %v289, 4294901760
        %v2995 = vsub.f32 %v289, %v2994
        %2996 = vmatmul.mubr.f32.gmra.mxu0 %v2995
        %v2997 = vpop.f32.mrf.mxu0
        %v2998 = vadd.f32 %v2723, %v2997
        %v2999 = vpop.f32.mrf.mxu0
        %3000 = vmatprep.mubr.f32.mxu0 0.0
        %v3001 = vand.u32 %v292, 4294901760
        %v3002 = vsub.f32 %v292, %v3001
        %3003 = vmatmul.mubr.f32.gmra.mxu0 %v3002
        %v3004 = vpop.f32.mrf.mxu0
        %v3005 = vadd.f32 %v2729, %v3004
        %v3006 = vpop.f32.mrf.mxu0
        %3007 = vmatprep.mubr.f32.mxu0 0.0
        %v3008 = vand.u32 %v295, 4294901760
        %v3009 = vsub.f32 %v295, %v3008
        %3010 = vmatmul.mubr.f32.gmra.mxu0 %v3009
        %v3011 = vpop.f32.mrf.mxu0
        %v3012 = vadd.f32 %v2735, %v3011
        %v3013 = vpop.f32.mrf.mxu0
        %3014 = vmatprep.mubr.f32.mxu0 0.0
        %v3015 = vand.u32 %v298, 4294901760
        %v3016 = vsub.f32 %v298, %v3015
        %3017 = vmatmul.mubr.f32.gmra.mxu0 %v3016
        %v3018 = vpop.f32.mrf.mxu0
        %v3019 = vadd.f32 %v2741, %v3018
        %v3020 = vpop.f32.mrf.mxu0
        %3021 = vmatprep.mubr.f32.mxu0 0.0
        %v3022 = vand.u32 %v301, 4294901760
        %v3023 = vsub.f32 %v301, %v3022
        %3024 = vmatmul.mubr.f32.gmra.mxu0 %v3023
        %v3025 = vpop.f32.mrf.mxu0
        %v3026 = vadd.f32 %v2747, %v3025
        %v3027 = vpop.f32.mrf.mxu0
        %3028 = vmatprep.mubr.f32.mxu0 0.0
        %v3029 = vand.u32 %v304, 4294901760
        %v3030 = vsub.f32 %v304, %v3029
        %3031 = vmatmul.mubr.f32.gmra.mxu0 %v3030
        %v3032 = vpop.f32.mrf.mxu0
        %v3033 = vadd.f32 %v2753, %v3032
        %v3034 = vpop.f32.mrf.mxu0
        %3035 = vmatprep.mubr.f32.mxu0 0.0
        %v3036 = vand.u32 %v307, 4294901760
        %v3037 = vsub.f32 %v307, %v3036
        %3038 = vmatmul.mubr.f32.gmra.mxu0 %v3037
        %v3039 = vpop.f32.mrf.mxu0
        %v3040 = vadd.f32 %v2759, %v3039
        %v3041 = vpop.f32.mrf.mxu0
        %3042 = vmatprep.mubr.f32.mxu0 0.0
        %v3043 = vand.u32 %v310, 4294901760
        %v3044 = vsub.f32 %v310, %v3043
        %3045 = vmatmul.mubr.f32.gmra.mxu0 %v3044
        %v3046 = vpop.f32.mrf.mxu0
        %v3047 = vadd.f32 %v2765, %v3046
        %v3048 = vpop.f32.mrf.mxu0
        %3049 = vmatprep.mubr.f32.mxu0 0.0
        %v3050 = vand.u32 %v313, 4294901760
        %v3051 = vsub.f32 %v313, %v3050
        %3052 = vmatmul.mubr.f32.gmra.mxu0 %v3051
        %v3053 = vpop.f32.mrf.mxu0
        %v3054 = vadd.f32 %v2771, %v3053
        %v3055 = vpop.f32.mrf.mxu0
        %3056 = vmatprep.mubr.f32.mxu0 0.0
        %v3057 = vand.u32 %v316, 4294901760
        %v3058 = vsub.f32 %v316, %v3057
        %3059 = vmatmul.mubr.f32.gmra.mxu0 %v3058
        %v3060 = vpop.f32.mrf.mxu0
        %v3061 = vadd.f32 %v2777, %v3060
        %v3062 = vpop.f32.mrf.mxu0
        %3063 = vmatprep.mubr.f32.mxu0 0.0
        %v3064 = vand.u32 %v319, 4294901760
        %v3065 = vsub.f32 %v319, %v3064
        %3066 = vmatmul.mubr.f32.gmra.mxu0 %v3065
        %v3067 = vpop.f32.mrf.mxu0
        %v3068 = vadd.f32 %v2783, %v3067
        %v3069 = vpop.f32.mrf.mxu0
        %3070 = vmatprep.mubr.f32.mxu0 0.0
        %v3071 = vand.u32 %v322, 4294901760
        %v3072 = vsub.f32 %v322, %v3071
        %3073 = vmatmul.mubr.f32.gmra.mxu0 %v3072
        %v3074 = vpop.f32.mrf.mxu0
        %v3075 = vadd.f32 %v2789, %v3074
        %v3076 = vpop.f32.mrf.mxu0
        %3077 = vmatprep.mubr.f32.mxu0 0.0
        %v3078 = vand.u32 %v325, 4294901760
        %v3079 = vsub.f32 %v325, %v3078
        %3080 = vmatmul.mubr.f32.gmra.mxu0 %v3079
        %v3081 = vpop.f32.mrf.mxu0
        %v3082 = vadd.f32 %v2795, %v3081
        %v3083 = vpop.f32.mrf.mxu0
        %3084 = vmatprep.mubr.f32.mxu0 0.0
        %v3085 = vand.u32 %v328, 4294901760
        %v3086 = vsub.f32 %v328, %v3085
        %3087 = vmatmul.mubr.f32.gmra.mxu0 %v3086
        %v3088 = vpop.f32.mrf.mxu0
        %v3089 = vadd.f32 %v2801, %v3088
        %v3090 = vpop.f32.mrf.mxu0
        %3091 = vmatprep.mubr.f32.mxu0 0.0
        %v3092 = vand.u32 %v331, 4294901760
        %v3093 = vsub.f32 %v331, %v3092
        %3094 = vmatmul.mubr.f32.gmra.mxu0 %v3093
        %v3095 = vpop.f32.mrf.mxu0
        %v3096 = vadd.f32 %v2807, %v3095
        %v3097 = vpop.f32.mrf.mxu0
        %3098 = vmatprep.mubr.f32.mxu0 0.0
        %v3099 = vand.u32 %v334, 4294901760
        %v3100 = vsub.f32 %v334, %v3099
        %3101 = vmatmul.mubr.f32.gmra.mxu0 %v3100
        %v3102 = vpop.f32.mrf.mxu0
        %v3103 = vadd.f32 %v2813, %v3102
        %v3104 = vpop.f32.mrf.mxu0
        %3105 = vmatprep.mubr.f32.mxu0 0.0
        %v3106 = vand.u32 %v337, 4294901760
        %v3107 = vsub.f32 %v337, %v3106
        %3108 = vmatmul.mubr.f32.gmra.mxu0 %v3107
        %v3109 = vpop.f32.mrf.mxu0
        %v3110 = vadd.f32 %v2819, %v3109
        %v3111 = vpop.f32.mrf.mxu0
        %3112 = vmatprep.mubr.f32.mxu0 0.0
        %v3113 = vand.u32 %v340, 4294901760
        %v3114 = vsub.f32 %v340, %v3113
        %3115 = vmatmul.mubr.f32.gmra.mxu0 %v3114
        %v3116 = vpop.f32.mrf.mxu0
        %v3117 = vadd.f32 %v2825, %v3116
        %v3118 = vpop.f32.mrf.mxu0
        %3119 = vmatprep.mubr.f32.mxu0 0.0
        %v3120 = vand.u32 %v343, 4294901760
        %v3121 = vsub.f32 %v343, %v3120
        %3122 = vmatmul.mubr.f32.gmra.mxu0 %v3121
        %v3123 = vpop.f32.mrf.mxu0
        %v3124 = vadd.f32 %v2831, %v3123
        %v3125 = vpop.f32.mrf.mxu0
        %3126 = vdwg.mxu0
        %3127 = vmatprep.subr.mxu0 0.0
        %3128 = vmatpush1.msra.mxu0 0.0
        %3129 = vmatprep.subr.mxu0 0.0
        %3130 = vmatpush1.msra.mxu0 0.0
        %3131 = vmatprep.subr.mxu0 0.0
        %3132 = vmatpush1.msra.mxu0 0.0
        %3133 = vmatprep.subr.mxu0 0.0
        %3134 = vmatpush1.msra.mxu0 0.0
        %3135 = vmatprep.subr.mxu0 0.0
        %3136 = vmatpush1.msra.mxu0 0.0
        %3137 = vmatprep.subr.mxu0 0.0
        %3138 = vmatpush1.msra.mxu0 0.0
        %3139 = vmatprep.subr.mxu0 0.0
        %3140 = vmatpush1.msra.mxu0 0.0
        %3141 = vmatprep.subr.mxu0 0.0
        %3142 = vmatpush1.msra.mxu0 0.0
        %3143 = vmatprep.subr.mxu0 0.0
        %3144 = vmatpush1.msra.mxu0 0.0
        %3145 = vmatprep.subr.mxu0 0.0
        %3146 = vmatpush1.msra.mxu0 0.0
        %3147 = vmatprep.subr.mxu0 0.0
        %3148 = vmatpush1.msra.mxu0 0.0
        %3149 = vmatprep.subr.mxu0 0.0
        %3150 = vmatpush1.msra.mxu0 0.0
        %3151 = vmatprep.subr.mxu0 0.0
        %3152 = vmatpush1.msra.mxu0 0.0
        %3153 = vmatprep.subr.mxu0 0.0
        %3154 = vmatpush1.msra.mxu0 0.0
        %3155 = vmatprep.subr.mxu0 0.0
        %v3156 = vand.u32 %v2177, 4294901760
        %3157 = vmatpush1.msra.mxu0 %v3156
        %3158 = vmatprep.subr.mxu0 0.0
        %v3159 = vand.u32 %v2175, 4294901760
        %3160 = vmatpush1.msra.mxu0 %v3159
        %3161 = vmatprep.subr.mxu0 0.0
        %3162 = vmatpush2.msra.mxu0 0.0
        %3163 = vmatprep.subr.mxu0 0.0
        %3164 = vmatpush2.msra.mxu0 0.0
        %3165 = vmatprep.subr.mxu0 0.0
        %3166 = vmatpush2.msra.mxu0 0.0
        %3167 = vmatprep.subr.mxu0 0.0
        %3168 = vmatpush2.msra.mxu0 0.0
        %3169 = vmatprep.subr.mxu0 0.0
        %3170 = vmatpush2.msra.mxu0 0.0
        %3171 = vmatprep.subr.mxu0 0.0
        %3172 = vmatpush2.msra.mxu0 0.0
        %3173 = vmatprep.subr.mxu0 0.0
        %3174 = vmatpush2.msra.mxu0 0.0
        %3175 = vmatprep.subr.mxu0 0.0
        %3176 = vmatpush2.msra.mxu0 0.0
        %3177 = vmatprep.subr.mxu0 0.0
        %3178 = vmatpush2.msra.mxu0 0.0
        %3179 = vmatprep.subr.mxu0 0.0
        %3180 = vmatpush2.msra.mxu0 0.0
        %3181 = vmatprep.subr.mxu0 0.0
        %3182 = vmatpush2.msra.mxu0 0.0
        %3183 = vmatprep.subr.mxu0 0.0
        %3184 = vmatpush2.msra.mxu0 0.0
        %3185 = vmatprep.subr.mxu0 0.0
        %3186 = vmatpush2.msra.mxu0 0.0
        %3187 = vmatprep.subr.mxu0 0.0
        %3188 = vmatpush2.msra.mxu0 0.0
        %3189 = vmatprep.subr.mxu0 0.0
        %3190 = vmatpush2.msra.mxu0 0.0
        %3191 = vmatprep.subr.mxu0 0.0
        %3192 = vmatpush2.msra.mxu0 0.0
        %3193 = vmatprep.mubr.f32.mxu0 0.0
        %v3194 = vand.u32 %v250, 4294901760
        %v3195 = vsub.f32 %v250, %v3194
        %v3196 = vand.u32 %v3195, 4294901760
        %3197 = vmatmul.mubr.f32.gmra.mxu0 %v3196
        %v3198 = vpop.f32.mrf.mxu0
        %v3199 = vadd.f32 %v2907, %v3198
        %v3200 = vpop.f32.mrf.mxu0
        %3201 = vmatprep.mubr.f32.mxu0 0.0
        %v3202 = vand.u32 %v253, 4294901760
        %v3203 = vsub.f32 %v253, %v3202
        %v3204 = vand.u32 %v3203, 4294901760
        %3205 = vmatmul.mubr.f32.gmra.mxu0 %v3204
        %v3206 = vpop.f32.mrf.mxu0
        %v3207 = vadd.f32 %v2914, %v3206
        %v3208 = vpop.f32.mrf.mxu0
        %3209 = vmatprep.mubr.f32.mxu0 0.0
        %v3210 = vand.u32 %v256, 4294901760
        %v3211 = vsub.f32 %v256, %v3210
        %v3212 = vand.u32 %v3211, 4294901760
        %3213 = vmatmul.mubr.f32.gmra.mxu0 %v3212
        %v3214 = vpop.f32.mrf.mxu0
        %v3215 = vadd.f32 %v2921, %v3214
        %v3216 = vpop.f32.mrf.mxu0
        %3217 = vmatprep.mubr.f32.mxu0 0.0
        %v3218 = vand.u32 %v259, 4294901760
        %v3219 = vsub.f32 %v259, %v3218
        %v3220 = vand.u32 %v3219, 4294901760
        %3221 = vmatmul.mubr.f32.gmra.mxu0 %v3220
        %v3222 = vpop.f32.mrf.mxu0
        %v3223 = vadd.f32 %v2928, %v3222
        %v3224 = vpop.f32.mrf.mxu0
        %3225 = vmatprep.mubr.f32.mxu0 0.0
        %v3226 = vand.u32 %v262, 4294901760
        %v3227 = vsub.f32 %v262, %v3226
        %v3228 = vand.u32 %v3227, 4294901760
        %3229 = vmatmul.mubr.f32.gmra.mxu0 %v3228
        %v3230 = vpop.f32.mrf.mxu0
        %v3231 = vadd.f32 %v2935, %v3230
        %v3232 = vpop.f32.mrf.mxu0
        %3233 = vmatprep.mubr.f32.mxu0 0.0
        %v3234 = vand.u32 %v265, 4294901760
        %v3235 = vsub.f32 %v265, %v3234
        %v3236 = vand.u32 %v3235, 4294901760
        %3237 = vmatmul.mubr.f32.gmra.mxu0 %v3236
        %v3238 = vpop.f32.mrf.mxu0
        %v3239 = vadd.f32 %v2942, %v3238
        %v3240 = vpop.f32.mrf.mxu0
        %3241 = vmatprep.mubr.f32.mxu0 0.0
        %v3242 = vand.u32 %v268, 4294901760
        %v3243 = vsub.f32 %v268, %v3242
        %v3244 = vand.u32 %v3243, 4294901760
        %3245 = vmatmul.mubr.f32.gmra.mxu0 %v3244
        %v3246 = vpop.f32.mrf.mxu0
        %v3247 = vadd.f32 %v2949, %v3246
        %v3248 = vpop.f32.mrf.mxu0
        %3249 = vmatprep.mubr.f32.mxu0 0.0
        %v3250 = vand.u32 %v271, 4294901760
        %v3251 = vsub.f32 %v271, %v3250
        %v3252 = vand.u32 %v3251, 4294901760
        %3253 = vmatmul.mubr.f32.gmra.mxu0 %v3252
        %v3254 = vpop.f32.mrf.mxu0
        %v3255 = vadd.f32 %v2956, %v3254
        %v3256 = vpop.f32.mrf.mxu0
        %3257 = vmatprep.mubr.f32.mxu0 0.0
        %v3258 = vand.u32 %v274, 4294901760
        %v3259 = vsub.f32 %v274, %v3258
        %v3260 = vand.u32 %v3259, 4294901760
        %3261 = vmatmul.mubr.f32.gmra.mxu0 %v3260
        %v3262 = vpop.f32.mrf.mxu0
        %v3263 = vadd.f32 %v2963, %v3262
        %v3264 = vpop.f32.mrf.mxu0
        %3265 = vmatprep.mubr.f32.mxu0 0.0
        %v3266 = vand.u32 %v277, 4294901760
        %v3267 = vsub.f32 %v277, %v3266
        %v3268 = vand.u32 %v3267, 4294901760
        %3269 = vmatmul.mubr.f32.gmra.mxu0 %v3268
        %v3270 = vpop.f32.mrf.mxu0
        %v3271 = vadd.f32 %v2970, %v3270
        %v3272 = vpop.f32.mrf.mxu0
        %3273 = vmatprep.mubr.f32.mxu0 0.0
        %v3274 = vand.u32 %v280, 4294901760
        %v3275 = vsub.f32 %v280, %v3274
        %v3276 = vand.u32 %v3275, 4294901760
        %3277 = vmatmul.mubr.f32.gmra.mxu0 %v3276
        %v3278 = vpop.f32.mrf.mxu0
        %v3279 = vadd.f32 %v2977, %v3278
        %v3280 = vpop.f32.mrf.mxu0
        %3281 = vmatprep.mubr.f32.mxu0 0.0
        %v3282 = vand.u32 %v283, 4294901760
        %v3283 = vsub.f32 %v283, %v3282
        %v3284 = vand.u32 %v3283, 4294901760
        %3285 = vmatmul.mubr.f32.gmra.mxu0 %v3284
        %v3286 = vpop.f32.mrf.mxu0
        %v3287 = vadd.f32 %v2984, %v3286
        %v3288 = vpop.f32.mrf.mxu0
        %3289 = vmatprep.mubr.f32.mxu0 0.0
        %v3290 = vand.u32 %v286, 4294901760
        %v3291 = vsub.f32 %v286, %v3290
        %v3292 = vand.u32 %v3291, 4294901760
        %3293 = vmatmul.mubr.f32.gmra.mxu0 %v3292
        %v3294 = vpop.f32.mrf.mxu0
        %v3295 = vadd.f32 %v2991, %v3294
        %v3296 = vpop.f32.mrf.mxu0
        %3297 = vmatprep.mubr.f32.mxu0 0.0
        %v3298 = vand.u32 %v289, 4294901760
        %v3299 = vsub.f32 %v289, %v3298
        %v3300 = vand.u32 %v3299, 4294901760
        %3301 = vmatmul.mubr.f32.gmra.mxu0 %v3300
        %v3302 = vpop.f32.mrf.mxu0
        %v3303 = vadd.f32 %v2998, %v3302
        %v3304 = vpop.f32.mrf.mxu0
        %3305 = vmatprep.mubr.f32.mxu0 0.0
        %v3306 = vand.u32 %v292, 4294901760
        %v3307 = vsub.f32 %v292, %v3306
        %v3308 = vand.u32 %v3307, 4294901760
        %3309 = vmatmul.mubr.f32.gmra.mxu0 %v3308
        %v3310 = vpop.f32.mrf.mxu0
        %v3311 = vadd.f32 %v3005, %v3310
        %v3312 = vpop.f32.mrf.mxu0
        %3313 = vmatprep.mubr.f32.mxu0 0.0
        %v3314 = vand.u32 %v295, 4294901760
        %v3315 = vsub.f32 %v295, %v3314
        %v3316 = vand.u32 %v3315, 4294901760
        %3317 = vmatmul.mubr.f32.gmra.mxu0 %v3316
        %v3318 = vpop.f32.mrf.mxu0
        %v3319 = vadd.f32 %v3012, %v3318
        %v3320 = vpop.f32.mrf.mxu0
        %3321 = vmatprep.mubr.f32.mxu0 0.0
        %v3322 = vand.u32 %v298, 4294901760
        %v3323 = vsub.f32 %v298, %v3322
        %v3324 = vand.u32 %v3323, 4294901760
        %3325 = vmatmul.mubr.f32.gmra.mxu0 %v3324
        %v3326 = vpop.f32.mrf.mxu0
        %v3327 = vadd.f32 %v3019, %v3326
        %v3328 = vpop.f32.mrf.mxu0
        %3329 = vmatprep.mubr.f32.mxu0 0.0
        %v3330 = vand.u32 %v301, 4294901760
        %v3331 = vsub.f32 %v301, %v3330
        %v3332 = vand.u32 %v3331, 4294901760
        %3333 = vmatmul.mubr.f32.gmra.mxu0 %v3332
        %v3334 = vpop.f32.mrf.mxu0
        %v3335 = vadd.f32 %v3026, %v3334
        %v3336 = vpop.f32.mrf.mxu0
        %3337 = vmatprep.mubr.f32.mxu0 0.0
        %v3338 = vand.u32 %v304, 4294901760
        %v3339 = vsub.f32 %v304, %v3338
        %v3340 = vand.u32 %v3339, 4294901760
        %3341 = vmatmul.mubr.f32.gmra.mxu0 %v3340
        %v3342 = vpop.f32.mrf.mxu0
        %v3343 = vadd.f32 %v3033, %v3342
        %v3344 = vpop.f32.mrf.mxu0
        %3345 = vmatprep.mubr.f32.mxu0 0.0
        %v3346 = vand.u32 %v307, 4294901760
        %v3347 = vsub.f32 %v307, %v3346
        %v3348 = vand.u32 %v3347, 4294901760
        %3349 = vmatmul.mubr.f32.gmra.mxu0 %v3348
        %v3350 = vpop.f32.mrf.mxu0
        %v3351 = vadd.f32 %v3040, %v3350
        %v3352 = vpop.f32.mrf.mxu0
        %3353 = vmatprep.mubr.f32.mxu0 0.0
        %v3354 = vand.u32 %v310, 4294901760
        %v3355 = vsub.f32 %v310, %v3354
        %v3356 = vand.u32 %v3355, 4294901760
        %3357 = vmatmul.mubr.f32.gmra.mxu0 %v3356
        %v3358 = vpop.f32.mrf.mxu0
        %v3359 = vadd.f32 %v3047, %v3358
        %v3360 = vpop.f32.mrf.mxu0
        %3361 = vmatprep.mubr.f32.mxu0 0.0
        %v3362 = vand.u32 %v313, 4294901760
        %v3363 = vsub.f32 %v313, %v3362
        %v3364 = vand.u32 %v3363, 4294901760
        %3365 = vmatmul.mubr.f32.gmra.mxu0 %v3364
        %v3366 = vpop.f32.mrf.mxu0
        %v3367 = vadd.f32 %v3054, %v3366
        %v3368 = vpop.f32.mrf.mxu0
        %3369 = vmatprep.mubr.f32.mxu0 0.0
        %v3370 = vand.u32 %v316, 4294901760
        %v3371 = vsub.f32 %v316, %v3370
        %v3372 = vand.u32 %v3371, 4294901760
        %3373 = vmatmul.mubr.f32.gmra.mxu0 %v3372
        %v3374 = vpop.f32.mrf.mxu0
        %v3375 = vadd.f32 %v3061, %v3374
        %v3376 = vpop.f32.mrf.mxu0
        %3377 = vmatprep.mubr.f32.mxu0 0.0
        %v3378 = vand.u32 %v319, 4294901760
        %v3379 = vsub.f32 %v319, %v3378
        %v3380 = vand.u32 %v3379, 4294901760
        %3381 = vmatmul.mubr.f32.gmra.mxu0 %v3380
        %v3382 = vpop.f32.mrf.mxu0
        %v3383 = vadd.f32 %v3068, %v3382
        %v3384 = vpop.f32.mrf.mxu0
        %3385 = vmatprep.mubr.f32.mxu0 0.0
        %v3386 = vand.u32 %v322, 4294901760
        %v3387 = vsub.f32 %v322, %v3386
        %v3388 = vand.u32 %v3387, 4294901760
        %3389 = vmatmul.mubr.f32.gmra.mxu0 %v3388
        %v3390 = vpop.f32.mrf.mxu0
        %v3391 = vadd.f32 %v3075, %v3390
        %v3392 = vpop.f32.mrf.mxu0
        %3393 = vmatprep.mubr.f32.mxu0 0.0
        %v3394 = vand.u32 %v325, 4294901760
        %v3395 = vsub.f32 %v325, %v3394
        %v3396 = vand.u32 %v3395, 4294901760
        %3397 = vmatmul.mubr.f32.gmra.mxu0 %v3396
        %v3398 = vpop.f32.mrf.mxu0
        %v3399 = vadd.f32 %v3082, %v3398
        %v3400 = vpop.f32.mrf.mxu0
        %3401 = vmatprep.mubr.f32.mxu0 0.0
        %v3402 = vand.u32 %v328, 4294901760
        %v3403 = vsub.f32 %v328, %v3402
        %v3404 = vand.u32 %v3403, 4294901760
        %3405 = vmatmul.mubr.f32.gmra.mxu0 %v3404
        %v3406 = vpop.f32.mrf.mxu0
        %v3407 = vadd.f32 %v3089, %v3406
        %v3408 = vpop.f32.mrf.mxu0
        %3409 = vmatprep.mubr.f32.mxu0 0.0
        %v3410 = vand.u32 %v331, 4294901760
        %v3411 = vsub.f32 %v331, %v3410
        %v3412 = vand.u32 %v3411, 4294901760
        %3413 = vmatmul.mubr.f32.gmra.mxu0 %v3412
        %v3414 = vpop.f32.mrf.mxu0
        %v3415 = vadd.f32 %v3096, %v3414
        %v3416 = vpop.f32.mrf.mxu0
        %3417 = vmatprep.mubr.f32.mxu0 0.0
        %v3418 = vand.u32 %v334, 4294901760
        %v3419 = vsub.f32 %v334, %v3418
        %v3420 = vand.u32 %v3419, 4294901760
        %3421 = vmatmul.mubr.f32.gmra.mxu0 %v3420
        %v3422 = vpop.f32.mrf.mxu0
        %v3423 = vadd.f32 %v3103, %v3422
        %v3424 = vpop.f32.mrf.mxu0
        %3425 = vmatprep.mubr.f32.mxu0 0.0
        %v3426 = vand.u32 %v337, 4294901760
        %v3427 = vsub.f32 %v337, %v3426
        %v3428 = vand.u32 %v3427, 4294901760
        %3429 = vmatmul.mubr.f32.gmra.mxu0 %v3428
        %v3430 = vpop.f32.mrf.mxu0
        %v3431 = vadd.f32 %v3110, %v3430
        %v3432 = vpop.f32.mrf.mxu0
        %3433 = vmatprep.mubr.f32.mxu0 0.0
        %v3434 = vand.u32 %v340, 4294901760
        %v3435 = vsub.f32 %v340, %v3434
        %v3436 = vand.u32 %v3435, 4294901760
        %3437 = vmatmul.mubr.f32.gmra.mxu0 %v3436
        %v3438 = vpop.f32.mrf.mxu0
        %v3439 = vadd.f32 %v3117, %v3438
        %v3440 = vpop.f32.mrf.mxu0
        %3441 = vmatprep.mubr.f32.mxu0 0.0
        %v3442 = vand.u32 %v343, 4294901760
        %v3443 = vsub.f32 %v343, %v3442
        %v3444 = vand.u32 %v3443, 4294901760
        %3445 = vmatmul.mubr.f32.gmra.mxu0 %v3444
        %v3446 = vpop.f32.mrf.mxu0
        %v3447 = vadd.f32 %v3124, %v3446
        %v3448 = vpop.f32.mrf.mxu0
        %3449 = vdwg.mxu0
        %3450 = vmatprep.subr.mxu0 0.0
        %3451 = vmatpush1.msra.mxu0 0.0
        %3452 = vmatprep.subr.mxu0 0.0
        %3453 = vmatpush1.msra.mxu0 0.0
        %3454 = vmatprep.subr.mxu0 0.0
        %3455 = vmatpush1.msra.mxu0 0.0
        %3456 = vmatprep.subr.mxu0 0.0
        %3457 = vmatpush1.msra.mxu0 0.0
        %3458 = vmatprep.subr.mxu0 0.0
        %3459 = vmatpush1.msra.mxu0 0.0
        %3460 = vmatprep.subr.mxu0 0.0
        %3461 = vmatpush1.msra.mxu0 0.0
        %3462 = vmatprep.subr.mxu0 0.0
        %3463 = vmatpush1.msra.mxu0 0.0
        %3464 = vmatprep.subr.mxu0 0.0
        %3465 = vmatpush1.msra.mxu0 0.0
        %3466 = vmatprep.subr.mxu0 0.0
        %3467 = vmatpush1.msra.mxu0 0.0
        %3468 = vmatprep.subr.mxu0 0.0
        %3469 = vmatpush1.msra.mxu0 0.0
        %3470 = vmatprep.subr.mxu0 0.0
        %3471 = vmatpush1.msra.mxu0 0.0
        %3472 = vmatprep.subr.mxu0 0.0
        %3473 = vmatpush1.msra.mxu0 0.0
        %3474 = vmatprep.subr.mxu0 0.0
        %3475 = vmatpush1.msra.mxu0 0.0
        %3476 = vmatprep.subr.mxu0 0.0
        %3477 = vmatpush1.msra.mxu0 0.0
        %3478 = vmatprep.subr.mxu0 0.0
        %v3479 = vand.u32 %v2177, 4294901760
        %v3480 = vsub.f32 %v2177, %v3479
        %v3481 = vand.u32 %v3480, 4294901760
        %3482 = vmatpush1.msra.mxu0 %v3481
        %3483 = vmatprep.subr.mxu0 0.0
        %v3484 = vand.u32 %v2175, 4294901760
        %v3485 = vsub.f32 %v2175, %v3484
        %v3486 = vand.u32 %v3485, 4294901760
        %3487 = vmatpush1.msra.mxu0 %v3486
        %3488 = vmatprep.subr.mxu0 0.0
        %3489 = vmatpush2.msra.mxu0 0.0
        %3490 = vmatprep.subr.mxu0 0.0
        %3491 = vmatpush2.msra.mxu0 0.0
        %3492 = vmatprep.subr.mxu0 0.0
        %3493 = vmatpush2.msra.mxu0 0.0
        %3494 = vmatprep.subr.mxu0 0.0
        %3495 = vmatpush2.msra.mxu0 0.0
        %3496 = vmatprep.subr.mxu0 0.0
        %3497 = vmatpush2.msra.mxu0 0.0
        %3498 = vmatprep.subr.mxu0 0.0
        %3499 = vmatpush2.msra.mxu0 0.0
        %3500 = vmatprep.subr.mxu0 0.0
        %3501 = vmatpush2.msra.mxu0 0.0
        %3502 = vmatprep.subr.mxu0 0.0
        %3503 = vmatpush2.msra.mxu0 0.0
        %3504 = vmatprep.subr.mxu0 0.0
        %3505 = vmatpush2.msra.mxu0 0.0
        %3506 = vmatprep.subr.mxu0 0.0
        %3507 = vmatpush2.msra.mxu0 0.0
        %3508 = vmatprep.subr.mxu0 0.0
        %3509 = vmatpush2.msra.mxu0 0.0
        %3510 = vmatprep.subr.mxu0 0.0
        %3511 = vmatpush2.msra.mxu0 0.0
        %3512 = vmatprep.subr.mxu0 0.0
        %3513 = vmatpush2.msra.mxu0 0.0
        %3514 = vmatprep.subr.mxu0 0.0
        %3515 = vmatpush2.msra.mxu0 0.0
        %3516 = vmatprep.subr.mxu0 0.0
        %3517 = vmatpush2.msra.mxu0 0.0
        %3518 = vmatprep.subr.mxu0 0.0
        %3519 = vmatpush2.msra.mxu0 0.0
        %3520 = vmatprep.mubr.f32.mxu0 0.0
        %v3521 = vand.u32 %v250, 4294901760
        %3522 = vmatmul.mubr.f32.gmra.mxu0 %v3521
        %v3523 = vpop.f32.mrf.mxu0
        %v3524 = vadd.f32 %v3199, %v3523
        %v3525 = vpop.f32.mrf.mxu0
        %3526 = vmatprep.mubr.f32.mxu0 0.0
        %v3527 = vand.u32 %v253, 4294901760
        %3528 = vmatmul.mubr.f32.gmra.mxu0 %v3527
        %v3529 = vpop.f32.mrf.mxu0
        %v3530 = vadd.f32 %v3207, %v3529
        %v3531 = vpop.f32.mrf.mxu0
        %3532 = vmatprep.mubr.f32.mxu0 0.0
        %v3533 = vand.u32 %v256, 4294901760
        %3534 = vmatmul.mubr.f32.gmra.mxu0 %v3533
        %v3535 = vpop.f32.mrf.mxu0
        %v3536 = vadd.f32 %v3215, %v3535
        %v3537 = vpop.f32.mrf.mxu0
        %3538 = vmatprep.mubr.f32.mxu0 0.0
        %v3539 = vand.u32 %v259, 4294901760
        %3540 = vmatmul.mubr.f32.gmra.mxu0 %v3539
        %v3541 = vpop.f32.mrf.mxu0
        %v3542 = vadd.f32 %v3223, %v3541
        %v3543 = vpop.f32.mrf.mxu0
        %3544 = vmatprep.mubr.f32.mxu0 0.0
        %v3545 = vand.u32 %v262, 4294901760
        %3546 = vmatmul.mubr.f32.gmra.mxu0 %v3545
        %v3547 = vpop.f32.mrf.mxu0
        %v3548 = vadd.f32 %v3231, %v3547
        %v3549 = vpop.f32.mrf.mxu0
        %3550 = vmatprep.mubr.f32.mxu0 0.0
        %v3551 = vand.u32 %v265, 4294901760
        %3552 = vmatmul.mubr.f32.gmra.mxu0 %v3551
        %v3553 = vpop.f32.mrf.mxu0
        %v3554 = vadd.f32 %v3239, %v3553
        %v3555 = vpop.f32.mrf.mxu0
        %3556 = vmatprep.mubr.f32.mxu0 0.0
        %v3557 = vand.u32 %v268, 4294901760
        %3558 = vmatmul.mubr.f32.gmra.mxu0 %v3557
        %v3559 = vpop.f32.mrf.mxu0
        %v3560 = vadd.f32 %v3247, %v3559
        %v3561 = vpop.f32.mrf.mxu0
        %3562 = vmatprep.mubr.f32.mxu0 0.0
        %v3563 = vand.u32 %v271, 4294901760
        %3564 = vmatmul.mubr.f32.gmra.mxu0 %v3563
        %v3565 = vpop.f32.mrf.mxu0
        %v3566 = vadd.f32 %v3255, %v3565
        %v3567 = vpop.f32.mrf.mxu0
        %3568 = vmatprep.mubr.f32.mxu0 0.0
        %v3569 = vand.u32 %v274, 4294901760
        %3570 = vmatmul.mubr.f32.gmra.mxu0 %v3569
        %v3571 = vpop.f32.mrf.mxu0
        %v3572 = vadd.f32 %v3263, %v3571
        %v3573 = vpop.f32.mrf.mxu0
        %3574 = vmatprep.mubr.f32.mxu0 0.0
        %v3575 = vand.u32 %v277, 4294901760
        %3576 = vmatmul.mubr.f32.gmra.mxu0 %v3575
        %v3577 = vpop.f32.mrf.mxu0
        %v3578 = vadd.f32 %v3271, %v3577
        %v3579 = vpop.f32.mrf.mxu0
        %3580 = vmatprep.mubr.f32.mxu0 0.0
        %v3581 = vand.u32 %v280, 4294901760
        %3582 = vmatmul.mubr.f32.gmra.mxu0 %v3581
        %v3583 = vpop.f32.mrf.mxu0
        %v3584 = vadd.f32 %v3279, %v3583
        %v3585 = vpop.f32.mrf.mxu0
        %3586 = vmatprep.mubr.f32.mxu0 0.0
        %v3587 = vand.u32 %v283, 4294901760
        %3588 = vmatmul.mubr.f32.gmra.mxu0 %v3587
        %v3589 = vpop.f32.mrf.mxu0
        %v3590 = vadd.f32 %v3287, %v3589
        %v3591 = vpop.f32.mrf.mxu0
        %3592 = vmatprep.mubr.f32.mxu0 0.0
        %v3593 = vand.u32 %v286, 4294901760
        %3594 = vmatmul.mubr.f32.gmra.mxu0 %v3593
        %v3595 = vpop.f32.mrf.mxu0
        %v3596 = vadd.f32 %v3295, %v3595
        %v3597 = vpop.f32.mrf.mxu0
        %3598 = vmatprep.mubr.f32.mxu0 0.0
        %v3599 = vand.u32 %v289, 4294901760
        %3600 = vmatmul.mubr.f32.gmra.mxu0 %v3599
        %v3601 = vpop.f32.mrf.mxu0
        %v3602 = vadd.f32 %v3303, %v3601
        %v3603 = vpop.f32.mrf.mxu0
        %3604 = vmatprep.mubr.f32.mxu0 0.0
        %v3605 = vand.u32 %v292, 4294901760
        %3606 = vmatmul.mubr.f32.gmra.mxu0 %v3605
        %v3607 = vpop.f32.mrf.mxu0
        %v3608 = vadd.f32 %v3311, %v3607
        %v3609 = vpop.f32.mrf.mxu0
        %3610 = vmatprep.mubr.f32.mxu0 0.0
        %v3611 = vand.u32 %v295, 4294901760
        %3612 = vmatmul.mubr.f32.gmra.mxu0 %v3611
        %v3613 = vpop.f32.mrf.mxu0
        %v3614 = vadd.f32 %v3319, %v3613
        %v3615 = vpop.f32.mrf.mxu0
        %3616 = vmatprep.mubr.f32.mxu0 0.0
        %v3617 = vand.u32 %v298, 4294901760
        %3618 = vmatmul.mubr.f32.gmra.mxu0 %v3617
        %v3619 = vpop.f32.mrf.mxu0
        %v3620 = vadd.f32 %v3327, %v3619
        %v3621 = vpop.f32.mrf.mxu0
        %3622 = vmatprep.mubr.f32.mxu0 0.0
        %v3623 = vand.u32 %v301, 4294901760
        %3624 = vmatmul.mubr.f32.gmra.mxu0 %v3623
        %v3625 = vpop.f32.mrf.mxu0
        %v3626 = vadd.f32 %v3335, %v3625
        %v3627 = vpop.f32.mrf.mxu0
        %3628 = vmatprep.mubr.f32.mxu0 0.0
        %v3629 = vand.u32 %v304, 4294901760
        %3630 = vmatmul.mubr.f32.gmra.mxu0 %v3629
        %v3631 = vpop.f32.mrf.mxu0
        %v3632 = vadd.f32 %v3343, %v3631
        %v3633 = vpop.f32.mrf.mxu0
        %3634 = vmatprep.mubr.f32.mxu0 0.0
        %v3635 = vand.u32 %v307, 4294901760
        %3636 = vmatmul.mubr.f32.gmra.mxu0 %v3635
        %v3637 = vpop.f32.mrf.mxu0
        %v3638 = vadd.f32 %v3351, %v3637
        %v3639 = vpop.f32.mrf.mxu0
        %3640 = vmatprep.mubr.f32.mxu0 0.0
        %v3641 = vand.u32 %v310, 4294901760
        %3642 = vmatmul.mubr.f32.gmra.mxu0 %v3641
        %v3643 = vpop.f32.mrf.mxu0
        %v3644 = vadd.f32 %v3359, %v3643
        %v3645 = vpop.f32.mrf.mxu0
        %3646 = vmatprep.mubr.f32.mxu0 0.0
        %v3647 = vand.u32 %v313, 4294901760
        %3648 = vmatmul.mubr.f32.gmra.mxu0 %v3647
        %v3649 = vpop.f32.mrf.mxu0
        %v3650 = vadd.f32 %v3367, %v3649
        %v3651 = vpop.f32.mrf.mxu0
        %3652 = vmatprep.mubr.f32.mxu0 0.0
        %v3653 = vand.u32 %v316, 4294901760
        %3654 = vmatmul.mubr.f32.gmra.mxu0 %v3653
        %v3655 = vpop.f32.mrf.mxu0
        %v3656 = vadd.f32 %v3375, %v3655
        %v3657 = vpop.f32.mrf.mxu0
        %3658 = vmatprep.mubr.f32.mxu0 0.0
        %v3659 = vand.u32 %v319, 4294901760
        %3660 = vmatmul.mubr.f32.gmra.mxu0 %v3659
        %v3661 = vpop.f32.mrf.mxu0
        %v3662 = vadd.f32 %v3383, %v3661
        %v3663 = vpop.f32.mrf.mxu0
        %3664 = vmatprep.mubr.f32.mxu0 0.0
        %v3665 = vand.u32 %v322, 4294901760
        %3666 = vmatmul.mubr.f32.gmra.mxu0 %v3665
        %v3667 = vpop.f32.mrf.mxu0
        %v3668 = vadd.f32 %v3391, %v3667
        %v3669 = vpop.f32.mrf.mxu0
        %3670 = vmatprep.mubr.f32.mxu0 0.0
        %v3671 = vand.u32 %v325, 4294901760
        %3672 = vmatmul.mubr.f32.gmra.mxu0 %v3671
        %v3673 = vpop.f32.mrf.mxu0
        %v3674 = vadd.f32 %v3399, %v3673
        %v3675 = vpop.f32.mrf.mxu0
        %3676 = vmatprep.mubr.f32.mxu0 0.0
        %v3677 = vand.u32 %v328, 4294901760
        %3678 = vmatmul.mubr.f32.gmra.mxu0 %v3677
        %v3679 = vpop.f32.mrf.mxu0
        %v3680 = vadd.f32 %v3407, %v3679
        %v3681 = vpop.f32.mrf.mxu0
        %3682 = vmatprep.mubr.f32.mxu0 0.0
        %v3683 = vand.u32 %v331, 4294901760
        %3684 = vmatmul.mubr.f32.gmra.mxu0 %v3683
        %v3685 = vpop.f32.mrf.mxu0
        %v3686 = vadd.f32 %v3415, %v3685
        %v3687 = vpop.f32.mrf.mxu0
        %3688 = vmatprep.mubr.f32.mxu0 0.0
        %v3689 = vand.u32 %v334, 4294901760
        %3690 = vmatmul.mubr.f32.gmra.mxu0 %v3689
        %v3691 = vpop.f32.mrf.mxu0
        %v3692 = vadd.f32 %v3423, %v3691
        %v3693 = vpop.f32.mrf.mxu0
        %3694 = vmatprep.mubr.f32.mxu0 0.0
        %v3695 = vand.u32 %v337, 4294901760
        %3696 = vmatmul.mubr.f32.gmra.mxu0 %v3695
        %v3697 = vpop.f32.mrf.mxu0
        %v3698 = vadd.f32 %v3431, %v3697
        %v3699 = vpop.f32.mrf.mxu0
        %3700 = vmatprep.mubr.f32.mxu0 0.0
        %v3701 = vand.u32 %v340, 4294901760
        %3702 = vmatmul.mubr.f32.gmra.mxu0 %v3701
        %v3703 = vpop.f32.mrf.mxu0
        %v3704 = vadd.f32 %v3439, %v3703
        %v3705 = vpop.f32.mrf.mxu0
        %3706 = vmatprep.mubr.f32.mxu0 0.0
        %v3707 = vand.u32 %v343, 4294901760
        %3708 = vmatmul.mubr.f32.gmra.mxu0 %v3707
        %v3709 = vpop.f32.mrf.mxu0
        %v3710 = vadd.f32 %v3447, %v3709
        %v3711 = vpop.f32.mrf.mxu0
        %3712 = vdwg.mxu0
        %3713 = vmatprep.subr.mxu0 0.0
        %3714 = vmatpush1.msra.mxu0 0.0
        %3715 = vmatprep.subr.mxu0 0.0
        %3716 = vmatpush1.msra.mxu0 0.0
        %3717 = vmatprep.subr.mxu0 0.0
        %3718 = vmatpush1.msra.mxu0 0.0
        %3719 = vmatprep.subr.mxu0 0.0
        %3720 = vmatpush1.msra.mxu0 0.0
        %3721 = vmatprep.subr.mxu0 0.0
        %3722 = vmatpush1.msra.mxu0 0.0
        %3723 = vmatprep.subr.mxu0 0.0
        %3724 = vmatpush1.msra.mxu0 0.0
        %3725 = vmatprep.subr.mxu0 0.0
        %3726 = vmatpush1.msra.mxu0 0.0
        %3727 = vmatprep.subr.mxu0 0.0
        %3728 = vmatpush1.msra.mxu0 0.0
        %3729 = vmatprep.subr.mxu0 0.0
        %3730 = vmatpush1.msra.mxu0 0.0
        %3731 = vmatprep.subr.mxu0 0.0
        %3732 = vmatpush1.msra.mxu0 0.0
        %3733 = vmatprep.subr.mxu0 0.0
        %3734 = vmatpush1.msra.mxu0 0.0
        %3735 = vmatprep.subr.mxu0 0.0
        %3736 = vmatpush1.msra.mxu0 0.0
        %3737 = vmatprep.subr.mxu0 0.0
        %3738 = vmatpush1.msra.mxu0 0.0
        %3739 = vmatprep.subr.mxu0 0.0
        %3740 = vmatpush1.msra.mxu0 0.0
        %3741 = vmatprep.subr.mxu0 0.0
        %v3742 = vand.u32 %v2177, 4294901760
        %3743 = vmatpush1.msra.mxu0 %v3742
        %3744 = vmatprep.subr.mxu0 0.0
        %v3745 = vand.u32 %v2175, 4294901760
        %3746 = vmatpush1.msra.mxu0 %v3745
        %3747 = vmatprep.subr.mxu0 0.0
        %3748 = vmatpush2.msra.mxu0 0.0
        %3749 = vmatprep.subr.mxu0 0.0
        %3750 = vmatpush2.msra.mxu0 0.0
        %3751 = vmatprep.subr.mxu0 0.0
        %3752 = vmatpush2.msra.mxu0 0.0
        %3753 = vmatprep.subr.mxu0 0.0
        %3754 = vmatpush2.msra.mxu0 0.0
        %3755 = vmatprep.subr.mxu0 0.0
        %3756 = vmatpush2.msra.mxu0 0.0
        %3757 = vmatprep.subr.mxu0 0.0
        %3758 = vmatpush2.msra.mxu0 0.0
        %3759 = vmatprep.subr.mxu0 0.0
        %3760 = vmatpush2.msra.mxu0 0.0
        %3761 = vmatprep.subr.mxu0 0.0
        %3762 = vmatpush2.msra.mxu0 0.0
        %3763 = vmatprep.subr.mxu0 0.0
        %3764 = vmatpush2.msra.mxu0 0.0
        %3765 = vmatprep.subr.mxu0 0.0
        %3766 = vmatpush2.msra.mxu0 0.0
        %3767 = vmatprep.subr.mxu0 0.0
        %3768 = vmatpush2.msra.mxu0 0.0
        %3769 = vmatprep.subr.mxu0 0.0
        %3770 = vmatpush2.msra.mxu0 0.0
        %3771 = vmatprep.subr.mxu0 0.0
        %3772 = vmatpush2.msra.mxu0 0.0
        %3773 = vmatprep.subr.mxu0 0.0
        %3774 = vmatpush2.msra.mxu0 0.0
        %3775 = vmatprep.subr.mxu0 0.0
        %3776 = vmatpush2.msra.mxu0 0.0
        %3777 = vmatprep.subr.mxu0 0.0
        %3778 = vmatpush2.msra.mxu0 0.0
        %3779 = vmatprep.mubr.f32.mxu0 0.0
        %v3780 = vand.u32 %v250, 4294901760
        %3781 = vmatmul.mubr.f32.gmra.mxu0 %v3780
        %v3782 = vpop.f32.mrf.mxu0
        %v3783 = vadd.f32 %v3524, %v3782
        %v3784 = vpop.f32.mrf.mxu0
        %3785 = vmatprep.mubr.f32.mxu0 0.0
        %v3786 = vand.u32 %v253, 4294901760
        %3787 = vmatmul.mubr.f32.gmra.mxu0 %v3786
        %v3788 = vpop.f32.mrf.mxu0
        %v3789 = vadd.f32 %v3530, %v3788
        %v3790 = vpop.f32.mrf.mxu0
        %3791 = vmatprep.mubr.f32.mxu0 0.0
        %v3792 = vand.u32 %v256, 4294901760
        %3793 = vmatmul.mubr.f32.gmra.mxu0 %v3792
        %v3794 = vpop.f32.mrf.mxu0
        %v3795 = vadd.f32 %v3536, %v3794
        %v3796 = vpop.f32.mrf.mxu0
        %3797 = vmatprep.mubr.f32.mxu0 0.0
        %v3798 = vand.u32 %v259, 4294901760
        %3799 = vmatmul.mubr.f32.gmra.mxu0 %v3798
        %v3800 = vpop.f32.mrf.mxu0
        %v3801 = vadd.f32 %v3542, %v3800
        %v3802 = vpop.f32.mrf.mxu0
        %3803 = vmatprep.mubr.f32.mxu0 0.0
        %v3804 = vand.u32 %v262, 4294901760
        %3805 = vmatmul.mubr.f32.gmra.mxu0 %v3804
        %v3806 = vpop.f32.mrf.mxu0
        %v3807 = vadd.f32 %v3548, %v3806
        %v3808 = vpop.f32.mrf.mxu0
        %3809 = vmatprep.mubr.f32.mxu0 0.0
        %v3810 = vand.u32 %v265, 4294901760
        %3811 = vmatmul.mubr.f32.gmra.mxu0 %v3810
        %v3812 = vpop.f32.mrf.mxu0
        %v3813 = vadd.f32 %v3554, %v3812
        %v3814 = vpop.f32.mrf.mxu0
        %3815 = vmatprep.mubr.f32.mxu0 0.0
        %v3816 = vand.u32 %v268, 4294901760
        %3817 = vmatmul.mubr.f32.gmra.mxu0 %v3816
        %v3818 = vpop.f32.mrf.mxu0
        %v3819 = vadd.f32 %v3560, %v3818
        %v3820 = vpop.f32.mrf.mxu0
        %3821 = vmatprep.mubr.f32.mxu0 0.0
        %v3822 = vand.u32 %v271, 4294901760
        %3823 = vmatmul.mubr.f32.gmra.mxu0 %v3822
        %v3824 = vpop.f32.mrf.mxu0
        %v3825 = vadd.f32 %v3566, %v3824
        %v3826 = vpop.f32.mrf.mxu0
        %3827 = vmatprep.mubr.f32.mxu0 0.0
        %v3828 = vand.u32 %v274, 4294901760
        %3829 = vmatmul.mubr.f32.gmra.mxu0 %v3828
        %v3830 = vpop.f32.mrf.mxu0
        %v3831 = vadd.f32 %v3572, %v3830
        %v3832 = vpop.f32.mrf.mxu0
        %3833 = vmatprep.mubr.f32.mxu0 0.0
        %v3834 = vand.u32 %v277, 4294901760
        %3835 = vmatmul.mubr.f32.gmra.mxu0 %v3834
        %v3836 = vpop.f32.mrf.mxu0
        %v3837 = vadd.f32 %v3578, %v3836
        %v3838 = vpop.f32.mrf.mxu0
        %3839 = vmatprep.mubr.f32.mxu0 0.0
        %v3840 = vand.u32 %v280, 4294901760
        %3841 = vmatmul.mubr.f32.gmra.mxu0 %v3840
        %v3842 = vpop.f32.mrf.mxu0
        %v3843 = vadd.f32 %v3584, %v3842
        %v3844 = vpop.f32.mrf.mxu0
        %3845 = vmatprep.mubr.f32.mxu0 0.0
        %v3846 = vand.u32 %v283, 4294901760
        %3847 = vmatmul.mubr.f32.gmra.mxu0 %v3846
        %v3848 = vpop.f32.mrf.mxu0
        %v3849 = vadd.f32 %v3590, %v3848
        %v3850 = vpop.f32.mrf.mxu0
        %3851 = vmatprep.mubr.f32.mxu0 0.0
        %v3852 = vand.u32 %v286, 4294901760
        %3853 = vmatmul.mubr.f32.gmra.mxu0 %v3852
        %v3854 = vpop.f32.mrf.mxu0
        %v3855 = vadd.f32 %v3596, %v3854
        %v3856 = vpop.f32.mrf.mxu0
        %3857 = vmatprep.mubr.f32.mxu0 0.0
        %v3858 = vand.u32 %v289, 4294901760
        %3859 = vmatmul.mubr.f32.gmra.mxu0 %v3858
        %v3860 = vpop.f32.mrf.mxu0
        %v3861 = vadd.f32 %v3602, %v3860
        %v3862 = vpop.f32.mrf.mxu0
        %3863 = vmatprep.mubr.f32.mxu0 0.0
        %v3864 = vand.u32 %v292, 4294901760
        %3865 = vmatmul.mubr.f32.gmra.mxu0 %v3864
        %v3866 = vpop.f32.mrf.mxu0
        %v3867 = vadd.f32 %v3608, %v3866
        %v3868 = vpop.f32.mrf.mxu0
        %3869 = vmatprep.mubr.f32.mxu0 0.0
        %v3870 = vand.u32 %v295, 4294901760
        %3871 = vmatmul.mubr.f32.gmra.mxu0 %v3870
        %v3872 = vpop.f32.mrf.mxu0
        %v3873 = vadd.f32 %v3614, %v3872
        %v3874 = vpop.f32.mrf.mxu0
        %3875 = vmatprep.mubr.f32.mxu0 0.0
        %v3876 = vand.u32 %v298, 4294901760
        %3877 = vmatmul.mubr.f32.gmra.mxu0 %v3876
        %v3878 = vpop.f32.mrf.mxu0
        %v3879 = vadd.f32 %v3620, %v3878
        %v3880 = vpop.f32.mrf.mxu0
        %3881 = vmatprep.mubr.f32.mxu0 0.0
        %v3882 = vand.u32 %v301, 4294901760
        %3883 = vmatmul.mubr.f32.gmra.mxu0 %v3882
        %v3884 = vpop.f32.mrf.mxu0
        %v3885 = vadd.f32 %v3626, %v3884
        %v3886 = vpop.f32.mrf.mxu0
        %3887 = vmatprep.mubr.f32.mxu0 0.0
        %v3888 = vand.u32 %v304, 4294901760
        %3889 = vmatmul.mubr.f32.gmra.mxu0 %v3888
        %v3890 = vpop.f32.mrf.mxu0
        %v3891 = vadd.f32 %v3632, %v3890
        %v3892 = vpop.f32.mrf.mxu0
        %3893 = vmatprep.mubr.f32.mxu0 0.0
        %v3894 = vand.u32 %v307, 4294901760
        %3895 = vmatmul.mubr.f32.gmra.mxu0 %v3894
        %v3896 = vpop.f32.mrf.mxu0
        %v3897 = vadd.f32 %v3638, %v3896
        %v3898 = vpop.f32.mrf.mxu0
        %3899 = vmatprep.mubr.f32.mxu0 0.0
        %v3900 = vand.u32 %v310, 4294901760
        %3901 = vmatmul.mubr.f32.gmra.mxu0 %v3900
        %v3902 = vpop.f32.mrf.mxu0
        %v3903 = vadd.f32 %v3644, %v3902
        %v3904 = vpop.f32.mrf.mxu0
        %3905 = vmatprep.mubr.f32.mxu0 0.0
        %v3906 = vand.u32 %v313, 4294901760
        %3907 = vmatmul.mubr.f32.gmra.mxu0 %v3906
        %v3908 = vpop.f32.mrf.mxu0
        %v3909 = vadd.f32 %v3650, %v3908
        %v3910 = vpop.f32.mrf.mxu0
        %3911 = vmatprep.mubr.f32.mxu0 0.0
        %v3912 = vand.u32 %v316, 4294901760
        %3913 = vmatmul.mubr.f32.gmra.mxu0 %v3912
        %v3914 = vpop.f32.mrf.mxu0
        %v3915 = vadd.f32 %v3656, %v3914
        %v3916 = vpop.f32.mrf.mxu0
        %3917 = vmatprep.mubr.f32.mxu0 0.0
        %v3918 = vand.u32 %v319, 4294901760
        %3919 = vmatmul.mubr.f32.gmra.mxu0 %v3918
        %v3920 = vpop.f32.mrf.mxu0
        %v3921 = vadd.f32 %v3662, %v3920
        %v3922 = vpop.f32.mrf.mxu0
        %3923 = vmatprep.mubr.f32.mxu0 0.0
        %v3924 = vand.u32 %v322, 4294901760
        %3925 = vmatmul.mubr.f32.gmra.mxu0 %v3924
        %v3926 = vpop.f32.mrf.mxu0
        %v3927 = vadd.f32 %v3668, %v3926
        %v3928 = vpop.f32.mrf.mxu0
        %3929 = vmatprep.mubr.f32.mxu0 0.0
        %v3930 = vand.u32 %v325, 4294901760
        %3931 = vmatmul.mubr.f32.gmra.mxu0 %v3930
        %v3932 = vpop.f32.mrf.mxu0
        %v3933 = vadd.f32 %v3674, %v3932
        %v3934 = vpop.f32.mrf.mxu0
        %3935 = vmatprep.mubr.f32.mxu0 0.0
        %v3936 = vand.u32 %v328, 4294901760
        %3937 = vmatmul.mubr.f32.gmra.mxu0 %v3936
        %v3938 = vpop.f32.mrf.mxu0
        %v3939 = vadd.f32 %v3680, %v3938
        %v3940 = vpop.f32.mrf.mxu0
        %3941 = vmatprep.mubr.f32.mxu0 0.0
        %v3942 = vand.u32 %v331, 4294901760
        %3943 = vmatmul.mubr.f32.gmra.mxu0 %v3942
        %v3944 = vpop.f32.mrf.mxu0
        %v3945 = vadd.f32 %v3686, %v3944
        %v3946 = vpop.f32.mrf.mxu0
        %3947 = vmatprep.mubr.f32.mxu0 0.0
        %v3948 = vand.u32 %v334, 4294901760
        %3949 = vmatmul.mubr.f32.gmra.mxu0 %v3948
        %v3950 = vpop.f32.mrf.mxu0
        %v3951 = vadd.f32 %v3692, %v3950
        %v3952 = vpop.f32.mrf.mxu0
        %3953 = vmatprep.mubr.f32.mxu0 0.0
        %v3954 = vand.u32 %v337, 4294901760
        %3955 = vmatmul.mubr.f32.gmra.mxu0 %v3954
        %v3956 = vpop.f32.mrf.mxu0
        %v3957 = vadd.f32 %v3698, %v3956
        %v3958 = vpop.f32.mrf.mxu0
        %3959 = vmatprep.mubr.f32.mxu0 0.0
        %v3960 = vand.u32 %v340, 4294901760
        %3961 = vmatmul.mubr.f32.gmra.mxu0 %v3960
        %v3962 = vpop.f32.mrf.mxu0
        %v3963 = vadd.f32 %v3704, %v3962
        %v3964 = vpop.f32.mrf.mxu0
        %3965 = vmatprep.mubr.f32.mxu0 0.0
        %v3966 = vand.u32 %v343, 4294901760
        %3967 = vmatmul.mubr.f32.gmra.mxu0 %v3966
        %v3968 = vpop.f32.mrf.mxu0
        %v3969 = vadd.f32 %v3710, %v3968
        %v3970 = vpop.f32.mrf.mxu0
        %3971 = vdwg.mxu0
        %s3972 = scalar_lea.vmem %s208, 32 [#allocation7]
        %3973 = vst.msk [vmem:[%s3972] sm:$0xff] %vm2137, %v3783
        %3974 = vst.msk [vmem:[%s3972 + $0x8] sm:$0xff] %vm2137, %v3789
        %3975 = vst.msk [vmem:[%s3972 + $0x10] sm:$0xff] %vm2137, %v3795
        %3976 = vst.msk [vmem:[%s3972 + $0x18] sm:$0xff] %vm2137, %v3801
        %3977 = vst.msk [vmem:[%s3972 + $0x80] sm:$0xff] %vm2137, %v3807
        %3978 = vst.msk [vmem:[%s3972 + $0x88] sm:$0xff] %vm2137, %v3813
        %3979 = vst.msk [vmem:[%s3972 + $0x90] sm:$0xff] %vm2137, %v3819
        %3980 = vst.msk [vmem:[%s3972 + $0x98] sm:$0xff] %vm2137, %v3825
        %3981 = vst.msk [vmem:[%s3972 + $0x100] sm:$0xff] %vm2137, %v3831
        %3982 = vst.msk [vmem:[%s3972 + $0x108] sm:$0xff] %vm2137, %v3837
        %3983 = vst.msk [vmem:[%s3972 + $0x110] sm:$0xff] %vm2137, %v3843
        %3984 = vst.msk [vmem:[%s3972 + $0x118] sm:$0xff] %vm2137, %v3849
        %3985 = vst.msk [vmem:[%s3972 + $0x180] sm:$0xff] %vm2137, %v3855
        %3986 = vst.msk [vmem:[%s3972 + $0x188] sm:$0xff] %vm2137, %v3861
        %3987 = vst.msk [vmem:[%s3972 + $0x190] sm:$0xff] %vm2137, %v3867
        %3988 = vst.msk [vmem:[%s3972 + $0x198] sm:$0xff] %vm2137, %v3873
        %3989 = vst.msk [vmem:[%s3972 + $0x200] sm:$0xff] %vm2137, %v3879
        %3990 = vst.msk [vmem:[%s3972 + $0x208] sm:$0xff] %vm2137, %v3885
        %3991 = vst.msk [vmem:[%s3972 + $0x210] sm:$0xff] %vm2137, %v3891
        %3992 = vst.msk [vmem:[%s3972 + $0x218] sm:$0xff] %vm2137, %v3897
        %3993 = vst.msk [vmem:[%s3972 + $0x280] sm:$0xff] %vm2137, %v3903
        %3994 = vst.msk [vmem:[%s3972 + $0x288] sm:$0xff] %vm2137, %v3909
        %3995 = vst.msk [vmem:[%s3972 + $0x290] sm:$0xff] %vm2137, %v3915
        %3996 = vst.msk [vmem:[%s3972 + $0x298] sm:$0xff] %vm2137, %v3921
        %3997 = vst.msk [vmem:[%s3972 + $0x300] sm:$0xff] %vm2137, %v3927
        %3998 = vst.msk [vmem:[%s3972 + $0x308] sm:$0xff] %vm2137, %v3933
        %3999 = vst.msk [vmem:[%s3972 + $0x310] sm:$0xff] %vm2137, %v3939
        %4000 = vst.msk [vmem:[%s3972 + $0x318] sm:$0xff] %vm2137, %v3945
        %4001 = vst.msk [vmem:[%s3972 + $0x380] sm:$0xff] %vm2137, %v3951
        %4002 = vst.msk [vmem:[%s3972 + $0x388] sm:$0xff] %vm2137, %v3957
        %4003 = vst.msk [vmem:[%s3972 + $0x390] sm:$0xff] %vm2137, %v3963
        %4004 = vst.msk [vmem:[%s3972 + $0x398] sm:$0xff] %vm2137, %v3969
        %v4005 = vld [vmem:[%s188] sm:$0xff]
        %v4006 = vld [vmem:[%s188 + $0x8] sm:$0xff]
        %v4007 = vld [vmem:[%s188 + $0x10] sm:$0xff]
        %v4008 = vld [vmem:[%s188 + $0x18] sm:$0xff]
        %v4009 = vld [vmem:[%s188 + $0x20] sm:$0xff]
        %v4010 = vld [vmem:[%s188 + $0x28] sm:$0xff]
        %v4011 = vld [vmem:[%s188 + $0x30] sm:$0xff]
        %v4012 = vld [vmem:[%s188 + $0x38] sm:$0xff]
        %v4013 = vld [vmem:[%s188 + $0x40] sm:$0xff]
        %v4014 = vld [vmem:[%s188 + $0x48] sm:$0xff]
        %v4015 = vld [vmem:[%s188 + $0x50] sm:$0xff]
        %v4016 = vld [vmem:[%s188 + $0x58] sm:$0xff]
        %v4017 = vld [vmem:[%s188 + $0x60] sm:$0xff]
        %v4018 = vld [vmem:[%s188 + $0x68] sm:$0xff]
        %v4019 = vld [vmem:[%s188 + $0x70] sm:$0xff]
        %v4020 = vld [vmem:[%s188 + $0x78] sm:$0xff]
        %v4021 = vld [vmem:[%s188 + $0x80] sm:$0xff]
        %v4022 = vld [vmem:[%s188 + $0x88] sm:$0xff]
        %v4023 = vld [vmem:[%s188 + $0x90] sm:$0xff]
        %v4024 = vld [vmem:[%s188 + $0x98] sm:$0xff]
        %v4025 = vld [vmem:[%s188 + $0xa0] sm:$0xff]
        %v4026 = vld [vmem:[%s188 + $0xa8] sm:$0xff]
        %v4027 = vld [vmem:[%s188 + $0xb0] sm:$0xff]
        %v4028 = vld [vmem:[%s188 + $0xb8] sm:$0xff]
        %v4029 = vld [vmem:[%s188 + $0xc0] sm:$0xff]
        %v4030 = vld [vmem:[%s188 + $0xc8] sm:$0xff]
        %v4031 = vld [vmem:[%s188 + $0xd0] sm:$0xff]
        %v4032 = vld [vmem:[%s188 + $0xd8] sm:$0xff]
        %v4033 = vld [vmem:[%s188 + $0xe0] sm:$0xff]
        %v4034 = vld [vmem:[%s188 + $0xe8] sm:$0xff]
        %v4035 = vld [vmem:[%s188 + $0xf0] sm:$0xff]
        %v4036 = vld [vmem:[%s188 + $0xf8] sm:$0xff]
        %v4037 = vld [vmem:[#allocation2] sm:$0xff]
        %v4038 = vld [vmem:[#allocation2 + $0x8] sm:$0xff]
        %4071 = vrot.lane.b32.xlu0 %v4005, 112
        %v4072 = vpop.permute.xlu0 %4071
        %4073 = vrot.lane.b32.xlu0 %v4006, 112
        %v4074 = vpop.permute.xlu0 %4073
        %4075 = vrot.lane.b32.xlu0 %v4007, 112
        %v4076 = vpop.permute.xlu0 %4075
        %4077 = vrot.lane.b32.xlu0 %v4008, 112
        %v4078 = vpop.permute.xlu0 %4077
        %4079 = vrot.lane.b32.xlu0 %v4009, 112
        %v4080 = vpop.permute.xlu0 %4079
        %4081 = vrot.lane.b32.xlu0 %v4010, 112
        %v4082 = vpop.permute.xlu0 %4081
        %4083 = vrot.lane.b32.xlu0 %v4011, 112
        %v4084 = vpop.permute.xlu0 %4083
        %4085 = vrot.lane.b32.xlu0 %v4012, 112
        %v4086 = vpop.permute.xlu0 %4085
        %4087 = vrot.lane.b32.xlu0 %v4013, 112
        %v4088 = vpop.permute.xlu0 %4087
        %4089 = vrot.lane.b32.xlu0 %v4014, 112
        %v4090 = vpop.permute.xlu0 %4089
        %4091 = vrot.lane.b32.xlu0 %v4015, 112
        %v4092 = vpop.permute.xlu0 %4091
        %4093 = vrot.lane.b32.xlu0 %v4016, 112
        %v4094 = vpop.permute.xlu0 %4093
        %4095 = vrot.lane.b32.xlu0 %v4017, 112
        %v4096 = vpop.permute.xlu0 %4095
        %4097 = vrot.lane.b32.xlu0 %v4018, 112
        %v4098 = vpop.permute.xlu0 %4097
        %4099 = vrot.lane.b32.xlu0 %v4019, 112
        %v4100 = vpop.permute.xlu0 %4099
        %4101 = vrot.lane.b32.xlu0 %v4020, 112
        %v4102 = vpop.permute.xlu0 %4101
        %4103 = vrot.lane.b32.xlu0 %v4021, 112
        %v4104 = vpop.permute.xlu0 %4103
        %4105 = vrot.lane.b32.xlu0 %v4022, 112
        %v4106 = vpop.permute.xlu0 %4105
        %4107 = vrot.lane.b32.xlu0 %v4023, 112
        %v4108 = vpop.permute.xlu0 %4107
        %4109 = vrot.lane.b32.xlu0 %v4024, 112
        %v4110 = vpop.permute.xlu0 %4109
        %4111 = vrot.lane.b32.xlu0 %v4025, 112
        %v4112 = vpop.permute.xlu0 %4111
        %4113 = vrot.lane.b32.xlu0 %v4026, 112
        %v4114 = vpop.permute.xlu0 %4113
        %4115 = vrot.lane.b32.xlu0 %v4027, 112
        %v4116 = vpop.permute.xlu0 %4115
        %4117 = vrot.lane.b32.xlu0 %v4028, 112
        %v4118 = vpop.permute.xlu0 %4117
        %4119 = vrot.lane.b32.xlu0 %v4029, 112
        %v4120 = vpop.permute.xlu0 %4119
        %4121 = vrot.lane.b32.xlu0 %v4030, 112
        %v4122 = vpop.permute.xlu0 %4121
        %4123 = vrot.lane.b32.xlu0 %v4031, 112
        %v4124 = vpop.permute.xlu0 %4123
        %4125 = vrot.lane.b32.xlu0 %v4032, 112
        %v4126 = vpop.permute.xlu0 %4125
        %4127 = vrot.lane.b32.xlu0 %v4033, 112
        %v4128 = vpop.permute.xlu0 %4127
        %4129 = vrot.lane.b32.xlu0 %v4034, 112
        %v4130 = vpop.permute.xlu0 %4129
        %4131 = vrot.lane.b32.xlu0 %v4035, 112
        %v4132 = vpop.permute.xlu0 %4131
        %4133 = vrot.lane.b32.xlu0 %v4036, 112
        %v4134 = vpop.permute.xlu0 %4133
        %v4135 = vsel %vm248, %v4072, 0
        %v4137 = vsel %vm248, %v4074, 0
        %v4139 = vsel %vm248, %v4076, 0
        %v4141 = vsel %vm248, %v4078, 0
        %v4143 = vsel %vm248, %v4080, 0
        %v4145 = vsel %vm248, %v4082, 0
        %v4147 = vsel %vm248, %v4084, 0
        %v4149 = vsel %vm248, %v4086, 0
        %v4151 = vsel %vm248, %v4088, 0
        %v4153 = vsel %vm248, %v4090, 0
        %v4155 = vsel %vm248, %v4092, 0
        %v4157 = vsel %vm248, %v4094, 0
        %v4159 = vsel %vm248, %v4096, 0
        %v4161 = vsel %vm248, %v4098, 0
        %v4163 = vsel %vm248, %v4100, 0
        %v4165 = vsel %vm248, %v4102, 0
        %v4167 = vsel %vm248, %v4104, 0
        %v4169 = vsel %vm248, %v4106, 0
        %v4171 = vsel %vm248, %v4108, 0
        %v4173 = vsel %vm248, %v4110, 0
        %v4175 = vsel %vm248, %v4112, 0
        %v4177 = vsel %vm248, %v4114, 0
        %v4179 = vsel %vm248, %v4116, 0
        %v4181 = vsel %vm248, %v4118, 0
        %v4183 = vsel %vm248, %v4120, 0
        %v4185 = vsel %vm248, %v4122, 0
        %v4187 = vsel %vm248, %v4124, 0
        %v4189 = vsel %vm248, %v4126, 0
        %v4191 = vsel %vm248, %v4128, 0
        %v4193 = vsel %vm248, %v4130, 0
        %v4195 = vsel %vm248, %v4132, 0
        %v4197 = vsel %vm248, %v4134, 0
        %4199 = vmatprep.subr.mxu0 0.0
        %4200 = vmatpush1.msra.mxu0 0.0
        %4201 = vmatprep.subr.mxu0 0.0
        %4202 = vmatpush1.msra.mxu0 0.0
        %4203 = vmatprep.subr.mxu0 0.0
        %4204 = vmatpush1.msra.mxu0 0.0
        %4205 = vmatprep.subr.mxu0 0.0
        %4206 = vmatpush1.msra.mxu0 0.0
        %4207 = vmatprep.subr.mxu0 0.0
        %4208 = vmatpush1.msra.mxu0 0.0
        %4209 = vmatprep.subr.mxu0 0.0
        %4210 = vmatpush1.msra.mxu0 0.0
        %4211 = vmatprep.subr.mxu0 0.0
        %4212 = vmatpush1.msra.mxu0 0.0
        %4213 = vmatprep.subr.mxu0 0.0
        %4214 = vmatpush1.msra.mxu0 0.0
        %4215 = vmatprep.subr.mxu0 0.0
        %4216 = vmatpush1.msra.mxu0 0.0
        %4217 = vmatprep.subr.mxu0 0.0
        %4218 = vmatpush1.msra.mxu0 0.0
        %4219 = vmatprep.subr.mxu0 0.0
        %4220 = vmatpush1.msra.mxu0 0.0
        %4221 = vmatprep.subr.mxu0 0.0
        %4222 = vmatpush1.msra.mxu0 0.0
        %4223 = vmatprep.subr.mxu0 0.0
        %4224 = vmatpush1.msra.mxu0 0.0
        %4225 = vmatprep.subr.mxu0 0.0
        %4226 = vmatpush1.msra.mxu0 0.0
        %4227 = vmatprep.subr.mxu0 0.0
        %v4228 = vand.u32 %v4038, 4294901760
        %4229 = vmatpush1.msra.mxu0 %v4228
        %4230 = vmatprep.subr.mxu0 0.0
        %v4231 = vand.u32 %v4037, 4294901760
        %4232 = vmatpush1.msra.mxu0 %v4231
        %4233 = vmatprep.subr.mxu0 0.0
        %4234 = vmatpush2.msra.mxu0 0.0
        %4235 = vmatprep.subr.mxu0 0.0
        %4236 = vmatpush2.msra.mxu0 0.0
        %4237 = vmatprep.subr.mxu0 0.0
        %4238 = vmatpush2.msra.mxu0 0.0
        %4239 = vmatprep.subr.mxu0 0.0
        %4240 = vmatpush2.msra.mxu0 0.0
        %4241 = vmatprep.subr.mxu0 0.0
        %4242 = vmatpush2.msra.mxu0 0.0
        %4243 = vmatprep.subr.mxu0 0.0
        %4244 = vmatpush2.msra.mxu0 0.0
        %4245 = vmatprep.subr.mxu0 0.0
        %4246 = vmatpush2.msra.mxu0 0.0
        %4247 = vmatprep.subr.mxu0 0.0
        %4248 = vmatpush2.msra.mxu0 0.0
        %4249 = vmatprep.subr.mxu0 0.0
        %4250 = vmatpush2.msra.mxu0 0.0
        %4251 = vmatprep.subr.mxu0 0.0
        %4252 = vmatpush2.msra.mxu0 0.0
        %4253 = vmatprep.subr.mxu0 0.0
        %4254 = vmatpush2.msra.mxu0 0.0
        %4255 = vmatprep.subr.mxu0 0.0
        %4256 = vmatpush2.msra.mxu0 0.0
        %4257 = vmatprep.subr.mxu0 0.0
        %4258 = vmatpush2.msra.mxu0 0.0
        %4259 = vmatprep.subr.mxu0 0.0
        %4260 = vmatpush2.msra.mxu0 0.0
        %4261 = vmatprep.subr.mxu0 0.0
        %4262 = vmatpush2.msra.mxu0 0.0
        %4263 = vmatprep.subr.mxu0 0.0
        %4264 = vmatpush2.msra.mxu0 0.0
        %4265 = vmatprep.mubr.f32.mxu0 0.0
        %v4266 = vand.u32 %v4135, 4294901760
        %v4267 = vsub.f32 %v4135, %v4266
        %v4268 = vand.u32 %v4267, 4294901760
        %v4269 = vsub.f32 %v4267, %v4268
        %v4270 = vand.u32 %v4269, 4294901760
        %4271 = vmatmul.mubr.f32.gmra.mxu0 %v4270
        %v4272 = vpop.f32.mrf.mxu0
        %v4273 = vadd.f32 0.0, %v4272
        %v4274 = vpop.f32.mrf.mxu0
        %4275 = vmatprep.mubr.f32.mxu0 0.0
        %v4276 = vand.u32 %v4137, 4294901760
        %v4277 = vsub.f32 %v4137, %v4276
        %v4278 = vand.u32 %v4277, 4294901760
        %v4279 = vsub.f32 %v4277, %v4278
        %v4280 = vand.u32 %v4279, 4294901760
        %4281 = vmatmul.mubr.f32.gmra.mxu0 %v4280
        %v4282 = vpop.f32.mrf.mxu0
        %v4283 = vadd.f32 0.0, %v4282
        %v4284 = vpop.f32.mrf.mxu0
        %4285 = vmatprep.mubr.f32.mxu0 0.0
        %v4286 = vand.u32 %v4139, 4294901760
        %v4287 = vsub.f32 %v4139, %v4286
        %v4288 = vand.u32 %v4287, 4294901760
        %v4289 = vsub.f32 %v4287, %v4288
        %v4290 = vand.u32 %v4289, 4294901760
        %4291 = vmatmul.mubr.f32.gmra.mxu0 %v4290
        %v4292 = vpop.f32.mrf.mxu0
        %v4293 = vadd.f32 0.0, %v4292
        %v4294 = vpop.f32.mrf.mxu0
        %4295 = vmatprep.mubr.f32.mxu0 0.0
        %v4296 = vand.u32 %v4141, 4294901760
        %v4297 = vsub.f32 %v4141, %v4296
        %v4298 = vand.u32 %v4297, 4294901760
        %v4299 = vsub.f32 %v4297, %v4298
        %v4300 = vand.u32 %v4299, 4294901760
        %4301 = vmatmul.mubr.f32.gmra.mxu0 %v4300
        %v4302 = vpop.f32.mrf.mxu0
        %v4303 = vadd.f32 0.0, %v4302
        %v4304 = vpop.f32.mrf.mxu0
        %4305 = vmatprep.mubr.f32.mxu0 0.0
        %v4306 = vand.u32 %v4143, 4294901760
        %v4307 = vsub.f32 %v4143, %v4306
        %v4308 = vand.u32 %v4307, 4294901760
        %v4309 = vsub.f32 %v4307, %v4308
        %v4310 = vand.u32 %v4309, 4294901760
        %4311 = vmatmul.mubr.f32.gmra.mxu0 %v4310
        %v4312 = vpop.f32.mrf.mxu0
        %v4313 = vadd.f32 0.0, %v4312
        %v4314 = vpop.f32.mrf.mxu0
        %4315 = vmatprep.mubr.f32.mxu0 0.0
        %v4316 = vand.u32 %v4145, 4294901760
        %v4317 = vsub.f32 %v4145, %v4316
        %v4318 = vand.u32 %v4317, 4294901760
        %v4319 = vsub.f32 %v4317, %v4318
        %v4320 = vand.u32 %v4319, 4294901760
        %4321 = vmatmul.mubr.f32.gmra.mxu0 %v4320
        %v4322 = vpop.f32.mrf.mxu0
        %v4323 = vadd.f32 0.0, %v4322
        %v4324 = vpop.f32.mrf.mxu0
        %4325 = vmatprep.mubr.f32.mxu0 0.0
        %v4326 = vand.u32 %v4147, 4294901760
        %v4327 = vsub.f32 %v4147, %v4326
        %v4328 = vand.u32 %v4327, 4294901760
        %v4329 = vsub.f32 %v4327, %v4328
        %v4330 = vand.u32 %v4329, 4294901760
        %4331 = vmatmul.mubr.f32.gmra.mxu0 %v4330
        %v4332 = vpop.f32.mrf.mxu0
        %v4333 = vadd.f32 0.0, %v4332
        %v4334 = vpop.f32.mrf.mxu0
        %4335 = vmatprep.mubr.f32.mxu0 0.0
        %v4336 = vand.u32 %v4149, 4294901760
        %v4337 = vsub.f32 %v4149, %v4336
        %v4338 = vand.u32 %v4337, 4294901760
        %v4339 = vsub.f32 %v4337, %v4338
        %v4340 = vand.u32 %v4339, 4294901760
        %4341 = vmatmul.mubr.f32.gmra.mxu0 %v4340
        %v4342 = vpop.f32.mrf.mxu0
        %v4343 = vadd.f32 0.0, %v4342
        %v4344 = vpop.f32.mrf.mxu0
        %4345 = vmatprep.mubr.f32.mxu0 0.0
        %v4346 = vand.u32 %v4151, 4294901760
        %v4347 = vsub.f32 %v4151, %v4346
        %v4348 = vand.u32 %v4347, 4294901760
        %v4349 = vsub.f32 %v4347, %v4348
        %v4350 = vand.u32 %v4349, 4294901760
        %4351 = vmatmul.mubr.f32.gmra.mxu0 %v4350
        %v4352 = vpop.f32.mrf.mxu0
        %v4353 = vadd.f32 0.0, %v4352
        %v4354 = vpop.f32.mrf.mxu0
        %4355 = vmatprep.mubr.f32.mxu0 0.0
        %v4356 = vand.u32 %v4153, 4294901760
        %v4357 = vsub.f32 %v4153, %v4356
        %v4358 = vand.u32 %v4357, 4294901760
        %v4359 = vsub.f32 %v4357, %v4358
        %v4360 = vand.u32 %v4359, 4294901760
        %4361 = vmatmul.mubr.f32.gmra.mxu0 %v4360
        %v4362 = vpop.f32.mrf.mxu0
        %v4363 = vadd.f32 0.0, %v4362
        %v4364 = vpop.f32.mrf.mxu0
        %4365 = vmatprep.mubr.f32.mxu0 0.0
        %v4366 = vand.u32 %v4155, 4294901760
        %v4367 = vsub.f32 %v4155, %v4366
        %v4368 = vand.u32 %v4367, 4294901760
        %v4369 = vsub.f32 %v4367, %v4368
        %v4370 = vand.u32 %v4369, 4294901760
        %4371 = vmatmul.mubr.f32.gmra.mxu0 %v4370
        %v4372 = vpop.f32.mrf.mxu0
        %v4373 = vadd.f32 0.0, %v4372
        %v4374 = vpop.f32.mrf.mxu0
        %4375 = vmatprep.mubr.f32.mxu0 0.0
        %v4376 = vand.u32 %v4157, 4294901760
        %v4377 = vsub.f32 %v4157, %v4376
        %v4378 = vand.u32 %v4377, 4294901760
        %v4379 = vsub.f32 %v4377, %v4378
        %v4380 = vand.u32 %v4379, 4294901760
        %4381 = vmatmul.mubr.f32.gmra.mxu0 %v4380
        %v4382 = vpop.f32.mrf.mxu0
        %v4383 = vadd.f32 0.0, %v4382
        %v4384 = vpop.f32.mrf.mxu0
        %4385 = vmatprep.mubr.f32.mxu0 0.0
        %v4386 = vand.u32 %v4159, 4294901760
        %v4387 = vsub.f32 %v4159, %v4386
        %v4388 = vand.u32 %v4387, 4294901760
        %v4389 = vsub.f32 %v4387, %v4388
        %v4390 = vand.u32 %v4389, 4294901760
        %4391 = vmatmul.mubr.f32.gmra.mxu0 %v4390
        %v4392 = vpop.f32.mrf.mxu0
        %v4393 = vadd.f32 0.0, %v4392
        %v4394 = vpop.f32.mrf.mxu0
        %4395 = vmatprep.mubr.f32.mxu0 0.0
        %v4396 = vand.u32 %v4161, 4294901760
        %v4397 = vsub.f32 %v4161, %v4396
        %v4398 = vand.u32 %v4397, 4294901760
        %v4399 = vsub.f32 %v4397, %v4398
        %v4400 = vand.u32 %v4399, 4294901760
        %4401 = vmatmul.mubr.f32.gmra.mxu0 %v4400
        %v4402 = vpop.f32.mrf.mxu0
        %v4403 = vadd.f32 0.0, %v4402
        %v4404 = vpop.f32.mrf.mxu0
        %4405 = vmatprep.mubr.f32.mxu0 0.0
        %v4406 = vand.u32 %v4163, 4294901760
        %v4407 = vsub.f32 %v4163, %v4406
        %v4408 = vand.u32 %v4407, 4294901760
        %v4409 = vsub.f32 %v4407, %v4408
        %v4410 = vand.u32 %v4409, 4294901760
        %4411 = vmatmul.mubr.f32.gmra.mxu0 %v4410
        %v4412 = vpop.f32.mrf.mxu0
        %v4413 = vadd.f32 0.0, %v4412
        %v4414 = vpop.f32.mrf.mxu0
        %4415 = vmatprep.mubr.f32.mxu0 0.0
        %v4416 = vand.u32 %v4165, 4294901760
        %v4417 = vsub.f32 %v4165, %v4416
        %v4418 = vand.u32 %v4417, 4294901760
        %v4419 = vsub.f32 %v4417, %v4418
        %v4420 = vand.u32 %v4419, 4294901760
        %4421 = vmatmul.mubr.f32.gmra.mxu0 %v4420
        %v4422 = vpop.f32.mrf.mxu0
        %v4423 = vadd.f32 0.0, %v4422
        %v4424 = vpop.f32.mrf.mxu0
        %4425 = vmatprep.mubr.f32.mxu0 0.0
        %v4426 = vand.u32 %v4167, 4294901760
        %v4427 = vsub.f32 %v4167, %v4426
        %v4428 = vand.u32 %v4427, 4294901760
        %v4429 = vsub.f32 %v4427, %v4428
        %v4430 = vand.u32 %v4429, 4294901760
        %4431 = vmatmul.mubr.f32.gmra.mxu0 %v4430
        %v4432 = vpop.f32.mrf.mxu0
        %v4433 = vadd.f32 0.0, %v4432
        %v4434 = vpop.f32.mrf.mxu0
        %4435 = vmatprep.mubr.f32.mxu0 0.0
        %v4436 = vand.u32 %v4169, 4294901760
        %v4437 = vsub.f32 %v4169, %v4436
        %v4438 = vand.u32 %v4437, 4294901760
        %v4439 = vsub.f32 %v4437, %v4438
        %v4440 = vand.u32 %v4439, 4294901760
        %4441 = vmatmul.mubr.f32.gmra.mxu0 %v4440
        %v4442 = vpop.f32.mrf.mxu0
        %v4443 = vadd.f32 0.0, %v4442
        %v4444 = vpop.f32.mrf.mxu0
        %4445 = vmatprep.mubr.f32.mxu0 0.0
        %v4446 = vand.u32 %v4171, 4294901760
        %v4447 = vsub.f32 %v4171, %v4446
        %v4448 = vand.u32 %v4447, 4294901760
        %v4449 = vsub.f32 %v4447, %v4448
        %v4450 = vand.u32 %v4449, 4294901760
        %4451 = vmatmul.mubr.f32.gmra.mxu0 %v4450
        %v4452 = vpop.f32.mrf.mxu0
        %v4453 = vadd.f32 0.0, %v4452
        %v4454 = vpop.f32.mrf.mxu0
        %4455 = vmatprep.mubr.f32.mxu0 0.0
        %v4456 = vand.u32 %v4173, 4294901760
        %v4457 = vsub.f32 %v4173, %v4456
        %v4458 = vand.u32 %v4457, 4294901760
        %v4459 = vsub.f32 %v4457, %v4458
        %v4460 = vand.u32 %v4459, 4294901760
        %4461 = vmatmul.mubr.f32.gmra.mxu0 %v4460
        %v4462 = vpop.f32.mrf.mxu0
        %v4463 = vadd.f32 0.0, %v4462
        %v4464 = vpop.f32.mrf.mxu0
        %4465 = vmatprep.mubr.f32.mxu0 0.0
        %v4466 = vand.u32 %v4175, 4294901760
        %v4467 = vsub.f32 %v4175, %v4466
        %v4468 = vand.u32 %v4467, 4294901760
        %v4469 = vsub.f32 %v4467, %v4468
        %v4470 = vand.u32 %v4469, 4294901760
        %4471 = vmatmul.mubr.f32.gmra.mxu0 %v4470
        %v4472 = vpop.f32.mrf.mxu0
        %v4473 = vadd.f32 0.0, %v4472
        %v4474 = vpop.f32.mrf.mxu0
        %4475 = vmatprep.mubr.f32.mxu0 0.0
        %v4476 = vand.u32 %v4177, 4294901760
        %v4477 = vsub.f32 %v4177, %v4476
        %v4478 = vand.u32 %v4477, 4294901760
        %v4479 = vsub.f32 %v4477, %v4478
        %v4480 = vand.u32 %v4479, 4294901760
        %4481 = vmatmul.mubr.f32.gmra.mxu0 %v4480
        %v4482 = vpop.f32.mrf.mxu0
        %v4483 = vadd.f32 0.0, %v4482
        %v4484 = vpop.f32.mrf.mxu0
        %4485 = vmatprep.mubr.f32.mxu0 0.0
        %v4486 = vand.u32 %v4179, 4294901760
        %v4487 = vsub.f32 %v4179, %v4486
        %v4488 = vand.u32 %v4487, 4294901760
        %v4489 = vsub.f32 %v4487, %v4488
        %v4490 = vand.u32 %v4489, 4294901760
        %4491 = vmatmul.mubr.f32.gmra.mxu0 %v4490
        %v4492 = vpop.f32.mrf.mxu0
        %v4493 = vadd.f32 0.0, %v4492
        %v4494 = vpop.f32.mrf.mxu0
        %4495 = vmatprep.mubr.f32.mxu0 0.0
        %v4496 = vand.u32 %v4181, 4294901760
        %v4497 = vsub.f32 %v4181, %v4496
        %v4498 = vand.u32 %v4497, 4294901760
        %v4499 = vsub.f32 %v4497, %v4498
        %v4500 = vand.u32 %v4499, 4294901760
        %4501 = vmatmul.mubr.f32.gmra.mxu0 %v4500
        %v4502 = vpop.f32.mrf.mxu0
        %v4503 = vadd.f32 0.0, %v4502
        %v4504 = vpop.f32.mrf.mxu0
        %4505 = vmatprep.mubr.f32.mxu0 0.0
        %v4506 = vand.u32 %v4183, 4294901760
        %v4507 = vsub.f32 %v4183, %v4506
        %v4508 = vand.u32 %v4507, 4294901760
        %v4509 = vsub.f32 %v4507, %v4508
        %v4510 = vand.u32 %v4509, 4294901760
        %4511 = vmatmul.mubr.f32.gmra.mxu0 %v4510
        %v4512 = vpop.f32.mrf.mxu0
        %v4513 = vadd.f32 0.0, %v4512
        %v4514 = vpop.f32.mrf.mxu0
        %4515 = vmatprep.mubr.f32.mxu0 0.0
        %v4516 = vand.u32 %v4185, 4294901760
        %v4517 = vsub.f32 %v4185, %v4516
        %v4518 = vand.u32 %v4517, 4294901760
        %v4519 = vsub.f32 %v4517, %v4518
        %v4520 = vand.u32 %v4519, 4294901760
        %4521 = vmatmul.mubr.f32.gmra.mxu0 %v4520
        %v4522 = vpop.f32.mrf.mxu0
        %v4523 = vadd.f32 0.0, %v4522
        %v4524 = vpop.f32.mrf.mxu0
        %4525 = vmatprep.mubr.f32.mxu0 0.0
        %v4526 = vand.u32 %v4187, 4294901760
        %v4527 = vsub.f32 %v4187, %v4526
        %v4528 = vand.u32 %v4527, 4294901760
        %v4529 = vsub.f32 %v4527, %v4528
        %v4530 = vand.u32 %v4529, 4294901760
        %4531 = vmatmul.mubr.f32.gmra.mxu0 %v4530
        %v4532 = vpop.f32.mrf.mxu0
        %v4533 = vadd.f32 0.0, %v4532
        %v4534 = vpop.f32.mrf.mxu0
        %4535 = vmatprep.mubr.f32.mxu0 0.0
        %v4536 = vand.u32 %v4189, 4294901760
        %v4537 = vsub.f32 %v4189, %v4536
        %v4538 = vand.u32 %v4537, 4294901760
        %v4539 = vsub.f32 %v4537, %v4538
        %v4540 = vand.u32 %v4539, 4294901760
        %4541 = vmatmul.mubr.f32.gmra.mxu0 %v4540
        %v4542 = vpop.f32.mrf.mxu0
        %v4543 = vadd.f32 0.0, %v4542
        %v4544 = vpop.f32.mrf.mxu0
        %4545 = vmatprep.mubr.f32.mxu0 0.0
        %v4546 = vand.u32 %v4191, 4294901760
        %v4547 = vsub.f32 %v4191, %v4546
        %v4548 = vand.u32 %v4547, 4294901760
        %v4549 = vsub.f32 %v4547, %v4548
        %v4550 = vand.u32 %v4549, 4294901760
        %4551 = vmatmul.mubr.f32.gmra.mxu0 %v4550
        %v4552 = vpop.f32.mrf.mxu0
        %v4553 = vadd.f32 0.0, %v4552
        %v4554 = vpop.f32.mrf.mxu0
        %4555 = vmatprep.mubr.f32.mxu0 0.0
        %v4556 = vand.u32 %v4193, 4294901760
        %v4557 = vsub.f32 %v4193, %v4556
        %v4558 = vand.u32 %v4557, 4294901760
        %v4559 = vsub.f32 %v4557, %v4558
        %v4560 = vand.u32 %v4559, 4294901760
        %4561 = vmatmul.mubr.f32.gmra.mxu0 %v4560
        %v4562 = vpop.f32.mrf.mxu0
        %v4563 = vadd.f32 0.0, %v4562
        %v4564 = vpop.f32.mrf.mxu0
        %4565 = vmatprep.mubr.f32.mxu0 0.0
        %v4566 = vand.u32 %v4195, 4294901760
        %v4567 = vsub.f32 %v4195, %v4566
        %v4568 = vand.u32 %v4567, 4294901760
        %v4569 = vsub.f32 %v4567, %v4568
        %v4570 = vand.u32 %v4569, 4294901760
        %4571 = vmatmul.mubr.f32.gmra.mxu0 %v4570
        %v4572 = vpop.f32.mrf.mxu0
        %v4573 = vadd.f32 0.0, %v4572
        %v4574 = vpop.f32.mrf.mxu0
        %4575 = vmatprep.mubr.f32.mxu0 0.0
        %v4576 = vand.u32 %v4197, 4294901760
        %v4577 = vsub.f32 %v4197, %v4576
        %v4578 = vand.u32 %v4577, 4294901760
        %v4579 = vsub.f32 %v4577, %v4578
        %v4580 = vand.u32 %v4579, 4294901760
        %4581 = vmatmul.mubr.f32.gmra.mxu0 %v4580
        %v4582 = vpop.f32.mrf.mxu0
        %v4583 = vadd.f32 0.0, %v4582
        %v4584 = vpop.f32.mrf.mxu0
        %4585 = vdwg.mxu0
        %4586 = vmatprep.subr.mxu0 0.0
        %4587 = vmatpush1.msra.mxu0 0.0
        %4588 = vmatprep.subr.mxu0 0.0
        %4589 = vmatpush1.msra.mxu0 0.0
        %4590 = vmatprep.subr.mxu0 0.0
        %4591 = vmatpush1.msra.mxu0 0.0
        %4592 = vmatprep.subr.mxu0 0.0
        %4593 = vmatpush1.msra.mxu0 0.0
        %4594 = vmatprep.subr.mxu0 0.0
        %4595 = vmatpush1.msra.mxu0 0.0
        %4596 = vmatprep.subr.mxu0 0.0
        %4597 = vmatpush1.msra.mxu0 0.0
        %4598 = vmatprep.subr.mxu0 0.0
        %4599 = vmatpush1.msra.mxu0 0.0
        %4600 = vmatprep.subr.mxu0 0.0
        %4601 = vmatpush1.msra.mxu0 0.0
        %4602 = vmatprep.subr.mxu0 0.0
        %4603 = vmatpush1.msra.mxu0 0.0
        %4604 = vmatprep.subr.mxu0 0.0
        %4605 = vmatpush1.msra.mxu0 0.0
        %4606 = vmatprep.subr.mxu0 0.0
        %4607 = vmatpush1.msra.mxu0 0.0
        %4608 = vmatprep.subr.mxu0 0.0
        %4609 = vmatpush1.msra.mxu0 0.0
        %4610 = vmatprep.subr.mxu0 0.0
        %4611 = vmatpush1.msra.mxu0 0.0
        %4612 = vmatprep.subr.mxu0 0.0
        %4613 = vmatpush1.msra.mxu0 0.0
        %4614 = vmatprep.subr.mxu0 0.0
        %v4615 = vand.u32 %v4038, 4294901760
        %v4616 = vsub.f32 %v4038, %v4615
        %v4617 = vand.u32 %v4616, 4294901760
        %v4618 = vsub.f32 %v4616, %v4617
        %v4619 = vand.u32 %v4618, 4294901760
        %4620 = vmatpush1.msra.mxu0 %v4619
        %4621 = vmatprep.subr.mxu0 0.0
        %v4622 = vand.u32 %v4037, 4294901760
        %v4623 = vsub.f32 %v4037, %v4622
        %v4624 = vand.u32 %v4623, 4294901760
        %v4625 = vsub.f32 %v4623, %v4624
        %v4626 = vand.u32 %v4625, 4294901760
        %4627 = vmatpush1.msra.mxu0 %v4626
        %4628 = vmatprep.subr.mxu0 0.0
        %4629 = vmatpush2.msra.mxu0 0.0
        %4630 = vmatprep.subr.mxu0 0.0
        %4631 = vmatpush2.msra.mxu0 0.0
        %4632 = vmatprep.subr.mxu0 0.0
        %4633 = vmatpush2.msra.mxu0 0.0
        %4634 = vmatprep.subr.mxu0 0.0
        %4635 = vmatpush2.msra.mxu0 0.0
        %4636 = vmatprep.subr.mxu0 0.0
        %4637 = vmatpush2.msra.mxu0 0.0
        %4638 = vmatprep.subr.mxu0 0.0
        %4639 = vmatpush2.msra.mxu0 0.0
        %4640 = vmatprep.subr.mxu0 0.0
        %4641 = vmatpush2.msra.mxu0 0.0
        %4642 = vmatprep.subr.mxu0 0.0
        %4643 = vmatpush2.msra.mxu0 0.0
        %4644 = vmatprep.subr.mxu0 0.0
        %4645 = vmatpush2.msra.mxu0 0.0
        %4646 = vmatprep.subr.mxu0 0.0
        %4647 = vmatpush2.msra.mxu0 0.0
        %4648 = vmatprep.subr.mxu0 0.0
        %4649 = vmatpush2.msra.mxu0 0.0
        %4650 = vmatprep.subr.mxu0 0.0
        %4651 = vmatpush2.msra.mxu0 0.0
        %4652 = vmatprep.subr.mxu0 0.0
        %4653 = vmatpush2.msra.mxu0 0.0
        %4654 = vmatprep.subr.mxu0 0.0
        %4655 = vmatpush2.msra.mxu0 0.0
        %4656 = vmatprep.subr.mxu0 0.0
        %4657 = vmatpush2.msra.mxu0 0.0
        %4658 = vmatprep.subr.mxu0 0.0
        %4659 = vmatpush2.msra.mxu0 0.0
        %4660 = vmatprep.mubr.f32.mxu0 0.0
        %v4661 = vand.u32 %v4135, 4294901760
        %4662 = vmatmul.mubr.f32.gmra.mxu0 %v4661
        %v4663 = vpop.f32.mrf.mxu0
        %v4664 = vadd.f32 %v4273, %v4663
        %v4665 = vpop.f32.mrf.mxu0
        %4666 = vmatprep.mubr.f32.mxu0 0.0
        %v4667 = vand.u32 %v4137, 4294901760
        %4668 = vmatmul.mubr.f32.gmra.mxu0 %v4667
        %v4669 = vpop.f32.mrf.mxu0
        %v4670 = vadd.f32 %v4283, %v4669
        %v4671 = vpop.f32.mrf.mxu0
        %4672 = vmatprep.mubr.f32.mxu0 0.0
        %v4673 = vand.u32 %v4139, 4294901760
        %4674 = vmatmul.mubr.f32.gmra.mxu0 %v4673
        %v4675 = vpop.f32.mrf.mxu0
        %v4676 = vadd.f32 %v4293, %v4675
        %v4677 = vpop.f32.mrf.mxu0
        %4678 = vmatprep.mubr.f32.mxu0 0.0
        %v4679 = vand.u32 %v4141, 4294901760
        %4680 = vmatmul.mubr.f32.gmra.mxu0 %v4679
        %v4681 = vpop.f32.mrf.mxu0
        %v4682 = vadd.f32 %v4303, %v4681
        %v4683 = vpop.f32.mrf.mxu0
        %4684 = vmatprep.mubr.f32.mxu0 0.0
        %v4685 = vand.u32 %v4143, 4294901760
        %4686 = vmatmul.mubr.f32.gmra.mxu0 %v4685
        %v4687 = vpop.f32.mrf.mxu0
        %v4688 = vadd.f32 %v4313, %v4687
        %v4689 = vpop.f32.mrf.mxu0
        %4690 = vmatprep.mubr.f32.mxu0 0.0
        %v4691 = vand.u32 %v4145, 4294901760
        %4692 = vmatmul.mubr.f32.gmra.mxu0 %v4691
        %v4693 = vpop.f32.mrf.mxu0
        %v4694 = vadd.f32 %v4323, %v4693
        %v4695 = vpop.f32.mrf.mxu0
        %4696 = vmatprep.mubr.f32.mxu0 0.0
        %v4697 = vand.u32 %v4147, 4294901760
        %4698 = vmatmul.mubr.f32.gmra.mxu0 %v4697
        %v4699 = vpop.f32.mrf.mxu0
        %v4700 = vadd.f32 %v4333, %v4699
        %v4701 = vpop.f32.mrf.mxu0
        %4702 = vmatprep.mubr.f32.mxu0 0.0
        %v4703 = vand.u32 %v4149, 4294901760
        %4704 = vmatmul.mubr.f32.gmra.mxu0 %v4703
        %v4705 = vpop.f32.mrf.mxu0
        %v4706 = vadd.f32 %v4343, %v4705
        %v4707 = vpop.f32.mrf.mxu0
        %4708 = vmatprep.mubr.f32.mxu0 0.0
        %v4709 = vand.u32 %v4151, 4294901760
        %4710 = vmatmul.mubr.f32.gmra.mxu0 %v4709
        %v4711 = vpop.f32.mrf.mxu0
        %v4712 = vadd.f32 %v4353, %v4711
        %v4713 = vpop.f32.mrf.mxu0
        %4714 = vmatprep.mubr.f32.mxu0 0.0
        %v4715 = vand.u32 %v4153, 4294901760
        %4716 = vmatmul.mubr.f32.gmra.mxu0 %v4715
        %v4717 = vpop.f32.mrf.mxu0
        %v4718 = vadd.f32 %v4363, %v4717
        %v4719 = vpop.f32.mrf.mxu0
        %4720 = vmatprep.mubr.f32.mxu0 0.0
        %v4721 = vand.u32 %v4155, 4294901760
        %4722 = vmatmul.mubr.f32.gmra.mxu0 %v4721
        %v4723 = vpop.f32.mrf.mxu0
        %v4724 = vadd.f32 %v4373, %v4723
        %v4725 = vpop.f32.mrf.mxu0
        %4726 = vmatprep.mubr.f32.mxu0 0.0
        %v4727 = vand.u32 %v4157, 4294901760
        %4728 = vmatmul.mubr.f32.gmra.mxu0 %v4727
        %v4729 = vpop.f32.mrf.mxu0
        %v4730 = vadd.f32 %v4383, %v4729
        %v4731 = vpop.f32.mrf.mxu0
        %4732 = vmatprep.mubr.f32.mxu0 0.0
        %v4733 = vand.u32 %v4159, 4294901760
        %4734 = vmatmul.mubr.f32.gmra.mxu0 %v4733
        %v4735 = vpop.f32.mrf.mxu0
        %v4736 = vadd.f32 %v4393, %v4735
        %v4737 = vpop.f32.mrf.mxu0
        %4738 = vmatprep.mubr.f32.mxu0 0.0
        %v4739 = vand.u32 %v4161, 4294901760
        %4740 = vmatmul.mubr.f32.gmra.mxu0 %v4739
        %v4741 = vpop.f32.mrf.mxu0
        %v4742 = vadd.f32 %v4403, %v4741
        %v4743 = vpop.f32.mrf.mxu0
        %4744 = vmatprep.mubr.f32.mxu0 0.0
        %v4745 = vand.u32 %v4163, 4294901760
        %4746 = vmatmul.mubr.f32.gmra.mxu0 %v4745
        %v4747 = vpop.f32.mrf.mxu0
        %v4748 = vadd.f32 %v4413, %v4747
        %v4749 = vpop.f32.mrf.mxu0
        %4750 = vmatprep.mubr.f32.mxu0 0.0
        %v4751 = vand.u32 %v4165, 4294901760
        %4752 = vmatmul.mubr.f32.gmra.mxu0 %v4751
        %v4753 = vpop.f32.mrf.mxu0
        %v4754 = vadd.f32 %v4423, %v4753
        %v4755 = vpop.f32.mrf.mxu0
        %4756 = vmatprep.mubr.f32.mxu0 0.0
        %v4757 = vand.u32 %v4167, 4294901760
        %4758 = vmatmul.mubr.f32.gmra.mxu0 %v4757
        %v4759 = vpop.f32.mrf.mxu0
        %v4760 = vadd.f32 %v4433, %v4759
        %v4761 = vpop.f32.mrf.mxu0
        %4762 = vmatprep.mubr.f32.mxu0 0.0
        %v4763 = vand.u32 %v4169, 4294901760
        %4764 = vmatmul.mubr.f32.gmra.mxu0 %v4763
        %v4765 = vpop.f32.mrf.mxu0
        %v4766 = vadd.f32 %v4443, %v4765
        %v4767 = vpop.f32.mrf.mxu0
        %4768 = vmatprep.mubr.f32.mxu0 0.0
        %v4769 = vand.u32 %v4171, 4294901760
        %4770 = vmatmul.mubr.f32.gmra.mxu0 %v4769
        %v4771 = vpop.f32.mrf.mxu0
        %v4772 = vadd.f32 %v4453, %v4771
        %v4773 = vpop.f32.mrf.mxu0
        %4774 = vmatprep.mubr.f32.mxu0 0.0
        %v4775 = vand.u32 %v4173, 4294901760
        %4776 = vmatmul.mubr.f32.gmra.mxu0 %v4775
        %v4777 = vpop.f32.mrf.mxu0
        %v4778 = vadd.f32 %v4463, %v4777
        %v4779 = vpop.f32.mrf.mxu0
        %4780 = vmatprep.mubr.f32.mxu0 0.0
        %v4781 = vand.u32 %v4175, 4294901760
        %4782 = vmatmul.mubr.f32.gmra.mxu0 %v4781
        %v4783 = vpop.f32.mrf.mxu0
        %v4784 = vadd.f32 %v4473, %v4783
        %v4785 = vpop.f32.mrf.mxu0
        %4786 = vmatprep.mubr.f32.mxu0 0.0
        %v4787 = vand.u32 %v4177, 4294901760
        %4788 = vmatmul.mubr.f32.gmra.mxu0 %v4787
        %v4789 = vpop.f32.mrf.mxu0
        %v4790 = vadd.f32 %v4483, %v4789
        %v4791 = vpop.f32.mrf.mxu0
        %4792 = vmatprep.mubr.f32.mxu0 0.0
        %v4793 = vand.u32 %v4179, 4294901760
        %4794 = vmatmul.mubr.f32.gmra.mxu0 %v4793
        %v4795 = vpop.f32.mrf.mxu0
        %v4796 = vadd.f32 %v4493, %v4795
        %v4797 = vpop.f32.mrf.mxu0
        %4798 = vmatprep.mubr.f32.mxu0 0.0
        %v4799 = vand.u32 %v4181, 4294901760
        %4800 = vmatmul.mubr.f32.gmra.mxu0 %v4799
        %v4801 = vpop.f32.mrf.mxu0
        %v4802 = vadd.f32 %v4503, %v4801
        %v4803 = vpop.f32.mrf.mxu0
        %4804 = vmatprep.mubr.f32.mxu0 0.0
        %v4805 = vand.u32 %v4183, 4294901760
        %4806 = vmatmul.mubr.f32.gmra.mxu0 %v4805
        %v4807 = vpop.f32.mrf.mxu0
        %v4808 = vadd.f32 %v4513, %v4807
        %v4809 = vpop.f32.mrf.mxu0
        %4810 = vmatprep.mubr.f32.mxu0 0.0
        %v4811 = vand.u32 %v4185, 4294901760
        %4812 = vmatmul.mubr.f32.gmra.mxu0 %v4811
        %v4813 = vpop.f32.mrf.mxu0
        %v4814 = vadd.f32 %v4523, %v4813
        %v4815 = vpop.f32.mrf.mxu0
        %4816 = vmatprep.mubr.f32.mxu0 0.0
        %v4817 = vand.u32 %v4187, 4294901760
        %4818 = vmatmul.mubr.f32.gmra.mxu0 %v4817
        %v4819 = vpop.f32.mrf.mxu0
        %v4820 = vadd.f32 %v4533, %v4819
        %v4821 = vpop.f32.mrf.mxu0
        %4822 = vmatprep.mubr.f32.mxu0 0.0
        %v4823 = vand.u32 %v4189, 4294901760
        %4824 = vmatmul.mubr.f32.gmra.mxu0 %v4823
        %v4825 = vpop.f32.mrf.mxu0
        %v4826 = vadd.f32 %v4543, %v4825
        %v4827 = vpop.f32.mrf.mxu0
        %4828 = vmatprep.mubr.f32.mxu0 0.0
        %v4829 = vand.u32 %v4191, 4294901760
        %4830 = vmatmul.mubr.f32.gmra.mxu0 %v4829
        %v4831 = vpop.f32.mrf.mxu0
        %v4832 = vadd.f32 %v4553, %v4831
        %v4833 = vpop.f32.mrf.mxu0
        %4834 = vmatprep.mubr.f32.mxu0 0.0
        %v4835 = vand.u32 %v4193, 4294901760
        %4836 = vmatmul.mubr.f32.gmra.mxu0 %v4835
        %v4837 = vpop.f32.mrf.mxu0
        %v4838 = vadd.f32 %v4563, %v4837
        %v4839 = vpop.f32.mrf.mxu0
        %4840 = vmatprep.mubr.f32.mxu0 0.0
        %v4841 = vand.u32 %v4195, 4294901760
        %4842 = vmatmul.mubr.f32.gmra.mxu0 %v4841
        %v4843 = vpop.f32.mrf.mxu0
        %v4844 = vadd.f32 %v4573, %v4843
        %v4845 = vpop.f32.mrf.mxu0
        %4846 = vmatprep.mubr.f32.mxu0 0.0
        %v4847 = vand.u32 %v4197, 4294901760
        %4848 = vmatmul.mubr.f32.gmra.mxu0 %v4847
        %v4849 = vpop.f32.mrf.mxu0
        %v4850 = vadd.f32 %v4583, %v4849
        %v4851 = vpop.f32.mrf.mxu0
        %4852 = vdwg.mxu0
        %4853 = vmatprep.subr.mxu0 0.0
        %4854 = vmatpush1.msra.mxu0 0.0
        %4855 = vmatprep.subr.mxu0 0.0
        %4856 = vmatpush1.msra.mxu0 0.0
        %4857 = vmatprep.subr.mxu0 0.0
        %4858 = vmatpush1.msra.mxu0 0.0
        %4859 = vmatprep.subr.mxu0 0.0
        %4860 = vmatpush1.msra.mxu0 0.0
        %4861 = vmatprep.subr.mxu0 0.0
        %4862 = vmatpush1.msra.mxu0 0.0
        %4863 = vmatprep.subr.mxu0 0.0
        %4864 = vmatpush1.msra.mxu0 0.0
        %4865 = vmatprep.subr.mxu0 0.0
        %4866 = vmatpush1.msra.mxu0 0.0
        %4867 = vmatprep.subr.mxu0 0.0
        %4868 = vmatpush1.msra.mxu0 0.0
        %4869 = vmatprep.subr.mxu0 0.0
        %4870 = vmatpush1.msra.mxu0 0.0
        %4871 = vmatprep.subr.mxu0 0.0
        %4872 = vmatpush1.msra.mxu0 0.0
        %4873 = vmatprep.subr.mxu0 0.0
        %4874 = vmatpush1.msra.mxu0 0.0
        %4875 = vmatprep.subr.mxu0 0.0
        %4876 = vmatpush1.msra.mxu0 0.0
        %4877 = vmatprep.subr.mxu0 0.0
        %4878 = vmatpush1.msra.mxu0 0.0
        %4879 = vmatprep.subr.mxu0 0.0
        %4880 = vmatpush1.msra.mxu0 0.0
        %4881 = vmatprep.subr.mxu0 0.0
        %v4882 = vand.u32 %v4038, 4294901760
        %v4883 = vsub.f32 %v4038, %v4882
        %4884 = vmatpush1.msra.mxu0 %v4883
        %4885 = vmatprep.subr.mxu0 0.0
        %v4886 = vand.u32 %v4037, 4294901760
        %v4887 = vsub.f32 %v4037, %v4886
        %4888 = vmatpush1.msra.mxu0 %v4887
        %4889 = vmatprep.subr.mxu0 0.0
        %4890 = vmatpush2.msra.mxu0 0.0
        %4891 = vmatprep.subr.mxu0 0.0
        %4892 = vmatpush2.msra.mxu0 0.0
        %4893 = vmatprep.subr.mxu0 0.0
        %4894 = vmatpush2.msra.mxu0 0.0
        %4895 = vmatprep.subr.mxu0 0.0
        %4896 = vmatpush2.msra.mxu0 0.0
        %4897 = vmatprep.subr.mxu0 0.0
        %4898 = vmatpush2.msra.mxu0 0.0
        %4899 = vmatprep.subr.mxu0 0.0
        %4900 = vmatpush2.msra.mxu0 0.0
        %4901 = vmatprep.subr.mxu0 0.0
        %4902 = vmatpush2.msra.mxu0 0.0
        %4903 = vmatprep.subr.mxu0 0.0
        %4904 = vmatpush2.msra.mxu0 0.0
        %4905 = vmatprep.subr.mxu0 0.0
        %4906 = vmatpush2.msra.mxu0 0.0
        %4907 = vmatprep.subr.mxu0 0.0
        %4908 = vmatpush2.msra.mxu0 0.0
        %4909 = vmatprep.subr.mxu0 0.0
        %4910 = vmatpush2.msra.mxu0 0.0
        %4911 = vmatprep.subr.mxu0 0.0
        %4912 = vmatpush2.msra.mxu0 0.0
        %4913 = vmatprep.subr.mxu0 0.0
        %4914 = vmatpush2.msra.mxu0 0.0
        %4915 = vmatprep.subr.mxu0 0.0
        %4916 = vmatpush2.msra.mxu0 0.0
        %4917 = vmatprep.subr.mxu0 0.0
        %4918 = vmatpush2.msra.mxu0 0.0
        %4919 = vmatprep.subr.mxu0 0.0
        %4920 = vmatpush2.msra.mxu0 0.0
        %4921 = vmatprep.mubr.f32.mxu0 0.0
        %v4922 = vand.u32 %v4135, 4294901760
        %v4923 = vsub.f32 %v4135, %v4922
        %4924 = vmatmul.mubr.f32.gmra.mxu0 %v4923
        %v4925 = vpop.f32.mrf.mxu0
        %v4926 = vadd.f32 %v4664, %v4925
        %v4927 = vpop.f32.mrf.mxu0
        %4928 = vmatprep.mubr.f32.mxu0 0.0
        %v4929 = vand.u32 %v4137, 4294901760
        %v4930 = vsub.f32 %v4137, %v4929
        %4931 = vmatmul.mubr.f32.gmra.mxu0 %v4930
        %v4932 = vpop.f32.mrf.mxu0
        %v4933 = vadd.f32 %v4670, %v4932
        %v4934 = vpop.f32.mrf.mxu0
        %4935 = vmatprep.mubr.f32.mxu0 0.0
        %v4936 = vand.u32 %v4139, 4294901760
        %v4937 = vsub.f32 %v4139, %v4936
        %4938 = vmatmul.mubr.f32.gmra.mxu0 %v4937
        %v4939 = vpop.f32.mrf.mxu0
        %v4940 = vadd.f32 %v4676, %v4939
        %v4941 = vpop.f32.mrf.mxu0
        %4942 = vmatprep.mubr.f32.mxu0 0.0
        %v4943 = vand.u32 %v4141, 4294901760
        %v4944 = vsub.f32 %v4141, %v4943
        %4945 = vmatmul.mubr.f32.gmra.mxu0 %v4944
        %v4946 = vpop.f32.mrf.mxu0
        %v4947 = vadd.f32 %v4682, %v4946
        %v4948 = vpop.f32.mrf.mxu0
        %4949 = vmatprep.mubr.f32.mxu0 0.0
        %v4950 = vand.u32 %v4143, 4294901760
        %v4951 = vsub.f32 %v4143, %v4950
        %4952 = vmatmul.mubr.f32.gmra.mxu0 %v4951
        %v4953 = vpop.f32.mrf.mxu0
        %v4954 = vadd.f32 %v4688, %v4953
        %v4955 = vpop.f32.mrf.mxu0
        %4956 = vmatprep.mubr.f32.mxu0 0.0
        %v4957 = vand.u32 %v4145, 4294901760
        %v4958 = vsub.f32 %v4145, %v4957
        %4959 = vmatmul.mubr.f32.gmra.mxu0 %v4958
        %v4960 = vpop.f32.mrf.mxu0
        %v4961 = vadd.f32 %v4694, %v4960
        %v4962 = vpop.f32.mrf.mxu0
        %4963 = vmatprep.mubr.f32.mxu0 0.0
        %v4964 = vand.u32 %v4147, 4294901760
        %v4965 = vsub.f32 %v4147, %v4964
        %4966 = vmatmul.mubr.f32.gmra.mxu0 %v4965
        %v4967 = vpop.f32.mrf.mxu0
        %v4968 = vadd.f32 %v4700, %v4967
        %v4969 = vpop.f32.mrf.mxu0
        %4970 = vmatprep.mubr.f32.mxu0 0.0
        %v4971 = vand.u32 %v4149, 4294901760
        %v4972 = vsub.f32 %v4149, %v4971
        %4973 = vmatmul.mubr.f32.gmra.mxu0 %v4972
        %v4974 = vpop.f32.mrf.mxu0
        %v4975 = vadd.f32 %v4706, %v4974
        %v4976 = vpop.f32.mrf.mxu0
        %4977 = vmatprep.mubr.f32.mxu0 0.0
        %v4978 = vand.u32 %v4151, 4294901760
        %v4979 = vsub.f32 %v4151, %v4978
        %4980 = vmatmul.mubr.f32.gmra.mxu0 %v4979
        %v4981 = vpop.f32.mrf.mxu0
        %v4982 = vadd.f32 %v4712, %v4981
        %v4983 = vpop.f32.mrf.mxu0
        %4984 = vmatprep.mubr.f32.mxu0 0.0
        %v4985 = vand.u32 %v4153, 4294901760
        %v4986 = vsub.f32 %v4153, %v4985
        %4987 = vmatmul.mubr.f32.gmra.mxu0 %v4986
        %v4988 = vpop.f32.mrf.mxu0
        %v4989 = vadd.f32 %v4718, %v4988
        %v4990 = vpop.f32.mrf.mxu0
        %4991 = vmatprep.mubr.f32.mxu0 0.0
        %v4992 = vand.u32 %v4155, 4294901760
        %v4993 = vsub.f32 %v4155, %v4992
        %4994 = vmatmul.mubr.f32.gmra.mxu0 %v4993
        %v4995 = vpop.f32.mrf.mxu0
        %v4996 = vadd.f32 %v4724, %v4995
        %v4997 = vpop.f32.mrf.mxu0
        %4998 = vmatprep.mubr.f32.mxu0 0.0
        %v4999 = vand.u32 %v4157, 4294901760
        %v5000 = vsub.f32 %v4157, %v4999
        %5001 = vmatmul.mubr.f32.gmra.mxu0 %v5000
        %v5002 = vpop.f32.mrf.mxu0
        %v5003 = vadd.f32 %v4730, %v5002
        %v5004 = vpop.f32.mrf.mxu0
        %5005 = vmatprep.mubr.f32.mxu0 0.0
        %v5006 = vand.u32 %v4159, 4294901760
        %v5007 = vsub.f32 %v4159, %v5006
        %5008 = vmatmul.mubr.f32.gmra.mxu0 %v5007
        %v5009 = vpop.f32.mrf.mxu0
        %v5010 = vadd.f32 %v4736, %v5009
        %v5011 = vpop.f32.mrf.mxu0
        %5012 = vmatprep.mubr.f32.mxu0 0.0
        %v5013 = vand.u32 %v4161, 4294901760
        %v5014 = vsub.f32 %v4161, %v5013
        %5015 = vmatmul.mubr.f32.gmra.mxu0 %v5014
        %v5016 = vpop.f32.mrf.mxu0
        %v5017 = vadd.f32 %v4742, %v5016
        %v5018 = vpop.f32.mrf.mxu0
        %5019 = vmatprep.mubr.f32.mxu0 0.0
        %v5020 = vand.u32 %v4163, 4294901760
        %v5021 = vsub.f32 %v4163, %v5020
        %5022 = vmatmul.mubr.f32.gmra.mxu0 %v5021
        %v5023 = vpop.f32.mrf.mxu0
        %v5024 = vadd.f32 %v4748, %v5023
        %v5025 = vpop.f32.mrf.mxu0
        %5026 = vmatprep.mubr.f32.mxu0 0.0
        %v5027 = vand.u32 %v4165, 4294901760
        %v5028 = vsub.f32 %v4165, %v5027
        %5029 = vmatmul.mubr.f32.gmra.mxu0 %v5028
        %v5030 = vpop.f32.mrf.mxu0
        %v5031 = vadd.f32 %v4754, %v5030
        %v5032 = vpop.f32.mrf.mxu0
        %5033 = vmatprep.mubr.f32.mxu0 0.0
        %v5034 = vand.u32 %v4167, 4294901760
        %v5035 = vsub.f32 %v4167, %v5034
        %5036 = vmatmul.mubr.f32.gmra.mxu0 %v5035
        %v5037 = vpop.f32.mrf.mxu0
        %v5038 = vadd.f32 %v4760, %v5037
        %v5039 = vpop.f32.mrf.mxu0
        %5040 = vmatprep.mubr.f32.mxu0 0.0
        %v5041 = vand.u32 %v4169, 4294901760
        %v5042 = vsub.f32 %v4169, %v5041
        %5043 = vmatmul.mubr.f32.gmra.mxu0 %v5042
        %v5044 = vpop.f32.mrf.mxu0
        %v5045 = vadd.f32 %v4766, %v5044
        %v5046 = vpop.f32.mrf.mxu0
        %5047 = vmatprep.mubr.f32.mxu0 0.0
        %v5048 = vand.u32 %v4171, 4294901760
        %v5049 = vsub.f32 %v4171, %v5048
        %5050 = vmatmul.mubr.f32.gmra.mxu0 %v5049
        %v5051 = vpop.f32.mrf.mxu0
        %v5052 = vadd.f32 %v4772, %v5051
        %v5053 = vpop.f32.mrf.mxu0
        %5054 = vmatprep.mubr.f32.mxu0 0.0
        %v5055 = vand.u32 %v4173, 4294901760
        %v5056 = vsub.f32 %v4173, %v5055
        %5057 = vmatmul.mubr.f32.gmra.mxu0 %v5056
        %v5058 = vpop.f32.mrf.mxu0
        %v5059 = vadd.f32 %v4778, %v5058
        %v5060 = vpop.f32.mrf.mxu0
        %5061 = vmatprep.mubr.f32.mxu0 0.0
        %v5062 = vand.u32 %v4175, 4294901760
        %v5063 = vsub.f32 %v4175, %v5062
        %5064 = vmatmul.mubr.f32.gmra.mxu0 %v5063
        %v5065 = vpop.f32.mrf.mxu0
        %v5066 = vadd.f32 %v4784, %v5065
        %v5067 = vpop.f32.mrf.mxu0
        %5068 = vmatprep.mubr.f32.mxu0 0.0
        %v5069 = vand.u32 %v4177, 4294901760
        %v5070 = vsub.f32 %v4177, %v5069
        %5071 = vmatmul.mubr.f32.gmra.mxu0 %v5070
        %v5072 = vpop.f32.mrf.mxu0
        %v5073 = vadd.f32 %v4790, %v5072
        %v5074 = vpop.f32.mrf.mxu0
        %5075 = vmatprep.mubr.f32.mxu0 0.0
        %v5076 = vand.u32 %v4179, 4294901760
        %v5077 = vsub.f32 %v4179, %v5076
        %5078 = vmatmul.mubr.f32.gmra.mxu0 %v5077
        %v5079 = vpop.f32.mrf.mxu0
        %v5080 = vadd.f32 %v4796, %v5079
        %v5081 = vpop.f32.mrf.mxu0
        %5082 = vmatprep.mubr.f32.mxu0 0.0
        %v5083 = vand.u32 %v4181, 4294901760
        %v5084 = vsub.f32 %v4181, %v5083
        %5085 = vmatmul.mubr.f32.gmra.mxu0 %v5084
        %v5086 = vpop.f32.mrf.mxu0
        %v5087 = vadd.f32 %v4802, %v5086
        %v5088 = vpop.f32.mrf.mxu0
        %5089 = vmatprep.mubr.f32.mxu0 0.0
        %v5090 = vand.u32 %v4183, 4294901760
        %v5091 = vsub.f32 %v4183, %v5090
        %5092 = vmatmul.mubr.f32.gmra.mxu0 %v5091
        %v5093 = vpop.f32.mrf.mxu0
        %v5094 = vadd.f32 %v4808, %v5093
        %v5095 = vpop.f32.mrf.mxu0
        %5096 = vmatprep.mubr.f32.mxu0 0.0
        %v5097 = vand.u32 %v4185, 4294901760
        %v5098 = vsub.f32 %v4185, %v5097
        %5099 = vmatmul.mubr.f32.gmra.mxu0 %v5098
        %v5100 = vpop.f32.mrf.mxu0
        %v5101 = vadd.f32 %v4814, %v5100
        %v5102 = vpop.f32.mrf.mxu0
        %5103 = vmatprep.mubr.f32.mxu0 0.0
        %v5104 = vand.u32 %v4187, 4294901760
        %v5105 = vsub.f32 %v4187, %v5104
        %5106 = vmatmul.mubr.f32.gmra.mxu0 %v5105
        %v5107 = vpop.f32.mrf.mxu0
        %v5108 = vadd.f32 %v4820, %v5107
        %v5109 = vpop.f32.mrf.mxu0
        %5110 = vmatprep.mubr.f32.mxu0 0.0
        %v5111 = vand.u32 %v4189, 4294901760
        %v5112 = vsub.f32 %v4189, %v5111
        %5113 = vmatmul.mubr.f32.gmra.mxu0 %v5112
        %v5114 = vpop.f32.mrf.mxu0
        %v5115 = vadd.f32 %v4826, %v5114
        %v5116 = vpop.f32.mrf.mxu0
        %5117 = vmatprep.mubr.f32.mxu0 0.0
        %v5118 = vand.u32 %v4191, 4294901760
        %v5119 = vsub.f32 %v4191, %v5118
        %5120 = vmatmul.mubr.f32.gmra.mxu0 %v5119
        %v5121 = vpop.f32.mrf.mxu0
        %v5122 = vadd.f32 %v4832, %v5121
        %v5123 = vpop.f32.mrf.mxu0
        %5124 = vmatprep.mubr.f32.mxu0 0.0
        %v5125 = vand.u32 %v4193, 4294901760
        %v5126 = vsub.f32 %v4193, %v5125
        %5127 = vmatmul.mubr.f32.gmra.mxu0 %v5126
        %v5128 = vpop.f32.mrf.mxu0
        %v5129 = vadd.f32 %v4838, %v5128
        %v5130 = vpop.f32.mrf.mxu0
        %5131 = vmatprep.mubr.f32.mxu0 0.0
        %v5132 = vand.u32 %v4195, 4294901760
        %v5133 = vsub.f32 %v4195, %v5132
        %5134 = vmatmul.mubr.f32.gmra.mxu0 %v5133
        %v5135 = vpop.f32.mrf.mxu0
        %v5136 = vadd.f32 %v4844, %v5135
        %v5137 = vpop.f32.mrf.mxu0
        %5138 = vmatprep.mubr.f32.mxu0 0.0
        %v5139 = vand.u32 %v4197, 4294901760
        %v5140 = vsub.f32 %v4197, %v5139
        %5141 = vmatmul.mubr.f32.gmra.mxu0 %v5140
        %v5142 = vpop.f32.mrf.mxu0
        %v5143 = vadd.f32 %v4850, %v5142
        %v5144 = vpop.f32.mrf.mxu0
        %5145 = vdwg.mxu0
        %5146 = vmatprep.subr.mxu0 0.0
        %5147 = vmatpush1.msra.mxu0 0.0
        %5148 = vmatprep.subr.mxu0 0.0
        %5149 = vmatpush1.msra.mxu0 0.0
        %5150 = vmatprep.subr.mxu0 0.0
        %5151 = vmatpush1.msra.mxu0 0.0
        %5152 = vmatprep.subr.mxu0 0.0
        %5153 = vmatpush1.msra.mxu0 0.0
        %5154 = vmatprep.subr.mxu0 0.0
        %5155 = vmatpush1.msra.mxu0 0.0
        %5156 = vmatprep.subr.mxu0 0.0
        %5157 = vmatpush1.msra.mxu0 0.0
        %5158 = vmatprep.subr.mxu0 0.0
        %5159 = vmatpush1.msra.mxu0 0.0
        %5160 = vmatprep.subr.mxu0 0.0
        %5161 = vmatpush1.msra.mxu0 0.0
        %5162 = vmatprep.subr.mxu0 0.0
        %5163 = vmatpush1.msra.mxu0 0.0
        %5164 = vmatprep.subr.mxu0 0.0
        %5165 = vmatpush1.msra.mxu0 0.0
        %5166 = vmatprep.subr.mxu0 0.0
        %5167 = vmatpush1.msra.mxu0 0.0
        %5168 = vmatprep.subr.mxu0 0.0
        %5169 = vmatpush1.msra.mxu0 0.0
        %5170 = vmatprep.subr.mxu0 0.0
        %5171 = vmatpush1.msra.mxu0 0.0
        %5172 = vmatprep.subr.mxu0 0.0
        %5173 = vmatpush1.msra.mxu0 0.0
        %5174 = vmatprep.subr.mxu0 0.0
        %v5175 = vand.u32 %v4038, 4294901760
        %5176 = vmatpush1.msra.mxu0 %v5175
        %5177 = vmatprep.subr.mxu0 0.0
        %v5178 = vand.u32 %v4037, 4294901760
        %5179 = vmatpush1.msra.mxu0 %v5178
        %5180 = vmatprep.subr.mxu0 0.0
        %5181 = vmatpush2.msra.mxu0 0.0
        %5182 = vmatprep.subr.mxu0 0.0
        %5183 = vmatpush2.msra.mxu0 0.0
        %5184 = vmatprep.subr.mxu0 0.0
        %5185 = vmatpush2.msra.mxu0 0.0
        %5186 = vmatprep.subr.mxu0 0.0
        %5187 = vmatpush2.msra.mxu0 0.0
        %5188 = vmatprep.subr.mxu0 0.0
        %5189 = vmatpush2.msra.mxu0 0.0
        %5190 = vmatprep.subr.mxu0 0.0
        %5191 = vmatpush2.msra.mxu0 0.0
        %5192 = vmatprep.subr.mxu0 0.0
        %5193 = vmatpush2.msra.mxu0 0.0
        %5194 = vmatprep.subr.mxu0 0.0
        %5195 = vmatpush2.msra.mxu0 0.0
        %5196 = vmatprep.subr.mxu0 0.0
        %5197 = vmatpush2.msra.mxu0 0.0
        %5198 = vmatprep.subr.mxu0 0.0
        %5199 = vmatpush2.msra.mxu0 0.0
        %5200 = vmatprep.subr.mxu0 0.0
        %5201 = vmatpush2.msra.mxu0 0.0
        %5202 = vmatprep.subr.mxu0 0.0
        %5203 = vmatpush2.msra.mxu0 0.0
        %5204 = vmatprep.subr.mxu0 0.0
        %5205 = vmatpush2.msra.mxu0 0.0
        %5206 = vmatprep.subr.mxu0 0.0
        %5207 = vmatpush2.msra.mxu0 0.0
        %5208 = vmatprep.subr.mxu0 0.0
        %5209 = vmatpush2.msra.mxu0 0.0
        %5210 = vmatprep.subr.mxu0 0.0
        %5211 = vmatpush2.msra.mxu0 0.0
        %5212 = vmatprep.mubr.f32.mxu0 0.0
        %v5213 = vand.u32 %v4135, 4294901760
        %v5214 = vsub.f32 %v4135, %v5213
        %v5215 = vand.u32 %v5214, 4294901760
        %5216 = vmatmul.mubr.f32.gmra.mxu0 %v5215
        %v5217 = vpop.f32.mrf.mxu0
        %v5218 = vadd.f32 %v4926, %v5217
        %v5219 = vpop.f32.mrf.mxu0
        %5220 = vmatprep.mubr.f32.mxu0 0.0
        %v5221 = vand.u32 %v4137, 4294901760
        %v5222 = vsub.f32 %v4137, %v5221
        %v5223 = vand.u32 %v5222, 4294901760
        %5224 = vmatmul.mubr.f32.gmra.mxu0 %v5223
        %v5225 = vpop.f32.mrf.mxu0
        %v5226 = vadd.f32 %v4933, %v5225
        %v5227 = vpop.f32.mrf.mxu0
        %5228 = vmatprep.mubr.f32.mxu0 0.0
        %v5229 = vand.u32 %v4139, 4294901760
        %v5230 = vsub.f32 %v4139, %v5229
        %v5231 = vand.u32 %v5230, 4294901760
        %5232 = vmatmul.mubr.f32.gmra.mxu0 %v5231
        %v5233 = vpop.f32.mrf.mxu0
        %v5234 = vadd.f32 %v4940, %v5233
        %v5235 = vpop.f32.mrf.mxu0
        %5236 = vmatprep.mubr.f32.mxu0 0.0
        %v5237 = vand.u32 %v4141, 4294901760
        %v5238 = vsub.f32 %v4141, %v5237
        %v5239 = vand.u32 %v5238, 4294901760
        %5240 = vmatmul.mubr.f32.gmra.mxu0 %v5239
        %v5241 = vpop.f32.mrf.mxu0
        %v5242 = vadd.f32 %v4947, %v5241
        %v5243 = vpop.f32.mrf.mxu0
        %5244 = vmatprep.mubr.f32.mxu0 0.0
        %v5245 = vand.u32 %v4143, 4294901760
        %v5246 = vsub.f32 %v4143, %v5245
        %v5247 = vand.u32 %v5246, 4294901760
        %5248 = vmatmul.mubr.f32.gmra.mxu0 %v5247
        %v5249 = vpop.f32.mrf.mxu0
        %v5250 = vadd.f32 %v4954, %v5249
        %v5251 = vpop.f32.mrf.mxu0
        %5252 = vmatprep.mubr.f32.mxu0 0.0
        %v5253 = vand.u32 %v4145, 4294901760
        %v5254 = vsub.f32 %v4145, %v5253
        %v5255 = vand.u32 %v5254, 4294901760
        %5256 = vmatmul.mubr.f32.gmra.mxu0 %v5255
        %v5257 = vpop.f32.mrf.mxu0
        %v5258 = vadd.f32 %v4961, %v5257
        %v5259 = vpop.f32.mrf.mxu0
        %5260 = vmatprep.mubr.f32.mxu0 0.0
        %v5261 = vand.u32 %v4147, 4294901760
        %v5262 = vsub.f32 %v4147, %v5261
        %v5263 = vand.u32 %v5262, 4294901760
        %5264 = vmatmul.mubr.f32.gmra.mxu0 %v5263
        %v5265 = vpop.f32.mrf.mxu0
        %v5266 = vadd.f32 %v4968, %v5265
        %v5267 = vpop.f32.mrf.mxu0
        %5268 = vmatprep.mubr.f32.mxu0 0.0
        %v5269 = vand.u32 %v4149, 4294901760
        %v5270 = vsub.f32 %v4149, %v5269
        %v5271 = vand.u32 %v5270, 4294901760
        %5272 = vmatmul.mubr.f32.gmra.mxu0 %v5271
        %v5273 = vpop.f32.mrf.mxu0
        %v5274 = vadd.f32 %v4975, %v5273
        %v5275 = vpop.f32.mrf.mxu0
        %5276 = vmatprep.mubr.f32.mxu0 0.0
        %v5277 = vand.u32 %v4151, 4294901760
        %v5278 = vsub.f32 %v4151, %v5277
        %v5279 = vand.u32 %v5278, 4294901760
        %5280 = vmatmul.mubr.f32.gmra.mxu0 %v5279
        %v5281 = vpop.f32.mrf.mxu0
        %v5282 = vadd.f32 %v4982, %v5281
        %v5283 = vpop.f32.mrf.mxu0
        %5284 = vmatprep.mubr.f32.mxu0 0.0
        %v5285 = vand.u32 %v4153, 4294901760
        %v5286 = vsub.f32 %v4153, %v5285
        %v5287 = vand.u32 %v5286, 4294901760
        %5288 = vmatmul.mubr.f32.gmra.mxu0 %v5287
        %v5289 = vpop.f32.mrf.mxu0
        %v5290 = vadd.f32 %v4989, %v5289
        %v5291 = vpop.f32.mrf.mxu0
        %5292 = vmatprep.mubr.f32.mxu0 0.0
        %v5293 = vand.u32 %v4155, 4294901760
        %v5294 = vsub.f32 %v4155, %v5293
        %v5295 = vand.u32 %v5294, 4294901760
        %5296 = vmatmul.mubr.f32.gmra.mxu0 %v5295
        %v5297 = vpop.f32.mrf.mxu0
        %v5298 = vadd.f32 %v4996, %v5297
        %v5299 = vpop.f32.mrf.mxu0
        %5300 = vmatprep.mubr.f32.mxu0 0.0
        %v5301 = vand.u32 %v4157, 4294901760
        %v5302 = vsub.f32 %v4157, %v5301
        %v5303 = vand.u32 %v5302, 4294901760
        %5304 = vmatmul.mubr.f32.gmra.mxu0 %v5303
        %v5305 = vpop.f32.mrf.mxu0
        %v5306 = vadd.f32 %v5003, %v5305
        %v5307 = vpop.f32.mrf.mxu0
        %5308 = vmatprep.mubr.f32.mxu0 0.0
        %v5309 = vand.u32 %v4159, 4294901760
        %v5310 = vsub.f32 %v4159, %v5309
        %v5311 = vand.u32 %v5310, 4294901760
        %5312 = vmatmul.mubr.f32.gmra.mxu0 %v5311
        %v5313 = vpop.f32.mrf.mxu0
        %v5314 = vadd.f32 %v5010, %v5313
        %v5315 = vpop.f32.mrf.mxu0
        %5316 = vmatprep.mubr.f32.mxu0 0.0
        %v5317 = vand.u32 %v4161, 4294901760
        %v5318 = vsub.f32 %v4161, %v5317
        %v5319 = vand.u32 %v5318, 4294901760
        %5320 = vmatmul.mubr.f32.gmra.mxu0 %v5319
        %v5321 = vpop.f32.mrf.mxu0
        %v5322 = vadd.f32 %v5017, %v5321
        %v5323 = vpop.f32.mrf.mxu0
        %5324 = vmatprep.mubr.f32.mxu0 0.0
        %v5325 = vand.u32 %v4163, 4294901760
        %v5326 = vsub.f32 %v4163, %v5325
        %v5327 = vand.u32 %v5326, 4294901760
        %5328 = vmatmul.mubr.f32.gmra.mxu0 %v5327
        %v5329 = vpop.f32.mrf.mxu0
        %v5330 = vadd.f32 %v5024, %v5329
        %v5331 = vpop.f32.mrf.mxu0
        %5332 = vmatprep.mubr.f32.mxu0 0.0
        %v5333 = vand.u32 %v4165, 4294901760
        %v5334 = vsub.f32 %v4165, %v5333
        %v5335 = vand.u32 %v5334, 4294901760
        %5336 = vmatmul.mubr.f32.gmra.mxu0 %v5335
        %v5337 = vpop.f32.mrf.mxu0
        %v5338 = vadd.f32 %v5031, %v5337
        %v5339 = vpop.f32.mrf.mxu0
        %5340 = vmatprep.mubr.f32.mxu0 0.0
        %v5341 = vand.u32 %v4167, 4294901760
        %v5342 = vsub.f32 %v4167, %v5341
        %v5343 = vand.u32 %v5342, 4294901760
        %5344 = vmatmul.mubr.f32.gmra.mxu0 %v5343
        %v5345 = vpop.f32.mrf.mxu0
        %v5346 = vadd.f32 %v5038, %v5345
        %v5347 = vpop.f32.mrf.mxu0
        %5348 = vmatprep.mubr.f32.mxu0 0.0
        %v5349 = vand.u32 %v4169, 4294901760
        %v5350 = vsub.f32 %v4169, %v5349
        %v5351 = vand.u32 %v5350, 4294901760
        %5352 = vmatmul.mubr.f32.gmra.mxu0 %v5351
        %v5353 = vpop.f32.mrf.mxu0
        %v5354 = vadd.f32 %v5045, %v5353
        %v5355 = vpop.f32.mrf.mxu0
        %5356 = vmatprep.mubr.f32.mxu0 0.0
        %v5357 = vand.u32 %v4171, 4294901760
        %v5358 = vsub.f32 %v4171, %v5357
        %v5359 = vand.u32 %v5358, 4294901760
        %5360 = vmatmul.mubr.f32.gmra.mxu0 %v5359
        %v5361 = vpop.f32.mrf.mxu0
        %v5362 = vadd.f32 %v5052, %v5361
        %v5363 = vpop.f32.mrf.mxu0
        %5364 = vmatprep.mubr.f32.mxu0 0.0
        %v5365 = vand.u32 %v4173, 4294901760
        %v5366 = vsub.f32 %v4173, %v5365
        %v5367 = vand.u32 %v5366, 4294901760
        %5368 = vmatmul.mubr.f32.gmra.mxu0 %v5367
        %v5369 = vpop.f32.mrf.mxu0
        %v5370 = vadd.f32 %v5059, %v5369
        %v5371 = vpop.f32.mrf.mxu0
        %5372 = vmatprep.mubr.f32.mxu0 0.0
        %v5373 = vand.u32 %v4175, 4294901760
        %v5374 = vsub.f32 %v4175, %v5373
        %v5375 = vand.u32 %v5374, 4294901760
        %5376 = vmatmul.mubr.f32.gmra.mxu0 %v5375
        %v5377 = vpop.f32.mrf.mxu0
        %v5378 = vadd.f32 %v5066, %v5377
        %v5379 = vpop.f32.mrf.mxu0
        %5380 = vmatprep.mubr.f32.mxu0 0.0
        %v5381 = vand.u32 %v4177, 4294901760
        %v5382 = vsub.f32 %v4177, %v5381
        %v5383 = vand.u32 %v5382, 4294901760
        %5384 = vmatmul.mubr.f32.gmra.mxu0 %v5383
        %v5385 = vpop.f32.mrf.mxu0
        %v5386 = vadd.f32 %v5073, %v5385
        %v5387 = vpop.f32.mrf.mxu0
        %5388 = vmatprep.mubr.f32.mxu0 0.0
        %v5389 = vand.u32 %v4179, 4294901760
        %v5390 = vsub.f32 %v4179, %v5389
        %v5391 = vand.u32 %v5390, 4294901760
        %5392 = vmatmul.mubr.f32.gmra.mxu0 %v5391
        %v5393 = vpop.f32.mrf.mxu0
        %v5394 = vadd.f32 %v5080, %v5393
        %v5395 = vpop.f32.mrf.mxu0
        %5396 = vmatprep.mubr.f32.mxu0 0.0
        %v5397 = vand.u32 %v4181, 4294901760
        %v5398 = vsub.f32 %v4181, %v5397
        %v5399 = vand.u32 %v5398, 4294901760
        %5400 = vmatmul.mubr.f32.gmra.mxu0 %v5399
        %v5401 = vpop.f32.mrf.mxu0
        %v5402 = vadd.f32 %v5087, %v5401
        %v5403 = vpop.f32.mrf.mxu0
        %5404 = vmatprep.mubr.f32.mxu0 0.0
        %v5405 = vand.u32 %v4183, 4294901760
        %v5406 = vsub.f32 %v4183, %v5405
        %v5407 = vand.u32 %v5406, 4294901760
        %5408 = vmatmul.mubr.f32.gmra.mxu0 %v5407
        %v5409 = vpop.f32.mrf.mxu0
        %v5410 = vadd.f32 %v5094, %v5409
        %v5411 = vpop.f32.mrf.mxu0
        %5412 = vmatprep.mubr.f32.mxu0 0.0
        %v5413 = vand.u32 %v4185, 4294901760
        %v5414 = vsub.f32 %v4185, %v5413
        %v5415 = vand.u32 %v5414, 4294901760
        %5416 = vmatmul.mubr.f32.gmra.mxu0 %v5415
        %v5417 = vpop.f32.mrf.mxu0
        %v5418 = vadd.f32 %v5101, %v5417
        %v5419 = vpop.f32.mrf.mxu0
        %5420 = vmatprep.mubr.f32.mxu0 0.0
        %v5421 = vand.u32 %v4187, 4294901760
        %v5422 = vsub.f32 %v4187, %v5421
        %v5423 = vand.u32 %v5422, 4294901760
        %5424 = vmatmul.mubr.f32.gmra.mxu0 %v5423
        %v5425 = vpop.f32.mrf.mxu0
        %v5426 = vadd.f32 %v5108, %v5425
        %v5427 = vpop.f32.mrf.mxu0
        %5428 = vmatprep.mubr.f32.mxu0 0.0
        %v5429 = vand.u32 %v4189, 4294901760
        %v5430 = vsub.f32 %v4189, %v5429
        %v5431 = vand.u32 %v5430, 4294901760
        %5432 = vmatmul.mubr.f32.gmra.mxu0 %v5431
        %v5433 = vpop.f32.mrf.mxu0
        %v5434 = vadd.f32 %v5115, %v5433
        %v5435 = vpop.f32.mrf.mxu0
        %5436 = vmatprep.mubr.f32.mxu0 0.0
        %v5437 = vand.u32 %v4191, 4294901760
        %v5438 = vsub.f32 %v4191, %v5437
        %v5439 = vand.u32 %v5438, 4294901760
        %5440 = vmatmul.mubr.f32.gmra.mxu0 %v5439
        %v5441 = vpop.f32.mrf.mxu0
        %v5442 = vadd.f32 %v5122, %v5441
        %v5443 = vpop.f32.mrf.mxu0
        %5444 = vmatprep.mubr.f32.mxu0 0.0
        %v5445 = vand.u32 %v4193, 4294901760
        %v5446 = vsub.f32 %v4193, %v5445
        %v5447 = vand.u32 %v5446, 4294901760
        %5448 = vmatmul.mubr.f32.gmra.mxu0 %v5447
        %v5449 = vpop.f32.mrf.mxu0
        %v5450 = vadd.f32 %v5129, %v5449
        %v5451 = vpop.f32.mrf.mxu0
        %5452 = vmatprep.mubr.f32.mxu0 0.0
        %v5453 = vand.u32 %v4195, 4294901760
        %v5454 = vsub.f32 %v4195, %v5453
        %v5455 = vand.u32 %v5454, 4294901760
        %5456 = vmatmul.mubr.f32.gmra.mxu0 %v5455
        %v5457 = vpop.f32.mrf.mxu0
        %v5458 = vadd.f32 %v5136, %v5457
        %v5459 = vpop.f32.mrf.mxu0
        %5460 = vmatprep.mubr.f32.mxu0 0.0
        %v5461 = vand.u32 %v4197, 4294901760
        %v5462 = vsub.f32 %v4197, %v5461
        %v5463 = vand.u32 %v5462, 4294901760
        %5464 = vmatmul.mubr.f32.gmra.mxu0 %v5463
        %v5465 = vpop.f32.mrf.mxu0
        %v5466 = vadd.f32 %v5143, %v5465
        %v5467 = vpop.f32.mrf.mxu0
        %5468 = vdwg.mxu0
        %5469 = vmatprep.subr.mxu0 0.0
        %5470 = vmatpush1.msra.mxu0 0.0
        %5471 = vmatprep.subr.mxu0 0.0
        %5472 = vmatpush1.msra.mxu0 0.0
        %5473 = vmatprep.subr.mxu0 0.0
        %5474 = vmatpush1.msra.mxu0 0.0
        %5475 = vmatprep.subr.mxu0 0.0
        %5476 = vmatpush1.msra.mxu0 0.0
        %5477 = vmatprep.subr.mxu0 0.0
        %5478 = vmatpush1.msra.mxu0 0.0
        %5479 = vmatprep.subr.mxu0 0.0
        %5480 = vmatpush1.msra.mxu0 0.0
        %5481 = vmatprep.subr.mxu0 0.0
        %5482 = vmatpush1.msra.mxu0 0.0
        %5483 = vmatprep.subr.mxu0 0.0
        %5484 = vmatpush1.msra.mxu0 0.0
        %5485 = vmatprep.subr.mxu0 0.0
        %5486 = vmatpush1.msra.mxu0 0.0
        %5487 = vmatprep.subr.mxu0 0.0
        %5488 = vmatpush1.msra.mxu0 0.0
        %5489 = vmatprep.subr.mxu0 0.0
        %5490 = vmatpush1.msra.mxu0 0.0
        %5491 = vmatprep.subr.mxu0 0.0
        %5492 = vmatpush1.msra.mxu0 0.0
        %5493 = vmatprep.subr.mxu0 0.0
        %5494 = vmatpush1.msra.mxu0 0.0
        %5495 = vmatprep.subr.mxu0 0.0
        %5496 = vmatpush1.msra.mxu0 0.0
        %5497 = vmatprep.subr.mxu0 0.0
        %v5498 = vand.u32 %v4038, 4294901760
        %v5499 = vsub.f32 %v4038, %v5498
        %v5500 = vand.u32 %v5499, 4294901760
        %5501 = vmatpush1.msra.mxu0 %v5500
        %5502 = vmatprep.subr.mxu0 0.0
        %v5503 = vand.u32 %v4037, 4294901760
        %v5504 = vsub.f32 %v4037, %v5503
        %v5505 = vand.u32 %v5504, 4294901760
        %5506 = vmatpush1.msra.mxu0 %v5505
        %5507 = vmatprep.subr.mxu0 0.0
        %5508 = vmatpush2.msra.mxu0 0.0
        %5509 = vmatprep.subr.mxu0 0.0
        %5510 = vmatpush2.msra.mxu0 0.0
        %5511 = vmatprep.subr.mxu0 0.0
        %5512 = vmatpush2.msra.mxu0 0.0
        %5513 = vmatprep.subr.mxu0 0.0
        %5514 = vmatpush2.msra.mxu0 0.0
        %5515 = vmatprep.subr.mxu0 0.0
        %5516 = vmatpush2.msra.mxu0 0.0
        %5517 = vmatprep.subr.mxu0 0.0
        %5518 = vmatpush2.msra.mxu0 0.0
        %5519 = vmatprep.subr.mxu0 0.0
        %5520 = vmatpush2.msra.mxu0 0.0
        %5521 = vmatprep.subr.mxu0 0.0
        %5522 = vmatpush2.msra.mxu0 0.0
        %5523 = vmatprep.subr.mxu0 0.0
        %5524 = vmatpush2.msra.mxu0 0.0
        %5525 = vmatprep.subr.mxu0 0.0
        %5526 = vmatpush2.msra.mxu0 0.0
        %5527 = vmatprep.subr.mxu0 0.0
        %5528 = vmatpush2.msra.mxu0 0.0
        %5529 = vmatprep.subr.mxu0 0.0
        %5530 = vmatpush2.msra.mxu0 0.0
        %5531 = vmatprep.subr.mxu0 0.0
        %5532 = vmatpush2.msra.mxu0 0.0
        %5533 = vmatprep.subr.mxu0 0.0
        %5534 = vmatpush2.msra.mxu0 0.0
        %5535 = vmatprep.subr.mxu0 0.0
        %5536 = vmatpush2.msra.mxu0 0.0
        %5537 = vmatprep.subr.mxu0 0.0
        %5538 = vmatpush2.msra.mxu0 0.0
        %5539 = vmatprep.mubr.f32.mxu0 0.0
        %v5540 = vand.u32 %v4135, 4294901760
        %5541 = vmatmul.mubr.f32.gmra.mxu0 %v5540
        %v5542 = vpop.f32.mrf.mxu0
        %v5543 = vadd.f32 %v5218, %v5542
        %v5544 = vpop.f32.mrf.mxu0
        %5545 = vmatprep.mubr.f32.mxu0 0.0
        %v5546 = vand.u32 %v4137, 4294901760
        %5547 = vmatmul.mubr.f32.gmra.mxu0 %v5546
        %v5548 = vpop.f32.mrf.mxu0
        %v5549 = vadd.f32 %v5226, %v5548
        %v5550 = vpop.f32.mrf.mxu0
        %5551 = vmatprep.mubr.f32.mxu0 0.0
        %v5552 = vand.u32 %v4139, 4294901760
        %5553 = vmatmul.mubr.f32.gmra.mxu0 %v5552
        %v5554 = vpop.f32.mrf.mxu0
        %v5555 = vadd.f32 %v5234, %v5554
        %v5556 = vpop.f32.mrf.mxu0
        %5557 = vmatprep.mubr.f32.mxu0 0.0
        %v5558 = vand.u32 %v4141, 4294901760
        %5559 = vmatmul.mubr.f32.gmra.mxu0 %v5558
        %v5560 = vpop.f32.mrf.mxu0
        %v5561 = vadd.f32 %v5242, %v5560
        %v5562 = vpop.f32.mrf.mxu0
        %5563 = vmatprep.mubr.f32.mxu0 0.0
        %v5564 = vand.u32 %v4143, 4294901760
        %5565 = vmatmul.mubr.f32.gmra.mxu0 %v5564
        %v5566 = vpop.f32.mrf.mxu0
        %v5567 = vadd.f32 %v5250, %v5566
        %v5568 = vpop.f32.mrf.mxu0
        %5569 = vmatprep.mubr.f32.mxu0 0.0
        %v5570 = vand.u32 %v4145, 4294901760
        %5571 = vmatmul.mubr.f32.gmra.mxu0 %v5570
        %v5572 = vpop.f32.mrf.mxu0
        %v5573 = vadd.f32 %v5258, %v5572
        %v5574 = vpop.f32.mrf.mxu0
        %5575 = vmatprep.mubr.f32.mxu0 0.0
        %v5576 = vand.u32 %v4147, 4294901760
        %5577 = vmatmul.mubr.f32.gmra.mxu0 %v5576
        %v5578 = vpop.f32.mrf.mxu0
        %v5579 = vadd.f32 %v5266, %v5578
        %v5580 = vpop.f32.mrf.mxu0
        %5581 = vmatprep.mubr.f32.mxu0 0.0
        %v5582 = vand.u32 %v4149, 4294901760
        %5583 = vmatmul.mubr.f32.gmra.mxu0 %v5582
        %v5584 = vpop.f32.mrf.mxu0
        %v5585 = vadd.f32 %v5274, %v5584
        %v5586 = vpop.f32.mrf.mxu0
        %5587 = vmatprep.mubr.f32.mxu0 0.0
        %v5588 = vand.u32 %v4151, 4294901760
        %5589 = vmatmul.mubr.f32.gmra.mxu0 %v5588
        %v5590 = vpop.f32.mrf.mxu0
        %v5591 = vadd.f32 %v5282, %v5590
        %v5592 = vpop.f32.mrf.mxu0
        %5593 = vmatprep.mubr.f32.mxu0 0.0
        %v5594 = vand.u32 %v4153, 4294901760
        %5595 = vmatmul.mubr.f32.gmra.mxu0 %v5594
        %v5596 = vpop.f32.mrf.mxu0
        %v5597 = vadd.f32 %v5290, %v5596
        %v5598 = vpop.f32.mrf.mxu0
        %5599 = vmatprep.mubr.f32.mxu0 0.0
        %v5600 = vand.u32 %v4155, 4294901760
        %5601 = vmatmul.mubr.f32.gmra.mxu0 %v5600
        %v5602 = vpop.f32.mrf.mxu0
        %v5603 = vadd.f32 %v5298, %v5602
        %v5604 = vpop.f32.mrf.mxu0
        %5605 = vmatprep.mubr.f32.mxu0 0.0
        %v5606 = vand.u32 %v4157, 4294901760
        %5607 = vmatmul.mubr.f32.gmra.mxu0 %v5606
        %v5608 = vpop.f32.mrf.mxu0
        %v5609 = vadd.f32 %v5306, %v5608
        %v5610 = vpop.f32.mrf.mxu0
        %5611 = vmatprep.mubr.f32.mxu0 0.0
        %v5612 = vand.u32 %v4159, 4294901760
        %5613 = vmatmul.mubr.f32.gmra.mxu0 %v5612
        %v5614 = vpop.f32.mrf.mxu0
        %v5615 = vadd.f32 %v5314, %v5614
        %v5616 = vpop.f32.mrf.mxu0
        %5617 = vmatprep.mubr.f32.mxu0 0.0
        %v5618 = vand.u32 %v4161, 4294901760
        %5619 = vmatmul.mubr.f32.gmra.mxu0 %v5618
        %v5620 = vpop.f32.mrf.mxu0
        %v5621 = vadd.f32 %v5322, %v5620
        %v5622 = vpop.f32.mrf.mxu0
        %5623 = vmatprep.mubr.f32.mxu0 0.0
        %v5624 = vand.u32 %v4163, 4294901760
        %5625 = vmatmul.mubr.f32.gmra.mxu0 %v5624
        %v5626 = vpop.f32.mrf.mxu0
        %v5627 = vadd.f32 %v5330, %v5626
        %v5628 = vpop.f32.mrf.mxu0
        %5629 = vmatprep.mubr.f32.mxu0 0.0
        %v5630 = vand.u32 %v4165, 4294901760
        %5631 = vmatmul.mubr.f32.gmra.mxu0 %v5630
        %v5632 = vpop.f32.mrf.mxu0
        %v5633 = vadd.f32 %v5338, %v5632
        %v5634 = vpop.f32.mrf.mxu0
        %5635 = vmatprep.mubr.f32.mxu0 0.0
        %v5636 = vand.u32 %v4167, 4294901760
        %5637 = vmatmul.mubr.f32.gmra.mxu0 %v5636
        %v5638 = vpop.f32.mrf.mxu0
        %v5639 = vadd.f32 %v5346, %v5638
        %v5640 = vpop.f32.mrf.mxu0
        %5641 = vmatprep.mubr.f32.mxu0 0.0
        %v5642 = vand.u32 %v4169, 4294901760
        %5643 = vmatmul.mubr.f32.gmra.mxu0 %v5642
        %v5644 = vpop.f32.mrf.mxu0
        %v5645 = vadd.f32 %v5354, %v5644
        %v5646 = vpop.f32.mrf.mxu0
        %5647 = vmatprep.mubr.f32.mxu0 0.0
        %v5648 = vand.u32 %v4171, 4294901760
        %5649 = vmatmul.mubr.f32.gmra.mxu0 %v5648
        %v5650 = vpop.f32.mrf.mxu0
        %v5651 = vadd.f32 %v5362, %v5650
        %v5652 = vpop.f32.mrf.mxu0
        %5653 = vmatprep.mubr.f32.mxu0 0.0
        %v5654 = vand.u32 %v4173, 4294901760
        %5655 = vmatmul.mubr.f32.gmra.mxu0 %v5654
        %v5656 = vpop.f32.mrf.mxu0
        %v5657 = vadd.f32 %v5370, %v5656
        %v5658 = vpop.f32.mrf.mxu0
        %5659 = vmatprep.mubr.f32.mxu0 0.0
        %v5660 = vand.u32 %v4175, 4294901760
        %5661 = vmatmul.mubr.f32.gmra.mxu0 %v5660
        %v5662 = vpop.f32.mrf.mxu0
        %v5663 = vadd.f32 %v5378, %v5662
        %v5664 = vpop.f32.mrf.mxu0
        %5665 = vmatprep.mubr.f32.mxu0 0.0
        %v5666 = vand.u32 %v4177, 4294901760
        %5667 = vmatmul.mubr.f32.gmra.mxu0 %v5666
        %v5668 = vpop.f32.mrf.mxu0
        %v5669 = vadd.f32 %v5386, %v5668
        %v5670 = vpop.f32.mrf.mxu0
        %5671 = vmatprep.mubr.f32.mxu0 0.0
        %v5672 = vand.u32 %v4179, 4294901760
        %5673 = vmatmul.mubr.f32.gmra.mxu0 %v5672
        %v5674 = vpop.f32.mrf.mxu0
        %v5675 = vadd.f32 %v5394, %v5674
        %v5676 = vpop.f32.mrf.mxu0
        %5677 = vmatprep.mubr.f32.mxu0 0.0
        %v5678 = vand.u32 %v4181, 4294901760
        %5679 = vmatmul.mubr.f32.gmra.mxu0 %v5678
        %v5680 = vpop.f32.mrf.mxu0
        %v5681 = vadd.f32 %v5402, %v5680
        %v5682 = vpop.f32.mrf.mxu0
        %5683 = vmatprep.mubr.f32.mxu0 0.0
        %v5684 = vand.u32 %v4183, 4294901760
        %5685 = vmatmul.mubr.f32.gmra.mxu0 %v5684
        %v5686 = vpop.f32.mrf.mxu0
        %v5687 = vadd.f32 %v5410, %v5686
        %v5688 = vpop.f32.mrf.mxu0
        %5689 = vmatprep.mubr.f32.mxu0 0.0
        %v5690 = vand.u32 %v4185, 4294901760
        %5691 = vmatmul.mubr.f32.gmra.mxu0 %v5690
        %v5692 = vpop.f32.mrf.mxu0
        %v5693 = vadd.f32 %v5418, %v5692
        %v5694 = vpop.f32.mrf.mxu0
        %5695 = vmatprep.mubr.f32.mxu0 0.0
        %v5696 = vand.u32 %v4187, 4294901760
        %5697 = vmatmul.mubr.f32.gmra.mxu0 %v5696
        %v5698 = vpop.f32.mrf.mxu0
        %v5699 = vadd.f32 %v5426, %v5698
        %v5700 = vpop.f32.mrf.mxu0
        %5701 = vmatprep.mubr.f32.mxu0 0.0
        %v5702 = vand.u32 %v4189, 4294901760
        %5703 = vmatmul.mubr.f32.gmra.mxu0 %v5702
        %v5704 = vpop.f32.mrf.mxu0
        %v5705 = vadd.f32 %v5434, %v5704
        %v5706 = vpop.f32.mrf.mxu0
        %5707 = vmatprep.mubr.f32.mxu0 0.0
        %v5708 = vand.u32 %v4191, 4294901760
        %5709 = vmatmul.mubr.f32.gmra.mxu0 %v5708
        %v5710 = vpop.f32.mrf.mxu0
        %v5711 = vadd.f32 %v5442, %v5710
        %v5712 = vpop.f32.mrf.mxu0
        %5713 = vmatprep.mubr.f32.mxu0 0.0
        %v5714 = vand.u32 %v4193, 4294901760
        %5715 = vmatmul.mubr.f32.gmra.mxu0 %v5714
        %v5716 = vpop.f32.mrf.mxu0
        %v5717 = vadd.f32 %v5450, %v5716
        %v5718 = vpop.f32.mrf.mxu0
        %5719 = vmatprep.mubr.f32.mxu0 0.0
        %v5720 = vand.u32 %v4195, 4294901760
        %5721 = vmatmul.mubr.f32.gmra.mxu0 %v5720
        %v5722 = vpop.f32.mrf.mxu0
        %v5723 = vadd.f32 %v5458, %v5722
        %v5724 = vpop.f32.mrf.mxu0
        %5725 = vmatprep.mubr.f32.mxu0 0.0
        %v5726 = vand.u32 %v4197, 4294901760
        %5727 = vmatmul.mubr.f32.gmra.mxu0 %v5726
        %v5728 = vpop.f32.mrf.mxu0
        %v5729 = vadd.f32 %v5466, %v5728
        %v5730 = vpop.f32.mrf.mxu0
        %5731 = vdwg.mxu0
        %5732 = vmatprep.subr.mxu0 0.0
        %5733 = vmatpush1.msra.mxu0 0.0
        %5734 = vmatprep.subr.mxu0 0.0
        %5735 = vmatpush1.msra.mxu0 0.0
        %5736 = vmatprep.subr.mxu0 0.0
        %5737 = vmatpush1.msra.mxu0 0.0
        %5738 = vmatprep.subr.mxu0 0.0
        %5739 = vmatpush1.msra.mxu0 0.0
        %5740 = vmatprep.subr.mxu0 0.0
        %5741 = vmatpush1.msra.mxu0 0.0
        %5742 = vmatprep.subr.mxu0 0.0
        %5743 = vmatpush1.msra.mxu0 0.0
        %5744 = vmatprep.subr.mxu0 0.0
        %5745 = vmatpush1.msra.mxu0 0.0
        %5746 = vmatprep.subr.mxu0 0.0
        %5747 = vmatpush1.msra.mxu0 0.0
        %5748 = vmatprep.subr.mxu0 0.0
        %5749 = vmatpush1.msra.mxu0 0.0
        %5750 = vmatprep.subr.mxu0 0.0
        %5751 = vmatpush1.msra.mxu0 0.0
        %5752 = vmatprep.subr.mxu0 0.0
        %5753 = vmatpush1.msra.mxu0 0.0
        %5754 = vmatprep.subr.mxu0 0.0
        %5755 = vmatpush1.msra.mxu0 0.0
        %5756 = vmatprep.subr.mxu0 0.0
        %5757 = vmatpush1.msra.mxu0 0.0
        %5758 = vmatprep.subr.mxu0 0.0
        %5759 = vmatpush1.msra.mxu0 0.0
        %5760 = vmatprep.subr.mxu0 0.0
        %v5761 = vand.u32 %v4038, 4294901760
        %5762 = vmatpush1.msra.mxu0 %v5761
        %5763 = vmatprep.subr.mxu0 0.0
        %v5764 = vand.u32 %v4037, 4294901760
        %5765 = vmatpush1.msra.mxu0 %v5764
        %5766 = vmatprep.subr.mxu0 0.0
        %5767 = vmatpush2.msra.mxu0 0.0
        %5768 = vmatprep.subr.mxu0 0.0
        %5769 = vmatpush2.msra.mxu0 0.0
        %5770 = vmatprep.subr.mxu0 0.0
        %5771 = vmatpush2.msra.mxu0 0.0
        %5772 = vmatprep.subr.mxu0 0.0
        %5773 = vmatpush2.msra.mxu0 0.0
        %5774 = vmatprep.subr.mxu0 0.0
        %5775 = vmatpush2.msra.mxu0 0.0
        %5776 = vmatprep.subr.mxu0 0.0
        %5777 = vmatpush2.msra.mxu0 0.0
        %5778 = vmatprep.subr.mxu0 0.0
        %5779 = vmatpush2.msra.mxu0 0.0
        %5780 = vmatprep.subr.mxu0 0.0
        %5781 = vmatpush2.msra.mxu0 0.0
        %5782 = vmatprep.subr.mxu0 0.0
        %5783 = vmatpush2.msra.mxu0 0.0
        %5784 = vmatprep.subr.mxu0 0.0
        %5785 = vmatpush2.msra.mxu0 0.0
        %5786 = vmatprep.subr.mxu0 0.0
        %5787 = vmatpush2.msra.mxu0 0.0
        %5788 = vmatprep.subr.mxu0 0.0
        %5789 = vmatpush2.msra.mxu0 0.0
        %5790 = vmatprep.subr.mxu0 0.0
        %5791 = vmatpush2.msra.mxu0 0.0
        %5792 = vmatprep.subr.mxu0 0.0
        %5793 = vmatpush2.msra.mxu0 0.0
        %5794 = vmatprep.subr.mxu0 0.0
        %5795 = vmatpush2.msra.mxu0 0.0
        %5796 = vmatprep.subr.mxu0 0.0
        %5797 = vmatpush2.msra.mxu0 0.0
        %5798 = vmatprep.mubr.f32.mxu0 0.0
        %v5799 = vand.u32 %v4135, 4294901760
        %5800 = vmatmul.mubr.f32.gmra.mxu0 %v5799
        %v5801 = vpop.f32.mrf.mxu0
        %v5802 = vadd.f32 %v5543, %v5801
        %v5803 = vpop.f32.mrf.mxu0
        %5804 = vmatprep.mubr.f32.mxu0 0.0
        %v5805 = vand.u32 %v4137, 4294901760
        %5806 = vmatmul.mubr.f32.gmra.mxu0 %v5805
        %v5807 = vpop.f32.mrf.mxu0
        %v5808 = vadd.f32 %v5549, %v5807
        %v5809 = vpop.f32.mrf.mxu0
        %5810 = vmatprep.mubr.f32.mxu0 0.0
        %v5811 = vand.u32 %v4139, 4294901760
        %5812 = vmatmul.mubr.f32.gmra.mxu0 %v5811
        %v5813 = vpop.f32.mrf.mxu0
        %v5814 = vadd.f32 %v5555, %v5813
        %v5815 = vpop.f32.mrf.mxu0
        %5816 = vmatprep.mubr.f32.mxu0 0.0
        %v5817 = vand.u32 %v4141, 4294901760
        %5818 = vmatmul.mubr.f32.gmra.mxu0 %v5817
        %v5819 = vpop.f32.mrf.mxu0
        %v5820 = vadd.f32 %v5561, %v5819
        %v5821 = vpop.f32.mrf.mxu0
        %5822 = vmatprep.mubr.f32.mxu0 0.0
        %v5823 = vand.u32 %v4143, 4294901760
        %5824 = vmatmul.mubr.f32.gmra.mxu0 %v5823
        %v5825 = vpop.f32.mrf.mxu0
        %v5826 = vadd.f32 %v5567, %v5825
        %v5827 = vpop.f32.mrf.mxu0
        %5828 = vmatprep.mubr.f32.mxu0 0.0
        %v5829 = vand.u32 %v4145, 4294901760
        %5830 = vmatmul.mubr.f32.gmra.mxu0 %v5829
        %v5831 = vpop.f32.mrf.mxu0
        %v5832 = vadd.f32 %v5573, %v5831
        %v5833 = vpop.f32.mrf.mxu0
        %5834 = vmatprep.mubr.f32.mxu0 0.0
        %v5835 = vand.u32 %v4147, 4294901760
        %5836 = vmatmul.mubr.f32.gmra.mxu0 %v5835
        %v5837 = vpop.f32.mrf.mxu0
        %v5838 = vadd.f32 %v5579, %v5837
        %v5839 = vpop.f32.mrf.mxu0
        %5840 = vmatprep.mubr.f32.mxu0 0.0
        %v5841 = vand.u32 %v4149, 4294901760
        %5842 = vmatmul.mubr.f32.gmra.mxu0 %v5841
        %v5843 = vpop.f32.mrf.mxu0
        %v5844 = vadd.f32 %v5585, %v5843
        %v5845 = vpop.f32.mrf.mxu0
        %5846 = vmatprep.mubr.f32.mxu0 0.0
        %v5847 = vand.u32 %v4151, 4294901760
        %5848 = vmatmul.mubr.f32.gmra.mxu0 %v5847
        %v5849 = vpop.f32.mrf.mxu0
        %v5850 = vadd.f32 %v5591, %v5849
        %v5851 = vpop.f32.mrf.mxu0
        %5852 = vmatprep.mubr.f32.mxu0 0.0
        %v5853 = vand.u32 %v4153, 4294901760
        %5854 = vmatmul.mubr.f32.gmra.mxu0 %v5853
        %v5855 = vpop.f32.mrf.mxu0
        %v5856 = vadd.f32 %v5597, %v5855
        %v5857 = vpop.f32.mrf.mxu0
        %5858 = vmatprep.mubr.f32.mxu0 0.0
        %v5859 = vand.u32 %v4155, 4294901760
        %5860 = vmatmul.mubr.f32.gmra.mxu0 %v5859
        %v5861 = vpop.f32.mrf.mxu0
        %v5862 = vadd.f32 %v5603, %v5861
        %v5863 = vpop.f32.mrf.mxu0
        %5864 = vmatprep.mubr.f32.mxu0 0.0
        %v5865 = vand.u32 %v4157, 4294901760
        %5866 = vmatmul.mubr.f32.gmra.mxu0 %v5865
        %v5867 = vpop.f32.mrf.mxu0
        %v5868 = vadd.f32 %v5609, %v5867
        %v5869 = vpop.f32.mrf.mxu0
        %5870 = vmatprep.mubr.f32.mxu0 0.0
        %v5871 = vand.u32 %v4159, 4294901760
        %5872 = vmatmul.mubr.f32.gmra.mxu0 %v5871
        %v5873 = vpop.f32.mrf.mxu0
        %v5874 = vadd.f32 %v5615, %v5873
        %v5875 = vpop.f32.mrf.mxu0
        %5876 = vmatprep.mubr.f32.mxu0 0.0
        %v5877 = vand.u32 %v4161, 4294901760
        %5878 = vmatmul.mubr.f32.gmra.mxu0 %v5877
        %v5879 = vpop.f32.mrf.mxu0
        %v5880 = vadd.f32 %v5621, %v5879
        %v5881 = vpop.f32.mrf.mxu0
        %5882 = vmatprep.mubr.f32.mxu0 0.0
        %v5883 = vand.u32 %v4163, 4294901760
        %5884 = vmatmul.mubr.f32.gmra.mxu0 %v5883
        %v5885 = vpop.f32.mrf.mxu0
        %v5886 = vadd.f32 %v5627, %v5885
        %v5887 = vpop.f32.mrf.mxu0
        %5888 = vmatprep.mubr.f32.mxu0 0.0
        %v5889 = vand.u32 %v4165, 4294901760
        %5890 = vmatmul.mubr.f32.gmra.mxu0 %v5889
        %v5891 = vpop.f32.mrf.mxu0
        %v5892 = vadd.f32 %v5633, %v5891
        %v5893 = vpop.f32.mrf.mxu0
        %5894 = vmatprep.mubr.f32.mxu0 0.0
        %v5895 = vand.u32 %v4167, 4294901760
        %5896 = vmatmul.mubr.f32.gmra.mxu0 %v5895
        %v5897 = vpop.f32.mrf.mxu0
        %v5898 = vadd.f32 %v5639, %v5897
        %v5899 = vpop.f32.mrf.mxu0
        %5900 = vmatprep.mubr.f32.mxu0 0.0
        %v5901 = vand.u32 %v4169, 4294901760
        %5902 = vmatmul.mubr.f32.gmra.mxu0 %v5901
        %v5903 = vpop.f32.mrf.mxu0
        %v5904 = vadd.f32 %v5645, %v5903
        %v5905 = vpop.f32.mrf.mxu0
        %5906 = vmatprep.mubr.f32.mxu0 0.0
        %v5907 = vand.u32 %v4171, 4294901760
        %5908 = vmatmul.mubr.f32.gmra.mxu0 %v5907
        %v5909 = vpop.f32.mrf.mxu0
        %v5910 = vadd.f32 %v5651, %v5909
        %v5911 = vpop.f32.mrf.mxu0
        %5912 = vmatprep.mubr.f32.mxu0 0.0
        %v5913 = vand.u32 %v4173, 4294901760
        %5914 = vmatmul.mubr.f32.gmra.mxu0 %v5913
        %v5915 = vpop.f32.mrf.mxu0
        %v5916 = vadd.f32 %v5657, %v5915
        %v5917 = vpop.f32.mrf.mxu0
        %5918 = vmatprep.mubr.f32.mxu0 0.0
        %v5919 = vand.u32 %v4175, 4294901760
        %5920 = vmatmul.mubr.f32.gmra.mxu0 %v5919
        %v5921 = vpop.f32.mrf.mxu0
        %v5922 = vadd.f32 %v5663, %v5921
        %v5923 = vpop.f32.mrf.mxu0
        %5924 = vmatprep.mubr.f32.mxu0 0.0
        %v5925 = vand.u32 %v4177, 4294901760
        %5926 = vmatmul.mubr.f32.gmra.mxu0 %v5925
        %v5927 = vpop.f32.mrf.mxu0
        %v5928 = vadd.f32 %v5669, %v5927
        %v5929 = vpop.f32.mrf.mxu0
        %5930 = vmatprep.mubr.f32.mxu0 0.0
        %v5931 = vand.u32 %v4179, 4294901760
        %5932 = vmatmul.mubr.f32.gmra.mxu0 %v5931
        %v5933 = vpop.f32.mrf.mxu0
        %v5934 = vadd.f32 %v5675, %v5933
        %v5935 = vpop.f32.mrf.mxu0
        %5936 = vmatprep.mubr.f32.mxu0 0.0
        %v5937 = vand.u32 %v4181, 4294901760
        %5938 = vmatmul.mubr.f32.gmra.mxu0 %v5937
        %v5939 = vpop.f32.mrf.mxu0
        %v5940 = vadd.f32 %v5681, %v5939
        %v5941 = vpop.f32.mrf.mxu0
        %5942 = vmatprep.mubr.f32.mxu0 0.0
        %v5943 = vand.u32 %v4183, 4294901760
        %5944 = vmatmul.mubr.f32.gmra.mxu0 %v5943
        %v5945 = vpop.f32.mrf.mxu0
        %v5946 = vadd.f32 %v5687, %v5945
        %v5947 = vpop.f32.mrf.mxu0
        %5948 = vmatprep.mubr.f32.mxu0 0.0
        %v5949 = vand.u32 %v4185, 4294901760
        %5950 = vmatmul.mubr.f32.gmra.mxu0 %v5949
        %v5951 = vpop.f32.mrf.mxu0
        %v5952 = vadd.f32 %v5693, %v5951
        %v5953 = vpop.f32.mrf.mxu0
        %5954 = vmatprep.mubr.f32.mxu0 0.0
        %v5955 = vand.u32 %v4187, 4294901760
        %5956 = vmatmul.mubr.f32.gmra.mxu0 %v5955
        %v5957 = vpop.f32.mrf.mxu0
        %v5958 = vadd.f32 %v5699, %v5957
        %v5959 = vpop.f32.mrf.mxu0
        %5960 = vmatprep.mubr.f32.mxu0 0.0
        %v5961 = vand.u32 %v4189, 4294901760
        %5962 = vmatmul.mubr.f32.gmra.mxu0 %v5961
        %v5963 = vpop.f32.mrf.mxu0
        %v5964 = vadd.f32 %v5705, %v5963
        %v5965 = vpop.f32.mrf.mxu0
        %5966 = vmatprep.mubr.f32.mxu0 0.0
        %v5967 = vand.u32 %v4191, 4294901760
        %5968 = vmatmul.mubr.f32.gmra.mxu0 %v5967
        %v5969 = vpop.f32.mrf.mxu0
        %v5970 = vadd.f32 %v5711, %v5969
        %v5971 = vpop.f32.mrf.mxu0
        %5972 = vmatprep.mubr.f32.mxu0 0.0
        %v5973 = vand.u32 %v4193, 4294901760
        %5974 = vmatmul.mubr.f32.gmra.mxu0 %v5973
        %v5975 = vpop.f32.mrf.mxu0
        %v5976 = vadd.f32 %v5717, %v5975
        %v5977 = vpop.f32.mrf.mxu0
        %5978 = vmatprep.mubr.f32.mxu0 0.0
        %v5979 = vand.u32 %v4195, 4294901760
        %5980 = vmatmul.mubr.f32.gmra.mxu0 %v5979
        %v5981 = vpop.f32.mrf.mxu0
        %v5982 = vadd.f32 %v5723, %v5981
        %v5983 = vpop.f32.mrf.mxu0
        %5984 = vmatprep.mubr.f32.mxu0 0.0
        %v5985 = vand.u32 %v4197, 4294901760
        %5986 = vmatmul.mubr.f32.gmra.mxu0 %v5985
        %v5987 = vpop.f32.mrf.mxu0
        %v5988 = vadd.f32 %v5729, %v5987
        %v5989 = vpop.f32.mrf.mxu0
        %5990 = vdwg.mxu0
        %s5991 = scalar_lea.vmem %s208, 64 [#allocation7]
        %5992 = vst.msk [vmem:[%s5991] sm:$0xff] %vm2137, %v5802
        %5993 = vst.msk [vmem:[%s5991 + $0x8] sm:$0xff] %vm2137, %v5808
        %5994 = vst.msk [vmem:[%s5991 + $0x10] sm:$0xff] %vm2137, %v5814
        %5995 = vst.msk [vmem:[%s5991 + $0x18] sm:$0xff] %vm2137, %v5820
        %5996 = vst.msk [vmem:[%s5991 + $0x80] sm:$0xff] %vm2137, %v5826
        %5997 = vst.msk [vmem:[%s5991 + $0x88] sm:$0xff] %vm2137, %v5832
        %5998 = vst.msk [vmem:[%s5991 + $0x90] sm:$0xff] %vm2137, %v5838
        %5999 = vst.msk [vmem:[%s5991 + $0x98] sm:$0xff] %vm2137, %v5844
        %6000 = vst.msk [vmem:[%s5991 + $0x100] sm:$0xff] %vm2137, %v5850
        %6001 = vst.msk [vmem:[%s5991 + $0x108] sm:$0xff] %vm2137, %v5856
        %6002 = vst.msk [vmem:[%s5991 + $0x110] sm:$0xff] %vm2137, %v5862
        %6003 = vst.msk [vmem:[%s5991 + $0x118] sm:$0xff] %vm2137, %v5868
        %6004 = vst.msk [vmem:[%s5991 + $0x180] sm:$0xff] %vm2137, %v5874
        %6005 = vst.msk [vmem:[%s5991 + $0x188] sm:$0xff] %vm2137, %v5880
        %6006 = vst.msk [vmem:[%s5991 + $0x190] sm:$0xff] %vm2137, %v5886
        %6007 = vst.msk [vmem:[%s5991 + $0x198] sm:$0xff] %vm2137, %v5892
        %6008 = vst.msk [vmem:[%s5991 + $0x200] sm:$0xff] %vm2137, %v5898
        %6009 = vst.msk [vmem:[%s5991 + $0x208] sm:$0xff] %vm2137, %v5904
        %6010 = vst.msk [vmem:[%s5991 + $0x210] sm:$0xff] %vm2137, %v5910
        %6011 = vst.msk [vmem:[%s5991 + $0x218] sm:$0xff] %vm2137, %v5916
        %6012 = vst.msk [vmem:[%s5991 + $0x280] sm:$0xff] %vm2137, %v5922
        %6013 = vst.msk [vmem:[%s5991 + $0x288] sm:$0xff] %vm2137, %v5928
        %6014 = vst.msk [vmem:[%s5991 + $0x290] sm:$0xff] %vm2137, %v5934
        %6015 = vst.msk [vmem:[%s5991 + $0x298] sm:$0xff] %vm2137, %v5940
        %6016 = vst.msk [vmem:[%s5991 + $0x300] sm:$0xff] %vm2137, %v5946
        %6017 = vst.msk [vmem:[%s5991 + $0x308] sm:$0xff] %vm2137, %v5952
        %6018 = vst.msk [vmem:[%s5991 + $0x310] sm:$0xff] %vm2137, %v5958
        %6019 = vst.msk [vmem:[%s5991 + $0x318] sm:$0xff] %vm2137, %v5964
        %6020 = vst.msk [vmem:[%s5991 + $0x380] sm:$0xff] %vm2137, %v5970
        %6021 = vst.msk [vmem:[%s5991 + $0x388] sm:$0xff] %vm2137, %v5976
        %6022 = vst.msk [vmem:[%s5991 + $0x390] sm:$0xff] %vm2137, %v5982
        %6023 = vst.msk [vmem:[%s5991 + $0x398] sm:$0xff] %vm2137, %v5988
        %v6024 = vld [vmem:[#allocation2] sm:$0xff]
        %v6025 = vld [vmem:[#allocation2 + $0x8] sm:$0xff]
        %6028 = vrot.lane.b32.xlu0 %v6024, 120
        %v6029 = vpop.permute.xlu0 %6028
        %6030 = vrot.lane.b32.xlu0 %v6025, 120
        %v6031 = vpop.permute.xlu0 %6030
        %6034 = vmatprep.subr.mxu0 0.0
        %6035 = vmatpush1.msra.mxu0 0.0
        %6036 = vmatprep.subr.mxu0 0.0
        %6037 = vmatpush1.msra.mxu0 0.0
        %6038 = vmatprep.subr.mxu0 0.0
        %6039 = vmatpush1.msra.mxu0 0.0
        %6040 = vmatprep.subr.mxu0 0.0
        %6041 = vmatpush1.msra.mxu0 0.0
        %6042 = vmatprep.subr.mxu0 0.0
        %6043 = vmatpush1.msra.mxu0 0.0
        %6044 = vmatprep.subr.mxu0 0.0
        %6045 = vmatpush1.msra.mxu0 0.0
        %6046 = vmatprep.subr.mxu0 0.0
        %6047 = vmatpush1.msra.mxu0 0.0
        %6048 = vmatprep.subr.mxu0 0.0
        %6049 = vmatpush1.msra.mxu0 0.0
        %6050 = vmatprep.subr.mxu0 0.0
        %6051 = vmatpush1.msra.mxu0 0.0
        %6052 = vmatprep.subr.mxu0 0.0
        %6053 = vmatpush1.msra.mxu0 0.0
        %6054 = vmatprep.subr.mxu0 0.0
        %6055 = vmatpush1.msra.mxu0 0.0
        %6056 = vmatprep.subr.mxu0 0.0
        %6057 = vmatpush1.msra.mxu0 0.0
        %6058 = vmatprep.subr.mxu0 0.0
        %6059 = vmatpush1.msra.mxu0 0.0
        %6060 = vmatprep.subr.mxu0 0.0
        %6061 = vmatpush1.msra.mxu0 0.0
        %6062 = vmatprep.subr.mxu0 0.0
        %v6063 = vand.u32 %v6031, 4294901760
        %6064 = vmatpush1.msra.mxu0 %v6063
        %6065 = vmatprep.subr.mxu0 0.0
        %v6066 = vand.u32 %v6029, 4294901760
        %6067 = vmatpush1.msra.mxu0 %v6066
        %6068 = vmatprep.subr.mxu0 0.0
        %6069 = vmatpush2.msra.mxu0 0.0
        %6070 = vmatprep.subr.mxu0 0.0
        %6071 = vmatpush2.msra.mxu0 0.0
        %6072 = vmatprep.subr.mxu0 0.0
        %6073 = vmatpush2.msra.mxu0 0.0
        %6074 = vmatprep.subr.mxu0 0.0
        %6075 = vmatpush2.msra.mxu0 0.0
        %6076 = vmatprep.subr.mxu0 0.0
        %6077 = vmatpush2.msra.mxu0 0.0
        %6078 = vmatprep.subr.mxu0 0.0
        %6079 = vmatpush2.msra.mxu0 0.0
        %6080 = vmatprep.subr.mxu0 0.0
        %6081 = vmatpush2.msra.mxu0 0.0
        %6082 = vmatprep.subr.mxu0 0.0
        %6083 = vmatpush2.msra.mxu0 0.0
        %6084 = vmatprep.subr.mxu0 0.0
        %6085 = vmatpush2.msra.mxu0 0.0
        %6086 = vmatprep.subr.mxu0 0.0
        %6087 = vmatpush2.msra.mxu0 0.0
        %6088 = vmatprep.subr.mxu0 0.0
        %6089 = vmatpush2.msra.mxu0 0.0
        %6090 = vmatprep.subr.mxu0 0.0
        %6091 = vmatpush2.msra.mxu0 0.0
        %6092 = vmatprep.subr.mxu0 0.0
        %6093 = vmatpush2.msra.mxu0 0.0
        %6094 = vmatprep.subr.mxu0 0.0
        %6095 = vmatpush2.msra.mxu0 0.0
        %6096 = vmatprep.subr.mxu0 0.0
        %6097 = vmatpush2.msra.mxu0 0.0
        %6098 = vmatprep.subr.mxu0 0.0
        %6099 = vmatpush2.msra.mxu0 0.0
        %6100 = vmatprep.mubr.f32.mxu0 0.0
        %v6101 = vand.u32 %v4135, 4294901760
        %v6102 = vsub.f32 %v4135, %v6101
        %v6103 = vand.u32 %v6102, 4294901760
        %v6104 = vsub.f32 %v6102, %v6103
        %v6105 = vand.u32 %v6104, 4294901760
        %6106 = vmatmul.mubr.f32.gmra.mxu0 %v6105
        %v6107 = vpop.f32.mrf.mxu0
        %v6108 = vadd.f32 0.0, %v6107
        %v6109 = vpop.f32.mrf.mxu0
        %6110 = vmatprep.mubr.f32.mxu0 0.0
        %v6111 = vand.u32 %v4137, 4294901760
        %v6112 = vsub.f32 %v4137, %v6111
        %v6113 = vand.u32 %v6112, 4294901760
        %v6114 = vsub.f32 %v6112, %v6113
        %v6115 = vand.u32 %v6114, 4294901760
        %6116 = vmatmul.mubr.f32.gmra.mxu0 %v6115
        %v6117 = vpop.f32.mrf.mxu0
        %v6118 = vadd.f32 0.0, %v6117
        %v6119 = vpop.f32.mrf.mxu0
        %6120 = vmatprep.mubr.f32.mxu0 0.0
        %v6121 = vand.u32 %v4139, 4294901760
        %v6122 = vsub.f32 %v4139, %v6121
        %v6123 = vand.u32 %v6122, 4294901760
        %v6124 = vsub.f32 %v6122, %v6123
        %v6125 = vand.u32 %v6124, 4294901760
        %6126 = vmatmul.mubr.f32.gmra.mxu0 %v6125
        %v6127 = vpop.f32.mrf.mxu0
        %v6128 = vadd.f32 0.0, %v6127
        %v6129 = vpop.f32.mrf.mxu0
        %6130 = vmatprep.mubr.f32.mxu0 0.0
        %v6131 = vand.u32 %v4141, 4294901760
        %v6132 = vsub.f32 %v4141, %v6131
        %v6133 = vand.u32 %v6132, 4294901760
        %v6134 = vsub.f32 %v6132, %v6133
        %v6135 = vand.u32 %v6134, 4294901760
        %6136 = vmatmul.mubr.f32.gmra.mxu0 %v6135
        %v6137 = vpop.f32.mrf.mxu0
        %v6138 = vadd.f32 0.0, %v6137
        %v6139 = vpop.f32.mrf.mxu0
        %6140 = vmatprep.mubr.f32.mxu0 0.0
        %v6141 = vand.u32 %v4143, 4294901760
        %v6142 = vsub.f32 %v4143, %v6141
        %v6143 = vand.u32 %v6142, 4294901760
        %v6144 = vsub.f32 %v6142, %v6143
        %v6145 = vand.u32 %v6144, 4294901760
        %6146 = vmatmul.mubr.f32.gmra.mxu0 %v6145
        %v6147 = vpop.f32.mrf.mxu0
        %v6148 = vadd.f32 0.0, %v6147
        %v6149 = vpop.f32.mrf.mxu0
        %6150 = vmatprep.mubr.f32.mxu0 0.0
        %v6151 = vand.u32 %v4145, 4294901760
        %v6152 = vsub.f32 %v4145, %v6151
        %v6153 = vand.u32 %v6152, 4294901760
        %v6154 = vsub.f32 %v6152, %v6153
        %v6155 = vand.u32 %v6154, 4294901760
        %6156 = vmatmul.mubr.f32.gmra.mxu0 %v6155
        %v6157 = vpop.f32.mrf.mxu0
        %v6158 = vadd.f32 0.0, %v6157
        %v6159 = vpop.f32.mrf.mxu0
        %6160 = vmatprep.mubr.f32.mxu0 0.0
        %v6161 = vand.u32 %v4147, 4294901760
        %v6162 = vsub.f32 %v4147, %v6161
        %v6163 = vand.u32 %v6162, 4294901760
        %v6164 = vsub.f32 %v6162, %v6163
        %v6165 = vand.u32 %v6164, 4294901760
        %6166 = vmatmul.mubr.f32.gmra.mxu0 %v6165
        %v6167 = vpop.f32.mrf.mxu0
        %v6168 = vadd.f32 0.0, %v6167
        %v6169 = vpop.f32.mrf.mxu0
        %6170 = vmatprep.mubr.f32.mxu0 0.0
        %v6171 = vand.u32 %v4149, 4294901760
        %v6172 = vsub.f32 %v4149, %v6171
        %v6173 = vand.u32 %v6172, 4294901760
        %v6174 = vsub.f32 %v6172, %v6173
        %v6175 = vand.u32 %v6174, 4294901760
        %6176 = vmatmul.mubr.f32.gmra.mxu0 %v6175
        %v6177 = vpop.f32.mrf.mxu0
        %v6178 = vadd.f32 0.0, %v6177
        %v6179 = vpop.f32.mrf.mxu0
        %6180 = vmatprep.mubr.f32.mxu0 0.0
        %v6181 = vand.u32 %v4151, 4294901760
        %v6182 = vsub.f32 %v4151, %v6181
        %v6183 = vand.u32 %v6182, 4294901760
        %v6184 = vsub.f32 %v6182, %v6183
        %v6185 = vand.u32 %v6184, 4294901760
        %6186 = vmatmul.mubr.f32.gmra.mxu0 %v6185
        %v6187 = vpop.f32.mrf.mxu0
        %v6188 = vadd.f32 0.0, %v6187
        %v6189 = vpop.f32.mrf.mxu0
        %6190 = vmatprep.mubr.f32.mxu0 0.0
        %v6191 = vand.u32 %v4153, 4294901760
        %v6192 = vsub.f32 %v4153, %v6191
        %v6193 = vand.u32 %v6192, 4294901760
        %v6194 = vsub.f32 %v6192, %v6193
        %v6195 = vand.u32 %v6194, 4294901760
        %6196 = vmatmul.mubr.f32.gmra.mxu0 %v6195
        %v6197 = vpop.f32.mrf.mxu0
        %v6198 = vadd.f32 0.0, %v6197
        %v6199 = vpop.f32.mrf.mxu0
        %6200 = vmatprep.mubr.f32.mxu0 0.0
        %v6201 = vand.u32 %v4155, 4294901760
        %v6202 = vsub.f32 %v4155, %v6201
        %v6203 = vand.u32 %v6202, 4294901760
        %v6204 = vsub.f32 %v6202, %v6203
        %v6205 = vand.u32 %v6204, 4294901760
        %6206 = vmatmul.mubr.f32.gmra.mxu0 %v6205
        %v6207 = vpop.f32.mrf.mxu0
        %v6208 = vadd.f32 0.0, %v6207
        %v6209 = vpop.f32.mrf.mxu0
        %6210 = vmatprep.mubr.f32.mxu0 0.0
        %v6211 = vand.u32 %v4157, 4294901760
        %v6212 = vsub.f32 %v4157, %v6211
        %v6213 = vand.u32 %v6212, 4294901760
        %v6214 = vsub.f32 %v6212, %v6213
        %v6215 = vand.u32 %v6214, 4294901760
        %6216 = vmatmul.mubr.f32.gmra.mxu0 %v6215
        %v6217 = vpop.f32.mrf.mxu0
        %v6218 = vadd.f32 0.0, %v6217
        %v6219 = vpop.f32.mrf.mxu0
        %6220 = vmatprep.mubr.f32.mxu0 0.0
        %v6221 = vand.u32 %v4159, 4294901760
        %v6222 = vsub.f32 %v4159, %v6221
        %v6223 = vand.u32 %v6222, 4294901760
        %v6224 = vsub.f32 %v6222, %v6223
        %v6225 = vand.u32 %v6224, 4294901760
        %6226 = vmatmul.mubr.f32.gmra.mxu0 %v6225
        %v6227 = vpop.f32.mrf.mxu0
        %v6228 = vadd.f32 0.0, %v6227
        %v6229 = vpop.f32.mrf.mxu0
        %6230 = vmatprep.mubr.f32.mxu0 0.0
        %v6231 = vand.u32 %v4161, 4294901760
        %v6232 = vsub.f32 %v4161, %v6231
        %v6233 = vand.u32 %v6232, 4294901760
        %v6234 = vsub.f32 %v6232, %v6233
        %v6235 = vand.u32 %v6234, 4294901760
        %6236 = vmatmul.mubr.f32.gmra.mxu0 %v6235
        %v6237 = vpop.f32.mrf.mxu0
        %v6238 = vadd.f32 0.0, %v6237
        %v6239 = vpop.f32.mrf.mxu0
        %6240 = vmatprep.mubr.f32.mxu0 0.0
        %v6241 = vand.u32 %v4163, 4294901760
        %v6242 = vsub.f32 %v4163, %v6241
        %v6243 = vand.u32 %v6242, 4294901760
        %v6244 = vsub.f32 %v6242, %v6243
        %v6245 = vand.u32 %v6244, 4294901760
        %6246 = vmatmul.mubr.f32.gmra.mxu0 %v6245
        %v6247 = vpop.f32.mrf.mxu0
        %v6248 = vadd.f32 0.0, %v6247
        %v6249 = vpop.f32.mrf.mxu0
        %6250 = vmatprep.mubr.f32.mxu0 0.0
        %v6251 = vand.u32 %v4165, 4294901760
        %v6252 = vsub.f32 %v4165, %v6251
        %v6253 = vand.u32 %v6252, 4294901760
        %v6254 = vsub.f32 %v6252, %v6253
        %v6255 = vand.u32 %v6254, 4294901760
        %6256 = vmatmul.mubr.f32.gmra.mxu0 %v6255
        %v6257 = vpop.f32.mrf.mxu0
        %v6258 = vadd.f32 0.0, %v6257
        %v6259 = vpop.f32.mrf.mxu0
        %6260 = vmatprep.mubr.f32.mxu0 0.0
        %v6261 = vand.u32 %v4167, 4294901760
        %v6262 = vsub.f32 %v4167, %v6261
        %v6263 = vand.u32 %v6262, 4294901760
        %v6264 = vsub.f32 %v6262, %v6263
        %v6265 = vand.u32 %v6264, 4294901760
        %6266 = vmatmul.mubr.f32.gmra.mxu0 %v6265
        %v6267 = vpop.f32.mrf.mxu0
        %v6268 = vadd.f32 0.0, %v6267
        %v6269 = vpop.f32.mrf.mxu0
        %6270 = vmatprep.mubr.f32.mxu0 0.0
        %v6271 = vand.u32 %v4169, 4294901760
        %v6272 = vsub.f32 %v4169, %v6271
        %v6273 = vand.u32 %v6272, 4294901760
        %v6274 = vsub.f32 %v6272, %v6273
        %v6275 = vand.u32 %v6274, 4294901760
        %6276 = vmatmul.mubr.f32.gmra.mxu0 %v6275
        %v6277 = vpop.f32.mrf.mxu0
        %v6278 = vadd.f32 0.0, %v6277
        %v6279 = vpop.f32.mrf.mxu0
        %6280 = vmatprep.mubr.f32.mxu0 0.0
        %v6281 = vand.u32 %v4171, 4294901760
        %v6282 = vsub.f32 %v4171, %v6281
        %v6283 = vand.u32 %v6282, 4294901760
        %v6284 = vsub.f32 %v6282, %v6283
        %v6285 = vand.u32 %v6284, 4294901760
        %6286 = vmatmul.mubr.f32.gmra.mxu0 %v6285
        %v6287 = vpop.f32.mrf.mxu0
        %v6288 = vadd.f32 0.0, %v6287
        %v6289 = vpop.f32.mrf.mxu0
        %6290 = vmatprep.mubr.f32.mxu0 0.0
        %v6291 = vand.u32 %v4173, 4294901760
        %v6292 = vsub.f32 %v4173, %v6291
        %v6293 = vand.u32 %v6292, 4294901760
        %v6294 = vsub.f32 %v6292, %v6293
        %v6295 = vand.u32 %v6294, 4294901760
        %6296 = vmatmul.mubr.f32.gmra.mxu0 %v6295
        %v6297 = vpop.f32.mrf.mxu0
        %v6298 = vadd.f32 0.0, %v6297
        %v6299 = vpop.f32.mrf.mxu0
        %6300 = vmatprep.mubr.f32.mxu0 0.0
        %v6301 = vand.u32 %v4175, 4294901760
        %v6302 = vsub.f32 %v4175, %v6301
        %v6303 = vand.u32 %v6302, 4294901760
        %v6304 = vsub.f32 %v6302, %v6303
        %v6305 = vand.u32 %v6304, 4294901760
        %6306 = vmatmul.mubr.f32.gmra.mxu0 %v6305
        %v6307 = vpop.f32.mrf.mxu0
        %v6308 = vadd.f32 0.0, %v6307
        %v6309 = vpop.f32.mrf.mxu0
        %6310 = vmatprep.mubr.f32.mxu0 0.0
        %v6311 = vand.u32 %v4177, 4294901760
        %v6312 = vsub.f32 %v4177, %v6311
        %v6313 = vand.u32 %v6312, 4294901760
        %v6314 = vsub.f32 %v6312, %v6313
        %v6315 = vand.u32 %v6314, 4294901760
        %6316 = vmatmul.mubr.f32.gmra.mxu0 %v6315
        %v6317 = vpop.f32.mrf.mxu0
        %v6318 = vadd.f32 0.0, %v6317
        %v6319 = vpop.f32.mrf.mxu0
        %6320 = vmatprep.mubr.f32.mxu0 0.0
        %v6321 = vand.u32 %v4179, 4294901760
        %v6322 = vsub.f32 %v4179, %v6321
        %v6323 = vand.u32 %v6322, 4294901760
        %v6324 = vsub.f32 %v6322, %v6323
        %v6325 = vand.u32 %v6324, 4294901760
        %6326 = vmatmul.mubr.f32.gmra.mxu0 %v6325
        %v6327 = vpop.f32.mrf.mxu0
        %v6328 = vadd.f32 0.0, %v6327
        %v6329 = vpop.f32.mrf.mxu0
        %6330 = vmatprep.mubr.f32.mxu0 0.0
        %v6331 = vand.u32 %v4181, 4294901760
        %v6332 = vsub.f32 %v4181, %v6331
        %v6333 = vand.u32 %v6332, 4294901760
        %v6334 = vsub.f32 %v6332, %v6333
        %v6335 = vand.u32 %v6334, 4294901760
        %6336 = vmatmul.mubr.f32.gmra.mxu0 %v6335
        %v6337 = vpop.f32.mrf.mxu0
        %v6338 = vadd.f32 0.0, %v6337
        %v6339 = vpop.f32.mrf.mxu0
        %6340 = vmatprep.mubr.f32.mxu0 0.0
        %v6341 = vand.u32 %v4183, 4294901760
        %v6342 = vsub.f32 %v4183, %v6341
        %v6343 = vand.u32 %v6342, 4294901760
        %v6344 = vsub.f32 %v6342, %v6343
        %v6345 = vand.u32 %v6344, 4294901760
        %6346 = vmatmul.mubr.f32.gmra.mxu0 %v6345
        %v6347 = vpop.f32.mrf.mxu0
        %v6348 = vadd.f32 0.0, %v6347
        %v6349 = vpop.f32.mrf.mxu0
        %6350 = vmatprep.mubr.f32.mxu0 0.0
        %v6351 = vand.u32 %v4185, 4294901760
        %v6352 = vsub.f32 %v4185, %v6351
        %v6353 = vand.u32 %v6352, 4294901760
        %v6354 = vsub.f32 %v6352, %v6353
        %v6355 = vand.u32 %v6354, 4294901760
        %6356 = vmatmul.mubr.f32.gmra.mxu0 %v6355
        %v6357 = vpop.f32.mrf.mxu0
        %v6358 = vadd.f32 0.0, %v6357
        %v6359 = vpop.f32.mrf.mxu0
        %6360 = vmatprep.mubr.f32.mxu0 0.0
        %v6361 = vand.u32 %v4187, 4294901760
        %v6362 = vsub.f32 %v4187, %v6361
        %v6363 = vand.u32 %v6362, 4294901760
        %v6364 = vsub.f32 %v6362, %v6363
        %v6365 = vand.u32 %v6364, 4294901760
        %6366 = vmatmul.mubr.f32.gmra.mxu0 %v6365
        %v6367 = vpop.f32.mrf.mxu0
        %v6368 = vadd.f32 0.0, %v6367
        %v6369 = vpop.f32.mrf.mxu0
        %6370 = vmatprep.mubr.f32.mxu0 0.0
        %v6371 = vand.u32 %v4189, 4294901760
        %v6372 = vsub.f32 %v4189, %v6371
        %v6373 = vand.u32 %v6372, 4294901760
        %v6374 = vsub.f32 %v6372, %v6373
        %v6375 = vand.u32 %v6374, 4294901760
        %6376 = vmatmul.mubr.f32.gmra.mxu0 %v6375
        %v6377 = vpop.f32.mrf.mxu0
        %v6378 = vadd.f32 0.0, %v6377
        %v6379 = vpop.f32.mrf.mxu0
        %6380 = vmatprep.mubr.f32.mxu0 0.0
        %v6381 = vand.u32 %v4191, 4294901760
        %v6382 = vsub.f32 %v4191, %v6381
        %v6383 = vand.u32 %v6382, 4294901760
        %v6384 = vsub.f32 %v6382, %v6383
        %v6385 = vand.u32 %v6384, 4294901760
        %6386 = vmatmul.mubr.f32.gmra.mxu0 %v6385
        %v6387 = vpop.f32.mrf.mxu0
        %v6388 = vadd.f32 0.0, %v6387
        %v6389 = vpop.f32.mrf.mxu0
        %6390 = vmatprep.mubr.f32.mxu0 0.0
        %v6391 = vand.u32 %v4193, 4294901760
        %v6392 = vsub.f32 %v4193, %v6391
        %v6393 = vand.u32 %v6392, 4294901760
        %v6394 = vsub.f32 %v6392, %v6393
        %v6395 = vand.u32 %v6394, 4294901760
        %6396 = vmatmul.mubr.f32.gmra.mxu0 %v6395
        %v6397 = vpop.f32.mrf.mxu0
        %v6398 = vadd.f32 0.0, %v6397
        %v6399 = vpop.f32.mrf.mxu0
        %6400 = vmatprep.mubr.f32.mxu0 0.0
        %v6401 = vand.u32 %v4195, 4294901760
        %v6402 = vsub.f32 %v4195, %v6401
        %v6403 = vand.u32 %v6402, 4294901760
        %v6404 = vsub.f32 %v6402, %v6403
        %v6405 = vand.u32 %v6404, 4294901760
        %6406 = vmatmul.mubr.f32.gmra.mxu0 %v6405
        %v6407 = vpop.f32.mrf.mxu0
        %v6408 = vadd.f32 0.0, %v6407
        %v6409 = vpop.f32.mrf.mxu0
        %6410 = vmatprep.mubr.f32.mxu0 0.0
        %v6411 = vand.u32 %v4197, 4294901760
        %v6412 = vsub.f32 %v4197, %v6411
        %v6413 = vand.u32 %v6412, 4294901760
        %v6414 = vsub.f32 %v6412, %v6413
        %v6415 = vand.u32 %v6414, 4294901760
        %6416 = vmatmul.mubr.f32.gmra.mxu0 %v6415
        %v6417 = vpop.f32.mrf.mxu0
        %v6418 = vadd.f32 0.0, %v6417
        %v6419 = vpop.f32.mrf.mxu0
        %6420 = vdwg.mxu0
        %6421 = vmatprep.subr.mxu0 0.0
        %6422 = vmatpush1.msra.mxu0 0.0
        %6423 = vmatprep.subr.mxu0 0.0
        %6424 = vmatpush1.msra.mxu0 0.0
        %6425 = vmatprep.subr.mxu0 0.0
        %6426 = vmatpush1.msra.mxu0 0.0
        %6427 = vmatprep.subr.mxu0 0.0
        %6428 = vmatpush1.msra.mxu0 0.0
        %6429 = vmatprep.subr.mxu0 0.0
        %6430 = vmatpush1.msra.mxu0 0.0
        %6431 = vmatprep.subr.mxu0 0.0
        %6432 = vmatpush1.msra.mxu0 0.0
        %6433 = vmatprep.subr.mxu0 0.0
        %6434 = vmatpush1.msra.mxu0 0.0
        %6435 = vmatprep.subr.mxu0 0.0
        %6436 = vmatpush1.msra.mxu0 0.0
        %6437 = vmatprep.subr.mxu0 0.0
        %6438 = vmatpush1.msra.mxu0 0.0
        %6439 = vmatprep.subr.mxu0 0.0
        %6440 = vmatpush1.msra.mxu0 0.0
        %6441 = vmatprep.subr.mxu0 0.0
        %6442 = vmatpush1.msra.mxu0 0.0
        %6443 = vmatprep.subr.mxu0 0.0
        %6444 = vmatpush1.msra.mxu0 0.0
        %6445 = vmatprep.subr.mxu0 0.0
        %6446 = vmatpush1.msra.mxu0 0.0
        %6447 = vmatprep.subr.mxu0 0.0
        %6448 = vmatpush1.msra.mxu0 0.0
        %6449 = vmatprep.subr.mxu0 0.0
        %v6450 = vand.u32 %v6031, 4294901760
        %v6451 = vsub.f32 %v6031, %v6450
        %v6452 = vand.u32 %v6451, 4294901760
        %v6453 = vsub.f32 %v6451, %v6452
        %v6454 = vand.u32 %v6453, 4294901760
        %6455 = vmatpush1.msra.mxu0 %v6454
        %6456 = vmatprep.subr.mxu0 0.0
        %v6457 = vand.u32 %v6029, 4294901760
        %v6458 = vsub.f32 %v6029, %v6457
        %v6459 = vand.u32 %v6458, 4294901760
        %v6460 = vsub.f32 %v6458, %v6459
        %v6461 = vand.u32 %v6460, 4294901760
        %6462 = vmatpush1.msra.mxu0 %v6461
        %6463 = vmatprep.subr.mxu0 0.0
        %6464 = vmatpush2.msra.mxu0 0.0
        %6465 = vmatprep.subr.mxu0 0.0
        %6466 = vmatpush2.msra.mxu0 0.0
        %6467 = vmatprep.subr.mxu0 0.0
        %6468 = vmatpush2.msra.mxu0 0.0
        %6469 = vmatprep.subr.mxu0 0.0
        %6470 = vmatpush2.msra.mxu0 0.0
        %6471 = vmatprep.subr.mxu0 0.0
        %6472 = vmatpush2.msra.mxu0 0.0
        %6473 = vmatprep.subr.mxu0 0.0
        %6474 = vmatpush2.msra.mxu0 0.0
        %6475 = vmatprep.subr.mxu0 0.0
        %6476 = vmatpush2.msra.mxu0 0.0
        %6477 = vmatprep.subr.mxu0 0.0
        %6478 = vmatpush2.msra.mxu0 0.0
        %6479 = vmatprep.subr.mxu0 0.0
        %6480 = vmatpush2.msra.mxu0 0.0
        %6481 = vmatprep.subr.mxu0 0.0
        %6482 = vmatpush2.msra.mxu0 0.0
        %6483 = vmatprep.subr.mxu0 0.0
        %6484 = vmatpush2.msra.mxu0 0.0
        %6485 = vmatprep.subr.mxu0 0.0
        %6486 = vmatpush2.msra.mxu0 0.0
        %6487 = vmatprep.subr.mxu0 0.0
        %6488 = vmatpush2.msra.mxu0 0.0
        %6489 = vmatprep.subr.mxu0 0.0
        %6490 = vmatpush2.msra.mxu0 0.0
        %6491 = vmatprep.subr.mxu0 0.0
        %6492 = vmatpush2.msra.mxu0 0.0
        %6493 = vmatprep.subr.mxu0 0.0
        %6494 = vmatpush2.msra.mxu0 0.0
        %6495 = vmatprep.mubr.f32.mxu0 0.0
        %v6496 = vand.u32 %v4135, 4294901760
        %6497 = vmatmul.mubr.f32.gmra.mxu0 %v6496
        %v6498 = vpop.f32.mrf.mxu0
        %v6499 = vadd.f32 %v6108, %v6498
        %v6500 = vpop.f32.mrf.mxu0
        %6501 = vmatprep.mubr.f32.mxu0 0.0
        %v6502 = vand.u32 %v4137, 4294901760
        %6503 = vmatmul.mubr.f32.gmra.mxu0 %v6502
        %v6504 = vpop.f32.mrf.mxu0
        %v6505 = vadd.f32 %v6118, %v6504
        %v6506 = vpop.f32.mrf.mxu0
        %6507 = vmatprep.mubr.f32.mxu0 0.0
        %v6508 = vand.u32 %v4139, 4294901760
        %6509 = vmatmul.mubr.f32.gmra.mxu0 %v6508
        %v6510 = vpop.f32.mrf.mxu0
        %v6511 = vadd.f32 %v6128, %v6510
        %v6512 = vpop.f32.mrf.mxu0
        %6513 = vmatprep.mubr.f32.mxu0 0.0
        %v6514 = vand.u32 %v4141, 4294901760
        %6515 = vmatmul.mubr.f32.gmra.mxu0 %v6514
        %v6516 = vpop.f32.mrf.mxu0
        %v6517 = vadd.f32 %v6138, %v6516
        %v6518 = vpop.f32.mrf.mxu0
        %6519 = vmatprep.mubr.f32.mxu0 0.0
        %v6520 = vand.u32 %v4143, 4294901760
        %6521 = vmatmul.mubr.f32.gmra.mxu0 %v6520
        %v6522 = vpop.f32.mrf.mxu0
        %v6523 = vadd.f32 %v6148, %v6522
        %v6524 = vpop.f32.mrf.mxu0
        %6525 = vmatprep.mubr.f32.mxu0 0.0
        %v6526 = vand.u32 %v4145, 4294901760
        %6527 = vmatmul.mubr.f32.gmra.mxu0 %v6526
        %v6528 = vpop.f32.mrf.mxu0
        %v6529 = vadd.f32 %v6158, %v6528
        %v6530 = vpop.f32.mrf.mxu0
        %6531 = vmatprep.mubr.f32.mxu0 0.0
        %v6532 = vand.u32 %v4147, 4294901760
        %6533 = vmatmul.mubr.f32.gmra.mxu0 %v6532
        %v6534 = vpop.f32.mrf.mxu0
        %v6535 = vadd.f32 %v6168, %v6534
        %v6536 = vpop.f32.mrf.mxu0
        %6537 = vmatprep.mubr.f32.mxu0 0.0
        %v6538 = vand.u32 %v4149, 4294901760
        %6539 = vmatmul.mubr.f32.gmra.mxu0 %v6538
        %v6540 = vpop.f32.mrf.mxu0
        %v6541 = vadd.f32 %v6178, %v6540
        %v6542 = vpop.f32.mrf.mxu0
        %6543 = vmatprep.mubr.f32.mxu0 0.0
        %v6544 = vand.u32 %v4151, 4294901760
        %6545 = vmatmul.mubr.f32.gmra.mxu0 %v6544
        %v6546 = vpop.f32.mrf.mxu0
        %v6547 = vadd.f32 %v6188, %v6546
        %v6548 = vpop.f32.mrf.mxu0
        %6549 = vmatprep.mubr.f32.mxu0 0.0
        %v6550 = vand.u32 %v4153, 4294901760
        %6551 = vmatmul.mubr.f32.gmra.mxu0 %v6550
        %v6552 = vpop.f32.mrf.mxu0
        %v6553 = vadd.f32 %v6198, %v6552
        %v6554 = vpop.f32.mrf.mxu0
        %6555 = vmatprep.mubr.f32.mxu0 0.0
        %v6556 = vand.u32 %v4155, 4294901760
        %6557 = vmatmul.mubr.f32.gmra.mxu0 %v6556
        %v6558 = vpop.f32.mrf.mxu0
        %v6559 = vadd.f32 %v6208, %v6558
        %v6560 = vpop.f32.mrf.mxu0
        %6561 = vmatprep.mubr.f32.mxu0 0.0
        %v6562 = vand.u32 %v4157, 4294901760
        %6563 = vmatmul.mubr.f32.gmra.mxu0 %v6562
        %v6564 = vpop.f32.mrf.mxu0
        %v6565 = vadd.f32 %v6218, %v6564
        %v6566 = vpop.f32.mrf.mxu0
        %6567 = vmatprep.mubr.f32.mxu0 0.0
        %v6568 = vand.u32 %v4159, 4294901760
        %6569 = vmatmul.mubr.f32.gmra.mxu0 %v6568
        %v6570 = vpop.f32.mrf.mxu0
        %v6571 = vadd.f32 %v6228, %v6570
        %v6572 = vpop.f32.mrf.mxu0
        %6573 = vmatprep.mubr.f32.mxu0 0.0
        %v6574 = vand.u32 %v4161, 4294901760
        %6575 = vmatmul.mubr.f32.gmra.mxu0 %v6574
        %v6576 = vpop.f32.mrf.mxu0
        %v6577 = vadd.f32 %v6238, %v6576
        %v6578 = vpop.f32.mrf.mxu0
        %6579 = vmatprep.mubr.f32.mxu0 0.0
        %v6580 = vand.u32 %v4163, 4294901760
        %6581 = vmatmul.mubr.f32.gmra.mxu0 %v6580
        %v6582 = vpop.f32.mrf.mxu0
        %v6583 = vadd.f32 %v6248, %v6582
        %v6584 = vpop.f32.mrf.mxu0
        %6585 = vmatprep.mubr.f32.mxu0 0.0
        %v6586 = vand.u32 %v4165, 4294901760
        %6587 = vmatmul.mubr.f32.gmra.mxu0 %v6586
        %v6588 = vpop.f32.mrf.mxu0
        %v6589 = vadd.f32 %v6258, %v6588
        %v6590 = vpop.f32.mrf.mxu0
        %6591 = vmatprep.mubr.f32.mxu0 0.0
        %v6592 = vand.u32 %v4167, 4294901760
        %6593 = vmatmul.mubr.f32.gmra.mxu0 %v6592
        %v6594 = vpop.f32.mrf.mxu0
        %v6595 = vadd.f32 %v6268, %v6594
        %v6596 = vpop.f32.mrf.mxu0
        %6597 = vmatprep.mubr.f32.mxu0 0.0
        %v6598 = vand.u32 %v4169, 4294901760
        %6599 = vmatmul.mubr.f32.gmra.mxu0 %v6598
        %v6600 = vpop.f32.mrf.mxu0
        %v6601 = vadd.f32 %v6278, %v6600
        %v6602 = vpop.f32.mrf.mxu0
        %6603 = vmatprep.mubr.f32.mxu0 0.0
        %v6604 = vand.u32 %v4171, 4294901760
        %6605 = vmatmul.mubr.f32.gmra.mxu0 %v6604
        %v6606 = vpop.f32.mrf.mxu0
        %v6607 = vadd.f32 %v6288, %v6606
        %v6608 = vpop.f32.mrf.mxu0
        %6609 = vmatprep.mubr.f32.mxu0 0.0
        %v6610 = vand.u32 %v4173, 4294901760
        %6611 = vmatmul.mubr.f32.gmra.mxu0 %v6610
        %v6612 = vpop.f32.mrf.mxu0
        %v6613 = vadd.f32 %v6298, %v6612
        %v6614 = vpop.f32.mrf.mxu0
        %6615 = vmatprep.mubr.f32.mxu0 0.0
        %v6616 = vand.u32 %v4175, 4294901760
        %6617 = vmatmul.mubr.f32.gmra.mxu0 %v6616
        %v6618 = vpop.f32.mrf.mxu0
        %v6619 = vadd.f32 %v6308, %v6618
        %v6620 = vpop.f32.mrf.mxu0
        %6621 = vmatprep.mubr.f32.mxu0 0.0
        %v6622 = vand.u32 %v4177, 4294901760
        %6623 = vmatmul.mubr.f32.gmra.mxu0 %v6622
        %v6624 = vpop.f32.mrf.mxu0
        %v6625 = vadd.f32 %v6318, %v6624
        %v6626 = vpop.f32.mrf.mxu0
        %6627 = vmatprep.mubr.f32.mxu0 0.0
        %v6628 = vand.u32 %v4179, 4294901760
        %6629 = vmatmul.mubr.f32.gmra.mxu0 %v6628
        %v6630 = vpop.f32.mrf.mxu0
        %v6631 = vadd.f32 %v6328, %v6630
        %v6632 = vpop.f32.mrf.mxu0
        %6633 = vmatprep.mubr.f32.mxu0 0.0
        %v6634 = vand.u32 %v4181, 4294901760
        %6635 = vmatmul.mubr.f32.gmra.mxu0 %v6634
        %v6636 = vpop.f32.mrf.mxu0
        %v6637 = vadd.f32 %v6338, %v6636
        %v6638 = vpop.f32.mrf.mxu0
        %6639 = vmatprep.mubr.f32.mxu0 0.0
        %v6640 = vand.u32 %v4183, 4294901760
        %6641 = vmatmul.mubr.f32.gmra.mxu0 %v6640
        %v6642 = vpop.f32.mrf.mxu0
        %v6643 = vadd.f32 %v6348, %v6642
        %v6644 = vpop.f32.mrf.mxu0
        %6645 = vmatprep.mubr.f32.mxu0 0.0
        %v6646 = vand.u32 %v4185, 4294901760
        %6647 = vmatmul.mubr.f32.gmra.mxu0 %v6646
        %v6648 = vpop.f32.mrf.mxu0
        %v6649 = vadd.f32 %v6358, %v6648
        %v6650 = vpop.f32.mrf.mxu0
        %6651 = vmatprep.mubr.f32.mxu0 0.0
        %v6652 = vand.u32 %v4187, 4294901760
        %6653 = vmatmul.mubr.f32.gmra.mxu0 %v6652
        %v6654 = vpop.f32.mrf.mxu0
        %v6655 = vadd.f32 %v6368, %v6654
        %v6656 = vpop.f32.mrf.mxu0
        %6657 = vmatprep.mubr.f32.mxu0 0.0
        %v6658 = vand.u32 %v4189, 4294901760
        %6659 = vmatmul.mubr.f32.gmra.mxu0 %v6658
        %v6660 = vpop.f32.mrf.mxu0
        %v6661 = vadd.f32 %v6378, %v6660
        %v6662 = vpop.f32.mrf.mxu0
        %6663 = vmatprep.mubr.f32.mxu0 0.0
        %v6664 = vand.u32 %v4191, 4294901760
        %6665 = vmatmul.mubr.f32.gmra.mxu0 %v6664
        %v6666 = vpop.f32.mrf.mxu0
        %v6667 = vadd.f32 %v6388, %v6666
        %v6668 = vpop.f32.mrf.mxu0
        %6669 = vmatprep.mubr.f32.mxu0 0.0
        %v6670 = vand.u32 %v4193, 4294901760
        %6671 = vmatmul.mubr.f32.gmra.mxu0 %v6670
        %v6672 = vpop.f32.mrf.mxu0
        %v6673 = vadd.f32 %v6398, %v6672
        %v6674 = vpop.f32.mrf.mxu0
        %6675 = vmatprep.mubr.f32.mxu0 0.0
        %v6676 = vand.u32 %v4195, 4294901760
        %6677 = vmatmul.mubr.f32.gmra.mxu0 %v6676
        %v6678 = vpop.f32.mrf.mxu0
        %v6679 = vadd.f32 %v6408, %v6678
        %v6680 = vpop.f32.mrf.mxu0
        %6681 = vmatprep.mubr.f32.mxu0 0.0
        %v6682 = vand.u32 %v4197, 4294901760
        %6683 = vmatmul.mubr.f32.gmra.mxu0 %v6682
        %v6684 = vpop.f32.mrf.mxu0
        %v6685 = vadd.f32 %v6418, %v6684
        %v6686 = vpop.f32.mrf.mxu0
        %6687 = vdwg.mxu0
        %6688 = vmatprep.subr.mxu0 0.0
        %6689 = vmatpush1.msra.mxu0 0.0
        %6690 = vmatprep.subr.mxu0 0.0
        %6691 = vmatpush1.msra.mxu0 0.0
        %6692 = vmatprep.subr.mxu0 0.0
        %6693 = vmatpush1.msra.mxu0 0.0
        %6694 = vmatprep.subr.mxu0 0.0
        %6695 = vmatpush1.msra.mxu0 0.0
        %6696 = vmatprep.subr.mxu0 0.0
        %6697 = vmatpush1.msra.mxu0 0.0
        %6698 = vmatprep.subr.mxu0 0.0
        %6699 = vmatpush1.msra.mxu0 0.0
        %6700 = vmatprep.subr.mxu0 0.0
        %6701 = vmatpush1.msra.mxu0 0.0
        %6702 = vmatprep.subr.mxu0 0.0
        %6703 = vmatpush1.msra.mxu0 0.0
        %6704 = vmatprep.subr.mxu0 0.0
        %6705 = vmatpush1.msra.mxu0 0.0
        %6706 = vmatprep.subr.mxu0 0.0
        %6707 = vmatpush1.msra.mxu0 0.0
        %6708 = vmatprep.subr.mxu0 0.0
        %6709 = vmatpush1.msra.mxu0 0.0
        %6710 = vmatprep.subr.mxu0 0.0
        %6711 = vmatpush1.msra.mxu0 0.0
        %6712 = vmatprep.subr.mxu0 0.0
        %6713 = vmatpush1.msra.mxu0 0.0
        %6714 = vmatprep.subr.mxu0 0.0
        %6715 = vmatpush1.msra.mxu0 0.0
        %6716 = vmatprep.subr.mxu0 0.0
        %v6717 = vand.u32 %v6031, 4294901760
        %v6718 = vsub.f32 %v6031, %v6717
        %6719 = vmatpush1.msra.mxu0 %v6718
        %6720 = vmatprep.subr.mxu0 0.0
        %v6721 = vand.u32 %v6029, 4294901760
        %v6722 = vsub.f32 %v6029, %v6721
        %6723 = vmatpush1.msra.mxu0 %v6722
        %6724 = vmatprep.subr.mxu0 0.0
        %6725 = vmatpush2.msra.mxu0 0.0
        %6726 = vmatprep.subr.mxu0 0.0
        %6727 = vmatpush2.msra.mxu0 0.0
        %6728 = vmatprep.subr.mxu0 0.0
        %6729 = vmatpush2.msra.mxu0 0.0
        %6730 = vmatprep.subr.mxu0 0.0
        %6731 = vmatpush2.msra.mxu0 0.0
        %6732 = vmatprep.subr.mxu0 0.0
        %6733 = vmatpush2.msra.mxu0 0.0
        %6734 = vmatprep.subr.mxu0 0.0
        %6735 = vmatpush2.msra.mxu0 0.0
        %6736 = vmatprep.subr.mxu0 0.0
        %6737 = vmatpush2.msra.mxu0 0.0
        %6738 = vmatprep.subr.mxu0 0.0
        %6739 = vmatpush2.msra.mxu0 0.0
        %6740 = vmatprep.subr.mxu0 0.0
        %6741 = vmatpush2.msra.mxu0 0.0
        %6742 = vmatprep.subr.mxu0 0.0
        %6743 = vmatpush2.msra.mxu0 0.0
        %6744 = vmatprep.subr.mxu0 0.0
        %6745 = vmatpush2.msra.mxu0 0.0
        %6746 = vmatprep.subr.mxu0 0.0
        %6747 = vmatpush2.msra.mxu0 0.0
        %6748 = vmatprep.subr.mxu0 0.0
        %6749 = vmatpush2.msra.mxu0 0.0
        %6750 = vmatprep.subr.mxu0 0.0
        %6751 = vmatpush2.msra.mxu0 0.0
        %6752 = vmatprep.subr.mxu0 0.0
        %6753 = vmatpush2.msra.mxu0 0.0
        %6754 = vmatprep.subr.mxu0 0.0
        %6755 = vmatpush2.msra.mxu0 0.0
        %6756 = vmatprep.mubr.f32.mxu0 0.0
        %v6757 = vand.u32 %v4135, 4294901760
        %v6758 = vsub.f32 %v4135, %v6757
        %6759 = vmatmul.mubr.f32.gmra.mxu0 %v6758
        %v6760 = vpop.f32.mrf.mxu0
        %v6761 = vadd.f32 %v6499, %v6760
        %v6762 = vpop.f32.mrf.mxu0
        %6763 = vmatprep.mubr.f32.mxu0 0.0
        %v6764 = vand.u32 %v4137, 4294901760
        %v6765 = vsub.f32 %v4137, %v6764
        %6766 = vmatmul.mubr.f32.gmra.mxu0 %v6765
        %v6767 = vpop.f32.mrf.mxu0
        %v6768 = vadd.f32 %v6505, %v6767
        %v6769 = vpop.f32.mrf.mxu0
        %6770 = vmatprep.mubr.f32.mxu0 0.0
        %v6771 = vand.u32 %v4139, 4294901760
        %v6772 = vsub.f32 %v4139, %v6771
        %6773 = vmatmul.mubr.f32.gmra.mxu0 %v6772
        %v6774 = vpop.f32.mrf.mxu0
        %v6775 = vadd.f32 %v6511, %v6774
        %v6776 = vpop.f32.mrf.mxu0
        %6777 = vmatprep.mubr.f32.mxu0 0.0
        %v6778 = vand.u32 %v4141, 4294901760
        %v6779 = vsub.f32 %v4141, %v6778
        %6780 = vmatmul.mubr.f32.gmra.mxu0 %v6779
        %v6781 = vpop.f32.mrf.mxu0
        %v6782 = vadd.f32 %v6517, %v6781
        %v6783 = vpop.f32.mrf.mxu0
        %6784 = vmatprep.mubr.f32.mxu0 0.0
        %v6785 = vand.u32 %v4143, 4294901760
        %v6786 = vsub.f32 %v4143, %v6785
        %6787 = vmatmul.mubr.f32.gmra.mxu0 %v6786
        %v6788 = vpop.f32.mrf.mxu0
        %v6789 = vadd.f32 %v6523, %v6788
        %v6790 = vpop.f32.mrf.mxu0
        %6791 = vmatprep.mubr.f32.mxu0 0.0
        %v6792 = vand.u32 %v4145, 4294901760
        %v6793 = vsub.f32 %v4145, %v6792
        %6794 = vmatmul.mubr.f32.gmra.mxu0 %v6793
        %v6795 = vpop.f32.mrf.mxu0
        %v6796 = vadd.f32 %v6529, %v6795
        %v6797 = vpop.f32.mrf.mxu0
        %6798 = vmatprep.mubr.f32.mxu0 0.0
        %v6799 = vand.u32 %v4147, 4294901760
        %v6800 = vsub.f32 %v4147, %v6799
        %6801 = vmatmul.mubr.f32.gmra.mxu0 %v6800
        %v6802 = vpop.f32.mrf.mxu0
        %v6803 = vadd.f32 %v6535, %v6802
        %v6804 = vpop.f32.mrf.mxu0
        %6805 = vmatprep.mubr.f32.mxu0 0.0
        %v6806 = vand.u32 %v4149, 4294901760
        %v6807 = vsub.f32 %v4149, %v6806
        %6808 = vmatmul.mubr.f32.gmra.mxu0 %v6807
        %v6809 = vpop.f32.mrf.mxu0
        %v6810 = vadd.f32 %v6541, %v6809
        %v6811 = vpop.f32.mrf.mxu0
        %6812 = vmatprep.mubr.f32.mxu0 0.0
        %v6813 = vand.u32 %v4151, 4294901760
        %v6814 = vsub.f32 %v4151, %v6813
        %6815 = vmatmul.mubr.f32.gmra.mxu0 %v6814
        %v6816 = vpop.f32.mrf.mxu0
        %v6817 = vadd.f32 %v6547, %v6816
        %v6818 = vpop.f32.mrf.mxu0
        %6819 = vmatprep.mubr.f32.mxu0 0.0
        %v6820 = vand.u32 %v4153, 4294901760
        %v6821 = vsub.f32 %v4153, %v6820
        %6822 = vmatmul.mubr.f32.gmra.mxu0 %v6821
        %v6823 = vpop.f32.mrf.mxu0
        %v6824 = vadd.f32 %v6553, %v6823
        %v6825 = vpop.f32.mrf.mxu0
        %6826 = vmatprep.mubr.f32.mxu0 0.0
        %v6827 = vand.u32 %v4155, 4294901760
        %v6828 = vsub.f32 %v4155, %v6827
        %6829 = vmatmul.mubr.f32.gmra.mxu0 %v6828
        %v6830 = vpop.f32.mrf.mxu0
        %v6831 = vadd.f32 %v6559, %v6830
        %v6832 = vpop.f32.mrf.mxu0
        %6833 = vmatprep.mubr.f32.mxu0 0.0
        %v6834 = vand.u32 %v4157, 4294901760
        %v6835 = vsub.f32 %v4157, %v6834
        %6836 = vmatmul.mubr.f32.gmra.mxu0 %v6835
        %v6837 = vpop.f32.mrf.mxu0
        %v6838 = vadd.f32 %v6565, %v6837
        %v6839 = vpop.f32.mrf.mxu0
        %6840 = vmatprep.mubr.f32.mxu0 0.0
        %v6841 = vand.u32 %v4159, 4294901760
        %v6842 = vsub.f32 %v4159, %v6841
        %6843 = vmatmul.mubr.f32.gmra.mxu0 %v6842
        %v6844 = vpop.f32.mrf.mxu0
        %v6845 = vadd.f32 %v6571, %v6844
        %v6846 = vpop.f32.mrf.mxu0
        %6847 = vmatprep.mubr.f32.mxu0 0.0
        %v6848 = vand.u32 %v4161, 4294901760
        %v6849 = vsub.f32 %v4161, %v6848
        %6850 = vmatmul.mubr.f32.gmra.mxu0 %v6849
        %v6851 = vpop.f32.mrf.mxu0
        %v6852 = vadd.f32 %v6577, %v6851
        %v6853 = vpop.f32.mrf.mxu0
        %6854 = vmatprep.mubr.f32.mxu0 0.0
        %v6855 = vand.u32 %v4163, 4294901760
        %v6856 = vsub.f32 %v4163, %v6855
        %6857 = vmatmul.mubr.f32.gmra.mxu0 %v6856
        %v6858 = vpop.f32.mrf.mxu0
        %v6859 = vadd.f32 %v6583, %v6858
        %v6860 = vpop.f32.mrf.mxu0
        %6861 = vmatprep.mubr.f32.mxu0 0.0
        %v6862 = vand.u32 %v4165, 4294901760
        %v6863 = vsub.f32 %v4165, %v6862
        %6864 = vmatmul.mubr.f32.gmra.mxu0 %v6863
        %v6865 = vpop.f32.mrf.mxu0
        %v6866 = vadd.f32 %v6589, %v6865
        %v6867 = vpop.f32.mrf.mxu0
        %6868 = vmatprep.mubr.f32.mxu0 0.0
        %v6869 = vand.u32 %v4167, 4294901760
        %v6870 = vsub.f32 %v4167, %v6869
        %6871 = vmatmul.mubr.f32.gmra.mxu0 %v6870
        %v6872 = vpop.f32.mrf.mxu0
        %v6873 = vadd.f32 %v6595, %v6872
        %v6874 = vpop.f32.mrf.mxu0
        %6875 = vmatprep.mubr.f32.mxu0 0.0
        %v6876 = vand.u32 %v4169, 4294901760
        %v6877 = vsub.f32 %v4169, %v6876
        %6878 = vmatmul.mubr.f32.gmra.mxu0 %v6877
        %v6879 = vpop.f32.mrf.mxu0
        %v6880 = vadd.f32 %v6601, %v6879
        %v6881 = vpop.f32.mrf.mxu0
        %6882 = vmatprep.mubr.f32.mxu0 0.0
        %v6883 = vand.u32 %v4171, 4294901760
        %v6884 = vsub.f32 %v4171, %v6883
        %6885 = vmatmul.mubr.f32.gmra.mxu0 %v6884
        %v6886 = vpop.f32.mrf.mxu0
        %v6887 = vadd.f32 %v6607, %v6886
        %v6888 = vpop.f32.mrf.mxu0
        %6889 = vmatprep.mubr.f32.mxu0 0.0
        %v6890 = vand.u32 %v4173, 4294901760
        %v6891 = vsub.f32 %v4173, %v6890
        %6892 = vmatmul.mubr.f32.gmra.mxu0 %v6891
        %v6893 = vpop.f32.mrf.mxu0
        %v6894 = vadd.f32 %v6613, %v6893
        %v6895 = vpop.f32.mrf.mxu0
        %6896 = vmatprep.mubr.f32.mxu0 0.0
        %v6897 = vand.u32 %v4175, 4294901760
        %v6898 = vsub.f32 %v4175, %v6897
        %6899 = vmatmul.mubr.f32.gmra.mxu0 %v6898
        %v6900 = vpop.f32.mrf.mxu0
        %v6901 = vadd.f32 %v6619, %v6900
        %v6902 = vpop.f32.mrf.mxu0
        %6903 = vmatprep.mubr.f32.mxu0 0.0
        %v6904 = vand.u32 %v4177, 4294901760
        %v6905 = vsub.f32 %v4177, %v6904
        %6906 = vmatmul.mubr.f32.gmra.mxu0 %v6905
        %v6907 = vpop.f32.mrf.mxu0
        %v6908 = vadd.f32 %v6625, %v6907
        %v6909 = vpop.f32.mrf.mxu0
        %6910 = vmatprep.mubr.f32.mxu0 0.0
        %v6911 = vand.u32 %v4179, 4294901760
        %v6912 = vsub.f32 %v4179, %v6911
        %6913 = vmatmul.mubr.f32.gmra.mxu0 %v6912
        %v6914 = vpop.f32.mrf.mxu0
        %v6915 = vadd.f32 %v6631, %v6914
        %v6916 = vpop.f32.mrf.mxu0
        %6917 = vmatprep.mubr.f32.mxu0 0.0
        %v6918 = vand.u32 %v4181, 4294901760
        %v6919 = vsub.f32 %v4181, %v6918
        %6920 = vmatmul.mubr.f32.gmra.mxu0 %v6919
        %v6921 = vpop.f32.mrf.mxu0
        %v6922 = vadd.f32 %v6637, %v6921
        %v6923 = vpop.f32.mrf.mxu0
        %6924 = vmatprep.mubr.f32.mxu0 0.0
        %v6925 = vand.u32 %v4183, 4294901760
        %v6926 = vsub.f32 %v4183, %v6925
        %6927 = vmatmul.mubr.f32.gmra.mxu0 %v6926
        %v6928 = vpop.f32.mrf.mxu0
        %v6929 = vadd.f32 %v6643, %v6928
        %v6930 = vpop.f32.mrf.mxu0
        %6931 = vmatprep.mubr.f32.mxu0 0.0
        %v6932 = vand.u32 %v4185, 4294901760
        %v6933 = vsub.f32 %v4185, %v6932
        %6934 = vmatmul.mubr.f32.gmra.mxu0 %v6933
        %v6935 = vpop.f32.mrf.mxu0
        %v6936 = vadd.f32 %v6649, %v6935
        %v6937 = vpop.f32.mrf.mxu0
        %6938 = vmatprep.mubr.f32.mxu0 0.0
        %v6939 = vand.u32 %v4187, 4294901760
        %v6940 = vsub.f32 %v4187, %v6939
        %6941 = vmatmul.mubr.f32.gmra.mxu0 %v6940
        %v6942 = vpop.f32.mrf.mxu0
        %v6943 = vadd.f32 %v6655, %v6942
        %v6944 = vpop.f32.mrf.mxu0
        %6945 = vmatprep.mubr.f32.mxu0 0.0
        %v6946 = vand.u32 %v4189, 4294901760
        %v6947 = vsub.f32 %v4189, %v6946
        %6948 = vmatmul.mubr.f32.gmra.mxu0 %v6947
        %v6949 = vpop.f32.mrf.mxu0
        %v6950 = vadd.f32 %v6661, %v6949
        %v6951 = vpop.f32.mrf.mxu0
        %6952 = vmatprep.mubr.f32.mxu0 0.0
        %v6953 = vand.u32 %v4191, 4294901760
        %v6954 = vsub.f32 %v4191, %v6953
        %6955 = vmatmul.mubr.f32.gmra.mxu0 %v6954
        %v6956 = vpop.f32.mrf.mxu0
        %v6957 = vadd.f32 %v6667, %v6956
        %v6958 = vpop.f32.mrf.mxu0
        %6959 = vmatprep.mubr.f32.mxu0 0.0
        %v6960 = vand.u32 %v4193, 4294901760
        %v6961 = vsub.f32 %v4193, %v6960
        %6962 = vmatmul.mubr.f32.gmra.mxu0 %v6961
        %v6963 = vpop.f32.mrf.mxu0
        %v6964 = vadd.f32 %v6673, %v6963
        %v6965 = vpop.f32.mrf.mxu0
        %6966 = vmatprep.mubr.f32.mxu0 0.0
        %v6967 = vand.u32 %v4195, 4294901760
        %v6968 = vsub.f32 %v4195, %v6967
        %6969 = vmatmul.mubr.f32.gmra.mxu0 %v6968
        %v6970 = vpop.f32.mrf.mxu0
        %v6971 = vadd.f32 %v6679, %v6970
        %v6972 = vpop.f32.mrf.mxu0
        %6973 = vmatprep.mubr.f32.mxu0 0.0
        %v6974 = vand.u32 %v4197, 4294901760
        %v6975 = vsub.f32 %v4197, %v6974
        %6976 = vmatmul.mubr.f32.gmra.mxu0 %v6975
        %v6977 = vpop.f32.mrf.mxu0
        %v6978 = vadd.f32 %v6685, %v6977
        %v6979 = vpop.f32.mrf.mxu0
        %6980 = vdwg.mxu0
        %6981 = vmatprep.subr.mxu0 0.0
        %6982 = vmatpush1.msra.mxu0 0.0
        %6983 = vmatprep.subr.mxu0 0.0
        %6984 = vmatpush1.msra.mxu0 0.0
        %6985 = vmatprep.subr.mxu0 0.0
        %6986 = vmatpush1.msra.mxu0 0.0
        %6987 = vmatprep.subr.mxu0 0.0
        %6988 = vmatpush1.msra.mxu0 0.0
        %6989 = vmatprep.subr.mxu0 0.0
        %6990 = vmatpush1.msra.mxu0 0.0
        %6991 = vmatprep.subr.mxu0 0.0
        %6992 = vmatpush1.msra.mxu0 0.0
        %6993 = vmatprep.subr.mxu0 0.0
        %6994 = vmatpush1.msra.mxu0 0.0
        %6995 = vmatprep.subr.mxu0 0.0
        %6996 = vmatpush1.msra.mxu0 0.0
        %6997 = vmatprep.subr.mxu0 0.0
        %6998 = vmatpush1.msra.mxu0 0.0
        %6999 = vmatprep.subr.mxu0 0.0
        %7000 = vmatpush1.msra.mxu0 0.0
        %7001 = vmatprep.subr.mxu0 0.0
        %7002 = vmatpush1.msra.mxu0 0.0
        %7003 = vmatprep.subr.mxu0 0.0
        %7004 = vmatpush1.msra.mxu0 0.0
        %7005 = vmatprep.subr.mxu0 0.0
        %7006 = vmatpush1.msra.mxu0 0.0
        %7007 = vmatprep.subr.mxu0 0.0
        %7008 = vmatpush1.msra.mxu0 0.0
        %7009 = vmatprep.subr.mxu0 0.0
        %v7010 = vand.u32 %v6031, 4294901760
        %7011 = vmatpush1.msra.mxu0 %v7010
        %7012 = vmatprep.subr.mxu0 0.0
        %v7013 = vand.u32 %v6029, 4294901760
        %7014 = vmatpush1.msra.mxu0 %v7013
        %7015 = vmatprep.subr.mxu0 0.0
        %7016 = vmatpush2.msra.mxu0 0.0
        %7017 = vmatprep.subr.mxu0 0.0
        %7018 = vmatpush2.msra.mxu0 0.0
        %7019 = vmatprep.subr.mxu0 0.0
        %7020 = vmatpush2.msra.mxu0 0.0
        %7021 = vmatprep.subr.mxu0 0.0
        %7022 = vmatpush2.msra.mxu0 0.0
        %7023 = vmatprep.subr.mxu0 0.0
        %7024 = vmatpush2.msra.mxu0 0.0
        %7025 = vmatprep.subr.mxu0 0.0
        %7026 = vmatpush2.msra.mxu0 0.0
        %7027 = vmatprep.subr.mxu0 0.0
        %7028 = vmatpush2.msra.mxu0 0.0
        %7029 = vmatprep.subr.mxu0 0.0
        %7030 = vmatpush2.msra.mxu0 0.0
        %7031 = vmatprep.subr.mxu0 0.0
        %7032 = vmatpush2.msra.mxu0 0.0
        %7033 = vmatprep.subr.mxu0 0.0
        %7034 = vmatpush2.msra.mxu0 0.0
        %7035 = vmatprep.subr.mxu0 0.0
        %7036 = vmatpush2.msra.mxu0 0.0
        %7037 = vmatprep.subr.mxu0 0.0
        %7038 = vmatpush2.msra.mxu0 0.0
        %7039 = vmatprep.subr.mxu0 0.0
        %7040 = vmatpush2.msra.mxu0 0.0
        %7041 = vmatprep.subr.mxu0 0.0
        %7042 = vmatpush2.msra.mxu0 0.0
        %7043 = vmatprep.subr.mxu0 0.0
        %7044 = vmatpush2.msra.mxu0 0.0
        %7045 = vmatprep.subr.mxu0 0.0
        %7046 = vmatpush2.msra.mxu0 0.0
        %7047 = vmatprep.mubr.f32.mxu0 0.0
        %v7048 = vand.u32 %v4135, 4294901760
        %v7049 = vsub.f32 %v4135, %v7048
        %v7050 = vand.u32 %v7049, 4294901760
        %7051 = vmatmul.mubr.f32.gmra.mxu0 %v7050
        %v7052 = vpop.f32.mrf.mxu0
        %v7053 = vadd.f32 %v6761, %v7052
        %v7054 = vpop.f32.mrf.mxu0
        %7055 = vmatprep.mubr.f32.mxu0 0.0
        %v7056 = vand.u32 %v4137, 4294901760
        %v7057 = vsub.f32 %v4137, %v7056
        %v7058 = vand.u32 %v7057, 4294901760
        %7059 = vmatmul.mubr.f32.gmra.mxu0 %v7058
        %v7060 = vpop.f32.mrf.mxu0
        %v7061 = vadd.f32 %v6768, %v7060
        %v7062 = vpop.f32.mrf.mxu0
        %7063 = vmatprep.mubr.f32.mxu0 0.0
        %v7064 = vand.u32 %v4139, 4294901760
        %v7065 = vsub.f32 %v4139, %v7064
        %v7066 = vand.u32 %v7065, 4294901760
        %7067 = vmatmul.mubr.f32.gmra.mxu0 %v7066
        %v7068 = vpop.f32.mrf.mxu0
        %v7069 = vadd.f32 %v6775, %v7068
        %v7070 = vpop.f32.mrf.mxu0
        %7071 = vmatprep.mubr.f32.mxu0 0.0
        %v7072 = vand.u32 %v4141, 4294901760
        %v7073 = vsub.f32 %v4141, %v7072
        %v7074 = vand.u32 %v7073, 4294901760
        %7075 = vmatmul.mubr.f32.gmra.mxu0 %v7074
        %v7076 = vpop.f32.mrf.mxu0
        %v7077 = vadd.f32 %v6782, %v7076
        %v7078 = vpop.f32.mrf.mxu0
        %7079 = vmatprep.mubr.f32.mxu0 0.0
        %v7080 = vand.u32 %v4143, 4294901760
        %v7081 = vsub.f32 %v4143, %v7080
        %v7082 = vand.u32 %v7081, 4294901760
        %7083 = vmatmul.mubr.f32.gmra.mxu0 %v7082
        %v7084 = vpop.f32.mrf.mxu0
        %v7085 = vadd.f32 %v6789, %v7084
        %v7086 = vpop.f32.mrf.mxu0
        %7087 = vmatprep.mubr.f32.mxu0 0.0
        %v7088 = vand.u32 %v4145, 4294901760
        %v7089 = vsub.f32 %v4145, %v7088
        %v7090 = vand.u32 %v7089, 4294901760
        %7091 = vmatmul.mubr.f32.gmra.mxu0 %v7090
        %v7092 = vpop.f32.mrf.mxu0
        %v7093 = vadd.f32 %v6796, %v7092
        %v7094 = vpop.f32.mrf.mxu0
        %7095 = vmatprep.mubr.f32.mxu0 0.0
        %v7096 = vand.u32 %v4147, 4294901760
        %v7097 = vsub.f32 %v4147, %v7096
        %v7098 = vand.u32 %v7097, 4294901760
        %7099 = vmatmul.mubr.f32.gmra.mxu0 %v7098
        %v7100 = vpop.f32.mrf.mxu0
        %v7101 = vadd.f32 %v6803, %v7100
        %v7102 = vpop.f32.mrf.mxu0
        %7103 = vmatprep.mubr.f32.mxu0 0.0
        %v7104 = vand.u32 %v4149, 4294901760
        %v7105 = vsub.f32 %v4149, %v7104
        %v7106 = vand.u32 %v7105, 4294901760
        %7107 = vmatmul.mubr.f32.gmra.mxu0 %v7106
        %v7108 = vpop.f32.mrf.mxu0
        %v7109 = vadd.f32 %v6810, %v7108
        %v7110 = vpop.f32.mrf.mxu0
        %7111 = vmatprep.mubr.f32.mxu0 0.0
        %v7112 = vand.u32 %v4151, 4294901760
        %v7113 = vsub.f32 %v4151, %v7112
        %v7114 = vand.u32 %v7113, 4294901760
        %7115 = vmatmul.mubr.f32.gmra.mxu0 %v7114
        %v7116 = vpop.f32.mrf.mxu0
        %v7117 = vadd.f32 %v6817, %v7116
        %v7118 = vpop.f32.mrf.mxu0
        %7119 = vmatprep.mubr.f32.mxu0 0.0
        %v7120 = vand.u32 %v4153, 4294901760
        %v7121 = vsub.f32 %v4153, %v7120
        %v7122 = vand.u32 %v7121, 4294901760
        %7123 = vmatmul.mubr.f32.gmra.mxu0 %v7122
        %v7124 = vpop.f32.mrf.mxu0
        %v7125 = vadd.f32 %v6824, %v7124
        %v7126 = vpop.f32.mrf.mxu0
        %7127 = vmatprep.mubr.f32.mxu0 0.0
        %v7128 = vand.u32 %v4155, 4294901760
        %v7129 = vsub.f32 %v4155, %v7128
        %v7130 = vand.u32 %v7129, 4294901760
        %7131 = vmatmul.mubr.f32.gmra.mxu0 %v7130
        %v7132 = vpop.f32.mrf.mxu0
        %v7133 = vadd.f32 %v6831, %v7132
        %v7134 = vpop.f32.mrf.mxu0
        %7135 = vmatprep.mubr.f32.mxu0 0.0
        %v7136 = vand.u32 %v4157, 4294901760
        %v7137 = vsub.f32 %v4157, %v7136
        %v7138 = vand.u32 %v7137, 4294901760
        %7139 = vmatmul.mubr.f32.gmra.mxu0 %v7138
        %v7140 = vpop.f32.mrf.mxu0
        %v7141 = vadd.f32 %v6838, %v7140
        %v7142 = vpop.f32.mrf.mxu0
        %7143 = vmatprep.mubr.f32.mxu0 0.0
        %v7144 = vand.u32 %v4159, 4294901760
        %v7145 = vsub.f32 %v4159, %v7144
        %v7146 = vand.u32 %v7145, 4294901760
        %7147 = vmatmul.mubr.f32.gmra.mxu0 %v7146
        %v7148 = vpop.f32.mrf.mxu0
        %v7149 = vadd.f32 %v6845, %v7148
        %v7150 = vpop.f32.mrf.mxu0
        %7151 = vmatprep.mubr.f32.mxu0 0.0
        %v7152 = vand.u32 %v4161, 4294901760
        %v7153 = vsub.f32 %v4161, %v7152
        %v7154 = vand.u32 %v7153, 4294901760
        %7155 = vmatmul.mubr.f32.gmra.mxu0 %v7154
        %v7156 = vpop.f32.mrf.mxu0
        %v7157 = vadd.f32 %v6852, %v7156
        %v7158 = vpop.f32.mrf.mxu0
        %7159 = vmatprep.mubr.f32.mxu0 0.0
        %v7160 = vand.u32 %v4163, 4294901760
        %v7161 = vsub.f32 %v4163, %v7160
        %v7162 = vand.u32 %v7161, 4294901760
        %7163 = vmatmul.mubr.f32.gmra.mxu0 %v7162
        %v7164 = vpop.f32.mrf.mxu0
        %v7165 = vadd.f32 %v6859, %v7164
        %v7166 = vpop.f32.mrf.mxu0
        %7167 = vmatprep.mubr.f32.mxu0 0.0
        %v7168 = vand.u32 %v4165, 4294901760
        %v7169 = vsub.f32 %v4165, %v7168
        %v7170 = vand.u32 %v7169, 4294901760
        %7171 = vmatmul.mubr.f32.gmra.mxu0 %v7170
        %v7172 = vpop.f32.mrf.mxu0
        %v7173 = vadd.f32 %v6866, %v7172
        %v7174 = vpop.f32.mrf.mxu0
        %7175 = vmatprep.mubr.f32.mxu0 0.0
        %v7176 = vand.u32 %v4167, 4294901760
        %v7177 = vsub.f32 %v4167, %v7176
        %v7178 = vand.u32 %v7177, 4294901760
        %7179 = vmatmul.mubr.f32.gmra.mxu0 %v7178
        %v7180 = vpop.f32.mrf.mxu0
        %v7181 = vadd.f32 %v6873, %v7180
        %v7182 = vpop.f32.mrf.mxu0
        %7183 = vmatprep.mubr.f32.mxu0 0.0
        %v7184 = vand.u32 %v4169, 4294901760
        %v7185 = vsub.f32 %v4169, %v7184
        %v7186 = vand.u32 %v7185, 4294901760
        %7187 = vmatmul.mubr.f32.gmra.mxu0 %v7186
        %v7188 = vpop.f32.mrf.mxu0
        %v7189 = vadd.f32 %v6880, %v7188
        %v7190 = vpop.f32.mrf.mxu0
        %7191 = vmatprep.mubr.f32.mxu0 0.0
        %v7192 = vand.u32 %v4171, 4294901760
        %v7193 = vsub.f32 %v4171, %v7192
        %v7194 = vand.u32 %v7193, 4294901760
        %7195 = vmatmul.mubr.f32.gmra.mxu0 %v7194
        %v7196 = vpop.f32.mrf.mxu0
        %v7197 = vadd.f32 %v6887, %v7196
        %v7198 = vpop.f32.mrf.mxu0
        %7199 = vmatprep.mubr.f32.mxu0 0.0
        %v7200 = vand.u32 %v4173, 4294901760
        %v7201 = vsub.f32 %v4173, %v7200
        %v7202 = vand.u32 %v7201, 4294901760
        %7203 = vmatmul.mubr.f32.gmra.mxu0 %v7202
        %v7204 = vpop.f32.mrf.mxu0
        %v7205 = vadd.f32 %v6894, %v7204
        %v7206 = vpop.f32.mrf.mxu0
        %7207 = vmatprep.mubr.f32.mxu0 0.0
        %v7208 = vand.u32 %v4175, 4294901760
        %v7209 = vsub.f32 %v4175, %v7208
        %v7210 = vand.u32 %v7209, 4294901760
        %7211 = vmatmul.mubr.f32.gmra.mxu0 %v7210
        %v7212 = vpop.f32.mrf.mxu0
        %v7213 = vadd.f32 %v6901, %v7212
        %v7214 = vpop.f32.mrf.mxu0
        %7215 = vmatprep.mubr.f32.mxu0 0.0
        %v7216 = vand.u32 %v4177, 4294901760
        %v7217 = vsub.f32 %v4177, %v7216
        %v7218 = vand.u32 %v7217, 4294901760
        %7219 = vmatmul.mubr.f32.gmra.mxu0 %v7218
        %v7220 = vpop.f32.mrf.mxu0
        %v7221 = vadd.f32 %v6908, %v7220
        %v7222 = vpop.f32.mrf.mxu0
        %7223 = vmatprep.mubr.f32.mxu0 0.0
        %v7224 = vand.u32 %v4179, 4294901760
        %v7225 = vsub.f32 %v4179, %v7224
        %v7226 = vand.u32 %v7225, 4294901760
        %7227 = vmatmul.mubr.f32.gmra.mxu0 %v7226
        %v7228 = vpop.f32.mrf.mxu0
        %v7229 = vadd.f32 %v6915, %v7228
        %v7230 = vpop.f32.mrf.mxu0
        %7231 = vmatprep.mubr.f32.mxu0 0.0
        %v7232 = vand.u32 %v4181, 4294901760
        %v7233 = vsub.f32 %v4181, %v7232
        %v7234 = vand.u32 %v7233, 4294901760
        %7235 = vmatmul.mubr.f32.gmra.mxu0 %v7234
        %v7236 = vpop.f32.mrf.mxu0
        %v7237 = vadd.f32 %v6922, %v7236
        %v7238 = vpop.f32.mrf.mxu0
        %7239 = vmatprep.mubr.f32.mxu0 0.0
        %v7240 = vand.u32 %v4183, 4294901760
        %v7241 = vsub.f32 %v4183, %v7240
        %v7242 = vand.u32 %v7241, 4294901760
        %7243 = vmatmul.mubr.f32.gmra.mxu0 %v7242
        %v7244 = vpop.f32.mrf.mxu0
        %v7245 = vadd.f32 %v6929, %v7244
        %v7246 = vpop.f32.mrf.mxu0
        %7247 = vmatprep.mubr.f32.mxu0 0.0
        %v7248 = vand.u32 %v4185, 4294901760
        %v7249 = vsub.f32 %v4185, %v7248
        %v7250 = vand.u32 %v7249, 4294901760
        %7251 = vmatmul.mubr.f32.gmra.mxu0 %v7250
        %v7252 = vpop.f32.mrf.mxu0
        %v7253 = vadd.f32 %v6936, %v7252
        %v7254 = vpop.f32.mrf.mxu0
        %7255 = vmatprep.mubr.f32.mxu0 0.0
        %v7256 = vand.u32 %v4187, 4294901760
        %v7257 = vsub.f32 %v4187, %v7256
        %v7258 = vand.u32 %v7257, 4294901760
        %7259 = vmatmul.mubr.f32.gmra.mxu0 %v7258
        %v7260 = vpop.f32.mrf.mxu0
        %v7261 = vadd.f32 %v6943, %v7260
        %v7262 = vpop.f32.mrf.mxu0
        %7263 = vmatprep.mubr.f32.mxu0 0.0
        %v7264 = vand.u32 %v4189, 4294901760
        %v7265 = vsub.f32 %v4189, %v7264
        %v7266 = vand.u32 %v7265, 4294901760
        %7267 = vmatmul.mubr.f32.gmra.mxu0 %v7266
        %v7268 = vpop.f32.mrf.mxu0
        %v7269 = vadd.f32 %v6950, %v7268
        %v7270 = vpop.f32.mrf.mxu0
        %7271 = vmatprep.mubr.f32.mxu0 0.0
        %v7272 = vand.u32 %v4191, 4294901760
        %v7273 = vsub.f32 %v4191, %v7272
        %v7274 = vand.u32 %v7273, 4294901760
        %7275 = vmatmul.mubr.f32.gmra.mxu0 %v7274
        %v7276 = vpop.f32.mrf.mxu0
        %v7277 = vadd.f32 %v6957, %v7276
        %v7278 = vpop.f32.mrf.mxu0
        %7279 = vmatprep.mubr.f32.mxu0 0.0
        %v7280 = vand.u32 %v4193, 4294901760
        %v7281 = vsub.f32 %v4193, %v7280
        %v7282 = vand.u32 %v7281, 4294901760
        %7283 = vmatmul.mubr.f32.gmra.mxu0 %v7282
        %v7284 = vpop.f32.mrf.mxu0
        %v7285 = vadd.f32 %v6964, %v7284
        %v7286 = vpop.f32.mrf.mxu0
        %7287 = vmatprep.mubr.f32.mxu0 0.0
        %v7288 = vand.u32 %v4195, 4294901760
        %v7289 = vsub.f32 %v4195, %v7288
        %v7290 = vand.u32 %v7289, 4294901760
        %7291 = vmatmul.mubr.f32.gmra.mxu0 %v7290
        %v7292 = vpop.f32.mrf.mxu0
        %v7293 = vadd.f32 %v6971, %v7292
        %v7294 = vpop.f32.mrf.mxu0
        %7295 = vmatprep.mubr.f32.mxu0 0.0
        %v7296 = vand.u32 %v4197, 4294901760
        %v7297 = vsub.f32 %v4197, %v7296
        %v7298 = vand.u32 %v7297, 4294901760
        %7299 = vmatmul.mubr.f32.gmra.mxu0 %v7298
        %v7300 = vpop.f32.mrf.mxu0
        %v7301 = vadd.f32 %v6978, %v7300
        %v7302 = vpop.f32.mrf.mxu0
        %7303 = vdwg.mxu0
        %7304 = vmatprep.subr.mxu0 0.0
        %7305 = vmatpush1.msra.mxu0 0.0
        %7306 = vmatprep.subr.mxu0 0.0
        %7307 = vmatpush1.msra.mxu0 0.0
        %7308 = vmatprep.subr.mxu0 0.0
        %7309 = vmatpush1.msra.mxu0 0.0
        %7310 = vmatprep.subr.mxu0 0.0
        %7311 = vmatpush1.msra.mxu0 0.0
        %7312 = vmatprep.subr.mxu0 0.0
        %7313 = vmatpush1.msra.mxu0 0.0
        %7314 = vmatprep.subr.mxu0 0.0
        %7315 = vmatpush1.msra.mxu0 0.0
        %7316 = vmatprep.subr.mxu0 0.0
        %7317 = vmatpush1.msra.mxu0 0.0
        %7318 = vmatprep.subr.mxu0 0.0
        %7319 = vmatpush1.msra.mxu0 0.0
        %7320 = vmatprep.subr.mxu0 0.0
        %7321 = vmatpush1.msra.mxu0 0.0
        %7322 = vmatprep.subr.mxu0 0.0
        %7323 = vmatpush1.msra.mxu0 0.0
        %7324 = vmatprep.subr.mxu0 0.0
        %7325 = vmatpush1.msra.mxu0 0.0
        %7326 = vmatprep.subr.mxu0 0.0
        %7327 = vmatpush1.msra.mxu0 0.0
        %7328 = vmatprep.subr.mxu0 0.0
        %7329 = vmatpush1.msra.mxu0 0.0
        %7330 = vmatprep.subr.mxu0 0.0
        %7331 = vmatpush1.msra.mxu0 0.0
        %7332 = vmatprep.subr.mxu0 0.0
        %v7333 = vand.u32 %v6031, 4294901760
        %v7334 = vsub.f32 %v6031, %v7333
        %v7335 = vand.u32 %v7334, 4294901760
        %7336 = vmatpush1.msra.mxu0 %v7335
        %7337 = vmatprep.subr.mxu0 0.0
        %v7338 = vand.u32 %v6029, 4294901760
        %v7339 = vsub.f32 %v6029, %v7338
        %v7340 = vand.u32 %v7339, 4294901760
        %7341 = vmatpush1.msra.mxu0 %v7340
        %7342 = vmatprep.subr.mxu0 0.0
        %7343 = vmatpush2.msra.mxu0 0.0
        %7344 = vmatprep.subr.mxu0 0.0
        %7345 = vmatpush2.msra.mxu0 0.0
        %7346 = vmatprep.subr.mxu0 0.0
        %7347 = vmatpush2.msra.mxu0 0.0
        %7348 = vmatprep.subr.mxu0 0.0
        %7349 = vmatpush2.msra.mxu0 0.0
        %7350 = vmatprep.subr.mxu0 0.0
        %7351 = vmatpush2.msra.mxu0 0.0
        %7352 = vmatprep.subr.mxu0 0.0
        %7353 = vmatpush2.msra.mxu0 0.0
        %7354 = vmatprep.subr.mxu0 0.0
        %7355 = vmatpush2.msra.mxu0 0.0
        %7356 = vmatprep.subr.mxu0 0.0
        %7357 = vmatpush2.msra.mxu0 0.0
        %7358 = vmatprep.subr.mxu0 0.0
        %7359 = vmatpush2.msra.mxu0 0.0
        %7360 = vmatprep.subr.mxu0 0.0
        %7361 = vmatpush2.msra.mxu0 0.0
        %7362 = vmatprep.subr.mxu0 0.0
        %7363 = vmatpush2.msra.mxu0 0.0
        %7364 = vmatprep.subr.mxu0 0.0
        %7365 = vmatpush2.msra.mxu0 0.0
        %7366 = vmatprep.subr.mxu0 0.0
        %7367 = vmatpush2.msra.mxu0 0.0
        %7368 = vmatprep.subr.mxu0 0.0
        %7369 = vmatpush2.msra.mxu0 0.0
        %7370 = vmatprep.subr.mxu0 0.0
        %7371 = vmatpush2.msra.mxu0 0.0
        %7372 = vmatprep.subr.mxu0 0.0
        %7373 = vmatpush2.msra.mxu0 0.0
        %7374 = vmatprep.mubr.f32.mxu0 0.0
        %v7375 = vand.u32 %v4135, 4294901760
        %7376 = vmatmul.mubr.f32.gmra.mxu0 %v7375
        %v7377 = vpop.f32.mrf.mxu0
        %v7378 = vadd.f32 %v7053, %v7377
        %v7379 = vpop.f32.mrf.mxu0
        %7380 = vmatprep.mubr.f32.mxu0 0.0
        %v7381 = vand.u32 %v4137, 4294901760
        %7382 = vmatmul.mubr.f32.gmra.mxu0 %v7381
        %v7383 = vpop.f32.mrf.mxu0
        %v7384 = vadd.f32 %v7061, %v7383
        %v7385 = vpop.f32.mrf.mxu0
        %7386 = vmatprep.mubr.f32.mxu0 0.0
        %v7387 = vand.u32 %v4139, 4294901760
        %7388 = vmatmul.mubr.f32.gmra.mxu0 %v7387
        %v7389 = vpop.f32.mrf.mxu0
        %v7390 = vadd.f32 %v7069, %v7389
        %v7391 = vpop.f32.mrf.mxu0
        %7392 = vmatprep.mubr.f32.mxu0 0.0
        %v7393 = vand.u32 %v4141, 4294901760
        %7394 = vmatmul.mubr.f32.gmra.mxu0 %v7393
        %v7395 = vpop.f32.mrf.mxu0
        %v7396 = vadd.f32 %v7077, %v7395
        %v7397 = vpop.f32.mrf.mxu0
        %7398 = vmatprep.mubr.f32.mxu0 0.0
        %v7399 = vand.u32 %v4143, 4294901760
        %7400 = vmatmul.mubr.f32.gmra.mxu0 %v7399
        %v7401 = vpop.f32.mrf.mxu0
        %v7402 = vadd.f32 %v7085, %v7401
        %v7403 = vpop.f32.mrf.mxu0
        %7404 = vmatprep.mubr.f32.mxu0 0.0
        %v7405 = vand.u32 %v4145, 4294901760
        %7406 = vmatmul.mubr.f32.gmra.mxu0 %v7405
        %v7407 = vpop.f32.mrf.mxu0
        %v7408 = vadd.f32 %v7093, %v7407
        %v7409 = vpop.f32.mrf.mxu0
        %7410 = vmatprep.mubr.f32.mxu0 0.0
        %v7411 = vand.u32 %v4147, 4294901760
        %7412 = vmatmul.mubr.f32.gmra.mxu0 %v7411
        %v7413 = vpop.f32.mrf.mxu0
        %v7414 = vadd.f32 %v7101, %v7413
        %v7415 = vpop.f32.mrf.mxu0
        %7416 = vmatprep.mubr.f32.mxu0 0.0
        %v7417 = vand.u32 %v4149, 4294901760
        %7418 = vmatmul.mubr.f32.gmra.mxu0 %v7417
        %v7419 = vpop.f32.mrf.mxu0
        %v7420 = vadd.f32 %v7109, %v7419
        %v7421 = vpop.f32.mrf.mxu0
        %7422 = vmatprep.mubr.f32.mxu0 0.0
        %v7423 = vand.u32 %v4151, 4294901760
        %7424 = vmatmul.mubr.f32.gmra.mxu0 %v7423
        %v7425 = vpop.f32.mrf.mxu0
        %v7426 = vadd.f32 %v7117, %v7425
        %v7427 = vpop.f32.mrf.mxu0
        %7428 = vmatprep.mubr.f32.mxu0 0.0
        %v7429 = vand.u32 %v4153, 4294901760
        %7430 = vmatmul.mubr.f32.gmra.mxu0 %v7429
        %v7431 = vpop.f32.mrf.mxu0
        %v7432 = vadd.f32 %v7125, %v7431
        %v7433 = vpop.f32.mrf.mxu0
        %7434 = vmatprep.mubr.f32.mxu0 0.0
        %v7435 = vand.u32 %v4155, 4294901760
        %7436 = vmatmul.mubr.f32.gmra.mxu0 %v7435
        %v7437 = vpop.f32.mrf.mxu0
        %v7438 = vadd.f32 %v7133, %v7437
        %v7439 = vpop.f32.mrf.mxu0
        %7440 = vmatprep.mubr.f32.mxu0 0.0
        %v7441 = vand.u32 %v4157, 4294901760
        %7442 = vmatmul.mubr.f32.gmra.mxu0 %v7441
        %v7443 = vpop.f32.mrf.mxu0
        %v7444 = vadd.f32 %v7141, %v7443
        %v7445 = vpop.f32.mrf.mxu0
        %7446 = vmatprep.mubr.f32.mxu0 0.0
        %v7447 = vand.u32 %v4159, 4294901760
        %7448 = vmatmul.mubr.f32.gmra.mxu0 %v7447
        %v7449 = vpop.f32.mrf.mxu0
        %v7450 = vadd.f32 %v7149, %v7449
        %v7451 = vpop.f32.mrf.mxu0
        %7452 = vmatprep.mubr.f32.mxu0 0.0
        %v7453 = vand.u32 %v4161, 4294901760
        %7454 = vmatmul.mubr.f32.gmra.mxu0 %v7453
        %v7455 = vpop.f32.mrf.mxu0
        %v7456 = vadd.f32 %v7157, %v7455
        %v7457 = vpop.f32.mrf.mxu0
        %7458 = vmatprep.mubr.f32.mxu0 0.0
        %v7459 = vand.u32 %v4163, 4294901760
        %7460 = vmatmul.mubr.f32.gmra.mxu0 %v7459
        %v7461 = vpop.f32.mrf.mxu0
        %v7462 = vadd.f32 %v7165, %v7461
        %v7463 = vpop.f32.mrf.mxu0
        %7464 = vmatprep.mubr.f32.mxu0 0.0
        %v7465 = vand.u32 %v4165, 4294901760
        %7466 = vmatmul.mubr.f32.gmra.mxu0 %v7465
        %v7467 = vpop.f32.mrf.mxu0
        %v7468 = vadd.f32 %v7173, %v7467
        %v7469 = vpop.f32.mrf.mxu0
        %7470 = vmatprep.mubr.f32.mxu0 0.0
        %v7471 = vand.u32 %v4167, 4294901760
        %7472 = vmatmul.mubr.f32.gmra.mxu0 %v7471
        %v7473 = vpop.f32.mrf.mxu0
        %v7474 = vadd.f32 %v7181, %v7473
        %v7475 = vpop.f32.mrf.mxu0
        %7476 = vmatprep.mubr.f32.mxu0 0.0
        %v7477 = vand.u32 %v4169, 4294901760
        %7478 = vmatmul.mubr.f32.gmra.mxu0 %v7477
        %v7479 = vpop.f32.mrf.mxu0
        %v7480 = vadd.f32 %v7189, %v7479
        %v7481 = vpop.f32.mrf.mxu0
        %7482 = vmatprep.mubr.f32.mxu0 0.0
        %v7483 = vand.u32 %v4171, 4294901760
        %7484 = vmatmul.mubr.f32.gmra.mxu0 %v7483
        %v7485 = vpop.f32.mrf.mxu0
        %v7486 = vadd.f32 %v7197, %v7485
        %v7487 = vpop.f32.mrf.mxu0
        %7488 = vmatprep.mubr.f32.mxu0 0.0
        %v7489 = vand.u32 %v4173, 4294901760
        %7490 = vmatmul.mubr.f32.gmra.mxu0 %v7489
        %v7491 = vpop.f32.mrf.mxu0
        %v7492 = vadd.f32 %v7205, %v7491
        %v7493 = vpop.f32.mrf.mxu0
        %7494 = vmatprep.mubr.f32.mxu0 0.0
        %v7495 = vand.u32 %v4175, 4294901760
        %7496 = vmatmul.mubr.f32.gmra.mxu0 %v7495
        %v7497 = vpop.f32.mrf.mxu0
        %v7498 = vadd.f32 %v7213, %v7497
        %v7499 = vpop.f32.mrf.mxu0
        %7500 = vmatprep.mubr.f32.mxu0 0.0
        %v7501 = vand.u32 %v4177, 4294901760
        %7502 = vmatmul.mubr.f32.gmra.mxu0 %v7501
        %v7503 = vpop.f32.mrf.mxu0
        %v7504 = vadd.f32 %v7221, %v7503
        %v7505 = vpop.f32.mrf.mxu0
        %7506 = vmatprep.mubr.f32.mxu0 0.0
        %v7507 = vand.u32 %v4179, 4294901760
        %7508 = vmatmul.mubr.f32.gmra.mxu0 %v7507
        %v7509 = vpop.f32.mrf.mxu0
        %v7510 = vadd.f32 %v7229, %v7509
        %v7511 = vpop.f32.mrf.mxu0
        %7512 = vmatprep.mubr.f32.mxu0 0.0
        %v7513 = vand.u32 %v4181, 4294901760
        %7514 = vmatmul.mubr.f32.gmra.mxu0 %v7513
        %v7515 = vpop.f32.mrf.mxu0
        %v7516 = vadd.f32 %v7237, %v7515
        %v7517 = vpop.f32.mrf.mxu0
        %7518 = vmatprep.mubr.f32.mxu0 0.0
        %v7519 = vand.u32 %v4183, 4294901760
        %7520 = vmatmul.mubr.f32.gmra.mxu0 %v7519
        %v7521 = vpop.f32.mrf.mxu0
        %v7522 = vadd.f32 %v7245, %v7521
        %v7523 = vpop.f32.mrf.mxu0
        %7524 = vmatprep.mubr.f32.mxu0 0.0
        %v7525 = vand.u32 %v4185, 4294901760
        %7526 = vmatmul.mubr.f32.gmra.mxu0 %v7525
        %v7527 = vpop.f32.mrf.mxu0
        %v7528 = vadd.f32 %v7253, %v7527
        %v7529 = vpop.f32.mrf.mxu0
        %7530 = vmatprep.mubr.f32.mxu0 0.0
        %v7531 = vand.u32 %v4187, 4294901760
        %7532 = vmatmul.mubr.f32.gmra.mxu0 %v7531
        %v7533 = vpop.f32.mrf.mxu0
        %v7534 = vadd.f32 %v7261, %v7533
        %v7535 = vpop.f32.mrf.mxu0
        %7536 = vmatprep.mubr.f32.mxu0 0.0
        %v7537 = vand.u32 %v4189, 4294901760
        %7538 = vmatmul.mubr.f32.gmra.mxu0 %v7537
        %v7539 = vpop.f32.mrf.mxu0
        %v7540 = vadd.f32 %v7269, %v7539
        %v7541 = vpop.f32.mrf.mxu0
        %7542 = vmatprep.mubr.f32.mxu0 0.0
        %v7543 = vand.u32 %v4191, 4294901760
        %7544 = vmatmul.mubr.f32.gmra.mxu0 %v7543
        %v7545 = vpop.f32.mrf.mxu0
        %v7546 = vadd.f32 %v7277, %v7545
        %v7547 = vpop.f32.mrf.mxu0
        %7548 = vmatprep.mubr.f32.mxu0 0.0
        %v7549 = vand.u32 %v4193, 4294901760
        %7550 = vmatmul.mubr.f32.gmra.mxu0 %v7549
        %v7551 = vpop.f32.mrf.mxu0
        %v7552 = vadd.f32 %v7285, %v7551
        %v7553 = vpop.f32.mrf.mxu0
        %7554 = vmatprep.mubr.f32.mxu0 0.0
        %v7555 = vand.u32 %v4195, 4294901760
        %7556 = vmatmul.mubr.f32.gmra.mxu0 %v7555
        %v7557 = vpop.f32.mrf.mxu0
        %v7558 = vadd.f32 %v7293, %v7557
        %v7559 = vpop.f32.mrf.mxu0
        %7560 = vmatprep.mubr.f32.mxu0 0.0
        %v7561 = vand.u32 %v4197, 4294901760
        %7562 = vmatmul.mubr.f32.gmra.mxu0 %v7561
        %v7563 = vpop.f32.mrf.mxu0
        %v7564 = vadd.f32 %v7301, %v7563
        %v7565 = vpop.f32.mrf.mxu0
        %7566 = vdwg.mxu0
        %7567 = vmatprep.subr.mxu0 0.0
        %7568 = vmatpush1.msra.mxu0 0.0
        %7569 = vmatprep.subr.mxu0 0.0
        %7570 = vmatpush1.msra.mxu0 0.0
        %7571 = vmatprep.subr.mxu0 0.0
        %7572 = vmatpush1.msra.mxu0 0.0
        %7573 = vmatprep.subr.mxu0 0.0
        %7574 = vmatpush1.msra.mxu0 0.0
        %7575 = vmatprep.subr.mxu0 0.0
        %7576 = vmatpush1.msra.mxu0 0.0
        %7577 = vmatprep.subr.mxu0 0.0
        %7578 = vmatpush1.msra.mxu0 0.0
        %7579 = vmatprep.subr.mxu0 0.0
        %7580 = vmatpush1.msra.mxu0 0.0
        %7581 = vmatprep.subr.mxu0 0.0
        %7582 = vmatpush1.msra.mxu0 0.0
        %7583 = vmatprep.subr.mxu0 0.0
        %7584 = vmatpush1.msra.mxu0 0.0
        %7585 = vmatprep.subr.mxu0 0.0
        %7586 = vmatpush1.msra.mxu0 0.0
        %7587 = vmatprep.subr.mxu0 0.0
        %7588 = vmatpush1.msra.mxu0 0.0
        %7589 = vmatprep.subr.mxu0 0.0
        %7590 = vmatpush1.msra.mxu0 0.0
        %7591 = vmatprep.subr.mxu0 0.0
        %7592 = vmatpush1.msra.mxu0 0.0
        %7593 = vmatprep.subr.mxu0 0.0
        %7594 = vmatpush1.msra.mxu0 0.0
        %7595 = vmatprep.subr.mxu0 0.0
        %v7596 = vand.u32 %v6031, 4294901760
        %7597 = vmatpush1.msra.mxu0 %v7596
        %7598 = vmatprep.subr.mxu0 0.0
        %v7599 = vand.u32 %v6029, 4294901760
        %7600 = vmatpush1.msra.mxu0 %v7599
        %7601 = vmatprep.subr.mxu0 0.0
        %7602 = vmatpush2.msra.mxu0 0.0
        %7603 = vmatprep.subr.mxu0 0.0
        %7604 = vmatpush2.msra.mxu0 0.0
        %7605 = vmatprep.subr.mxu0 0.0
        %7606 = vmatpush2.msra.mxu0 0.0
        %7607 = vmatprep.subr.mxu0 0.0
        %7608 = vmatpush2.msra.mxu0 0.0
        %7609 = vmatprep.subr.mxu0 0.0
        %7610 = vmatpush2.msra.mxu0 0.0
        %7611 = vmatprep.subr.mxu0 0.0
        %7612 = vmatpush2.msra.mxu0 0.0
        %7613 = vmatprep.subr.mxu0 0.0
        %7614 = vmatpush2.msra.mxu0 0.0
        %7615 = vmatprep.subr.mxu0 0.0
        %7616 = vmatpush2.msra.mxu0 0.0
        %7617 = vmatprep.subr.mxu0 0.0
        %7618 = vmatpush2.msra.mxu0 0.0
        %7619 = vmatprep.subr.mxu0 0.0
        %7620 = vmatpush2.msra.mxu0 0.0
        %7621 = vmatprep.subr.mxu0 0.0
        %7622 = vmatpush2.msra.mxu0 0.0
        %7623 = vmatprep.subr.mxu0 0.0
        %7624 = vmatpush2.msra.mxu0 0.0
        %7625 = vmatprep.subr.mxu0 0.0
        %7626 = vmatpush2.msra.mxu0 0.0
        %7627 = vmatprep.subr.mxu0 0.0
        %7628 = vmatpush2.msra.mxu0 0.0
        %7629 = vmatprep.subr.mxu0 0.0
        %7630 = vmatpush2.msra.mxu0 0.0
        %7631 = vmatprep.subr.mxu0 0.0
        %7632 = vmatpush2.msra.mxu0 0.0
        %7633 = vmatprep.mubr.f32.mxu0 0.0
        %v7634 = vand.u32 %v4135, 4294901760
        %7635 = vmatmul.mubr.f32.gmra.mxu0 %v7634
        %v7636 = vpop.f32.mrf.mxu0
        %v7637 = vadd.f32 %v7378, %v7636
        %v7638 = vpop.f32.mrf.mxu0
        %7639 = vmatprep.mubr.f32.mxu0 0.0
        %v7640 = vand.u32 %v4137, 4294901760
        %7641 = vmatmul.mubr.f32.gmra.mxu0 %v7640
        %v7642 = vpop.f32.mrf.mxu0
        %v7643 = vadd.f32 %v7384, %v7642
        %v7644 = vpop.f32.mrf.mxu0
        %7645 = vmatprep.mubr.f32.mxu0 0.0
        %v7646 = vand.u32 %v4139, 4294901760
        %7647 = vmatmul.mubr.f32.gmra.mxu0 %v7646
        %v7648 = vpop.f32.mrf.mxu0
        %v7649 = vadd.f32 %v7390, %v7648
        %v7650 = vpop.f32.mrf.mxu0
        %7651 = vmatprep.mubr.f32.mxu0 0.0
        %v7652 = vand.u32 %v4141, 4294901760
        %7653 = vmatmul.mubr.f32.gmra.mxu0 %v7652
        %v7654 = vpop.f32.mrf.mxu0
        %v7655 = vadd.f32 %v7396, %v7654
        %v7656 = vpop.f32.mrf.mxu0
        %7657 = vmatprep.mubr.f32.mxu0 0.0
        %v7658 = vand.u32 %v4143, 4294901760
        %7659 = vmatmul.mubr.f32.gmra.mxu0 %v7658
        %v7660 = vpop.f32.mrf.mxu0
        %v7661 = vadd.f32 %v7402, %v7660
        %v7662 = vpop.f32.mrf.mxu0
        %7663 = vmatprep.mubr.f32.mxu0 0.0
        %v7664 = vand.u32 %v4145, 4294901760
        %7665 = vmatmul.mubr.f32.gmra.mxu0 %v7664
        %v7666 = vpop.f32.mrf.mxu0
        %v7667 = vadd.f32 %v7408, %v7666
        %v7668 = vpop.f32.mrf.mxu0
        %7669 = vmatprep.mubr.f32.mxu0 0.0
        %v7670 = vand.u32 %v4147, 4294901760
        %7671 = vmatmul.mubr.f32.gmra.mxu0 %v7670
        %v7672 = vpop.f32.mrf.mxu0
        %v7673 = vadd.f32 %v7414, %v7672
        %v7674 = vpop.f32.mrf.mxu0
        %7675 = vmatprep.mubr.f32.mxu0 0.0
        %v7676 = vand.u32 %v4149, 4294901760
        %7677 = vmatmul.mubr.f32.gmra.mxu0 %v7676
        %v7678 = vpop.f32.mrf.mxu0
        %v7679 = vadd.f32 %v7420, %v7678
        %v7680 = vpop.f32.mrf.mxu0
        %7681 = vmatprep.mubr.f32.mxu0 0.0
        %v7682 = vand.u32 %v4151, 4294901760
        %7683 = vmatmul.mubr.f32.gmra.mxu0 %v7682
        %v7684 = vpop.f32.mrf.mxu0
        %v7685 = vadd.f32 %v7426, %v7684
        %v7686 = vpop.f32.mrf.mxu0
        %7687 = vmatprep.mubr.f32.mxu0 0.0
        %v7688 = vand.u32 %v4153, 4294901760
        %7689 = vmatmul.mubr.f32.gmra.mxu0 %v7688
        %v7690 = vpop.f32.mrf.mxu0
        %v7691 = vadd.f32 %v7432, %v7690
        %v7692 = vpop.f32.mrf.mxu0
        %7693 = vmatprep.mubr.f32.mxu0 0.0
        %v7694 = vand.u32 %v4155, 4294901760
        %7695 = vmatmul.mubr.f32.gmra.mxu0 %v7694
        %v7696 = vpop.f32.mrf.mxu0
        %v7697 = vadd.f32 %v7438, %v7696
        %v7698 = vpop.f32.mrf.mxu0
        %7699 = vmatprep.mubr.f32.mxu0 0.0
        %v7700 = vand.u32 %v4157, 4294901760
        %7701 = vmatmul.mubr.f32.gmra.mxu0 %v7700
        %v7702 = vpop.f32.mrf.mxu0
        %v7703 = vadd.f32 %v7444, %v7702
        %v7704 = vpop.f32.mrf.mxu0
        %7705 = vmatprep.mubr.f32.mxu0 0.0
        %v7706 = vand.u32 %v4159, 4294901760
        %7707 = vmatmul.mubr.f32.gmra.mxu0 %v7706
        %v7708 = vpop.f32.mrf.mxu0
        %v7709 = vadd.f32 %v7450, %v7708
        %v7710 = vpop.f32.mrf.mxu0
        %7711 = vmatprep.mubr.f32.mxu0 0.0
        %v7712 = vand.u32 %v4161, 4294901760
        %7713 = vmatmul.mubr.f32.gmra.mxu0 %v7712
        %v7714 = vpop.f32.mrf.mxu0
        %v7715 = vadd.f32 %v7456, %v7714
        %v7716 = vpop.f32.mrf.mxu0
        %7717 = vmatprep.mubr.f32.mxu0 0.0
        %v7718 = vand.u32 %v4163, 4294901760
        %7719 = vmatmul.mubr.f32.gmra.mxu0 %v7718
        %v7720 = vpop.f32.mrf.mxu0
        %v7721 = vadd.f32 %v7462, %v7720
        %v7722 = vpop.f32.mrf.mxu0
        %7723 = vmatprep.mubr.f32.mxu0 0.0
        %v7724 = vand.u32 %v4165, 4294901760
        %7725 = vmatmul.mubr.f32.gmra.mxu0 %v7724
        %v7726 = vpop.f32.mrf.mxu0
        %v7727 = vadd.f32 %v7468, %v7726
        %v7728 = vpop.f32.mrf.mxu0
        %7729 = vmatprep.mubr.f32.mxu0 0.0
        %v7730 = vand.u32 %v4167, 4294901760
        %7731 = vmatmul.mubr.f32.gmra.mxu0 %v7730
        %v7732 = vpop.f32.mrf.mxu0
        %v7733 = vadd.f32 %v7474, %v7732
        %v7734 = vpop.f32.mrf.mxu0
        %7735 = vmatprep.mubr.f32.mxu0 0.0
        %v7736 = vand.u32 %v4169, 4294901760
        %7737 = vmatmul.mubr.f32.gmra.mxu0 %v7736
        %v7738 = vpop.f32.mrf.mxu0
        %v7739 = vadd.f32 %v7480, %v7738
        %v7740 = vpop.f32.mrf.mxu0
        %7741 = vmatprep.mubr.f32.mxu0 0.0
        %v7742 = vand.u32 %v4171, 4294901760
        %7743 = vmatmul.mubr.f32.gmra.mxu0 %v7742
        %v7744 = vpop.f32.mrf.mxu0
        %v7745 = vadd.f32 %v7486, %v7744
        %v7746 = vpop.f32.mrf.mxu0
        %7747 = vmatprep.mubr.f32.mxu0 0.0
        %v7748 = vand.u32 %v4173, 4294901760
        %7749 = vmatmul.mubr.f32.gmra.mxu0 %v7748
        %v7750 = vpop.f32.mrf.mxu0
        %v7751 = vadd.f32 %v7492, %v7750
        %v7752 = vpop.f32.mrf.mxu0
        %7753 = vmatprep.mubr.f32.mxu0 0.0
        %v7754 = vand.u32 %v4175, 4294901760
        %7755 = vmatmul.mubr.f32.gmra.mxu0 %v7754
        %v7756 = vpop.f32.mrf.mxu0
        %v7757 = vadd.f32 %v7498, %v7756
        %v7758 = vpop.f32.mrf.mxu0
        %7759 = vmatprep.mubr.f32.mxu0 0.0
        %v7760 = vand.u32 %v4177, 4294901760
        %7761 = vmatmul.mubr.f32.gmra.mxu0 %v7760
        %v7762 = vpop.f32.mrf.mxu0
        %v7763 = vadd.f32 %v7504, %v7762
        %v7764 = vpop.f32.mrf.mxu0
        %7765 = vmatprep.mubr.f32.mxu0 0.0
        %v7766 = vand.u32 %v4179, 4294901760
        %7767 = vmatmul.mubr.f32.gmra.mxu0 %v7766
        %v7768 = vpop.f32.mrf.mxu0
        %v7769 = vadd.f32 %v7510, %v7768
        %v7770 = vpop.f32.mrf.mxu0
        %7771 = vmatprep.mubr.f32.mxu0 0.0
        %v7772 = vand.u32 %v4181, 4294901760
        %7773 = vmatmul.mubr.f32.gmra.mxu0 %v7772
        %v7774 = vpop.f32.mrf.mxu0
        %v7775 = vadd.f32 %v7516, %v7774
        %v7776 = vpop.f32.mrf.mxu0
        %7777 = vmatprep.mubr.f32.mxu0 0.0
        %v7778 = vand.u32 %v4183, 4294901760
        %7779 = vmatmul.mubr.f32.gmra.mxu0 %v7778
        %v7780 = vpop.f32.mrf.mxu0
        %v7781 = vadd.f32 %v7522, %v7780
        %v7782 = vpop.f32.mrf.mxu0
        %7783 = vmatprep.mubr.f32.mxu0 0.0
        %v7784 = vand.u32 %v4185, 4294901760
        %7785 = vmatmul.mubr.f32.gmra.mxu0 %v7784
        %v7786 = vpop.f32.mrf.mxu0
        %v7787 = vadd.f32 %v7528, %v7786
        %v7788 = vpop.f32.mrf.mxu0
        %7789 = vmatprep.mubr.f32.mxu0 0.0
        %v7790 = vand.u32 %v4187, 4294901760
        %7791 = vmatmul.mubr.f32.gmra.mxu0 %v7790
        %v7792 = vpop.f32.mrf.mxu0
        %v7793 = vadd.f32 %v7534, %v7792
        %v7794 = vpop.f32.mrf.mxu0
        %7795 = vmatprep.mubr.f32.mxu0 0.0
        %v7796 = vand.u32 %v4189, 4294901760
        %7797 = vmatmul.mubr.f32.gmra.mxu0 %v7796
        %v7798 = vpop.f32.mrf.mxu0
        %v7799 = vadd.f32 %v7540, %v7798
        %v7800 = vpop.f32.mrf.mxu0
        %7801 = vmatprep.mubr.f32.mxu0 0.0
        %v7802 = vand.u32 %v4191, 4294901760
        %7803 = vmatmul.mubr.f32.gmra.mxu0 %v7802
        %v7804 = vpop.f32.mrf.mxu0
        %v7805 = vadd.f32 %v7546, %v7804
        %v7806 = vpop.f32.mrf.mxu0
        %7807 = vmatprep.mubr.f32.mxu0 0.0
        %v7808 = vand.u32 %v4193, 4294901760
        %7809 = vmatmul.mubr.f32.gmra.mxu0 %v7808
        %v7810 = vpop.f32.mrf.mxu0
        %v7811 = vadd.f32 %v7552, %v7810
        %v7812 = vpop.f32.mrf.mxu0
        %7813 = vmatprep.mubr.f32.mxu0 0.0
        %v7814 = vand.u32 %v4195, 4294901760
        %7815 = vmatmul.mubr.f32.gmra.mxu0 %v7814
        %v7816 = vpop.f32.mrf.mxu0
        %v7817 = vadd.f32 %v7558, %v7816
        %v7818 = vpop.f32.mrf.mxu0
        %7819 = vmatprep.mubr.f32.mxu0 0.0
        %v7820 = vand.u32 %v4197, 4294901760
        %7821 = vmatmul.mubr.f32.gmra.mxu0 %v7820
        %v7822 = vpop.f32.mrf.mxu0
        %v7823 = vadd.f32 %v7564, %v7822
        %v7824 = vpop.f32.mrf.mxu0
        %7825 = vdwg.mxu0
        %s7826 = scalar_lea.vmem %s208, 96 [#allocation7]
        %7827 = vst.msk [vmem:[%s7826] sm:$0xff] %vm2137, %v7637
        %7828 = vst.msk [vmem:[%s7826 + $0x8] sm:$0xff] %vm2137, %v7643
        %7829 = vst.msk [vmem:[%s7826 + $0x10] sm:$0xff] %vm2137, %v7649
        %7830 = vst.msk [vmem:[%s7826 + $0x18] sm:$0xff] %vm2137, %v7655
        %7831 = vst.msk [vmem:[%s7826 + $0x80] sm:$0xff] %vm2137, %v7661
        %7832 = vst.msk [vmem:[%s7826 + $0x88] sm:$0xff] %vm2137, %v7667
        %7833 = vst.msk [vmem:[%s7826 + $0x90] sm:$0xff] %vm2137, %v7673
        %7834 = vst.msk [vmem:[%s7826 + $0x98] sm:$0xff] %vm2137, %v7679
        %7835 = vst.msk [vmem:[%s7826 + $0x100] sm:$0xff] %vm2137, %v7685
        %7836 = vst.msk [vmem:[%s7826 + $0x108] sm:$0xff] %vm2137, %v7691
        %7837 = vst.msk [vmem:[%s7826 + $0x110] sm:$0xff] %vm2137, %v7697
        %7838 = vst.msk [vmem:[%s7826 + $0x118] sm:$0xff] %vm2137, %v7703
        %7839 = vst.msk [vmem:[%s7826 + $0x180] sm:$0xff] %vm2137, %v7709
        %7840 = vst.msk [vmem:[%s7826 + $0x188] sm:$0xff] %vm2137, %v7715
        %7841 = vst.msk [vmem:[%s7826 + $0x190] sm:$0xff] %vm2137, %v7721
        %7842 = vst.msk [vmem:[%s7826 + $0x198] sm:$0xff] %vm2137, %v7727
        %7843 = vst.msk [vmem:[%s7826 + $0x200] sm:$0xff] %vm2137, %v7733
        %7844 = vst.msk [vmem:[%s7826 + $0x208] sm:$0xff] %vm2137, %v7739
        %7845 = vst.msk [vmem:[%s7826 + $0x210] sm:$0xff] %vm2137, %v7745
        %7846 = vst.msk [vmem:[%s7826 + $0x218] sm:$0xff] %vm2137, %v7751
        %7847 = vst.msk [vmem:[%s7826 + $0x280] sm:$0xff] %vm2137, %v7757
        %7848 = vst.msk [vmem:[%s7826 + $0x288] sm:$0xff] %vm2137, %v7763
        %7849 = vst.msk [vmem:[%s7826 + $0x290] sm:$0xff] %vm2137, %v7769
        %7850 = vst.msk [vmem:[%s7826 + $0x298] sm:$0xff] %vm2137, %v7775
        %7851 = vst.msk [vmem:[%s7826 + $0x300] sm:$0xff] %vm2137, %v7781
        %7852 = vst.msk [vmem:[%s7826 + $0x308] sm:$0xff] %vm2137, %v7787
        %7853 = vst.msk [vmem:[%s7826 + $0x310] sm:$0xff] %vm2137, %v7793
        %7854 = vst.msk [vmem:[%s7826 + $0x318] sm:$0xff] %vm2137, %v7799
        %7855 = vst.msk [vmem:[%s7826 + $0x380] sm:$0xff] %vm2137, %v7805
        %7856 = vst.msk [vmem:[%s7826 + $0x388] sm:$0xff] %vm2137, %v7811
        %7857 = vst.msk [vmem:[%s7826 + $0x390] sm:$0xff] %vm2137, %v7817
        %7858 = vst.msk [vmem:[%s7826 + $0x398] sm:$0xff] %vm2137, %v7823
        %s7859 = sand.u32 %s102, 1
        %s7860 = scalar_lea.sflag [#allocation4], %s7859
        %s7861 = sand.u32 %s102, 1
        %s7862 = smul.addr %s7861, 1024
        %s7863 = scalar_lea.vmem [#allocation7], %s7862
        // Predicated region
        $region37: #{tpu_custom_call.1} parent=27 // pred_check
          %p7864 = pneg %p112
        $region38: #{tpu_custom_call.1} parent=27 // pred_check_branch
          %7866 = sbr.rel (%p7864) target = $region40
        $region39: #{tpu_custom_call.1} parent=27 // pred_region
          #allocation9 [shape = 'u32[6]{0}', space=smem, size = 0x18, scoped, tag = 'DMA stride descriptor']
          %s7867 = smul.u32 8, %s25
          %s7868 = smul.u32 4, %s27
          %s7869 = smul.u32 4, %s26
          %s7871 = ssub.s32 16384, 16384
          %7872 = vsyncadd %s7860, %s7871
          %s7873 = smul.addr %s7868, 4
          %s7874 = sadd.s32 %s7869, %s7873
          %s7875 = smul.addr %s7867, 32
          %s7876 = sadd.s32 %s7874, %s7875
          %s7877 = smul.addr %s7876, 128
          %s7878 = scalar_lea.hbm %s2, %s7877
          %s7880 = sshll.u32 1, 14
          %s7881 = sxor.u32 4294967295, %s7880
          %s7884 = sshll.u32 7, 18
          %s7885 = sxor.u32 4294967295, %s7884
          %s7886 = sand.u32 0, %s7885
          %s7888 = sor.u32 %s7886, 0
          %s7889 = sshll.u32 %s7863, 4
          %s7890 = int_to_ptr.vmem [resolvable:$true] %s7889
          %7896 = sst [smem:[#allocation9]] 2048
          %s7897 = scalar_lea.smem [#allocation9], 1
          %7898 = sst [smem:[%s7897]] 4096
          %s7899 = scalar_lea.smem [#allocation9], 2
          %7900 = sst [smem:[%s7899]] 16
          %s7901 = scalar_lea.smem [#allocation9], 3
          %7902 = sst [smem:[%s7901]] 128
          %s7903 = scalar_lea.smem [#allocation9], 4
          %7904 = sst [smem:[%s7903]] 128
          %s7905 = scalar_lea.smem [#allocation9], 5
          %7906 = sst [smem:[%s7905]] 8
          %7908 = dma.general %s7890, 16384, %s7878, %s7860, 131072, [#allocation9], %s7888, 0
        $region40: #{tpu_custom_call.1} parent=27 // pred_fallthru
          _
      $region28: #{tpu_custom_call.1} parent=5 // pred_fallthru
        _
      %p7909 = scmp.le.s32.totalorder 2, %s15
      // Predicated region
      $region41: #{tpu_custom_call.1} parent=5 // pred_check
        %p7910 = pneg %p7909
      $region42: #{tpu_custom_call.1} parent=5 // pred_check_branch
        %7912 = sbr.rel (%p7910) target = $region44
      $region43: #{tpu_custom_call.1} parent=5 // pred_region
        %s7913 = ssub.s32 %s15, 2
        // Predicated region
        $region45: #{tpu_custom_call.1} parent=43 // pred_check
          %p7914 = pneg %p118
        $region46: #{tpu_custom_call.1} parent=43 // pred_check_branch
          %7916 = sbr.rel (%p7914) target = $region48
        $region47: #{tpu_custom_call.1} parent=43 // pred_region
          %s7917 = sand.u32 %s103, 1
          %s7918 = scalar_lea.sflag [#allocation4], %s7917
          %s7919 = sand.u32 %s103, 1
          %s7920 = smul.addr %s7919, 1024
          %s7921 = scalar_lea.vmem [#allocation7], %s7920
          %7922 = dma.done %s7918, 16384
        $region48: #{tpu_custom_call.1} parent=43 // pred_fallthru
          _
      $region44: #{tpu_custom_call.1} parent=5 // pred_fallthru
        _
    $region6: #{tpu_custom_call.1} parent=1 // loop_footer
      %s19 = sadd.s32 1, %s15
    $region7: #{tpu_custom_call.1} parent=1 // loop_footer_branch
      %14 = sbr.rel target = $region3
    $region8: #{tpu_custom_call.1} parent=1 // loop_exit
      _
    %7923 = vsyncpa [#allocation3], 1
    %s7924 = scalar_lea.sflag [#allocation3], 1
    %7925 = vsyncpa %s7924, 1
    %7926 = vsyncpa [#allocation6], 1
    %s7927 = scalar_lea.sflag [#allocation6], 1
    %7928 = vsyncpa %s7927, 1
    %7929 = vsyncpa [#allocation4], 1
    %s7930 = scalar_lea.sflag [#allocation4], 1
    %7931 = vsyncpa %s7930, 1

</llo_original>
